<compile_context>
chip_gen: v7x
topology: tpu7x:2x2x1
jax: 0.10.0
libtpu: 0.0.40
codegen_flags: <defaults>
</compile_context>

<pallas_src>
import functools
import math

import jax
import jax.numpy as jnp
from jax.experimental import pallas as pl
from jax.experimental.pallas import tpu as pltpu

MID_CHANNELS = 128
KSIZE = 3
DILATIONS = (1, 2, 5)
BN_EPS = 1e-5
HALO = 8   # zero-pad halo width; max(dilations)=5 rounded up to a sublane tile


# ---------------------------- fused Pallas kernel ----------------------------

def _global_net_kernel(x_ref, in_w_ref, in_b_ref, dw_ref, dscale_ref,
                       dshift_ref, out_w_ref, out_b_ref, o_ref,
                       buf_ref, cat_ref, *, dilations, ksize, hs, ws, halo):
    """Whole globalNet body for one batch image, VMEM resident.

    x_ref:      (1, hs*ws, C0)             downscaled input rows, f32
    in_w_ref:   (C0, mid) bf16             in0 1x1 conv weight
    in_b_ref:   (1, mid) f32               in0 bias
    dw_ref:     (L, K, K*mid, mid) bf16    dilated conv weights, kw-restacked
    dscale_ref: (L, 1, mid) f32            folded BN scale
    dshift_ref: (L, 1, mid) f32            folded BN shift (conv bias included)
    out_w_ref:  (mid, mid) bf16            out0 weight, lane-padded to mid
    out_b_ref:  (1, mid) f32               out0 bias, lane-padded
    o_ref:      (1, hs*ws, mid) bf16       sigmoid output (lane-dense)
    buf_ref:    (hs+2P, ws+2P, mid) bf16   zero-halo activation scratch
    cat_ref:    (hs+2P, ws, K*mid) bf16    column-shift-concatenated scratch
    """
    mid = in_w_ref.shape[1]
    M = hs * ws
    P = halo

    # --- zero only the halo strips (interior is fully overwritten each step).
    # Do NOT gate this with pl.when(program_id == 0): under the megacore-parallel
    # grid a core that never runs pid 0 would read an uninitialized halo.
    zero_row = jnp.zeros((P, ws + 2 * P, mid), dtype=buf_ref.dtype)
    zero_col = jnp.zeros((hs, P, mid), dtype=buf_ref.dtype)
    buf_ref[0:P, :, :] = zero_row                 # top halo rows
    buf_ref[P + hs:, :, :] = zero_row             # bottom halo rows
    buf_ref[P:P + hs, 0:P, :] = zero_col          # left halo cols
    buf_ref[P:P + hs, P + ws:, :] = zero_col      # right halo cols

    # --- in0: 1x1 conv == channel matmul (K = in_chan + out_chan) ------------
    x = x_ref[0].astype(jnp.bfloat16)                                  # (M, C0)
    y = jnp.dot(x, in_w_ref[...], preferred_element_type=jnp.float32)
    y = y + in_b_ref[...]
    buf_ref[P:P + hs, P:P + ws, :] = y.reshape(hs, ws, mid).astype(buf_ref.dtype)

    # --- convs0: dilated KxK conv + folded BN + ReLU, all in VMEM ------------
    # Restructured taps: per layer, build ksize column-shifted copies of the
    # (padded) layer input concatenated along channels (K = ksize*mid), then do
    # ksize row-shifted matmuls of depth ksize*mid.  Row shifts are free
    # leading-axis offsets; only the column shifts need sublane relayout.
    for li, d in enumerate(dilations):
        for kw in range(ksize):
            c0 = P + (kw - (ksize - 1) // 2) * d
            cat_ref[:, :, kw * mid:(kw + 1) * mid] = buf_ref[:, c0:c0 + ws, :]
        acc = None
        for kh in range(ksize):
            r0 = P + (kh - (ksize - 1) // 2) * d
            win = cat_ref[r0:r0 + hs, :, :].reshape(M, ksize * mid)
            tap = jnp.dot(win, dw_ref[li, kh],
                          preferred_element_type=jnp.float32)
            acc = tap if acc is None else acc + tap     # init from first matmul
        z = acc * dscale_ref[li] + dshift_ref[li]   # BN (conv bias pre-folded)
        z = jnp.maximum(z, 0.0)                     # ReLU
        buf_ref[P:P + hs, P:P + ws, :] = z.reshape(hs, ws, mid).astype(buf_ref.dtype)

    # --- out0: 1x1 conv (lane-padded to mid) + sigmoid epilogue --------------
    h = buf_ref[P:P + hs, P:P + ws, :].reshape(M, mid)            # already bf16
    z = jnp.dot(h, out_w_ref[...], preferred_element_type=jnp.float32)
    z = z + out_b_ref[...]
    # sigmoid(z) == 0.5 * (1 + tanh(z / 2)) : tanh runs on the EUP slot.
    o_ref[0] = (0.5 * jnp.tanh(0.5 * z) + 0.5).astype(o_ref.dtype)


# ---------------------------- host-side helpers ----------------------------

def nearest_resize(x_nhwc, out_h, out_w):
    """PyTorch F.interpolate(mode='nearest'): src = floor(dst * in/out)."""
    N, H, W, C = x_nhwc.shape
    rows = jnp.floor(jnp.arange(out_h) * (H / out_h)).astype(jnp.int32)
    cols = jnp.floor(jnp.arange(out_w) * (W / out_w)).astype(jnp.int32)
    return x_nhwc[:, rows][:, :, cols]


def _vmem_limit_bytes():
    """Generation-aware scoped-VMEM cap: ~3/4 of physical, <= 100 MiB.

    v5e/v6e (128 MiB physical) -> 96 MiB; v7x (64 MiB/TC) -> 48 MiB.
    Falls back to a conservative 32 MiB if the hardware query fails.
    """
    try:
        cap = int(pltpu.get_tpu_info().vmem_capacity_bytes)
        return min((cap * 3) // 4, 100 * 1024 * 1024)
    except Exception:
        return 32 * 1024 * 1024


def init_params(key, in_chan, out_chan, mid=MID_CHANNELS, ksize=KSIZE,
                dilations=DILATIONS):
    """Random parameters matching the PyTorch module structure (eval-mode BN)."""
    keys = jax.random.split(key, 4 + 4 * len(dilations))
    cin0 = in_chan + out_chan                    # in0: Conv2d(in+out, mid, 1)
    p = {
        "in_w": 0.1 * jax.random.normal(keys[0], (cin0, mid), jnp.float32),
        "in_b": 0.1 * jax.random.normal(keys[1], (mid,), jnp.float32),
        "out_w": 0.1 * jax.random.normal(keys[2], (mid, out_chan), jnp.float32),
        "out_b": 0.1 * jax.random.normal(keys[3], (out_chan,), jnp.float32),
        "dilated": [],
    }
    ki = 4
    for d in dilations:
        w = jax.random.normal(keys[ki], (ksize * ksize, mid, mid),
                              jnp.float32) / (mid * ksize)
        b = 0.1 * jax.random.normal(keys[ki + 1], (mid,), jnp.float32)
        gamma = 1.0 + 0.1 * jax.random.normal(keys[ki + 2], (mid,), jnp.float32)
        beta = 0.1 * jax.random.normal(keys[ki + 3], (mid,), jnp.float32)
        run_mean = jnp.zeros((mid,), jnp.float32)    # BN default buffers
        run_var = jnp.ones((mid,), jnp.float32)
        p["dilated"].append({"w": w, "b": b, "gamma": gamma, "beta": beta,
                             "mean": run_mean, "var": run_var, "d": d})
        ki += 4
    return p


def fold_params(p, ksize=KSIZE):
    """Fold BN + conv bias, cast MXU weights to bf16, restack taps, lane-pad out0."""
    mid = p["in_w"].shape[1]
    out_chan = p["out_w"].shape[1]
    dw, dscale, dshift = [], [], []
    for layer in p["dilated"]:
        scale = layer["gamma"] / jnp.sqrt(layer["var"] + BN_EPS)
        shift = layer["beta"] + scale * (layer["b"] - layer["mean"])  # bias fold
        # Restack for K=ksize*mid matmuls: kh-slice row-block kw holds tap (kh,kw).
        per_kh = [jnp.concatenate([layer["w"][kh * ksize + kw]
                                   for kw in range(ksize)], axis=0)
                  for kh in range(ksize)]
        dw.append(jnp.stack(per_kh).astype(jnp.bfloat16))  # (ksize, ksize*mid, mid)
        dscale.append(scale.reshape(1, mid))
        dshift.append(shift.reshape(1, mid))
    out_w_pad = jnp.zeros((mid, mid), jnp.float32).at[:, :out_chan].set(p["out_w"])
    out_b_pad = jnp.zeros((1, mid), jnp.float32).at[0, :out_chan].set(p["out_b"])
    return {
        "in_w": p["in_w"].astype(jnp.bfloat16),        # (C0, mid)
        "in_b": p["in_b"].reshape(1, mid),             # (1, mid) f32
        "dw": jnp.stack(dw),                           # (L, K, K*mid, mid) bf16
        "dscale": jnp.stack(dscale),                   # (L, 1, mid) f32
        "dshift": jnp.stack(dshift),                   # (L, 1, mid) f32
        "out_w": out_w_pad.astype(jnp.bfloat16),       # (mid, mid) bf16
        "out_b": out_b_pad,                            # (1, mid) f32
        "out_chan": out_chan,
        "dilations": tuple(l["d"] for l in p["dilated"]),
    }


# ---------------------------- forward ----------------------------

def global_net_forward(x_nchw, fparams, scale_factor=0.25, ksize=KSIZE):
    N, C, H, W = x_nchw.shape
    mid = fparams["in_w"].shape[1]
    out_chan = fparams["out_chan"]
    dilations = fparams["dilations"]
    L = len(dilations)
    P = HALO
    assert P >= max(dilations)

    hs = int(math.floor(H * scale_factor))
    ws = int(math.floor(W * scale_factor))
    M = hs * ws

    x = jnp.transpose(x_nchw, (0, 2, 3, 1))          # NCHW -> NHWC
    x = nearest_resize(x, hs, ws)                    # F.interpolate(scale_factor)
    x = x.reshape(N, M, C)                           # rows on sublanes, C on lanes

    kernel = functools.partial(_global_net_kernel, dilations=dilations,
                               ksize=ksize, hs=hs, ws=ws, halo=P)

    grid_spec = pltpu.PrefetchScalarGridSpec(
        num_scalar_prefetch=0,
        grid=(N,),                                   # one image per grid step
        in_specs=[
            pl.BlockSpec((1, M, C), lambda i: (i, 0, 0)),
            pl.BlockSpec((C, mid), lambda i: (0, 0)),
            pl.BlockSpec((1, mid), lambda i: (0, 0)),
            pl.BlockSpec((L, ksize, ksize * mid, mid), lambda i: (0, 0, 0, 0)),
            pl.BlockSpec((L, 1, mid), lambda i: (0, 0, 0)),
            pl.BlockSpec((L, 1, mid), lambda i: (0, 0, 0)),
            pl.BlockSpec((mid, mid), lambda i: (0, 0)),
            pl.BlockSpec((1, mid), lambda i: (0, 0)),
        ],
        out_specs=pl.BlockSpec((1, M, mid), lambda i: (i, 0, 0)),
        scratch_shapes=[
            pltpu.VMEM((hs + 2 * P, ws + 2 * P, mid), jnp.bfloat16),
            pltpu.VMEM((hs + 2 * P, ws, ksize * mid), jnp.bfloat16),
        ],
    )

    y = pl.pallas_call(
        kernel,
        out_shape=jax.ShapeDtypeStruct((N, M, mid), jnp.bfloat16),
        grid_spec=grid_spec,
        compiler_params=pltpu.CompilerParams(
            dimension_semantics=("parallel",),       # both TCs on v7x megacore
            vmem_limit_bytes=_vmem_limit_bytes()),
    )(x, fparams["in_w"], fparams["in_b"], fparams["dw"],
      fparams["dscale"], fparams["dshift"], fparams["out_w"], fparams["out_b"])

    y = y.reshape(N, hs, ws, mid)[..., :out_chan]    # drop lane padding (Cout=4)
    y = nearest_resize(y, H, W)                      # F.interpolate(size=...)
    # back to NCHW; restore f32 for downstream parity with the PyTorch module
    return {"output": jnp.transpose(y, (0, 3, 1, 2)).astype(jnp.float32)}


# ---------------------------- pure-JAX reference ----------------------------

def reference_forward(x_nchw, p, scale_factor=0.25, ksize=KSIZE):
    """f32 / highest-precision XLA reference of the PyTorch forward (eval BN)."""
    N, C, H, W = x_nchw.shape
    mid = p["in_w"].shape[1]
    hs = int(math.floor(H * scale_factor))
    ws = int(math.floor(W * scale_factor))
    hp = jax.lax.Precision.HIGHEST
    x = jnp.transpose(x_nchw, (0, 2, 3, 1))
    x = nearest_resize(x, hs, ws)
    y = jnp.einsum("nhwc,cd->nhwd", x, p["in_w"], precision=hp) + p["in_b"]
    for layer in p["dilated"]:
        d = layer["d"]
        w = layer["w"].reshape(ksize, ksize, mid, mid)       # (kh, kw, cin, cout)
        z = jax.lax.conv_general_dilated(
            y, w, window_strides=(1, 1), padding=[(d, d), (d, d)],
            rhs_dilation=(d, d), dimension_numbers=("NHWC", "HWIO", "NHWC"),
            precision=hp)
        z = z + layer["b"]
        z = (z - layer["mean"]) / jnp.sqrt(layer["var"] + BN_EPS) \
            * layer["gamma"] + layer["beta"]
        y = jnp.maximum(z, 0.0)
    z = jnp.einsum("nhwc,cd->nhwd", y, p["out_w"], precision=hp) + p["out_b"]
    z = jax.nn.sigmoid(z)
    z = nearest_resize(z, H, W)
    return jnp.transpose(z, (0, 3, 1, 2))


# ---------------------------- demo ----------------------------

if __name__ == "__main__":
    in_channels, out_channels = 4, 4
    N, H, W = 2, 32, 32
    C_in = in_channels + out_channels   # forward input carries in+out channels

    x = jax.random.normal(jax.random.PRNGKey(0), (N, C_in, H, W), jnp.float32)
    raw_params = init_params(jax.random.PRNGKey(1), in_channels, out_channels)
    fparams = fold_params(raw_params)

    fwd = jax.jit(lambda xx: global_net_forward(xx, fparams))
    out = fwd(x)["output"]
    jax.block_until_ready(out)

    assert out.shape == (N, out_channels, H, W)
    assert bool(jnp.all(jnp.isfinite(out)))
    assert bool(jnp.all((out >= 0.0) & (out <= 1.0)))

    ref = reference_forward(x, raw_params)
    max_err = float(jnp.max(jnp.abs(out - ref)))
    assert max_err < 3e-2, f"kernel vs reference mismatch: max_err={max_err}"

    print("KERNEL_OK")
</pallas_src>

<mosaic_0001>
module attributes {stable_mosaic.version = 11 : i64} {
  func.func @_global_net_kernel(%arg0: i32, %arg1: memref<1x64x8xf32, #tpu.memory_space<vmem>>, %arg2: memref<8x128xbf16, #tpu.memory_space<vmem>>, %arg3: memref<1x128xf32, #tpu.memory_space<vmem>>, %arg4: memref<3x3x384x128xbf16, #tpu.memory_space<vmem>>, %arg5: memref<3x1x128xf32, #tpu.memory_space<vmem>>, %arg6: memref<3x1x128xf32, #tpu.memory_space<vmem>>, %arg7: memref<128x128xbf16, #tpu.memory_space<vmem>>, %arg8: memref<1x128xf32, #tpu.memory_space<vmem>>, %arg9: memref<1x64x128xbf16, #tpu.memory_space<vmem>>, %arg10: memref<24x24x128xbf16, #tpu.memory_space<vmem>>, %arg11: memref<24x8x384xbf16, #tpu.memory_space<vmem>>) attributes {dimension_semantics = [#tpu.dimension_semantics<parallel>], iteration_bounds = array<i64: 2>, scalar_prefetch = 0 : i64, scratch_operands = 2 : i64, tpu.core_type = #tpu.core_type<tc>, window_params = [{transform_indices = @transform_0, window_bounds = array<i64: 1, 64, 8>}, {pipeline_mode = #tpu.pipeline_mode<synchronous>, transform_indices = @transform_1, window_bounds = array<i64: 8, 128>}, {pipeline_mode = #tpu.pipeline_mode<synchronous>, transform_indices = @transform_2, window_bounds = array<i64: 1, 128>}, {pipeline_mode = #tpu.pipeline_mode<synchronous>, transform_indices = @transform_3, window_bounds = array<i64: 3, 3, 384, 128>}, {pipeline_mode = #tpu.pipeline_mode<synchronous>, transform_indices = @transform_4, window_bounds = array<i64: 3, 1, 128>}, {pipeline_mode = #tpu.pipeline_mode<synchronous>, transform_indices = @transform_5, window_bounds = array<i64: 3, 1, 128>}, {pipeline_mode = #tpu.pipeline_mode<synchronous>, transform_indices = @transform_6, window_bounds = array<i64: 128, 128>}, {pipeline_mode = #tpu.pipeline_mode<synchronous>, transform_indices = @transform_7, window_bounds = array<i64: 1, 128>}, {transform_indices = @transform_8, window_bounds = array<i64: 1, 64, 128>}]} {
    %cst = arith.constant 0.000000e+00 : bf16
    %0 = vector.broadcast %cst : bf16 to vector<8x24x128xbf16>
    %cst_0 = arith.constant 0.000000e+00 : bf16
    %1 = vector.broadcast %cst_0 : bf16 to vector<8x8x128xbf16>
    %c0 = arith.constant 0 : index
    %c0_1 = arith.constant 0 : index
    %c0_2 = arith.constant 0 : index
    %2 = vector.load %arg10[%c0, %c0_1, %c0_2] : memref<24x24x128xbf16, #tpu.memory_space<vmem>>, vector<8x24x128xbf16>
    tpu.vector_store %arg10[%c0, %c0_1, %c0_2], %0 {strides = array<i32>} : memref<24x24x128xbf16, #tpu.memory_space<vmem>>, vector<8x24x128xbf16>,
    %c16 = arith.constant 16 : index
    %c0_3 = arith.constant 0 : index
    %c0_4 = arith.constant 0 : index
    %3 = vector.load %arg10[%c16, %c0_3, %c0_4] : memref<24x24x128xbf16, #tpu.memory_space<vmem>>, vector<8x24x128xbf16>
    tpu.vector_store %arg10[%c16, %c0_3, %c0_4], %0 {strides = array<i32>} : memref<24x24x128xbf16, #tpu.memory_space<vmem>>, vector<8x24x128xbf16>,
    %c8 = arith.constant 8 : index
    %c0_5 = arith.constant 0 : index
    %c0_6 = arith.constant 0 : index
    %4 = vector.load %arg10[%c8, %c0_5, %c0_6] : memref<24x24x128xbf16, #tpu.memory_space<vmem>>, vector<8x8x128xbf16>
    tpu.vector_store %arg10[%c8, %c0_5, %c0_6], %1 {strides = array<i32>} : memref<24x24x128xbf16, #tpu.memory_space<vmem>>, vector<8x8x128xbf16>,
    %c8_7 = arith.constant 8 : index
    %c16_8 = arith.constant 16 : index
    %c0_9 = arith.constant 0 : index
    %5 = vector.load %arg10[%c8_7, %c16_8, %c0_9] : memref<24x24x128xbf16, #tpu.memory_space<vmem>>, vector<8x8x128xbf16>
    tpu.vector_store %arg10[%c8_7, %c16_8, %c0_9], %1 {strides = array<i32>} : memref<24x24x128xbf16, #tpu.memory_space<vmem>>, vector<8x8x128xbf16>,
    %c0_10 = arith.constant 0 : index
    %c0_11 = arith.constant 0 : index
    %c0_12 = arith.constant 0 : index
    %6 = vector.load %arg1[%c0_10, %c0_11, %c0_12] : memref<1x64x8xf32, #tpu.memory_space<vmem>>, vector<1x64x8xf32>
    %7 = vector.shape_cast %6 : vector<1x64x8xf32> to vector<64x8xf32>
    %8 = arith.truncf %7 : vector<64x8xf32> to vector<64x8xbf16>
    %c0_13 = arith.constant 0 : index
    %c0_14 = arith.constant 0 : index
    %9 = vector.load %arg2[%c0_13, %c0_14] : memref<8x128xbf16, #tpu.memory_space<vmem>>, vector<8x128xbf16>
    %cst_15 = arith.constant dense<0.000000e+00> : vector<64x128xf32>
    %10 = tpu.matmul %8, %9, %cst_15 {dimension_numbers = #tpu.dot_dimension_numbers<[1], [0], [0], [1], [0, 0, 1, 1], [], []>} : vector<64x8xbf16>, vector<8x128xbf16>, vector<64x128xf32> -> vector<64x128xf32>
    %c0_16 = arith.constant 0 : index
    %c0_17 = arith.constant 0 : index
    %11 = vector.load %arg3[%c0_16, %c0_17] : memref<1x128xf32, #tpu.memory_space<vmem>>, vector<1x128xf32>
    %12 = vector.broadcast %11 : vector<1x128xf32> to vector<64x128xf32>
    %13 = arith.addf %10, %12 : vector<64x128xf32>
    %14 = vector.shape_cast %13 : vector<64x128xf32> to vector<8x8x128xf32>
    %15 = arith.truncf %14 : vector<8x8x128xf32> to vector<8x8x128xbf16>
    %c8_18 = arith.constant 8 : index
    %c8_19 = arith.constant 8 : index
    %c0_20 = arith.constant 0 : index
    %16 = vector.load %arg10[%c8_18, %c8_19, %c0_20] : memref<24x24x128xbf16, #tpu.memory_space<vmem>>, vector<8x8x128xbf16>
    tpu.vector_store %arg10[%c8_18, %c8_19, %c0_20], %15 {strides = array<i32>} : memref<24x24x128xbf16, #tpu.memory_space<vmem>>, vector<8x8x128xbf16>,
    %c0_21 = arith.constant 0 : index
    %c7 = arith.constant 7 : index
    %c0_22 = arith.constant 0 : index
    %17 = vector.load %arg10[%c0_21, %c7, %c0_22] : memref<24x24x128xbf16, #tpu.memory_space<vmem>>, vector<24x8x128xbf16>
    %c0_23 = arith.constant 0 : index
    %c0_24 = arith.constant 0 : index
    %c0_25 = arith.constant 0 : index
    %18 = vector.load %arg11[%c0_23, %c0_24, %c0_25] : memref<24x8x384xbf16, #tpu.memory_space<vmem>>, vector<24x8x128xbf16>
    tpu.vector_store %arg11[%c0_23, %c0_24, %c0_25], %17 {strides = array<i32>} : memref<24x8x384xbf16, #tpu.memory_space<vmem>>, vector<24x8x128xbf16>,
    %c0_26 = arith.constant 0 : index
    %c8_27 = arith.constant 8 : index
    %c0_28 = arith.constant 0 : index
    %19 = vector.load %arg10[%c0_26, %c8_27, %c0_28] : memref<24x24x128xbf16, #tpu.memory_space<vmem>>, vector<24x8x128xbf16>
    %c0_29 = arith.constant 0 : index
    %c0_30 = arith.constant 0 : index
    %c128 = arith.constant 128 : index
    %20 = vector.load %arg11[%c0_29, %c0_30, %c128] : memref<24x8x384xbf16, #tpu.memory_space<vmem>>, vector<24x8x128xbf16>
    tpu.vector_store %arg11[%c0_29, %c0_30, %c128], %19 {strides = array<i32>} : memref<24x8x384xbf16, #tpu.memory_space<vmem>>, vector<24x8x128xbf16>,
    %c0_31 = arith.constant 0 : index
    %c9 = arith.constant 9 : index
    %c0_32 = arith.constant 0 : index
    %21 = vector.load %arg10[%c0_31, %c9, %c0_32] : memref<24x24x128xbf16, #tpu.memory_space<vmem>>, vector<24x8x128xbf16>
    %c0_33 = arith.constant 0 : index
    %c0_34 = arith.constant 0 : index
    %c256 = arith.constant 256 : index
    %22 = vector.load %arg11[%c0_33, %c0_34, %c256] : memref<24x8x384xbf16, #tpu.memory_space<vmem>>, vector<24x8x128xbf16>
    tpu.vector_store %arg11[%c0_33, %c0_34, %c256], %21 {strides = array<i32>} : memref<24x8x384xbf16, #tpu.memory_space<vmem>>, vector<24x8x128xbf16>,
    %c7_35 = arith.constant 7 : index
    %c0_36 = arith.constant 0 : index
    %c0_37 = arith.constant 0 : index
    %23 = vector.load %arg11[%c7_35, %c0_36, %c0_37] : memref<24x8x384xbf16, #tpu.memory_space<vmem>>, vector<8x8x384xbf16>
    %24 = vector.shape_cast %23 : vector<8x8x384xbf16> to vector<64x384xbf16>
    %c0_38 = arith.constant 0 : index
    %c0_39 = arith.constant 0 : index
    %c0_40 = arith.constant 0 : index
    %c0_41 = arith.constant 0 : index
    %25 = vector.load %arg4[%c0_38, %c0_39, %c0_40, %c0_41] : memref<3x3x384x128xbf16, #tpu.memory_space<vmem>>, vector<1x1x384x128xbf16>
    %26 = vector.shape_cast %25 : vector<1x1x384x128xbf16> to vector<384x128xbf16>
    %cst_42 = arith.constant dense<0.000000e+00> : vector<64x128xf32>
    %27 = tpu.matmul %24, %26, %cst_42 {dimension_numbers = #tpu.dot_dimension_numbers<[1], [0], [0], [1], [0, 0, 1, 1], [], []>} : vector<64x384xbf16>, vector<384x128xbf16>, vector<64x128xf32> -> vector<64x128xf32>
    %c8_43 = arith.constant 8 : index
    %c0_44 = arith.constant 0 : index
    %c0_45 = arith.constant 0 : index
    %28 = vector.load %arg11[%c8_43, %c0_44, %c0_45] : memref<24x8x384xbf16, #tpu.memory_space<vmem>>, vector<8x8x384xbf16>
    %29 = vector.shape_cast %28 : vector<8x8x384xbf16> to vector<64x384xbf16>
    %c0_46 = arith.constant 0 : index
    %c1 = arith.constant 1 : index
    %c0_47 = arith.constant 0 : index
    %c0_48 = arith.constant 0 : index
    %30 = vector.load %arg4[%c0_46, %c1, %c0_47, %c0_48] : memref<3x3x384x128xbf16, #tpu.memory_space<vmem>>, vector<1x1x384x128xbf16>
    %31 = vector.shape_cast %30 : vector<1x1x384x128xbf16> to vector<384x128xbf16>
    %cst_49 = arith.constant dense<0.000000e+00> : vector<64x128xf32>
    %32 = tpu.matmul %29, %31, %cst_49 {dimension_numbers = #tpu.dot_dimension_numbers<[1], [0], [0], [1], [0, 0, 1, 1], [], []>} : vector<64x384xbf16>, vector<384x128xbf16>, vector<64x128xf32> -> vector<64x128xf32>
    %33 = arith.addf %27, %32 : vector<64x128xf32>
    %c9_50 = arith.constant 9 : index
    %c0_51 = arith.constant 0 : index
    %c0_52 = arith.constant 0 : index
    %34 = vector.load %arg11[%c9_50, %c0_51, %c0_52] : memref<24x8x384xbf16, #tpu.memory_space<vmem>>, vector<8x8x384xbf16>
    %35 = vector.shape_cast %34 : vector<8x8x384xbf16> to vector<64x384xbf16>
    %c0_53 = arith.constant 0 : index
    %c2 = arith.constant 2 : index
    %c0_54 = arith.constant 0 : index
    %c0_55 = arith.constant 0 : index
    %36 = vector.load %arg4[%c0_53, %c2, %c0_54, %c0_55] : memref<3x3x384x128xbf16, #tpu.memory_space<vmem>>, vector<1x1x384x128xbf16>
    %37 = vector.shape_cast %36 : vector<1x1x384x128xbf16> to vector<384x128xbf16>
    %cst_56 = arith.constant dense<0.000000e+00> : vector<64x128xf32>
    %38 = tpu.matmul %35, %37, %cst_56 {dimension_numbers = #tpu.dot_dimension_numbers<[1], [0], [0], [1], [0, 0, 1, 1], [], []>} : vector<64x384xbf16>, vector<384x128xbf16>, vector<64x128xf32> -> vector<64x128xf32>
    %39 = arith.addf %33, %38 : vector<64x128xf32>
    %c0_57 = arith.constant 0 : index
    %c0_58 = arith.constant 0 : index
    %c0_59 = arith.constant 0 : index
    %40 = vector.load %arg5[%c0_57, %c0_58, %c0_59] : memref<3x1x128xf32, #tpu.memory_space<vmem>>, vector<1x1x128xf32>
    %41 = vector.shape_cast %40 : vector<1x1x128xf32> to vector<1x128xf32>
    %42 = vector.broadcast %41 : vector<1x128xf32> to vector<64x128xf32>
    %43 = arith.mulf %39, %42 : vector<64x128xf32>
    %c0_60 = arith.constant 0 : index
    %c0_61 = arith.constant 0 : index
    %c0_62 = arith.constant 0 : index
    %44 = vector.load %arg6[%c0_60, %c0_61, %c0_62] : memref<3x1x128xf32, #tpu.memory_space<vmem>>, vector<1x1x128xf32>
    %45 = vector.shape_cast %44 : vector<1x1x128xf32> to vector<1x128xf32>
    %46 = vector.broadcast %45 : vector<1x128xf32> to vector<64x128xf32>
    %47 = arith.addf %43, %46 : vector<64x128xf32>
    %cst_63 = arith.constant 0.000000e+00 : f32
    %48 = vector.broadcast %cst_63 : f32 to vector<64x128xf32>
    %49 = arith.maximumf %47, %48 : vector<64x128xf32>
    %50 = vector.shape_cast %49 : vector<64x128xf32> to vector<8x8x128xf32>
    %51 = arith.truncf %50 : vector<8x8x128xf32> to vector<8x8x128xbf16>
    %c8_64 = arith.constant 8 : index
    %c8_65 = arith.constant 8 : index
    %c0_66 = arith.constant 0 : index
    %52 = vector.load %arg10[%c8_64, %c8_65, %c0_66] : memref<24x24x128xbf16, #tpu.memory_space<vmem>>, vector<8x8x128xbf16>
    tpu.vector_store %arg10[%c8_64, %c8_65, %c0_66], %51 {strides = array<i32>} : memref<24x24x128xbf16, #tpu.memory_space<vmem>>, vector<8x8x128xbf16>,
    %c0_67 = arith.constant 0 : index
    %c6 = arith.constant 6 : index
    %c0_68 = arith.constant 0 : index
    %53 = vector.load %arg10[%c0_67, %c6, %c0_68] : memref<24x24x128xbf16, #tpu.memory_space<vmem>>, vector<24x8x128xbf16>
    %c0_69 = arith.constant 0 : index
    %c0_70 = arith.constant 0 : index
    %c0_71 = arith.constant 0 : index
    %54 = vector.load %arg11[%c0_69, %c0_70, %c0_71] : memref<24x8x384xbf16, #tpu.memory_space<vmem>>, vector<24x8x128xbf16>
    tpu.vector_store %arg11[%c0_69, %c0_70, %c0_71], %53 {strides = array<i32>} : memref<24x8x384xbf16, #tpu.memory_space<vmem>>, vector<24x8x128xbf16>,
    %c0_72 = arith.constant 0 : index
    %c8_73 = arith.constant 8 : index
    %c0_74 = arith.constant 0 : index
    %55 = vector.load %arg10[%c0_72, %c8_73, %c0_74] : memref<24x24x128xbf16, #tpu.memory_space<vmem>>, vector<24x8x128xbf16>
    %c0_75 = arith.constant 0 : index
    %c0_76 = arith.constant 0 : index
    %c128_77 = arith.constant 128 : index
    %56 = vector.load %arg11[%c0_75, %c0_76, %c128_77] : memref<24x8x384xbf16, #tpu.memory_space<vmem>>, vector<24x8x128xbf16>
    tpu.vector_store %arg11[%c0_75, %c0_76, %c128_77], %55 {strides = array<i32>} : memref<24x8x384xbf16, #tpu.memory_space<vmem>>, vector<24x8x128xbf16>,
    %c0_78 = arith.constant 0 : index
    %c10 = arith.constant 10 : index
    %c0_79 = arith.constant 0 : index
    %57 = vector.load %arg10[%c0_78, %c10, %c0_79] : memref<24x24x128xbf16, #tpu.memory_space<vmem>>, vector<24x8x128xbf16>
    %c0_80 = arith.constant 0 : index
    %c0_81 = arith.constant 0 : index
    %c256_82 = arith.constant 256 : index
    %58 = vector.load %arg11[%c0_80, %c0_81, %c256_82] : memref<24x8x384xbf16, #tpu.memory_space<vmem>>, vector<24x8x128xbf16>
    tpu.vector_store %arg11[%c0_80, %c0_81, %c256_82], %57 {strides = array<i32>} : memref<24x8x384xbf16, #tpu.memory_space<vmem>>, vector<24x8x128xbf16>,
    %c6_83 = arith.constant 6 : index
    %c0_84 = arith.constant 0 : index
    %c0_85 = arith.constant 0 : index
    %59 = vector.load %arg11[%c6_83, %c0_84, %c0_85] : memref<24x8x384xbf16, #tpu.memory_space<vmem>>, vector<8x8x384xbf16>
    %60 = vector.shape_cast %59 : vector<8x8x384xbf16> to vector<64x384xbf16>
    %c1_86 = arith.constant 1 : index
    %c0_87 = arith.constant 0 : index
    %c0_88 = arith.constant 0 : index
    %c0_89 = arith.constant 0 : index
    %61 = vector.load %arg4[%c1_86, %c0_87, %c0_88, %c0_89] : memref<3x3x384x128xbf16, #tpu.memory_space<vmem>>, vector<1x1x384x128xbf16>
    %62 = vector.shape_cast %61 : vector<1x1x384x128xbf16> to vector<384x128xbf16>
    %cst_90 = arith.constant dense<0.000000e+00> : vector<64x128xf32>
    %63 = tpu.matmul %60, %62, %cst_90 {dimension_numbers = #tpu.dot_dimension_numbers<[1], [0], [0], [1], [0, 0, 1, 1], [], []>} : vector<64x384xbf16>, vector<384x128xbf16>, vector<64x128xf32> -> vector<64x128xf32>
    %c8_91 = arith.constant 8 : index
    %c0_92 = arith.constant 0 : index
    %c0_93 = arith.constant 0 : index
    %64 = vector.load %arg11[%c8_91, %c0_92, %c0_93] : memref<24x8x384xbf16, #tpu.memory_space<vmem>>, vector<8x8x384xbf16>
    %65 = vector.shape_cast %64 : vector<8x8x384xbf16> to vector<64x384xbf16>
    %c1_94 = arith.constant 1 : index
    %c1_95 = arith.constant 1 : index
    %c0_96 = arith.constant 0 : index
    %c0_97 = arith.constant 0 : index
    %66 = vector.load %arg4[%c1_94, %c1_95, %c0_96, %c0_97] : memref<3x3x384x128xbf16, #tpu.memory_space<vmem>>, vector<1x1x384x128xbf16>
    %67 = vector.shape_cast %66 : vector<1x1x384x128xbf16> to vector<384x128xbf16>
    %cst_98 = arith.constant dense<0.000000e+00> : vector<64x128xf32>
    %68 = tpu.matmul %65, %67, %cst_98 {dimension_numbers = #tpu.dot_dimension_numbers<[1], [0], [0], [1], [0, 0, 1, 1], [], []>} : vector<64x384xbf16>, vector<384x128xbf16>, vector<64x128xf32> -> vector<64x128xf32>
    %69 = arith.addf %63, %68 : vector<64x128xf32>
    %c10_99 = arith.constant 10 : index
    %c0_100 = arith.constant 0 : index
    %c0_101 = arith.constant 0 : index
    %70 = vector.load %arg11[%c10_99, %c0_100, %c0_101] : memref<24x8x384xbf16, #tpu.memory_space<vmem>>, vector<8x8x384xbf16>
    %71 = vector.shape_cast %70 : vector<8x8x384xbf16> to vector<64x384xbf16>
    %c1_102 = arith.constant 1 : index
    %c2_103 = arith.constant 2 : index
    %c0_104 = arith.constant 0 : index
    %c0_105 = arith.constant 0 : index
    %72 = vector.load %arg4[%c1_102, %c2_103, %c0_104, %c0_105] : memref<3x3x384x128xbf16, #tpu.memory_space<vmem>>, vector<1x1x384x128xbf16>
    %73 = vector.shape_cast %72 : vector<1x1x384x128xbf16> to vector<384x128xbf16>
    %cst_106 = arith.constant dense<0.000000e+00> : vector<64x128xf32>
    %74 = tpu.matmul %71, %73, %cst_106 {dimension_numbers = #tpu.dot_dimension_numbers<[1], [0], [0], [1], [0, 0, 1, 1], [], []>} : vector<64x384xbf16>, vector<384x128xbf16>, vector<64x128xf32> -> vector<64x128xf32>
    %75 = arith.addf %69, %74 : vector<64x128xf32>
    %c1_107 = arith.constant 1 : index
    %c0_108 = arith.constant 0 : index
    %c0_109 = arith.constant 0 : index
    %76 = vector.load %arg5[%c1_107, %c0_108, %c0_109] : memref<3x1x128xf32, #tpu.memory_space<vmem>>, vector<1x1x128xf32>
    %77 = vector.shape_cast %76 : vector<1x1x128xf32> to vector<1x128xf32>
    %78 = vector.broadcast %77 : vector<1x128xf32> to vector<64x128xf32>
    %79 = arith.mulf %75, %78 : vector<64x128xf32>
    %c1_110 = arith.constant 1 : index
    %c0_111 = arith.constant 0 : index
    %c0_112 = arith.constant 0 : index
    %80 = vector.load %arg6[%c1_110, %c0_111, %c0_112] : memref<3x1x128xf32, #tpu.memory_space<vmem>>, vector<1x1x128xf32>
    %81 = vector.shape_cast %80 : vector<1x1x128xf32> to vector<1x128xf32>
    %82 = vector.broadcast %81 : vector<1x128xf32> to vector<64x128xf32>
    %83 = arith.addf %79, %82 : vector<64x128xf32>
    %cst_113 = arith.constant 0.000000e+00 : f32
    %84 = vector.broadcast %cst_113 : f32 to vector<64x128xf32>
    %85 = arith.maximumf %83, %84 : vector<64x128xf32>
    %86 = vector.shape_cast %85 : vector<64x128xf32> to vector<8x8x128xf32>
    %87 = arith.truncf %86 : vector<8x8x128xf32> to vector<8x8x128xbf16>
    %c8_114 = arith.constant 8 : index
    %c8_115 = arith.constant 8 : index
    %c0_116 = arith.constant 0 : index
    %88 = vector.load %arg10[%c8_114, %c8_115, %c0_116] : memref<24x24x128xbf16, #tpu.memory_space<vmem>>, vector<8x8x128xbf16>
    tpu.vector_store %arg10[%c8_114, %c8_115, %c0_116], %87 {strides = array<i32>} : memref<24x24x128xbf16, #tpu.memory_space<vmem>>, vector<8x8x128xbf16>,
    %c0_117 = arith.constant 0 : index
    %c3 = arith.constant 3 : index
    %c0_118 = arith.constant 0 : index
    %89 = vector.load %arg10[%c0_117, %c3, %c0_118] : memref<24x24x128xbf16, #tpu.memory_space<vmem>>, vector<24x8x128xbf16>
    %c0_119 = arith.constant 0 : index
    %c0_120 = arith.constant 0 : index
    %c0_121 = arith.constant 0 : index
    %90 = vector.load %arg11[%c0_119, %c0_120, %c0_121] : memref<24x8x384xbf16, #tpu.memory_space<vmem>>, vector<24x8x128xbf16>
    tpu.vector_store %arg11[%c0_119, %c0_120, %c0_121], %89 {strides = array<i32>} : memref<24x8x384xbf16, #tpu.memory_space<vmem>>, vector<24x8x128xbf16>,
    %c0_122 = arith.constant 0 : index
    %c8_123 = arith.constant 8 : index
    %c0_124 = arith.constant 0 : index
    %91 = vector.load %arg10[%c0_122, %c8_123, %c0_124] : memref<24x24x128xbf16, #tpu.memory_space<vmem>>, vector<24x8x128xbf16>
    %c0_125 = arith.constant 0 : index
    %c0_126 = arith.constant 0 : index
    %c128_127 = arith.constant 128 : index
    %92 = vector.load %arg11[%c0_125, %c0_126, %c128_127] : memref<24x8x384xbf16, #tpu.memory_space<vmem>>, vector<24x8x128xbf16>
    tpu.vector_store %arg11[%c0_125, %c0_126, %c128_127], %91 {strides = array<i32>} : memref<24x8x384xbf16, #tpu.memory_space<vmem>>, vector<24x8x128xbf16>,
    %c0_128 = arith.constant 0 : index
    %c13 = arith.constant 13 : index
    %c0_129 = arith.constant 0 : index
    %93 = vector.load %arg10[%c0_128, %c13, %c0_129] : memref<24x24x128xbf16, #tpu.memory_space<vmem>>, vector<24x8x128xbf16>
    %c0_130 = arith.constant 0 : index
    %c0_131 = arith.constant 0 : index
    %c256_132 = arith.constant 256 : index
    %94 = vector.load %arg11[%c0_130, %c0_131, %c256_132] : memref<24x8x384xbf16, #tpu.memory_space<vmem>>, vector<24x8x128xbf16>
    tpu.vector_store %arg11[%c0_130, %c0_131, %c256_132], %93 {strides = array<i32>} : memref<24x8x384xbf16, #tpu.memory_space<vmem>>, vector<24x8x128xbf16>,
    %c3_133 = arith.constant 3 : index
    %c0_134 = arith.constant 0 : index
    %c0_135 = arith.constant 0 : index
    %95 = vector.load %arg11[%c3_133, %c0_134, %c0_135] : memref<24x8x384xbf16, #tpu.memory_space<vmem>>, vector<8x8x384xbf16>
    %96 = vector.shape_cast %95 : vector<8x8x384xbf16> to vector<64x384xbf16>
    %c2_136 = arith.constant 2 : index
    %c0_137 = arith.constant 0 : index
    %c0_138 = arith.constant 0 : index
    %c0_139 = arith.constant 0 : index
    %97 = vector.load %arg4[%c2_136, %c0_137, %c0_138, %c0_139] : memref<3x3x384x128xbf16, #tpu.memory_space<vmem>>, vector<1x1x384x128xbf16>
    %98 = vector.shape_cast %97 : vector<1x1x384x128xbf16> to vector<384x128xbf16>
    %cst_140 = arith.constant dense<0.000000e+00> : vector<64x128xf32>
    %99 = tpu.matmul %96, %98, %cst_140 {dimension_numbers = #tpu.dot_dimension_numbers<[1], [0], [0], [1], [0, 0, 1, 1], [], []>} : vector<64x384xbf16>, vector<384x128xbf16>, vector<64x128xf32> -> vector<64x128xf32>
    %c8_141 = arith.constant 8 : index
    %c0_142 = arith.constant 0 : index
    %c0_143 = arith.constant 0 : index
    %100 = vector.load %arg11[%c8_141, %c0_142, %c0_143] : memref<24x8x384xbf16, #tpu.memory_space<vmem>>, vector<8x8x384xbf16>
    %101 = vector.shape_cast %100 : vector<8x8x384xbf16> to vector<64x384xbf16>
    %c2_144 = arith.constant 2 : index
    %c1_145 = arith.constant 1 : index
    %c0_146 = arith.constant 0 : index
    %c0_147 = arith.constant 0 : index
    %102 = vector.load %arg4[%c2_144, %c1_145, %c0_146, %c0_147] : memref<3x3x384x128xbf16, #tpu.memory_space<vmem>>, vector<1x1x384x128xbf16>
    %103 = vector.shape_cast %102 : vector<1x1x384x128xbf16> to vector<384x128xbf16>
    %cst_148 = arith.constant dense<0.000000e+00> : vector<64x128xf32>
    %104 = tpu.matmul %101, %103, %cst_148 {dimension_numbers = #tpu.dot_dimension_numbers<[1], [0], [0], [1], [0, 0, 1, 1], [], []>} : vector<64x384xbf16>, vector<384x128xbf16>, vector<64x128xf32> -> vector<64x128xf32>
    %105 = arith.addf %99, %104 : vector<64x128xf32>
    %c13_149 = arith.constant 13 : index
    %c0_150 = arith.constant 0 : index
    %c0_151 = arith.constant 0 : index
    %106 = vector.load %arg11[%c13_149, %c0_150, %c0_151] : memref<24x8x384xbf16, #tpu.memory_space<vmem>>, vector<8x8x384xbf16>
    %107 = vector.shape_cast %106 : vector<8x8x384xbf16> to vector<64x384xbf16>
    %c2_152 = arith.constant 2 : index
    %c2_153 = arith.constant 2 : index
    %c0_154 = arith.constant 0 : index
    %c0_155 = arith.constant 0 : index
    %108 = vector.load %arg4[%c2_152, %c2_153, %c0_154, %c0_155] : memref<3x3x384x128xbf16, #tpu.memory_space<vmem>>, vector<1x1x384x128xbf16>
    %109 = vector.shape_cast %108 : vector<1x1x384x128xbf16> to vector<384x128xbf16>
    %cst_156 = arith.constant dense<0.000000e+00> : vector<64x128xf32>
    %110 = tpu.matmul %107, %109, %cst_156 {dimension_numbers = #tpu.dot_dimension_numbers<[1], [0], [0], [1], [0, 0, 1, 1], [], []>} : vector<64x384xbf16>, vector<384x128xbf16>, vector<64x128xf32> -> vector<64x128xf32>
    %111 = arith.addf %105, %110 : vector<64x128xf32>
    %c2_157 = arith.constant 2 : index
    %c0_158 = arith.constant 0 : index
    %c0_159 = arith.constant 0 : index
    %112 = vector.load %arg5[%c2_157, %c0_158, %c0_159] : memref<3x1x128xf32, #tpu.memory_space<vmem>>, vector<1x1x128xf32>
    %113 = vector.shape_cast %112 : vector<1x1x128xf32> to vector<1x128xf32>
    %114 = vector.broadcast %113 : vector<1x128xf32> to vector<64x128xf32>
    %115 = arith.mulf %111, %114 : vector<64x128xf32>
    %c2_160 = arith.constant 2 : index
    %c0_161 = arith.constant 0 : index
    %c0_162 = arith.constant 0 : index
    %116 = vector.load %arg6[%c2_160, %c0_161, %c0_162] : memref<3x1x128xf32, #tpu.memory_space<vmem>>, vector<1x1x128xf32>
    %117 = vector.shape_cast %116 : vector<1x1x128xf32> to vector<1x128xf32>
    %118 = vector.broadcast %117 : vector<1x128xf32> to vector<64x128xf32>
    %119 = arith.addf %115, %118 : vector<64x128xf32>
    %cst_163 = arith.constant 0.000000e+00 : f32
    %120 = vector.broadcast %cst_163 : f32 to vector<64x128xf32>
    %121 = arith.maximumf %119, %120 : vector<64x128xf32>
    %122 = vector.shape_cast %121 : vector<64x128xf32> to vector<8x8x128xf32>
    %123 = arith.truncf %122 : vector<8x8x128xf32> to vector<8x8x128xbf16>
    %c8_164 = arith.constant 8 : index
    %c8_165 = arith.constant 8 : index
    %c0_166 = arith.constant 0 : index
    %124 = vector.load %arg10[%c8_164, %c8_165, %c0_166] : memref<24x24x128xbf16, #tpu.memory_space<vmem>>, vector<8x8x128xbf16>
    tpu.vector_store %arg10[%c8_164, %c8_165, %c0_166], %123 {strides = array<i32>} : memref<24x24x128xbf16, #tpu.memory_space<vmem>>, vector<8x8x128xbf16>,
    %c8_167 = arith.constant 8 : index
    %c8_168 = arith.constant 8 : index
    %c0_169 = arith.constant 0 : index
    %125 = vector.load %arg10[%c8_167, %c8_168, %c0_169] : memref<24x24x128xbf16, #tpu.memory_space<vmem>>, vector<8x8x128xbf16>
    %126 = vector.shape_cast %125 : vector<8x8x128xbf16> to vector<64x128xbf16>
    %c0_170 = arith.constant 0 : index
    %c0_171 = arith.constant 0 : index
    %127 = vector.load %arg7[%c0_170, %c0_171] : memref<128x128xbf16, #tpu.memory_space<vmem>>, vector<128x128xbf16>
    %cst_172 = arith.constant dense<0.000000e+00> : vector<64x128xf32>
    %128 = tpu.matmul %126, %127, %cst_172 {dimension_numbers = #tpu.dot_dimension_numbers<[1], [0], [0], [1], [0, 0, 1, 1], [], []>} : vector<64x128xbf16>, vector<128x128xbf16>, vector<64x128xf32> -> vector<64x128xf32>
    %c0_173 = arith.constant 0 : index
    %c0_174 = arith.constant 0 : index
    %129 = vector.load %arg8[%c0_173, %c0_174] : memref<1x128xf32, #tpu.memory_space<vmem>>, vector<1x128xf32>
    %130 = vector.broadcast %129 : vector<1x128xf32> to vector<64x128xf32>
    %131 = arith.addf %128, %130 : vector<64x128xf32>
    %cst_175 = arith.constant 5.000000e-01 : f32
    %132 = vector.broadcast %cst_175 : f32 to vector<64x128xf32>
    %133 = arith.mulf %132, %131 : vector<64x128xf32>
    %134 = math.tanh %133 : vector<64x128xf32>
    %cst_176 = arith.constant 5.000000e-01 : f32
    %135 = vector.broadcast %cst_176 : f32 to vector<64x128xf32>
    %136 = arith.mulf %135, %134 : vector<64x128xf32>
    %cst_177 = arith.constant 5.000000e-01 : f32
    %137 = vector.broadcast %cst_177 : f32 to vector<64x128xf32>
    %138 = arith.addf %136, %137 : vector<64x128xf32>
    %139 = arith.truncf %138 : vector<64x128xf32> to vector<64x128xbf16>
    %c0_178 = arith.constant 0 : index
    %c0_179 = arith.constant 0 : index
    %c0_180 = arith.constant 0 : index
    %140 = vector.load %arg9[%c0_178, %c0_179, %c0_180] : memref<1x64x128xbf16, #tpu.memory_space<vmem>>, vector<1x64x128xbf16>
    %141 = vector.shape_cast %140 : vector<1x64x128xbf16> to vector<64x128xbf16>
    %142 = vector.shape_cast %139 : vector<64x128xbf16> to vector<1x64x128xbf16>
    tpu.vector_store %arg9[%c0_178, %c0_179, %c0_180], %142 {strides = array<i32>} : memref<1x64x128xbf16, #tpu.memory_space<vmem>>, vector<1x64x128xbf16>,
    return
  }
  func.func @transform_0(%arg0: i32) -> (i32, i32, i32) {
    %c0_i32 = arith.constant 0 : i32
    %c0_i32_0 = arith.constant 0 : i32
    %c0_i32_1 = arith.constant 0 : i32
    return %arg0, %c0_i32, %c0_i32_0 : i32, i32, i32
  }
  func.func @transform_1(%arg0: i32) -> (i32, i32) {
    %c0_i32 = arith.constant 0 : i32
    %c0_i32_0 = arith.constant 0 : i32
    %c0_i32_1 = arith.constant 0 : i32
    return %c0_i32, %c0_i32_0 : i32, i32
  }
  func.func @transform_2(%arg0: i32) -> (i32, i32) {
    %c0_i32 = arith.constant 0 : i32
    %c0_i32_0 = arith.constant 0 : i32
    %c0_i32_1 = arith.constant 0 : i32
    return %c0_i32, %c0_i32_0 : i32, i32
  }
  func.func @transform_3(%arg0: i32) -> (i32, i32, i32, i32) {
    %c0_i32 = arith.constant 0 : i32
    %c0_i32_0 = arith.constant 0 : i32
    %c0_i32_1 = arith.constant 0 : i32
    %c0_i32_2 = arith.constant 0 : i32
    %c0_i32_3 = arith.constant 0 : i32
    return %c0_i32, %c0_i32_0, %c0_i32_1, %c0_i32_2 : i32, i32, i32, i32
  }
  func.func @transform_4(%arg0: i32) -> (i32, i32, i32) {
    %c0_i32 = arith.constant 0 : i32
    %c0_i32_0 = arith.constant 0 : i32
    %c0_i32_1 = arith.constant 0 : i32
    %c0_i32_2 = arith.constant 0 : i32
    return %c0_i32, %c0_i32_0, %c0_i32_1 : i32, i32, i32
  }
  func.func @transform_5(%arg0: i32) -> (i32, i32, i32) {
    %c0_i32 = arith.constant 0 : i32
    %c0_i32_0 = arith.constant 0 : i32
    %c0_i32_1 = arith.constant 0 : i32
    %c0_i32_2 = arith.constant 0 : i32
    return %c0_i32, %c0_i32_0, %c0_i32_1 : i32, i32, i32
  }
  func.func @transform_6(%arg0: i32) -> (i32, i32) {
    %c0_i32 = arith.constant 0 : i32
    %c0_i32_0 = arith.constant 0 : i32
    %c0_i32_1 = arith.constant 0 : i32
    return %c0_i32, %c0_i32_0 : i32, i32
  }
  func.func @transform_7(%arg0: i32) -> (i32, i32) {
    %c0_i32 = arith.constant 0 : i32
    %c0_i32_0 = arith.constant 0 : i32
    %c0_i32_1 = arith.constant 0 : i32
    return %c0_i32, %c0_i32_0 : i32, i32
  }
  func.func @transform_8(%arg0: i32) -> (i32, i32, i32) {
    %c0_i32 = arith.constant 0 : i32
    %c0_i32_0 = arith.constant 0 : i32
    %c0_i32_1 = arith.constant 0 : i32
    return %arg0, %c0_i32, %c0_i32_0 : i32, i32, i32
  }
}

</mosaic_0001>

<llo_original>
// kernel: _lambda_.1
$region0: #{_lambda_.1}
  #allocation0 [shape = 'u32[]', space=smem, size = 0x4, offset = 0x4, fixed_abs, tag = 'smem constant byte address 0x4 - core index']
  #allocation1 [shape = 'u32[144,128]{1,0:T(1,128)}', space=vmem, size = 0x12000, scoped, tag = 'internal scratch']
  #allocation2 [shape = 'bf16[24,24,128]{2,1,0:T(8,128)(2,1)}', space=vmem, size = 0x24000, scoped, tag = 'scratch operand']
  #allocation3 [shape = 'bf16[24,8,384]{2,1,0:T(8,128)(2,1)}', space=vmem, size = 0x24000, scoped, tag = 'scratch operand']
  %s0 = inlined_call_operand.vmem [shape: f32[2,64,8], index: 0, kind: input, shape index: {}]
  %s1 = inlined_call_operand.vmem [shape: bf16[8,128], index: 1, kind: input, shape index: {}]
  %s2 = inlined_call_operand.vmem [shape: f32[1,128], index: 2, kind: input, shape index: {}]
  %s3 = inlined_call_operand.vmem [shape: bf16[3,3,384,128], index: 3, kind: input, shape index: {}]
  %s4 = inlined_call_operand.vmem [shape: f32[3,1,128], index: 4, kind: input, shape index: {}]
  %s5 = inlined_call_operand.vmem [shape: f32[3,1,128], index: 5, kind: input, shape index: {}]
  %s6 = inlined_call_operand.vmem [shape: bf16[128,128], index: 6, kind: input, shape index: {}]
  %s7 = inlined_call_operand.vmem [shape: f32[1,128], index: 7, kind: input, shape index: {}]
  %s8 = inlined_call_operand.vmem [shape: bf16[2,64,128], index: 8, kind: output, shape index: {}]
  %s9 = sld [smem:[#allocation0]]
  $region65: #{_lambda_.1} parent=0
    _
  %s11 = ssub.s32 1, %s9
  %s12 = scalar_select 0, %s11, %s9
  loop: start=0, step=1, limit=4
  $region2: #{_lambda_.1} parent=0 // loop_pre_header
    _
  $region3: #{_lambda_.1} parent=0 // loop_header
    %s14 = sphi 0, %s18
    %p15 = scmp.ge.s32.totalorder %s14, 4
    %s24 = sphi 0, %s26
    %s27 = sphi 0, %s24
    %s28 = sphi 0, %s27
    %s44 = sphi 0, %s28
    %s48 = sphi 0, %s48
    %s50 = sphi 0, %s48
    %s51 = sphi 0, %s50
    %s65 = sphi 0, %s51
    %s69 = sphi 0, %s69
    %s71 = sphi 0, %s69
    %s72 = sphi 0, %s71
    %s86 = sphi 0, %s72
    %s90 = sphi 0, %s90
    %s92 = sphi 0, %s90
    %s93 = sphi 0, %s92
    %s107 = sphi 0, %s93
    %s111 = sphi 0, %s111
    %s113 = sphi 0, %s111
    %s114 = sphi 0, %s113
    %s128 = sphi 0, %s114
    %s132 = sphi 0, %s132
    %s134 = sphi 0, %s132
    %s135 = sphi 0, %s134
    %s149 = sphi 0, %s135
    %s153 = sphi 0, %s153
    %s155 = sphi 0, %s153
    %s156 = sphi 0, %s155
    %s170 = sphi 0, %s156
    %s174 = sphi 0, %s174
    %s176 = sphi 0, %s174
    %s177 = sphi 0, %s176
    %s191 = sphi 0, %s177
    %s197 = sphi 0, %s199
    %s200 = sphi 0, %s197
    %s201 = sphi 0, %s200
    %s217 = sphi 0, %s201
  $region4: #{_lambda_.1} parent=0 // loop_header_branch
    %17 = sbr.rel (%p15) target = $region8
  $region5: #{_lambda_.1} parent=0 // loop_body
    %s19 = ssub.s32 %s14, 1
    %s20 = ssub.s32 %s14, 2
    %s21 = sadd.s32 %s14, 1
    %s22 = ssub.s32 %s14, %s21
    %p23 = scmp.eq.s32.totalorder %s22, 0
    %s25 = sadd.s32 %s24, 1
    %s26 = scalar_select %p23, %s24, %s25
    %p29 = pneg %p23
    %p30 = scmp.eq.s32.totalorder %s14, 1
    %p31 = por %p29, %p30
    %p32 = scmp.ne.s32.totalorder %s24, %s27
    %p33 = scmp.eq.s32.totalorder %s14, 0
    %p34 = por %p32, %p33
    %p35 = scmp.ne.s32.totalorder %s24, %s27
    %p36 = scmp.eq.s32.totalorder %s19, 1
    %p37 = por %p35, %p36
    %p38 = scmp.ne.s32.totalorder %s27, %s28
    %p39 = scmp.eq.s32.totalorder %s19, 0
    %p40 = por %p38, %p39
    %p41 = scmp.ne.s32.totalorder %s27, %s28
    %p42 = scmp.eq.s32.totalorder %s20, 1
    %p43 = por %p41, %p42
    %p45 = scmp.ne.s32.totalorder %s28, %s44
    %p46 = scmp.eq.s32.totalorder %s20, 0
    %p47 = por %p45, %p46
    %s49 = sadd.s32 %s48, 1
    %p52 = scmp.eq.s32.totalorder %s14, 1
    %p53 = scmp.ne.s32.totalorder %s48, %s50
    %p54 = scmp.eq.s32.totalorder %s14, 0
    %p55 = por %p53, %p54
    %p56 = scmp.ne.s32.totalorder %s48, %s50
    %p57 = scmp.eq.s32.totalorder %s19, 1
    %p58 = por %p56, %p57
    %p59 = scmp.ne.s32.totalorder %s50, %s51
    %p60 = scmp.eq.s32.totalorder %s19, 0
    %p61 = por %p59, %p60
    %p62 = scmp.ne.s32.totalorder %s50, %s51
    %p63 = scmp.eq.s32.totalorder %s20, 1
    %p64 = por %p62, %p63
    %p66 = scmp.ne.s32.totalorder %s51, %s65
    %p67 = scmp.eq.s32.totalorder %s20, 0
    %p68 = por %p66, %p67
    %s70 = sadd.s32 %s69, 1
    %p73 = scmp.eq.s32.totalorder %s14, 1
    %p74 = scmp.ne.s32.totalorder %s69, %s71
    %p75 = scmp.eq.s32.totalorder %s14, 0
    %p76 = por %p74, %p75
    %p77 = scmp.ne.s32.totalorder %s69, %s71
    %p78 = scmp.eq.s32.totalorder %s19, 1
    %p79 = por %p77, %p78
    %p80 = scmp.ne.s32.totalorder %s71, %s72
    %p81 = scmp.eq.s32.totalorder %s19, 0
    %p82 = por %p80, %p81
    %p83 = scmp.ne.s32.totalorder %s71, %s72
    %p84 = scmp.eq.s32.totalorder %s20, 1
    %p85 = por %p83, %p84
    %p87 = scmp.ne.s32.totalorder %s72, %s86
    %p88 = scmp.eq.s32.totalorder %s20, 0
    %p89 = por %p87, %p88
    %s91 = sadd.s32 %s90, 1
    %p94 = scmp.eq.s32.totalorder %s14, 1
    %p95 = scmp.ne.s32.totalorder %s90, %s92
    %p96 = scmp.eq.s32.totalorder %s14, 0
    %p97 = por %p95, %p96
    %p98 = scmp.ne.s32.totalorder %s90, %s92
    %p99 = scmp.eq.s32.totalorder %s19, 1
    %p100 = por %p98, %p99
    %p101 = scmp.ne.s32.totalorder %s92, %s93
    %p102 = scmp.eq.s32.totalorder %s19, 0
    %p103 = por %p101, %p102
    %p104 = scmp.ne.s32.totalorder %s92, %s93
    %p105 = scmp.eq.s32.totalorder %s20, 1
    %p106 = por %p104, %p105
    %p108 = scmp.ne.s32.totalorder %s93, %s107
    %p109 = scmp.eq.s32.totalorder %s20, 0
    %p110 = por %p108, %p109
    %s112 = sadd.s32 %s111, 1
    %p115 = scmp.eq.s32.totalorder %s14, 1
    %p116 = scmp.ne.s32.totalorder %s111, %s113
    %p117 = scmp.eq.s32.totalorder %s14, 0
    %p118 = por %p116, %p117
    %p119 = scmp.ne.s32.totalorder %s111, %s113
    %p120 = scmp.eq.s32.totalorder %s19, 1
    %p121 = por %p119, %p120
    %p122 = scmp.ne.s32.totalorder %s113, %s114
    %p123 = scmp.eq.s32.totalorder %s19, 0
    %p124 = por %p122, %p123
    %p125 = scmp.ne.s32.totalorder %s113, %s114
    %p126 = scmp.eq.s32.totalorder %s20, 1
    %p127 = por %p125, %p126
    %p129 = scmp.ne.s32.totalorder %s114, %s128
    %p130 = scmp.eq.s32.totalorder %s20, 0
    %p131 = por %p129, %p130
    %s133 = sadd.s32 %s132, 1
    %p136 = scmp.eq.s32.totalorder %s14, 1
    %p137 = scmp.ne.s32.totalorder %s132, %s134
    %p138 = scmp.eq.s32.totalorder %s14, 0
    %p139 = por %p137, %p138
    %p140 = scmp.ne.s32.totalorder %s132, %s134
    %p141 = scmp.eq.s32.totalorder %s19, 1
    %p142 = por %p140, %p141
    %p143 = scmp.ne.s32.totalorder %s134, %s135
    %p144 = scmp.eq.s32.totalorder %s19, 0
    %p145 = por %p143, %p144
    %p146 = scmp.ne.s32.totalorder %s134, %s135
    %p147 = scmp.eq.s32.totalorder %s20, 1
    %p148 = por %p146, %p147
    %p150 = scmp.ne.s32.totalorder %s135, %s149
    %p151 = scmp.eq.s32.totalorder %s20, 0
    %p152 = por %p150, %p151
    %s154 = sadd.s32 %s153, 1
    %p157 = scmp.eq.s32.totalorder %s14, 1
    %p158 = scmp.ne.s32.totalorder %s153, %s155
    %p159 = scmp.eq.s32.totalorder %s14, 0
    %p160 = por %p158, %p159
    %p161 = scmp.ne.s32.totalorder %s153, %s155
    %p162 = scmp.eq.s32.totalorder %s19, 1
    %p163 = por %p161, %p162
    %p164 = scmp.ne.s32.totalorder %s155, %s156
    %p165 = scmp.eq.s32.totalorder %s19, 0
    %p166 = por %p164, %p165
    %p167 = scmp.ne.s32.totalorder %s155, %s156
    %p168 = scmp.eq.s32.totalorder %s20, 1
    %p169 = por %p167, %p168
    %p171 = scmp.ne.s32.totalorder %s156, %s170
    %p172 = scmp.eq.s32.totalorder %s20, 0
    %p173 = por %p171, %p172
    %s175 = sadd.s32 %s174, 1
    %p178 = scmp.eq.s32.totalorder %s14, 1
    %p179 = scmp.ne.s32.totalorder %s174, %s176
    %p180 = scmp.eq.s32.totalorder %s14, 0
    %p181 = por %p179, %p180
    %p182 = scmp.ne.s32.totalorder %s174, %s176
    %p183 = scmp.eq.s32.totalorder %s19, 1
    %p184 = por %p182, %p183
    %p185 = scmp.ne.s32.totalorder %s176, %s177
    %p186 = scmp.eq.s32.totalorder %s19, 0
    %p187 = por %p185, %p186
    %p188 = scmp.ne.s32.totalorder %s176, %s177
    %p189 = scmp.eq.s32.totalorder %s20, 1
    %p190 = por %p188, %p189
    %p192 = scmp.ne.s32.totalorder %s177, %s191
    %p193 = scmp.eq.s32.totalorder %s20, 0
    %p194 = por %p192, %p193
    %s195 = ssub.s32 %s14, %s21
    %p196 = scmp.eq.s32.totalorder %s195, 0
    %s198 = sadd.s32 %s197, 1
    %s199 = scalar_select %p196, %s197, %s198
    %p202 = pneg %p196
    %p203 = scmp.eq.s32.totalorder %s14, 1
    %p204 = por %p202, %p203
    %p205 = scmp.ne.s32.totalorder %s197, %s200
    %p206 = scmp.eq.s32.totalorder %s14, 0
    %p207 = por %p205, %p206
    %p208 = scmp.ne.s32.totalorder %s197, %s200
    %p209 = scmp.eq.s32.totalorder %s19, 1
    %p210 = por %p208, %p209
    %p211 = scmp.ne.s32.totalorder %s200, %s201
    %p212 = scmp.eq.s32.totalorder %s19, 0
    %p213 = por %p211, %p212
    %p214 = scmp.ne.s32.totalorder %s200, %s201
    %p215 = scmp.eq.s32.totalorder %s20, 1
    %p216 = por %p214, %p215
    %p218 = scmp.ne.s32.totalorder %s201, %s217
    %p219 = scmp.eq.s32.totalorder %s20, 0
    %p220 = por %p218, %p219
    %p221 = scmp.le.s32.totalorder 1, %s14
    %p222 = scmp.lt.s32.totalorder %s14, 3
    %p223 = pnand %p221, %p222
    %p224 = pneg %p223
    // Predicated region
    $region9: #{_lambda_.1} parent=5 // pred_check
      _
    $region10: #{_lambda_.1} parent=5 // pred_check_branch
      %226 = sbr.rel (%p223) target = $region12
    $region11: #{_lambda_.1} parent=5 // pred_region
      %s227 = ssub.s32 %s14, 1
      // Predicated region
      $region13: #{_lambda_.1} parent=11 // pred_check
        %p228 = pneg %p61
      $region14: #{_lambda_.1} parent=11 // pred_check_branch
        %230 = sbr.rel (%p228) target = $region16
      $region15: #{_lambda_.1} parent=11 // pred_region
        _
      $region16: #{_lambda_.1} parent=11 // pred_fallthru
        _
      // Predicated region
      $region17: #{_lambda_.1} parent=11 // pred_check
        %p231 = pneg %p82
      $region18: #{_lambda_.1} parent=11 // pred_check_branch
        %233 = sbr.rel (%p231) target = $region20
      $region19: #{_lambda_.1} parent=11 // pred_region
        _
      $region20: #{_lambda_.1} parent=11 // pred_fallthru
        _
      // Predicated region
      $region21: #{_lambda_.1} parent=11 // pred_check
        %p234 = pneg %p103
      $region22: #{_lambda_.1} parent=11 // pred_check_branch
        %236 = sbr.rel (%p234) target = $region24
      $region23: #{_lambda_.1} parent=11 // pred_region
        _
      $region24: #{_lambda_.1} parent=11 // pred_fallthru
        _
      // Predicated region
      $region25: #{_lambda_.1} parent=11 // pred_check
        %p237 = pneg %p124
      $region26: #{_lambda_.1} parent=11 // pred_check_branch
        %239 = sbr.rel (%p237) target = $region28
      $region27: #{_lambda_.1} parent=11 // pred_region
        _
      $region28: #{_lambda_.1} parent=11 // pred_fallthru
        _
      // Predicated region
      $region29: #{_lambda_.1} parent=11 // pred_check
        %p240 = pneg %p145
      $region30: #{_lambda_.1} parent=11 // pred_check_branch
        %242 = sbr.rel (%p240) target = $region32
      $region31: #{_lambda_.1} parent=11 // pred_region
        _
      $region32: #{_lambda_.1} parent=11 // pred_fallthru
        _
      // Predicated region
      $region33: #{_lambda_.1} parent=11 // pred_check
        %p243 = pneg %p166
      $region34: #{_lambda_.1} parent=11 // pred_check_branch
        %245 = sbr.rel (%p243) target = $region36
      $region35: #{_lambda_.1} parent=11 // pred_region
        _
      $region36: #{_lambda_.1} parent=11 // pred_fallthru
        _
      // Predicated region
      $region37: #{_lambda_.1} parent=11 // pred_check
        %p246 = pneg %p187
      $region38: #{_lambda_.1} parent=11 // pred_check_branch
        %248 = sbr.rel (%p246) target = $region40
      $region39: #{_lambda_.1} parent=11 // pred_region
        _
      $region40: #{_lambda_.1} parent=11 // pred_fallthru
        _
    $region12: #{_lambda_.1} parent=5 // pred_fallthru
      _
    %p249 = scmp.lt.s32.totalorder %s14, 2
    // Predicated region
    $region41: #{_lambda_.1} parent=5 // pred_check
      %p250 = pneg %p249
    $region42: #{_lambda_.1} parent=5 // pred_check_branch
      %252 = sbr.rel (%p250) target = $region44
    $region43: #{_lambda_.1} parent=5 // pred_region
      // Predicated region
      $region45: #{_lambda_.1} parent=43 // pred_check
        %p253 = pneg %p34
      $region46: #{_lambda_.1} parent=43 // pred_check_branch
        %255 = sbr.rel (%p253) target = $region48
      $region47: #{_lambda_.1} parent=43 // pred_region
        %p256 = scmp.lt.s32.totalorder %s14, 1
        %s257 = scalar_select %p256, %s14, 1
        %s258 = smul.addr %s257, 8
        %s259 = smul.addr %s258, 8
        %s260 = scalar_lea.vmem %s0, %s259
      $region48: #{_lambda_.1} parent=43 // pred_fallthru
        _
    $region44: #{_lambda_.1} parent=5 // pred_fallthru
      _
    %p261 = scmp.le.s32.totalorder 1, %s14
    %p262 = scmp.lt.s32.totalorder %s14, 3
    %p263 = pnand %p261, %p262
    %p264 = pneg %p263
    // Predicated region
    $region49: #{_lambda_.1} parent=5 // pred_check
      _
    $region50: #{_lambda_.1} parent=5 // pred_check_branch
      %266 = sbr.rel (%p263) target = $region52
    $region51: #{_lambda_.1} parent=5 // pred_region
      %s267 = ssub.s32 %s14, 1
      %p268 = scmp.lt.s32.totalorder %s19, 1
      %s269 = scalar_select %p268, %s19, 1
      %s270 = smul.addr %s269, 8
      %s271 = smul.addr %s270, 8
      %s272 = scalar_lea.vmem %s0, %s271
      %p273 = pneg %p40
      %p274 = pneg %p37
      %p275 = pneg %p61
      %p276 = pneg %p58
      %p277 = pneg %p82
      %p278 = pneg %p79
      %p279 = pneg %p103
      %p280 = pneg %p100
      %p281 = pneg %p124
      %p282 = pneg %p121
      %p283 = pneg %p145
      %p284 = pneg %p142
      %p285 = pneg %p166
      %p286 = pneg %p163
      %p287 = pneg %p187
      %p288 = pneg %p184
      %p289 = pneg %p213
      %p290 = pneg %p210
      %p291 = scmp.lt.s32.totalorder %s19, 1
      %s292 = scalar_select %p291, %s19, 1
      %s293 = smul.addr %s292, 8
      %s294 = smul.addr %s293, 4
      %s295 = scalar_lea.vmem %s8, %s294
      %p296 = scmp.lt.s32.totalorder %s19, 1
      %s297 = scalar_select %p296, %s19, 1
      %s298 = smul.addr %s297, 8
      %s299 = smul.addr %s298, 8
      %s300 = scalar_lea.vmem %s0, %s299
      %p301 = scmp.lt.s32.totalorder %s19, 1
      %s302 = scalar_select %p301, %s19, 1
      %s303 = smul.addr %s302, 8
      %s304 = smul.addr %s303, 4
      %s305 = scalar_lea.vmem %s8, %s304
      %307 = vst [vmem:[#allocation2] sm:$0xf] 0
      %308 = vst [vmem:[#allocation2 + $0x4] sm:$0xf] 0
      %309 = vst [vmem:[#allocation2 + $0x8] sm:$0xf] 0
      %310 = vst [vmem:[#allocation2 + $0xc] sm:$0xf] 0
      %311 = vst [vmem:[#allocation2 + $0x10] sm:$0xf] 0
      %312 = vst [vmem:[#allocation2 + $0x14] sm:$0xf] 0
      %313 = vst [vmem:[#allocation2 + $0x18] sm:$0xf] 0
      %314 = vst [vmem:[#allocation2 + $0x1c] sm:$0xf] 0
      %315 = vst [vmem:[#allocation2 + $0x20] sm:$0xf] 0
      %316 = vst [vmem:[#allocation2 + $0x24] sm:$0xf] 0
      %317 = vst [vmem:[#allocation2 + $0x28] sm:$0xf] 0
      %318 = vst [vmem:[#allocation2 + $0x2c] sm:$0xf] 0
      %319 = vst [vmem:[#allocation2 + $0x30] sm:$0xf] 0
      %320 = vst [vmem:[#allocation2 + $0x34] sm:$0xf] 0
      %321 = vst [vmem:[#allocation2 + $0x38] sm:$0xf] 0
      %322 = vst [vmem:[#allocation2 + $0x3c] sm:$0xf] 0
      %323 = vst [vmem:[#allocation2 + $0x40] sm:$0xf] 0
      %324 = vst [vmem:[#allocation2 + $0x44] sm:$0xf] 0
      %325 = vst [vmem:[#allocation2 + $0x48] sm:$0xf] 0
      %326 = vst [vmem:[#allocation2 + $0x4c] sm:$0xf] 0
      %327 = vst [vmem:[#allocation2 + $0x50] sm:$0xf] 0
      %328 = vst [vmem:[#allocation2 + $0x54] sm:$0xf] 0
      %329 = vst [vmem:[#allocation2 + $0x58] sm:$0xf] 0
      %330 = vst [vmem:[#allocation2 + $0x5c] sm:$0xf] 0
      %s331 = scalar_lea.vmem [#allocation2], 192
      %332 = vst [vmem:[%s331] sm:$0xf] 0
      %333 = vst [vmem:[%s331 + $0x4] sm:$0xf] 0
      %334 = vst [vmem:[%s331 + $0x8] sm:$0xf] 0
      %335 = vst [vmem:[%s331 + $0xc] sm:$0xf] 0
      %336 = vst [vmem:[%s331 + $0x10] sm:$0xf] 0
      %337 = vst [vmem:[%s331 + $0x14] sm:$0xf] 0
      %338 = vst [vmem:[%s331 + $0x18] sm:$0xf] 0
      %339 = vst [vmem:[%s331 + $0x1c] sm:$0xf] 0
      %340 = vst [vmem:[%s331 + $0x20] sm:$0xf] 0
      %341 = vst [vmem:[%s331 + $0x24] sm:$0xf] 0
      %342 = vst [vmem:[%s331 + $0x28] sm:$0xf] 0
      %343 = vst [vmem:[%s331 + $0x2c] sm:$0xf] 0
      %344 = vst [vmem:[%s331 + $0x30] sm:$0xf] 0
      %345 = vst [vmem:[%s331 + $0x34] sm:$0xf] 0
      %346 = vst [vmem:[%s331 + $0x38] sm:$0xf] 0
      %347 = vst [vmem:[%s331 + $0x3c] sm:$0xf] 0
      %348 = vst [vmem:[%s331 + $0x40] sm:$0xf] 0
      %349 = vst [vmem:[%s331 + $0x44] sm:$0xf] 0
      %350 = vst [vmem:[%s331 + $0x48] sm:$0xf] 0
      %351 = vst [vmem:[%s331 + $0x4c] sm:$0xf] 0
      %352 = vst [vmem:[%s331 + $0x50] sm:$0xf] 0
      %353 = vst [vmem:[%s331 + $0x54] sm:$0xf] 0
      %354 = vst [vmem:[%s331 + $0x58] sm:$0xf] 0
      %355 = vst [vmem:[%s331 + $0x5c] sm:$0xf] 0
      %s356 = scalar_lea.vmem [#allocation2], 96
      %357 = vst [vmem:[%s356] sm:$0xf] 0
      %358 = vst [vmem:[%s356 + $0xc] sm:$0xf] 0
      %359 = vst [vmem:[%s356 + $0x18] sm:$0xf] 0
      %360 = vst [vmem:[%s356 + $0x24] sm:$0xf] 0
      %361 = vst [vmem:[%s356 + $0x30] sm:$0xf] 0
      %362 = vst [vmem:[%s356 + $0x3c] sm:$0xf] 0
      %363 = vst [vmem:[%s356 + $0x48] sm:$0xf] 0
      %364 = vst [vmem:[%s356 + $0x54] sm:$0xf] 0
      %365 = vst [vmem:[%s356 + $0x8] sm:$0xf] 0
      %366 = vst [vmem:[%s356 + $0x14] sm:$0xf] 0
      %367 = vst [vmem:[%s356 + $0x20] sm:$0xf] 0
      %368 = vst [vmem:[%s356 + $0x2c] sm:$0xf] 0
      %369 = vst [vmem:[%s356 + $0x38] sm:$0xf] 0
      %370 = vst [vmem:[%s356 + $0x44] sm:$0xf] 0
      %371 = vst [vmem:[%s356 + $0x50] sm:$0xf] 0
      %372 = vst [vmem:[%s356 + $0x5c] sm:$0xf] 0
      %v373 = vld [vmem:[%s300] sm:$0xff]
      %v374 = vld [vmem:[%s300 + $0x8] sm:$0xff]
      %v375 = vld [vmem:[%s300 + $0x10] sm:$0xff]
      %v376 = vld [vmem:[%s300 + $0x18] sm:$0xff]
      %v377 = vld [vmem:[%s300 + $0x20] sm:$0xff]
      %v378 = vld [vmem:[%s300 + $0x28] sm:$0xff]
      %v379 = vld [vmem:[%s300 + $0x30] sm:$0xff]
      %v380 = vld [vmem:[%s300 + $0x38] sm:$0xff]
      %v381 = vpack.c.bf16 %v374, %v373
      %v382 = vpack.c.bf16 %v376, %v375
      %v383 = vpack.c.bf16 %v378, %v377
      %v384 = vpack.c.bf16 %v380, %v379
      %v385 = vld [vmem:[%s1] sm:$0xf]
      %v386 = vld [vmem:[%s2] sm:$0x1]
      %v388 = vlaneseq
      %v389 = vshrl.u32 %v388, 7
      %v390 = vsub.s32 0, %v389
      %v391 = vrot.slane %v386, %v390
      %vm393 = vcmask 64512
      %v395 = vsel %vm393, %v381, 0
      %v398 = vsel %vm393, %v382, 0
      %v401 = vsel %vm393, %v383, 0
      %v404 = vsel %vm393, %v384, 0
      %vm406 = vcmask 1043456
      %v408 = vsel %vm406, %v385, 0
      %410 = vmatprep.subr.bf16.mxu0 0
      %411 = vmatpush1.bf16.msra.mxu0 %v408
      %412 = vmatprep.subr.bf16.mxu0 0
      %413 = vmatpush1.bf16.msra.mxu0 0
      %414 = vmatprep.subr.bf16.mxu0 0
      %415 = vmatpush1.bf16.msra.mxu0 0
      %416 = vmatprep.subr.bf16.mxu0 0
      %417 = vmatpush1.bf16.msra.mxu0 0
      %418 = vmatprep.subr.bf16.mxu0 0
      %419 = vmatpush1.bf16.msra.mxu0 0
      %420 = vmatprep.subr.bf16.mxu0 0
      %421 = vmatpush1.bf16.msra.mxu0 0
      %422 = vmatprep.subr.bf16.mxu0 0
      %423 = vmatpush1.bf16.msra.mxu0 0
      %424 = vmatprep.subr.bf16.mxu0 0
      %425 = vmatpush1.bf16.msra.mxu0 0
      %426 = vmatprep.subr.bf16.mxu0 0
      %427 = vmatpush1.bf16.msra.mxu0 0
      %428 = vmatprep.subr.bf16.mxu0 0
      %429 = vmatpush1.bf16.msra.mxu0 0
      %430 = vmatprep.subr.bf16.mxu0 0
      %431 = vmatpush1.bf16.msra.mxu0 0
      %432 = vmatprep.subr.bf16.mxu0 0
      %433 = vmatpush1.bf16.msra.mxu0 0
      %434 = vmatprep.subr.bf16.mxu0 0
      %435 = vmatpush1.bf16.msra.mxu0 0
      %436 = vmatprep.subr.bf16.mxu0 0
      %437 = vmatpush1.bf16.msra.mxu0 0
      %438 = vmatprep.subr.bf16.mxu0 0
      %439 = vmatpush1.bf16.msra.mxu0 0
      %440 = vmatprep.subr.bf16.mxu0 0
      %441 = vmatpush1.bf16.msra.mxu0 0
      %442 = vmatprep.mubr.bf16.mxu0 0
      %443 = vmatmul.mubr.bf16.gmra.mrb[0].mxu0 %v395
      %v444 = vpop.f32.mrb[0].mxu0
      %v445 = vadd.f32 %v391, %v444
      %v446 = vpop.f32.mrb[0].mxu0
      %v447 = vpop.f32.mrb[0].mxu0
      %v448 = vadd.f32 %v391, %v447
      %v449 = vpop.f32.mrb[0].mxu0
      %450 = vmatprep.mubr.bf16.mxu0 0
      %451 = vmatmul.mubr.bf16.gmra.mrb[0].mxu0 %v398
      %v452 = vpop.f32.mrb[0].mxu0
      %v453 = vadd.f32 %v391, %v452
      %v454 = vpop.f32.mrb[0].mxu0
      %v455 = vpop.f32.mrb[0].mxu0
      %v456 = vadd.f32 %v391, %v455
      %v457 = vpop.f32.mrb[0].mxu0
      %458 = vmatprep.mubr.bf16.mxu0 0
      %459 = vmatmul.mubr.bf16.gmra.mrb[0].mxu0 %v401
      %v460 = vpop.f32.mrb[0].mxu0
      %v461 = vadd.f32 %v391, %v460
      %v462 = vpop.f32.mrb[0].mxu0
      %v463 = vpop.f32.mrb[0].mxu0
      %v464 = vadd.f32 %v391, %v463
      %v465 = vpop.f32.mrb[0].mxu0
      %466 = vmatprep.mubr.bf16.mxu0 0
      %467 = vmatmul.mubr.bf16.gmra.mrb[0].mxu0 %v404
      %v468 = vpop.f32.mrb[0].mxu0
      %v469 = vadd.f32 %v391, %v468
      %v470 = vpop.f32.mrb[0].mxu0
      %v471 = vpop.f32.mrb[0].mxu0
      %v472 = vadd.f32 %v391, %v471
      %v473 = vpop.f32.mrb[0].mxu0
      %474 = vdwg.mxu0
      %v475 = vpack.c.bf16 %v445, %v445
      %v476 = vpack.c.bf16 %v448, %v448
      %v477 = vpack.c.bf16 %v453, %v453
      %v478 = vpack.c.bf16 %v456, %v456
      %v479 = vpack.c.bf16 %v461, %v461
      %v480 = vpack.c.bf16 %v464, %v464
      %v481 = vpack.c.bf16 %v469, %v469
      %v482 = vpack.c.bf16 %v472, %v472
      %483 = vst [vmem:[%s356 + $0x4] sm:$0xf] %v475
      %484 = vst [vmem:[%s356 + $0x10] sm:$0xf] %v476
      %485 = vst [vmem:[%s356 + $0x1c] sm:$0xf] %v477
      %486 = vst [vmem:[%s356 + $0x28] sm:$0xf] %v478
      %487 = vst [vmem:[%s356 + $0x34] sm:$0xf] %v479
      %488 = vst [vmem:[%s356 + $0x40] sm:$0xf] %v480
      %489 = vst [vmem:[%s356 + $0x4c] sm:$0xf] %v481
      %490 = vst [vmem:[%s356 + $0x58] sm:$0xf] %v482
      %v491 = vld [vmem:[#allocation2] sm:$0x8]
      %v492 = vld [vmem:[#allocation2 + $0x4] sm:$0xf]
      %v493 = vld [vmem:[#allocation2 + $0xc] sm:$0x8]
      %v494 = vld [vmem:[#allocation2 + $0x10] sm:$0xf]
      %v495 = vld [vmem:[#allocation2 + $0x18] sm:$0x8]
      %v496 = vld [vmem:[#allocation2 + $0x1c] sm:$0xf]
      %v497 = vld [vmem:[#allocation2 + $0x24] sm:$0x8]
      %v498 = vld [vmem:[#allocation2 + $0x28] sm:$0xf]
      %v499 = vld [vmem:[#allocation2 + $0x30] sm:$0x8]
      %v500 = vld [vmem:[#allocation2 + $0x34] sm:$0xf]
      %v501 = vld [vmem:[#allocation2 + $0x3c] sm:$0x8]
      %v502 = vld [vmem:[#allocation2 + $0x40] sm:$0xf]
      %v503 = vld [vmem:[#allocation2 + $0x48] sm:$0x8]
      %v504 = vld [vmem:[#allocation2 + $0x4c] sm:$0xf]
      %v505 = vld [vmem:[#allocation2 + $0x54] sm:$0x8]
      %v506 = vld [vmem:[#allocation2 + $0x58] sm:$0xf]
      %v507 = vld [vmem:[#allocation2 + $0x60] sm:$0x8]
      %v508 = vld [vmem:[#allocation2 + $0x64] sm:$0xf]
      %v509 = vld [vmem:[#allocation2 + $0x6c] sm:$0x8]
      %v510 = vld [vmem:[#allocation2 + $0x70] sm:$0xf]
      %v511 = vld [vmem:[#allocation2 + $0x78] sm:$0x8]
      %v512 = vld [vmem:[#allocation2 + $0x7c] sm:$0xf]
      %v513 = vld [vmem:[#allocation2 + $0x84] sm:$0x8]
      %v514 = vld [vmem:[#allocation2 + $0x88] sm:$0xf]
      %v515 = vld [vmem:[#allocation2 + $0x90] sm:$0x8]
      %v516 = vld [vmem:[#allocation2 + $0x94] sm:$0xf]
      %v517 = vld [vmem:[#allocation2 + $0x9c] sm:$0x8]
      %v518 = vld [vmem:[#allocation2 + $0xa0] sm:$0xf]
      %v519 = vld [vmem:[#allocation2 + $0xa8] sm:$0x8]
      %v520 = vld [vmem:[#allocation2 + $0xac] sm:$0xf]
      %v521 = vld [vmem:[#allocation2 + $0xb4] sm:$0x8]
      %v522 = vld [vmem:[#allocation2 + $0xb8] sm:$0xf]
      %v523 = vld [vmem:[#allocation2 + $0xc0] sm:$0x8]
      %v524 = vld [vmem:[#allocation2 + $0xc4] sm:$0xf]
      %v525 = vld [vmem:[#allocation2 + $0xcc] sm:$0x8]
      %v526 = vld [vmem:[#allocation2 + $0xd0] sm:$0xf]
      %v527 = vld [vmem:[#allocation2 + $0xd8] sm:$0x8]
      %v528 = vld [vmem:[#allocation2 + $0xdc] sm:$0xf]
      %v529 = vld [vmem:[#allocation2 + $0xe4] sm:$0x8]
      %v530 = vld [vmem:[#allocation2 + $0xe8] sm:$0xf]
      %v531 = vld [vmem:[#allocation2 + $0xf0] sm:$0x8]
      %v532 = vld [vmem:[#allocation2 + $0xf4] sm:$0xf]
      %v533 = vld [vmem:[#allocation2 + $0xfc] sm:$0x8]
      %v534 = vld [vmem:[#allocation2 + $0x100] sm:$0xf]
      %v535 = vld [vmem:[#allocation2 + $0x108] sm:$0x8]
      %v536 = vld [vmem:[#allocation2 + $0x10c] sm:$0xf]
      %v537 = vld [vmem:[#allocation2 + $0x114] sm:$0x8]
      %v538 = vld [vmem:[#allocation2 + $0x118] sm:$0xf]
      %vm539 = vsmask.f32 256
      %vm540 = vsmask.f32 4368
      %vm541 = vmor %vm539, %vm540
      %v543 = vshrl.u32 %v491, 16
      %v545 = vrot.slane %v543, 7
      %v546 = vrot.slane %v545, 4
      %v548 = vshrl.u32 %v492, 16
      %v550 = vrot.slane %v548, 7
      %v551 = vshll.u32 %v492, 16
      %v553 = vor.u32 %v550, %v551
      %v554 = vsel %vm541, %v546, %v553
      %v556 = vshrl.u32 %v493, 16
      %v558 = vrot.slane %v556, 7
      %v559 = vrot.slane %v558, 4
      %v561 = vshrl.u32 %v494, 16
      %v563 = vrot.slane %v561, 7
      %v564 = vshll.u32 %v494, 16
      %v566 = vor.u32 %v563, %v564
      %v567 = vsel %vm541, %v559, %v566
      %v569 = vshrl.u32 %v495, 16
      %v571 = vrot.slane %v569, 7
      %v572 = vrot.slane %v571, 4
      %v574 = vshrl.u32 %v496, 16
      %v576 = vrot.slane %v574, 7
      %v577 = vshll.u32 %v496, 16
      %v579 = vor.u32 %v576, %v577
      %v580 = vsel %vm541, %v572, %v579
      %v582 = vshrl.u32 %v497, 16
      %v584 = vrot.slane %v582, 7
      %v585 = vrot.slane %v584, 4
      %v587 = vshrl.u32 %v498, 16
      %v589 = vrot.slane %v587, 7
      %v590 = vshll.u32 %v498, 16
      %v592 = vor.u32 %v589, %v590
      %v593 = vsel %vm541, %v585, %v592
      %v595 = vshrl.u32 %v499, 16
      %v597 = vrot.slane %v595, 7
      %v598 = vrot.slane %v597, 4
      %v600 = vshrl.u32 %v500, 16
      %v602 = vrot.slane %v600, 7
      %v603 = vshll.u32 %v500, 16
      %v605 = vor.u32 %v602, %v603
      %v606 = vsel %vm541, %v598, %v605
      %v608 = vshrl.u32 %v501, 16
      %v610 = vrot.slane %v608, 7
      %v611 = vrot.slane %v610, 4
      %v613 = vshrl.u32 %v502, 16
      %v615 = vrot.slane %v613, 7
      %v616 = vshll.u32 %v502, 16
      %v618 = vor.u32 %v615, %v616
      %v619 = vsel %vm541, %v611, %v618
      %v621 = vshrl.u32 %v503, 16
      %v623 = vrot.slane %v621, 7
      %v624 = vrot.slane %v623, 4
      %v626 = vshrl.u32 %v504, 16
      %v628 = vrot.slane %v626, 7
      %v629 = vshll.u32 %v504, 16
      %v631 = vor.u32 %v628, %v629
      %v632 = vsel %vm541, %v624, %v631
      %v634 = vshrl.u32 %v505, 16
      %v636 = vrot.slane %v634, 7
      %v637 = vrot.slane %v636, 4
      %v639 = vshrl.u32 %v506, 16
      %v641 = vrot.slane %v639, 7
      %v642 = vshll.u32 %v506, 16
      %v644 = vor.u32 %v641, %v642
      %v645 = vsel %vm541, %v637, %v644
      %v647 = vshrl.u32 %v507, 16
      %v649 = vrot.slane %v647, 7
      %v650 = vrot.slane %v649, 4
      %v652 = vshrl.u32 %v508, 16
      %v654 = vrot.slane %v652, 7
      %v655 = vshll.u32 %v508, 16
      %v657 = vor.u32 %v654, %v655
      %v658 = vsel %vm541, %v650, %v657
      %v660 = vshrl.u32 %v509, 16
      %v662 = vrot.slane %v660, 7
      %v663 = vrot.slane %v662, 4
      %v665 = vshrl.u32 %v510, 16
      %v667 = vrot.slane %v665, 7
      %v668 = vshll.u32 %v510, 16
      %v670 = vor.u32 %v667, %v668
      %v671 = vsel %vm541, %v663, %v670
      %v673 = vshrl.u32 %v511, 16
      %v675 = vrot.slane %v673, 7
      %v676 = vrot.slane %v675, 4
      %v678 = vshrl.u32 %v512, 16
      %v680 = vrot.slane %v678, 7
      %v681 = vshll.u32 %v512, 16
      %v683 = vor.u32 %v680, %v681
      %v684 = vsel %vm541, %v676, %v683
      %v686 = vshrl.u32 %v513, 16
      %v688 = vrot.slane %v686, 7
      %v689 = vrot.slane %v688, 4
      %v691 = vshrl.u32 %v514, 16
      %v693 = vrot.slane %v691, 7
      %v694 = vshll.u32 %v514, 16
      %v696 = vor.u32 %v693, %v694
      %v697 = vsel %vm541, %v689, %v696
      %v699 = vshrl.u32 %v515, 16
      %v701 = vrot.slane %v699, 7
      %v702 = vrot.slane %v701, 4
      %v704 = vshrl.u32 %v516, 16
      %v706 = vrot.slane %v704, 7
      %v707 = vshll.u32 %v516, 16
      %v709 = vor.u32 %v706, %v707
      %v710 = vsel %vm541, %v702, %v709
      %v712 = vshrl.u32 %v517, 16
      %v714 = vrot.slane %v712, 7
      %v715 = vrot.slane %v714, 4
      %v717 = vshrl.u32 %v518, 16
      %v719 = vrot.slane %v717, 7
      %v720 = vshll.u32 %v518, 16
      %v722 = vor.u32 %v719, %v720
      %v723 = vsel %vm541, %v715, %v722
      %v725 = vshrl.u32 %v519, 16
      %v727 = vrot.slane %v725, 7
      %v728 = vrot.slane %v727, 4
      %v730 = vshrl.u32 %v520, 16
      %v732 = vrot.slane %v730, 7
      %v733 = vshll.u32 %v520, 16
      %v735 = vor.u32 %v732, %v733
      %v736 = vsel %vm541, %v728, %v735
      %v738 = vshrl.u32 %v521, 16
      %v740 = vrot.slane %v738, 7
      %v741 = vrot.slane %v740, 4
      %v743 = vshrl.u32 %v522, 16
      %v745 = vrot.slane %v743, 7
      %v746 = vshll.u32 %v522, 16
      %v748 = vor.u32 %v745, %v746
      %v749 = vsel %vm541, %v741, %v748
      %v751 = vshrl.u32 %v523, 16
      %v753 = vrot.slane %v751, 7
      %v754 = vrot.slane %v753, 4
      %v756 = vshrl.u32 %v524, 16
      %v758 = vrot.slane %v756, 7
      %v759 = vshll.u32 %v524, 16
      %v761 = vor.u32 %v758, %v759
      %v762 = vsel %vm541, %v754, %v761
      %v764 = vshrl.u32 %v525, 16
      %v766 = vrot.slane %v764, 7
      %v767 = vrot.slane %v766, 4
      %v769 = vshrl.u32 %v526, 16
      %v771 = vrot.slane %v769, 7
      %v772 = vshll.u32 %v526, 16
      %v774 = vor.u32 %v771, %v772
      %v775 = vsel %vm541, %v767, %v774
      %v777 = vshrl.u32 %v527, 16
      %v779 = vrot.slane %v777, 7
      %v780 = vrot.slane %v779, 4
      %v782 = vshrl.u32 %v528, 16
      %v784 = vrot.slane %v782, 7
      %v785 = vshll.u32 %v528, 16
      %v787 = vor.u32 %v784, %v785
      %v788 = vsel %vm541, %v780, %v787
      %v790 = vshrl.u32 %v529, 16
      %v792 = vrot.slane %v790, 7
      %v793 = vrot.slane %v792, 4
      %v795 = vshrl.u32 %v530, 16
      %v797 = vrot.slane %v795, 7
      %v798 = vshll.u32 %v530, 16
      %v800 = vor.u32 %v797, %v798
      %v801 = vsel %vm541, %v793, %v800
      %v803 = vshrl.u32 %v531, 16
      %v805 = vrot.slane %v803, 7
      %v806 = vrot.slane %v805, 4
      %v808 = vshrl.u32 %v532, 16
      %v810 = vrot.slane %v808, 7
      %v811 = vshll.u32 %v532, 16
      %v813 = vor.u32 %v810, %v811
      %v814 = vsel %vm541, %v806, %v813
      %v816 = vshrl.u32 %v533, 16
      %v818 = vrot.slane %v816, 7
      %v819 = vrot.slane %v818, 4
      %v821 = vshrl.u32 %v534, 16
      %v823 = vrot.slane %v821, 7
      %v824 = vshll.u32 %v534, 16
      %v826 = vor.u32 %v823, %v824
      %v827 = vsel %vm541, %v819, %v826
      %v829 = vshrl.u32 %v535, 16
      %v831 = vrot.slane %v829, 7
      %v832 = vrot.slane %v831, 4
      %v834 = vshrl.u32 %v536, 16
      %v836 = vrot.slane %v834, 7
      %v837 = vshll.u32 %v536, 16
      %v839 = vor.u32 %v836, %v837
      %v840 = vsel %vm541, %v832, %v839
      %v842 = vshrl.u32 %v537, 16
      %v844 = vrot.slane %v842, 7
      %v845 = vrot.slane %v844, 4
      %v847 = vshrl.u32 %v538, 16
      %v849 = vrot.slane %v847, 7
      %v850 = vshll.u32 %v538, 16
      %v852 = vor.u32 %v849, %v850
      %v853 = vsel %vm541, %v845, %v852
      %878 = vst [vmem:[#allocation3] sm:$0xf] %v554
      %879 = vst [vmem:[#allocation3 + $0xc] sm:$0xf] %v567
      %880 = vst [vmem:[#allocation3 + $0x18] sm:$0xf] %v580
      %881 = vst [vmem:[#allocation3 + $0x24] sm:$0xf] %v593
      %882 = vst [vmem:[#allocation3 + $0x30] sm:$0xf] %v606
      %883 = vst [vmem:[#allocation3 + $0x3c] sm:$0xf] %v619
      %884 = vst [vmem:[#allocation3 + $0x48] sm:$0xf] %v632
      %885 = vst [vmem:[#allocation3 + $0x54] sm:$0xf] %v645
      %886 = vst [vmem:[#allocation3 + $0x60] sm:$0xf] %v658
      %887 = vst [vmem:[#allocation3 + $0x6c] sm:$0xf] %v671
      %888 = vst [vmem:[#allocation3 + $0x78] sm:$0xf] %v684
      %889 = vst [vmem:[#allocation3 + $0x84] sm:$0xf] %v697
      %890 = vst [vmem:[#allocation3 + $0x90] sm:$0xf] %v710
      %891 = vst [vmem:[#allocation3 + $0x9c] sm:$0xf] %v723
      %892 = vst [vmem:[#allocation3 + $0xa8] sm:$0xf] %v736
      %893 = vst [vmem:[#allocation3 + $0xb4] sm:$0xf] %v749
      %894 = vst [vmem:[#allocation3 + $0xc0] sm:$0xf] %v762
      %895 = vst [vmem:[#allocation3 + $0xcc] sm:$0xf] %v775
      %896 = vst [vmem:[#allocation3 + $0xd8] sm:$0xf] %v788
      %897 = vst [vmem:[#allocation3 + $0xe4] sm:$0xf] %v801
      %898 = vst [vmem:[#allocation3 + $0xf0] sm:$0xf] %v814
      %899 = vst [vmem:[#allocation3 + $0xfc] sm:$0xf] %v827
      %900 = vst [vmem:[#allocation3 + $0x108] sm:$0xf] %v840
      %901 = vst [vmem:[#allocation3 + $0x114] sm:$0xf] %v853
      %v902 = vld [vmem:[#allocation2 + $0x4] sm:$0xf]
      %v903 = vld [vmem:[#allocation2 + $0x10] sm:$0xf]
      %v904 = vld [vmem:[#allocation2 + $0x1c] sm:$0xf]
      %v905 = vld [vmem:[#allocation2 + $0x28] sm:$0xf]
      %v906 = vld [vmem:[#allocation2 + $0x34] sm:$0xf]
      %v907 = vld [vmem:[#allocation2 + $0x40] sm:$0xf]
      %v908 = vld [vmem:[#allocation2 + $0x4c] sm:$0xf]
      %v909 = vld [vmem:[#allocation2 + $0x58] sm:$0xf]
      %v910 = vld [vmem:[#allocation2 + $0x64] sm:$0xf]
      %v911 = vld [vmem:[#allocation2 + $0x70] sm:$0xf]
      %v912 = vld [vmem:[#allocation2 + $0x7c] sm:$0xf]
      %v913 = vld [vmem:[#allocation2 + $0x88] sm:$0xf]
      %v914 = vld [vmem:[#allocation2 + $0x94] sm:$0xf]
      %v915 = vld [vmem:[#allocation2 + $0xa0] sm:$0xf]
      %v916 = vld [vmem:[#allocation2 + $0xac] sm:$0xf]
      %v917 = vld [vmem:[#allocation2 + $0xb8] sm:$0xf]
      %v918 = vld [vmem:[#allocation2 + $0xc4] sm:$0xf]
      %v919 = vld [vmem:[#allocation2 + $0xd0] sm:$0xf]
      %v920 = vld [vmem:[#allocation2 + $0xdc] sm:$0xf]
      %v921 = vld [vmem:[#allocation2 + $0xe8] sm:$0xf]
      %v922 = vld [vmem:[#allocation2 + $0xf4] sm:$0xf]
      %v923 = vld [vmem:[#allocation2 + $0x100] sm:$0xf]
      %v924 = vld [vmem:[#allocation2 + $0x10c] sm:$0xf]
      %v925 = vld [vmem:[#allocation2 + $0x118] sm:$0xf]
      %926 = vst [vmem:[#allocation3 + $0x4] sm:$0xf] %v902
      %927 = vst [vmem:[#allocation3 + $0x10] sm:$0xf] %v903
      %928 = vst [vmem:[#allocation3 + $0x1c] sm:$0xf] %v904
      %929 = vst [vmem:[#allocation3 + $0x28] sm:$0xf] %v905
      %930 = vst [vmem:[#allocation3 + $0x34] sm:$0xf] %v906
      %931 = vst [vmem:[#allocation3 + $0x40] sm:$0xf] %v907
      %932 = vst [vmem:[#allocation3 + $0x4c] sm:$0xf] %v908
      %933 = vst [vmem:[#allocation3 + $0x58] sm:$0xf] %v909
      %934 = vst [vmem:[#allocation3 + $0x64] sm:$0xf] %v910
      %935 = vst [vmem:[#allocation3 + $0x70] sm:$0xf] %v911
      %936 = vst [vmem:[#allocation3 + $0x7c] sm:$0xf] %v912
      %937 = vst [vmem:[#allocation3 + $0x88] sm:$0xf] %v913
      %938 = vst [vmem:[#allocation3 + $0x94] sm:$0xf] %v914
      %939 = vst [vmem:[#allocation3 + $0xa0] sm:$0xf] %v915
      %940 = vst [vmem:[#allocation3 + $0xac] sm:$0xf] %v916
      %941 = vst [vmem:[#allocation3 + $0xb8] sm:$0xf] %v917
      %942 = vst [vmem:[#allocation3 + $0xc4] sm:$0xf] %v918
      %943 = vst [vmem:[#allocation3 + $0xd0] sm:$0xf] %v919
      %944 = vst [vmem:[#allocation3 + $0xdc] sm:$0xf] %v920
      %945 = vst [vmem:[#allocation3 + $0xe8] sm:$0xf] %v921
      %946 = vst [vmem:[#allocation3 + $0xf4] sm:$0xf] %v922
      %947 = vst [vmem:[#allocation3 + $0x100] sm:$0xf] %v923
      %948 = vst [vmem:[#allocation3 + $0x10c] sm:$0xf] %v924
      %949 = vst [vmem:[#allocation3 + $0x118] sm:$0xf] %v925
      %v950 = vld [vmem:[#allocation2 + $0x4] sm:$0xf]
      %v951 = vld [vmem:[#allocation2 + $0x8] sm:$0x1]
      %v952 = vld [vmem:[#allocation2 + $0x10] sm:$0xf]
      %v953 = vld [vmem:[#allocation2 + $0x14] sm:$0x1]
      %v954 = vld [vmem:[#allocation2 + $0x1c] sm:$0xf]
      %v955 = vld [vmem:[#allocation2 + $0x20] sm:$0x1]
      %v956 = vld [vmem:[#allocation2 + $0x28] sm:$0xf]
      %v957 = vld [vmem:[#allocation2 + $0x2c] sm:$0x1]
      %v958 = vld [vmem:[#allocation2 + $0x34] sm:$0xf]
      %v959 = vld [vmem:[#allocation2 + $0x38] sm:$0x1]
      %v960 = vld [vmem:[#allocation2 + $0x40] sm:$0xf]
      %v961 = vld [vmem:[#allocation2 + $0x44] sm:$0x1]
      %v962 = vld [vmem:[#allocation2 + $0x4c] sm:$0xf]
      %v963 = vld [vmem:[#allocation2 + $0x50] sm:$0x1]
      %v964 = vld [vmem:[#allocation2 + $0x58] sm:$0xf]
      %v965 = vld [vmem:[#allocation2 + $0x5c] sm:$0x1]
      %v966 = vld [vmem:[#allocation2 + $0x64] sm:$0xf]
      %v967 = vld [vmem:[#allocation2 + $0x68] sm:$0x1]
      %v968 = vld [vmem:[#allocation2 + $0x70] sm:$0xf]
      %v969 = vld [vmem:[#allocation2 + $0x74] sm:$0x1]
      %v970 = vld [vmem:[#allocation2 + $0x7c] sm:$0xf]
      %v971 = vld [vmem:[#allocation2 + $0x80] sm:$0x1]
      %v972 = vld [vmem:[#allocation2 + $0x88] sm:$0xf]
      %v973 = vld [vmem:[#allocation2 + $0x8c] sm:$0x1]
      %v974 = vld [vmem:[#allocation2 + $0x94] sm:$0xf]
      %v975 = vld [vmem:[#allocation2 + $0x98] sm:$0x1]
      %v976 = vld [vmem:[#allocation2 + $0xa0] sm:$0xf]
      %v977 = vld [vmem:[#allocation2 + $0xa4] sm:$0x1]
      %v978 = vld [vmem:[#allocation2 + $0xac] sm:$0xf]
      %v979 = vld [vmem:[#allocation2 + $0xb0] sm:$0x1]
      %v980 = vld [vmem:[#allocation2 + $0xb8] sm:$0xf]
      %v981 = vld [vmem:[#allocation2 + $0xbc] sm:$0x1]
      %v982 = vld [vmem:[#allocation2 + $0xc4] sm:$0xf]
      %v983 = vld [vmem:[#allocation2 + $0xc8] sm:$0x1]
      %v984 = vld [vmem:[#allocation2 + $0xd0] sm:$0xf]
      %v985 = vld [vmem:[#allocation2 + $0xd4] sm:$0x1]
      %v986 = vld [vmem:[#allocation2 + $0xdc] sm:$0xf]
      %v987 = vld [vmem:[#allocation2 + $0xe0] sm:$0x1]
      %v988 = vld [vmem:[#allocation2 + $0xe8] sm:$0xf]
      %v989 = vld [vmem:[#allocation2 + $0xec] sm:$0x1]
      %v990 = vld [vmem:[#allocation2 + $0xf4] sm:$0xf]
      %v991 = vld [vmem:[#allocation2 + $0xf8] sm:$0x1]
      %v992 = vld [vmem:[#allocation2 + $0x100] sm:$0xf]
      %v993 = vld [vmem:[#allocation2 + $0x104] sm:$0x1]
      %v994 = vld [vmem:[#allocation2 + $0x10c] sm:$0xf]
      %v995 = vld [vmem:[#allocation2 + $0x110] sm:$0x1]
      %v996 = vld [vmem:[#allocation2 + $0x118] sm:$0xf]
      %v997 = vld [vmem:[#allocation2 + $0x11c] sm:$0x1]
      %vm998 = vsmask.f32 3328
      %vm999 = vsmask.f32 7440
      %vm1000 = vmor %vm998, %vm999
      %v1002 = vshrl.u32 %v950, 16
      %v1004 = vrot.slane %v1002, 4
      %v1005 = vshll.u32 %v950, 16
      %v1007 = vrot.slane %v1005, 5
      %v1008 = vor.u32 %v1004, %v1007
      %v1009 = vrot.slane %v1008, 4
      %v1011 = vshll.u32 %v951, 16
      %v1013 = vrot.slane %v1011, 5
      %v1014 = vsel %vm1000, %v1009, %v1013
      %v1016 = vshrl.u32 %v952, 16
      %v1018 = vrot.slane %v1016, 4
      %v1019 = vshll.u32 %v952, 16
      %v1021 = vrot.slane %v1019, 5
      %v1022 = vor.u32 %v1018, %v1021
      %v1023 = vrot.slane %v1022, 4
      %v1025 = vshll.u32 %v953, 16
      %v1027 = vrot.slane %v1025, 5
      %v1028 = vsel %vm1000, %v1023, %v1027
      %v1030 = vshrl.u32 %v954, 16
      %v1032 = vrot.slane %v1030, 4
      %v1033 = vshll.u32 %v954, 16
      %v1035 = vrot.slane %v1033, 5
      %v1036 = vor.u32 %v1032, %v1035
      %v1037 = vrot.slane %v1036, 4
      %v1039 = vshll.u32 %v955, 16
      %v1041 = vrot.slane %v1039, 5
      %v1042 = vsel %vm1000, %v1037, %v1041
      %v1044 = vshrl.u32 %v956, 16
      %v1046 = vrot.slane %v1044, 4
      %v1047 = vshll.u32 %v956, 16
      %v1049 = vrot.slane %v1047, 5
      %v1050 = vor.u32 %v1046, %v1049
      %v1051 = vrot.slane %v1050, 4
      %v1053 = vshll.u32 %v957, 16
      %v1055 = vrot.slane %v1053, 5
      %v1056 = vsel %vm1000, %v1051, %v1055
      %v1058 = vshrl.u32 %v958, 16
      %v1060 = vrot.slane %v1058, 4
      %v1061 = vshll.u32 %v958, 16
      %v1063 = vrot.slane %v1061, 5
      %v1064 = vor.u32 %v1060, %v1063
      %v1065 = vrot.slane %v1064, 4
      %v1067 = vshll.u32 %v959, 16
      %v1069 = vrot.slane %v1067, 5
      %v1070 = vsel %vm1000, %v1065, %v1069
      %v1072 = vshrl.u32 %v960, 16
      %v1074 = vrot.slane %v1072, 4
      %v1075 = vshll.u32 %v960, 16
      %v1077 = vrot.slane %v1075, 5
      %v1078 = vor.u32 %v1074, %v1077
      %v1079 = vrot.slane %v1078, 4
      %v1081 = vshll.u32 %v961, 16
      %v1083 = vrot.slane %v1081, 5
      %v1084 = vsel %vm1000, %v1079, %v1083
      %v1086 = vshrl.u32 %v962, 16
      %v1088 = vrot.slane %v1086, 4
      %v1089 = vshll.u32 %v962, 16
      %v1091 = vrot.slane %v1089, 5
      %v1092 = vor.u32 %v1088, %v1091
      %v1093 = vrot.slane %v1092, 4
      %v1095 = vshll.u32 %v963, 16
      %v1097 = vrot.slane %v1095, 5
      %v1098 = vsel %vm1000, %v1093, %v1097
      %v1100 = vshrl.u32 %v964, 16
      %v1102 = vrot.slane %v1100, 4
      %v1103 = vshll.u32 %v964, 16
      %v1105 = vrot.slane %v1103, 5
      %v1106 = vor.u32 %v1102, %v1105
      %v1107 = vrot.slane %v1106, 4
      %v1109 = vshll.u32 %v965, 16
      %v1111 = vrot.slane %v1109, 5
      %v1112 = vsel %vm1000, %v1107, %v1111
      %v1114 = vshrl.u32 %v966, 16
      %v1116 = vrot.slane %v1114, 4
      %v1117 = vshll.u32 %v966, 16
      %v1119 = vrot.slane %v1117, 5
      %v1120 = vor.u32 %v1116, %v1119
      %v1121 = vrot.slane %v1120, 4
      %v1123 = vshll.u32 %v967, 16
      %v1125 = vrot.slane %v1123, 5
      %v1126 = vsel %vm1000, %v1121, %v1125
      %v1128 = vshrl.u32 %v968, 16
      %v1130 = vrot.slane %v1128, 4
      %v1131 = vshll.u32 %v968, 16
      %v1133 = vrot.slane %v1131, 5
      %v1134 = vor.u32 %v1130, %v1133
      %v1135 = vrot.slane %v1134, 4
      %v1137 = vshll.u32 %v969, 16
      %v1139 = vrot.slane %v1137, 5
      %v1140 = vsel %vm1000, %v1135, %v1139
      %v1142 = vshrl.u32 %v970, 16
      %v1144 = vrot.slane %v1142, 4
      %v1145 = vshll.u32 %v970, 16
      %v1147 = vrot.slane %v1145, 5
      %v1148 = vor.u32 %v1144, %v1147
      %v1149 = vrot.slane %v1148, 4
      %v1151 = vshll.u32 %v971, 16
      %v1153 = vrot.slane %v1151, 5
      %v1154 = vsel %vm1000, %v1149, %v1153
      %v1156 = vshrl.u32 %v972, 16
      %v1158 = vrot.slane %v1156, 4
      %v1159 = vshll.u32 %v972, 16
      %v1161 = vrot.slane %v1159, 5
      %v1162 = vor.u32 %v1158, %v1161
      %v1163 = vrot.slane %v1162, 4
      %v1165 = vshll.u32 %v973, 16
      %v1167 = vrot.slane %v1165, 5
      %v1168 = vsel %vm1000, %v1163, %v1167
      %v1170 = vshrl.u32 %v974, 16
      %v1172 = vrot.slane %v1170, 4
      %v1173 = vshll.u32 %v974, 16
      %v1175 = vrot.slane %v1173, 5
      %v1176 = vor.u32 %v1172, %v1175
      %v1177 = vrot.slane %v1176, 4
      %v1179 = vshll.u32 %v975, 16
      %v1181 = vrot.slane %v1179, 5
      %v1182 = vsel %vm1000, %v1177, %v1181
      %v1184 = vshrl.u32 %v976, 16
      %v1186 = vrot.slane %v1184, 4
      %v1187 = vshll.u32 %v976, 16
      %v1189 = vrot.slane %v1187, 5
      %v1190 = vor.u32 %v1186, %v1189
      %v1191 = vrot.slane %v1190, 4
      %v1193 = vshll.u32 %v977, 16
      %v1195 = vrot.slane %v1193, 5
      %v1196 = vsel %vm1000, %v1191, %v1195
      %v1198 = vshrl.u32 %v978, 16
      %v1200 = vrot.slane %v1198, 4
      %v1201 = vshll.u32 %v978, 16
      %v1203 = vrot.slane %v1201, 5
      %v1204 = vor.u32 %v1200, %v1203
      %v1205 = vrot.slane %v1204, 4
      %v1207 = vshll.u32 %v979, 16
      %v1209 = vrot.slane %v1207, 5
      %v1210 = vsel %vm1000, %v1205, %v1209
      %v1212 = vshrl.u32 %v980, 16
      %v1214 = vrot.slane %v1212, 4
      %v1215 = vshll.u32 %v980, 16
      %v1217 = vrot.slane %v1215, 5
      %v1218 = vor.u32 %v1214, %v1217
      %v1219 = vrot.slane %v1218, 4
      %v1221 = vshll.u32 %v981, 16
      %v1223 = vrot.slane %v1221, 5
      %v1224 = vsel %vm1000, %v1219, %v1223
      %v1226 = vshrl.u32 %v982, 16
      %v1228 = vrot.slane %v1226, 4
      %v1229 = vshll.u32 %v982, 16
      %v1231 = vrot.slane %v1229, 5
      %v1232 = vor.u32 %v1228, %v1231
      %v1233 = vrot.slane %v1232, 4
      %v1235 = vshll.u32 %v983, 16
      %v1237 = vrot.slane %v1235, 5
      %v1238 = vsel %vm1000, %v1233, %v1237
      %v1240 = vshrl.u32 %v984, 16
      %v1242 = vrot.slane %v1240, 4
      %v1243 = vshll.u32 %v984, 16
      %v1245 = vrot.slane %v1243, 5
      %v1246 = vor.u32 %v1242, %v1245
      %v1247 = vrot.slane %v1246, 4
      %v1249 = vshll.u32 %v985, 16
      %v1251 = vrot.slane %v1249, 5
      %v1252 = vsel %vm1000, %v1247, %v1251
      %v1254 = vshrl.u32 %v986, 16
      %v1256 = vrot.slane %v1254, 4
      %v1257 = vshll.u32 %v986, 16
      %v1259 = vrot.slane %v1257, 5
      %v1260 = vor.u32 %v1256, %v1259
      %v1261 = vrot.slane %v1260, 4
      %v1263 = vshll.u32 %v987, 16
      %v1265 = vrot.slane %v1263, 5
      %v1266 = vsel %vm1000, %v1261, %v1265
      %v1268 = vshrl.u32 %v988, 16
      %v1270 = vrot.slane %v1268, 4
      %v1271 = vshll.u32 %v988, 16
      %v1273 = vrot.slane %v1271, 5
      %v1274 = vor.u32 %v1270, %v1273
      %v1275 = vrot.slane %v1274, 4
      %v1277 = vshll.u32 %v989, 16
      %v1279 = vrot.slane %v1277, 5
      %v1280 = vsel %vm1000, %v1275, %v1279
      %v1282 = vshrl.u32 %v990, 16
      %v1284 = vrot.slane %v1282, 4
      %v1285 = vshll.u32 %v990, 16
      %v1287 = vrot.slane %v1285, 5
      %v1288 = vor.u32 %v1284, %v1287
      %v1289 = vrot.slane %v1288, 4
      %v1291 = vshll.u32 %v991, 16
      %v1293 = vrot.slane %v1291, 5
      %v1294 = vsel %vm1000, %v1289, %v1293
      %v1296 = vshrl.u32 %v992, 16
      %v1298 = vrot.slane %v1296, 4
      %v1299 = vshll.u32 %v992, 16
      %v1301 = vrot.slane %v1299, 5
      %v1302 = vor.u32 %v1298, %v1301
      %v1303 = vrot.slane %v1302, 4
      %v1305 = vshll.u32 %v993, 16
      %v1307 = vrot.slane %v1305, 5
      %v1308 = vsel %vm1000, %v1303, %v1307
      %v1310 = vshrl.u32 %v994, 16
      %v1312 = vrot.slane %v1310, 4
      %v1313 = vshll.u32 %v994, 16
      %v1315 = vrot.slane %v1313, 5
      %v1316 = vor.u32 %v1312, %v1315
      %v1317 = vrot.slane %v1316, 4
      %v1319 = vshll.u32 %v995, 16
      %v1321 = vrot.slane %v1319, 5
      %v1322 = vsel %vm1000, %v1317, %v1321
      %v1324 = vshrl.u32 %v996, 16
      %v1326 = vrot.slane %v1324, 4
      %v1327 = vshll.u32 %v996, 16
      %v1329 = vrot.slane %v1327, 5
      %v1330 = vor.u32 %v1326, %v1329
      %v1331 = vrot.slane %v1330, 4
      %v1333 = vshll.u32 %v997, 16
      %v1335 = vrot.slane %v1333, 5
      %v1336 = vsel %vm1000, %v1331, %v1335
      %1361 = vst [vmem:[#allocation3 + $0x8] sm:$0xf] %v1014
      %1362 = vst [vmem:[#allocation3 + $0x14] sm:$0xf] %v1028
      %1363 = vst [vmem:[#allocation3 + $0x20] sm:$0xf] %v1042
      %1364 = vst [vmem:[#allocation3 + $0x2c] sm:$0xf] %v1056
      %1365 = vst [vmem:[#allocation3 + $0x38] sm:$0xf] %v1070
      %1366 = vst [vmem:[#allocation3 + $0x44] sm:$0xf] %v1084
      %1367 = vst [vmem:[#allocation3 + $0x50] sm:$0xf] %v1098
      %1368 = vst [vmem:[#allocation3 + $0x5c] sm:$0xf] %v1112
      %1369 = vst [vmem:[#allocation3 + $0x68] sm:$0xf] %v1126
      %1370 = vst [vmem:[#allocation3 + $0x74] sm:$0xf] %v1140
      %1371 = vst [vmem:[#allocation3 + $0x80] sm:$0xf] %v1154
      %1372 = vst [vmem:[#allocation3 + $0x8c] sm:$0xf] %v1168
      %1373 = vst [vmem:[#allocation3 + $0x98] sm:$0xf] %v1182
      %1374 = vst [vmem:[#allocation3 + $0xa4] sm:$0xf] %v1196
      %1375 = vst [vmem:[#allocation3 + $0xb0] sm:$0xf] %v1210
      %1376 = vst [vmem:[#allocation3 + $0xbc] sm:$0xf] %v1224
      %1377 = vst [vmem:[#allocation3 + $0xc8] sm:$0xf] %v1238
      %1378 = vst [vmem:[#allocation3 + $0xd4] sm:$0xf] %v1252
      %1379 = vst [vmem:[#allocation3 + $0xe0] sm:$0xf] %v1266
      %1380 = vst [vmem:[#allocation3 + $0xec] sm:$0xf] %v1280
      %1381 = vst [vmem:[#allocation3 + $0xf8] sm:$0xf] %v1294
      %1382 = vst [vmem:[#allocation3 + $0x104] sm:$0xf] %v1308
      %1383 = vst [vmem:[#allocation3 + $0x110] sm:$0xf] %v1322
      %1384 = vst [vmem:[#allocation3 + $0x11c] sm:$0xf] %v1336
      %s1385 = scalar_lea.vmem [#allocation3], 84
      %v1386 = vld [vmem:[%s1385] sm:$0xff]
      %v1387 = vld [vmem:[%s1385 + $0x8] sm:$0xf]
      %v1388 = vld [vmem:[%s1385 + $0xc] sm:$0xff]
      %v1389 = vld [vmem:[%s1385 + $0x14] sm:$0xf]
      %v1390 = vld [vmem:[%s1385 + $0x18] sm:$0xff]
      %v1391 = vld [vmem:[%s1385 + $0x20] sm:$0xf]
      %v1392 = vld [vmem:[%s1385 + $0x24] sm:$0xff]
      %v1393 = vld [vmem:[%s1385 + $0x2c] sm:$0xf]
      %v1394 = vld [vmem:[%s1385 + $0x30] sm:$0xff]
      %v1395 = vld [vmem:[%s1385 + $0x38] sm:$0xf]
      %v1396 = vld [vmem:[%s1385 + $0x3c] sm:$0xff]
      %v1397 = vld [vmem:[%s1385 + $0x44] sm:$0xf]
      %v1398 = vld [vmem:[%s1385 + $0x48] sm:$0xff]
      %v1399 = vld [vmem:[%s1385 + $0x50] sm:$0xf]
      %v1400 = vld [vmem:[%s1385 + $0x54] sm:$0xff]
      %v1401 = vld [vmem:[%s1385 + $0x5c] sm:$0xf]
      %v1402 = vld [vmem:[%s3] sm:$0xf]
      %v1403 = vld [vmem:[%s3 + $0x4] sm:$0xf]
      %v1404 = vld [vmem:[%s3 + $0x8] sm:$0xf]
      %v1405 = vld [vmem:[%s3 + $0xc] sm:$0xf]
      %v1406 = vld [vmem:[%s3 + $0x10] sm:$0xf]
      %v1407 = vld [vmem:[%s3 + $0x14] sm:$0xf]
      %v1408 = vld [vmem:[%s3 + $0x18] sm:$0xf]
      %v1409 = vld [vmem:[%s3 + $0x1c] sm:$0xf]
      %v1410 = vld [vmem:[%s3 + $0x20] sm:$0xf]
      %v1411 = vld [vmem:[%s3 + $0x24] sm:$0xf]
      %v1412 = vld [vmem:[%s3 + $0x28] sm:$0xf]
      %v1413 = vld [vmem:[%s3 + $0x2c] sm:$0xf]
      %v1414 = vld [vmem:[%s3 + $0x30] sm:$0xf]
      %v1415 = vld [vmem:[%s3 + $0x34] sm:$0xf]
      %v1416 = vld [vmem:[%s3 + $0x38] sm:$0xf]
      %v1417 = vld [vmem:[%s3 + $0x3c] sm:$0xf]
      %v1418 = vld [vmem:[%s3 + $0x40] sm:$0xf]
      %v1419 = vld [vmem:[%s3 + $0x44] sm:$0xf]
      %v1420 = vld [vmem:[%s3 + $0x48] sm:$0xf]
      %v1421 = vld [vmem:[%s3 + $0x4c] sm:$0xf]
      %v1422 = vld [vmem:[%s3 + $0x50] sm:$0xf]
      %v1423 = vld [vmem:[%s3 + $0x54] sm:$0xf]
      %v1424 = vld [vmem:[%s3 + $0x58] sm:$0xf]
      %v1425 = vld [vmem:[%s3 + $0x5c] sm:$0xf]
      %v1426 = vld [vmem:[%s3 + $0x60] sm:$0xf]
      %v1427 = vld [vmem:[%s3 + $0x64] sm:$0xf]
      %v1428 = vld [vmem:[%s3 + $0x68] sm:$0xf]
      %v1429 = vld [vmem:[%s3 + $0x6c] sm:$0xf]
      %v1430 = vld [vmem:[%s3 + $0x70] sm:$0xf]
      %v1431 = vld [vmem:[%s3 + $0x74] sm:$0xf]
      %v1432 = vld [vmem:[%s3 + $0x78] sm:$0xf]
      %v1433 = vld [vmem:[%s3 + $0x7c] sm:$0xf]
      %v1434 = vld [vmem:[%s3 + $0x80] sm:$0xf]
      %v1435 = vld [vmem:[%s3 + $0x84] sm:$0xf]
      %v1436 = vld [vmem:[%s3 + $0x88] sm:$0xf]
      %v1437 = vld [vmem:[%s3 + $0x8c] sm:$0xf]
      %v1438 = vld [vmem:[%s3 + $0x90] sm:$0xf]
      %v1439 = vld [vmem:[%s3 + $0x94] sm:$0xf]
      %v1440 = vld [vmem:[%s3 + $0x98] sm:$0xf]
      %v1441 = vld [vmem:[%s3 + $0x9c] sm:$0xf]
      %v1442 = vld [vmem:[%s3 + $0xa0] sm:$0xf]
      %v1443 = vld [vmem:[%s3 + $0xa4] sm:$0xf]
      %v1444 = vld [vmem:[%s3 + $0xa8] sm:$0xf]
      %v1445 = vld [vmem:[%s3 + $0xac] sm:$0xf]
      %v1446 = vld [vmem:[%s3 + $0xb0] sm:$0xf]
      %v1447 = vld [vmem:[%s3 + $0xb4] sm:$0xf]
      %v1448 = vld [vmem:[%s3 + $0xb8] sm:$0xf]
      %v1449 = vld [vmem:[%s3 + $0xbc] sm:$0xf]
      %s1450 = scalar_lea.vmem [#allocation3], 96
      %v1451 = vld [vmem:[%s1450] sm:$0xff]
      %v1452 = vld [vmem:[%s1450 + $0x8] sm:$0xf]
      %v1453 = vld [vmem:[%s1450 + $0xc] sm:$0xff]
      %v1454 = vld [vmem:[%s1450 + $0x14] sm:$0xf]
      %v1455 = vld [vmem:[%s1450 + $0x18] sm:$0xff]
      %v1456 = vld [vmem:[%s1450 + $0x20] sm:$0xf]
      %v1457 = vld [vmem:[%s1450 + $0x24] sm:$0xff]
      %v1458 = vld [vmem:[%s1450 + $0x2c] sm:$0xf]
      %v1459 = vld [vmem:[%s1450 + $0x30] sm:$0xff]
      %v1460 = vld [vmem:[%s1450 + $0x38] sm:$0xf]
      %v1461 = vld [vmem:[%s1450 + $0x3c] sm:$0xff]
      %v1462 = vld [vmem:[%s1450 + $0x44] sm:$0xf]
      %v1463 = vld [vmem:[%s1450 + $0x48] sm:$0xff]
      %v1464 = vld [vmem:[%s1450 + $0x50] sm:$0xf]
      %v1465 = vld [vmem:[%s1450 + $0x54] sm:$0xff]
      %v1466 = vld [vmem:[%s1450 + $0x5c] sm:$0xf]
      %s1467 = scalar_lea.vmem %s3, 192
      %v1468 = vld [vmem:[%s1467] sm:$0xf]
      %v1469 = vld [vmem:[%s1467 + $0x4] sm:$0xf]
      %v1470 = vld [vmem:[%s1467 + $0x8] sm:$0xf]
      %v1471 = vld [vmem:[%s1467 + $0xc] sm:$0xf]
      %v1472 = vld [vmem:[%s1467 + $0x10] sm:$0xf]
      %v1473 = vld [vmem:[%s1467 + $0x14] sm:$0xf]
      %v1474 = vld [vmem:[%s1467 + $0x18] sm:$0xf]
      %v1475 = vld [vmem:[%s1467 + $0x1c] sm:$0xf]
      %v1476 = vld [vmem:[%s1467 + $0x20] sm:$0xf]
      %v1477 = vld [vmem:[%s1467 + $0x24] sm:$0xf]
      %v1478 = vld [vmem:[%s1467 + $0x28] sm:$0xf]
      %v1479 = vld [vmem:[%s1467 + $0x2c] sm:$0xf]
      %v1480 = vld [vmem:[%s1467 + $0x30] sm:$0xf]
      %v1481 = vld [vmem:[%s1467 + $0x34] sm:$0xf]
      %v1482 = vld [vmem:[%s1467 + $0x38] sm:$0xf]
      %v1483 = vld [vmem:[%s1467 + $0x3c] sm:$0xf]
      %v1484 = vld [vmem:[%s1467 + $0x40] sm:$0xf]
      %v1485 = vld [vmem:[%s1467 + $0x44] sm:$0xf]
      %v1486 = vld [vmem:[%s1467 + $0x48] sm:$0xf]
      %v1487 = vld [vmem:[%s1467 + $0x4c] sm:$0xf]
      %v1488 = vld [vmem:[%s1467 + $0x50] sm:$0xf]
      %v1489 = vld [vmem:[%s1467 + $0x54] sm:$0xf]
      %v1490 = vld [vmem:[%s1467 + $0x58] sm:$0xf]
      %v1491 = vld [vmem:[%s1467 + $0x5c] sm:$0xf]
      %v1492 = vld [vmem:[%s1467 + $0x60] sm:$0xf]
      %v1493 = vld [vmem:[%s1467 + $0x64] sm:$0xf]
      %v1494 = vld [vmem:[%s1467 + $0x68] sm:$0xf]
      %v1495 = vld [vmem:[%s1467 + $0x6c] sm:$0xf]
      %v1496 = vld [vmem:[%s1467 + $0x70] sm:$0xf]
      %v1497 = vld [vmem:[%s1467 + $0x74] sm:$0xf]
      %v1498 = vld [vmem:[%s1467 + $0x78] sm:$0xf]
      %v1499 = vld [vmem:[%s1467 + $0x7c] sm:$0xf]
      %v1500 = vld [vmem:[%s1467 + $0x80] sm:$0xf]
      %v1501 = vld [vmem:[%s1467 + $0x84] sm:$0xf]
      %v1502 = vld [vmem:[%s1467 + $0x88] sm:$0xf]
      %v1503 = vld [vmem:[%s1467 + $0x8c] sm:$0xf]
      %v1504 = vld [vmem:[%s1467 + $0x90] sm:$0xf]
      %v1505 = vld [vmem:[%s1467 + $0x94] sm:$0xf]
      %v1506 = vld [vmem:[%s1467 + $0x98] sm:$0xf]
      %v1507 = vld [vmem:[%s1467 + $0x9c] sm:$0xf]
      %v1508 = vld [vmem:[%s1467 + $0xa0] sm:$0xf]
      %v1509 = vld [vmem:[%s1467 + $0xa4] sm:$0xf]
      %v1510 = vld [vmem:[%s1467 + $0xa8] sm:$0xf]
      %v1511 = vld [vmem:[%s1467 + $0xac] sm:$0xf]
      %v1512 = vld [vmem:[%s1467 + $0xb0] sm:$0xf]
      %v1513 = vld [vmem:[%s1467 + $0xb4] sm:$0xf]
      %v1514 = vld [vmem:[%s1467 + $0xb8] sm:$0xf]
      %v1515 = vld [vmem:[%s1467 + $0xbc] sm:$0xf]
      %v1532 = vunpack.c.l.b16 %v1451
      %v1533 = vunpack.c.h.b16 %v1451
      %v1534 = vunpack.c.l.b16 %v1452
      %v1535 = vunpack.c.l.b16 %v1453
      %v1536 = vunpack.c.h.b16 %v1453
      %v1537 = vunpack.c.l.b16 %v1454
      %v1538 = vunpack.c.l.b16 %v1455
      %v1539 = vunpack.c.h.b16 %v1455
      %v1540 = vunpack.c.l.b16 %v1456
      %v1541 = vunpack.c.l.b16 %v1457
      %v1542 = vunpack.c.h.b16 %v1457
      %v1543 = vunpack.c.l.b16 %v1458
      %v1544 = vunpack.c.l.b16 %v1459
      %v1545 = vunpack.c.h.b16 %v1459
      %v1546 = vunpack.c.l.b16 %v1460
      %v1547 = vunpack.c.l.b16 %v1461
      %v1548 = vunpack.c.h.b16 %v1461
      %v1549 = vunpack.c.l.b16 %v1462
      %v1550 = vunpack.c.l.b16 %v1463
      %v1551 = vunpack.c.h.b16 %v1463
      %v1552 = vunpack.c.l.b16 %v1464
      %v1553 = vunpack.c.l.b16 %v1465
      %v1554 = vunpack.c.h.b16 %v1465
      %v1555 = vunpack.c.l.b16 %v1466
      %v1556 = vpack.c.b16 %v1535, %v1532
      %v1557 = vpack.c.b16 %v1536, %v1533
      %v1558 = vpack.c.b16 %v1537, %v1534
      %v1559 = vpack.c.b16 %v1541, %v1538
      %v1560 = vpack.c.b16 %v1542, %v1539
      %v1561 = vpack.c.b16 %v1543, %v1540
      %v1562 = vpack.c.b16 %v1547, %v1544
      %v1563 = vpack.c.b16 %v1548, %v1545
      %v1564 = vpack.c.b16 %v1549, %v1546
      %v1565 = vpack.c.b16 %v1553, %v1550
      %v1566 = vpack.c.b16 %v1554, %v1551
      %v1567 = vpack.c.b16 %v1555, %v1552
      %v1628 = vunpack.c.l.b16 %v1468
      %v1629 = vunpack.c.l.b16 %v1469
      %v1630 = vunpack.c.l.b16 %v1470
      %v1631 = vunpack.c.l.b16 %v1471
      %v1632 = vunpack.c.l.b16 %v1472
      %v1633 = vunpack.c.l.b16 %v1473
      %v1634 = vunpack.c.l.b16 %v1474
      %v1635 = vunpack.c.l.b16 %v1475
      %v1636 = vunpack.c.l.b16 %v1476
      %v1637 = vunpack.c.l.b16 %v1477
      %v1638 = vunpack.c.l.b16 %v1478
      %v1639 = vunpack.c.l.b16 %v1479
      %v1640 = vunpack.c.l.b16 %v1480
      %v1641 = vunpack.c.l.b16 %v1481
      %v1642 = vunpack.c.l.b16 %v1482
      %v1643 = vunpack.c.l.b16 %v1483
      %v1644 = vunpack.c.l.b16 %v1484
      %v1645 = vunpack.c.l.b16 %v1485
      %v1646 = vunpack.c.l.b16 %v1486
      %v1647 = vunpack.c.l.b16 %v1487
      %v1648 = vunpack.c.l.b16 %v1488
      %v1649 = vunpack.c.l.b16 %v1489
      %v1650 = vunpack.c.l.b16 %v1490
      %v1651 = vunpack.c.l.b16 %v1491
      %v1652 = vunpack.c.l.b16 %v1492
      %v1653 = vunpack.c.l.b16 %v1493
      %v1654 = vunpack.c.l.b16 %v1494
      %v1655 = vunpack.c.l.b16 %v1495
      %v1656 = vunpack.c.l.b16 %v1496
      %v1657 = vunpack.c.l.b16 %v1497
      %v1658 = vunpack.c.l.b16 %v1498
      %v1659 = vunpack.c.l.b16 %v1499
      %v1660 = vunpack.c.l.b16 %v1500
      %v1661 = vunpack.c.l.b16 %v1501
      %v1662 = vunpack.c.l.b16 %v1502
      %v1663 = vunpack.c.l.b16 %v1503
      %v1664 = vunpack.c.l.b16 %v1504
      %v1665 = vunpack.c.l.b16 %v1505
      %v1666 = vunpack.c.l.b16 %v1506
      %v1667 = vunpack.c.l.b16 %v1507
      %v1668 = vunpack.c.l.b16 %v1508
      %v1669 = vunpack.c.l.b16 %v1509
      %v1670 = vunpack.c.l.b16 %v1510
      %v1671 = vunpack.c.l.b16 %v1511
      %v1672 = vunpack.c.l.b16 %v1512
      %v1673 = vunpack.c.l.b16 %v1513
      %v1674 = vunpack.c.l.b16 %v1514
      %v1675 = vunpack.c.l.b16 %v1515
      %v1676 = vpack.c.b16 %v1629, %v1628
      %v1677 = vpack.c.b16 %v1631, %v1630
      %v1678 = vpack.c.b16 %v1633, %v1632
      %v1679 = vpack.c.b16 %v1635, %v1634
      %v1680 = vpack.c.b16 %v1637, %v1636
      %v1681 = vpack.c.b16 %v1639, %v1638
      %v1682 = vpack.c.b16 %v1641, %v1640
      %v1683 = vpack.c.b16 %v1643, %v1642
      %v1684 = vpack.c.b16 %v1645, %v1644
      %v1685 = vpack.c.b16 %v1647, %v1646
      %v1686 = vpack.c.b16 %v1649, %v1648
      %v1687 = vpack.c.b16 %v1651, %v1650
      %v1688 = vpack.c.b16 %v1653, %v1652
      %v1689 = vpack.c.b16 %v1655, %v1654
      %v1690 = vpack.c.b16 %v1657, %v1656
      %v1691 = vpack.c.b16 %v1659, %v1658
      %v1692 = vpack.c.b16 %v1661, %v1660
      %v1693 = vpack.c.b16 %v1663, %v1662
      %v1694 = vpack.c.b16 %v1665, %v1664
      %v1695 = vpack.c.b16 %v1667, %v1666
      %v1696 = vpack.c.b16 %v1669, %v1668
      %v1697 = vpack.c.b16 %v1671, %v1670
      %v1698 = vpack.c.b16 %v1673, %v1672
      %v1699 = vpack.c.b16 %v1675, %v1674
      %1724 = vmatprep.subr.bf16.mxu0 0
      %1725 = vmatpush1.bf16.msra.mxu0 %v1676
      %1726 = vmatprep.subr.bf16.mxu0 0
      %1727 = vmatpush1.bf16.msra.mxu0 %v1677
      %1728 = vmatprep.subr.bf16.mxu0 0
      %1729 = vmatpush1.bf16.msra.mxu0 %v1678
      %1730 = vmatprep.subr.bf16.mxu0 0
      %1731 = vmatpush1.bf16.msra.mxu0 %v1679
      %1732 = vmatprep.subr.bf16.mxu0 0
      %1733 = vmatpush1.bf16.msra.mxu0 %v1680
      %1734 = vmatprep.subr.bf16.mxu0 0
      %1735 = vmatpush1.bf16.msra.mxu0 %v1681
      %1736 = vmatprep.subr.bf16.mxu0 0
      %1737 = vmatpush1.bf16.msra.mxu0 %v1682
      %1738 = vmatprep.subr.bf16.mxu0 0
      %1739 = vmatpush1.bf16.msra.mxu0 %v1683
      %1740 = vmatprep.subr.bf16.mxu0 0
      %1741 = vmatpush1.bf16.msra.mxu0 %v1684
      %1742 = vmatprep.subr.bf16.mxu0 0
      %1743 = vmatpush1.bf16.msra.mxu0 %v1685
      %1744 = vmatprep.subr.bf16.mxu0 0
      %1745 = vmatpush1.bf16.msra.mxu0 %v1686
      %1746 = vmatprep.subr.bf16.mxu0 0
      %1747 = vmatpush1.bf16.msra.mxu0 %v1687
      %1748 = vmatprep.subr.bf16.mxu0 0
      %1749 = vmatpush1.bf16.msra.mxu0 %v1688
      %1750 = vmatprep.subr.bf16.mxu0 0
      %1751 = vmatpush1.bf16.msra.mxu0 %v1689
      %1752 = vmatprep.subr.bf16.mxu0 0
      %1753 = vmatpush1.bf16.msra.mxu0 %v1690
      %1754 = vmatprep.subr.bf16.mxu0 0
      %1755 = vmatpush1.bf16.msra.mxu0 %v1691
      %1756 = vmatprep.mubr.bf16.mxu0 %v1557
      %1757 = vmatmul.mubr.bf16.gmra.mrb[0].mxu0 %v1556
      %v1758 = vpop.f32.mrb[0].mxu0
      %v1759 = vadd.f32 0.0, %v1758
      %v1760 = vpop.f32.mrb[0].mxu0
      %v1761 = vpop.f32.mrb[0].mxu0
      %v1762 = vadd.f32 0.0, %v1761
      %v1763 = vpop.f32.mrb[0].mxu0
      %1764 = vmatprep.mubr.bf16.mxu0 %v1560
      %1765 = vmatmul.mubr.bf16.gmra.mrb[0].mxu0 %v1559
      %v1766 = vpop.f32.mrb[0].mxu0
      %v1767 = vadd.f32 0.0, %v1766
      %v1768 = vpop.f32.mrb[0].mxu0
      %v1769 = vpop.f32.mrb[0].mxu0
      %v1770 = vadd.f32 0.0, %v1769
      %v1771 = vpop.f32.mrb[0].mxu0
      %1772 = vmatprep.mubr.bf16.mxu0 %v1563
      %1773 = vmatmul.mubr.bf16.gmra.mrb[0].mxu0 %v1562
      %v1774 = vpop.f32.mrb[0].mxu0
      %v1775 = vadd.f32 0.0, %v1774
      %v1776 = vpop.f32.mrb[0].mxu0
      %v1777 = vpop.f32.mrb[0].mxu0
      %v1778 = vadd.f32 0.0, %v1777
      %v1779 = vpop.f32.mrb[0].mxu0
      %1780 = vmatprep.mubr.bf16.mxu0 %v1566
      %1781 = vmatmul.mubr.bf16.gmra.mrb[0].mxu0 %v1565
      %v1782 = vpop.f32.mrb[0].mxu0
      %v1783 = vadd.f32 0.0, %v1782
      %v1784 = vpop.f32.mrb[0].mxu0
      %v1785 = vpop.f32.mrb[0].mxu0
      %v1786 = vadd.f32 0.0, %v1785
      %v1787 = vpop.f32.mrb[0].mxu0
      %1788 = vdwg.mxu0
      %1789 = vmatprep.subr.bf16.mxu0 0
      %1790 = vmatpush1.bf16.msra.mxu0 %v1692
      %1791 = vmatprep.subr.bf16.mxu0 0
      %1792 = vmatpush1.bf16.msra.mxu0 %v1693
      %1793 = vmatprep.subr.bf16.mxu0 0
      %1794 = vmatpush1.bf16.msra.mxu0 %v1694
      %1795 = vmatprep.subr.bf16.mxu0 0
      %1796 = vmatpush1.bf16.msra.mxu0 %v1695
      %1797 = vmatprep.subr.bf16.mxu0 0
      %1798 = vmatpush1.bf16.msra.mxu0 %v1696
      %1799 = vmatprep.subr.bf16.mxu0 0
      %1800 = vmatpush1.bf16.msra.mxu0 %v1697
      %1801 = vmatprep.subr.bf16.mxu0 0
      %1802 = vmatpush1.bf16.msra.mxu0 %v1698
      %1803 = vmatprep.subr.bf16.mxu0 0
      %1804 = vmatpush1.bf16.msra.mxu0 %v1699
      %1805 = vmatprep.subr.bf16.mxu0 0
      %1806 = vmatpush1.bf16.msra.mxu0 0
      %1807 = vmatprep.subr.bf16.mxu0 0
      %1808 = vmatpush1.bf16.msra.mxu0 0
      %1809 = vmatprep.subr.bf16.mxu0 0
      %1810 = vmatpush1.bf16.msra.mxu0 0
      %1811 = vmatprep.subr.bf16.mxu0 0
      %1812 = vmatpush1.bf16.msra.mxu0 0
      %1813 = vmatprep.subr.bf16.mxu0 0
      %1814 = vmatpush1.bf16.msra.mxu0 0
      %1815 = vmatprep.subr.bf16.mxu0 0
      %1816 = vmatpush1.bf16.msra.mxu0 0
      %1817 = vmatprep.subr.bf16.mxu0 0
      %1818 = vmatpush1.bf16.msra.mxu0 0
      %1819 = vmatprep.subr.bf16.mxu0 0
      %1820 = vmatpush1.bf16.msra.mxu0 0
      %1821 = vmatprep.mubr.bf16.mxu0 0
      %1822 = vmatmul.mubr.bf16.gmra.mrb[0].mxu0 %v1558
      %v1823 = vpop.f32.mrb[0].mxu0
      %v1824 = vadd.f32 %v1759, %v1823
      %v1825 = vpop.f32.mrb[0].mxu0
      %v1826 = vpop.f32.mrb[0].mxu0
      %v1827 = vadd.f32 %v1762, %v1826
      %v1828 = vpop.f32.mrb[0].mxu0
      %1829 = vmatprep.mubr.bf16.mxu0 0
      %1830 = vmatmul.mubr.bf16.gmra.mrb[0].mxu0 %v1561
      %v1831 = vpop.f32.mrb[0].mxu0
      %v1832 = vadd.f32 %v1767, %v1831
      %v1833 = vpop.f32.mrb[0].mxu0
      %v1834 = vpop.f32.mrb[0].mxu0
      %v1835 = vadd.f32 %v1770, %v1834
      %v1836 = vpop.f32.mrb[0].mxu0
      %1837 = vmatprep.mubr.bf16.mxu0 0
      %1838 = vmatmul.mubr.bf16.gmra.mrb[0].mxu0 %v1564
      %v1839 = vpop.f32.mrb[0].mxu0
      %v1840 = vadd.f32 %v1775, %v1839
      %v1841 = vpop.f32.mrb[0].mxu0
      %v1842 = vpop.f32.mrb[0].mxu0
      %v1843 = vadd.f32 %v1778, %v1842
      %v1844 = vpop.f32.mrb[0].mxu0
      %1845 = vmatprep.mubr.bf16.mxu0 0
      %1846 = vmatmul.mubr.bf16.gmra.mrb[0].mxu0 %v1567
      %v1847 = vpop.f32.mrb[0].mxu0
      %v1848 = vadd.f32 %v1783, %v1847
      %v1849 = vpop.f32.mrb[0].mxu0
      %v1850 = vpop.f32.mrb[0].mxu0
      %v1851 = vadd.f32 %v1786, %v1850
      %v1852 = vpop.f32.mrb[0].mxu0
      %1853 = vdwg.mxu0
      %v1870 = vunpack.c.l.b16 %v1386
      %v1871 = vunpack.c.h.b16 %v1386
      %v1872 = vunpack.c.l.b16 %v1387
      %v1873 = vunpack.c.l.b16 %v1388
      %v1874 = vunpack.c.h.b16 %v1388
      %v1875 = vunpack.c.l.b16 %v1389
      %v1876 = vunpack.c.l.b16 %v1390
      %v1877 = vunpack.c.h.b16 %v1390
      %v1878 = vunpack.c.l.b16 %v1391
      %v1879 = vunpack.c.l.b16 %v1392
      %v1880 = vunpack.c.h.b16 %v1392
      %v1881 = vunpack.c.l.b16 %v1393
      %v1882 = vunpack.c.l.b16 %v1394
      %v1883 = vunpack.c.h.b16 %v1394
      %v1884 = vunpack.c.l.b16 %v1395
      %v1885 = vunpack.c.l.b16 %v1396
      %v1886 = vunpack.c.h.b16 %v1396
      %v1887 = vunpack.c.l.b16 %v1397
      %v1888 = vunpack.c.l.b16 %v1398
      %v1889 = vunpack.c.h.b16 %v1398
      %v1890 = vunpack.c.l.b16 %v1399
      %v1891 = vunpack.c.l.b16 %v1400
      %v1892 = vunpack.c.h.b16 %v1400
      %v1893 = vunpack.c.l.b16 %v1401
      %v1894 = vpack.c.b16 %v1873, %v1870
      %v1895 = vpack.c.b16 %v1874, %v1871
      %v1896 = vpack.c.b16 %v1875, %v1872
      %v1897 = vpack.c.b16 %v1879, %v1876
      %v1898 = vpack.c.b16 %v1880, %v1877
      %v1899 = vpack.c.b16 %v1881, %v1878
      %v1900 = vpack.c.b16 %v1885, %v1882
      %v1901 = vpack.c.b16 %v1886, %v1883
      %v1902 = vpack.c.b16 %v1887, %v1884
      %v1903 = vpack.c.b16 %v1891, %v1888
      %v1904 = vpack.c.b16 %v1892, %v1889
      %v1905 = vpack.c.b16 %v1893, %v1890
      %v1966 = vunpack.c.l.b16 %v1402
      %v1967 = vunpack.c.l.b16 %v1403
      %v1968 = vunpack.c.l.b16 %v1404
      %v1969 = vunpack.c.l.b16 %v1405
      %v1970 = vunpack.c.l.b16 %v1406
      %v1971 = vunpack.c.l.b16 %v1407
      %v1972 = vunpack.c.l.b16 %v1408
      %v1973 = vunpack.c.l.b16 %v1409
      %v1974 = vunpack.c.l.b16 %v1410
      %v1975 = vunpack.c.l.b16 %v1411
      %v1976 = vunpack.c.l.b16 %v1412
      %v1977 = vunpack.c.l.b16 %v1413
      %v1978 = vunpack.c.l.b16 %v1414
      %v1979 = vunpack.c.l.b16 %v1415
      %v1980 = vunpack.c.l.b16 %v1416
      %v1981 = vunpack.c.l.b16 %v1417
      %v1982 = vunpack.c.l.b16 %v1418
      %v1983 = vunpack.c.l.b16 %v1419
      %v1984 = vunpack.c.l.b16 %v1420
      %v1985 = vunpack.c.l.b16 %v1421
      %v1986 = vunpack.c.l.b16 %v1422
      %v1987 = vunpack.c.l.b16 %v1423
      %v1988 = vunpack.c.l.b16 %v1424
      %v1989 = vunpack.c.l.b16 %v1425
      %v1990 = vunpack.c.l.b16 %v1426
      %v1991 = vunpack.c.l.b16 %v1427
      %v1992 = vunpack.c.l.b16 %v1428
      %v1993 = vunpack.c.l.b16 %v1429
      %v1994 = vunpack.c.l.b16 %v1430
      %v1995 = vunpack.c.l.b16 %v1431
      %v1996 = vunpack.c.l.b16 %v1432
      %v1997 = vunpack.c.l.b16 %v1433
      %v1998 = vunpack.c.l.b16 %v1434
      %v1999 = vunpack.c.l.b16 %v1435
      %v2000 = vunpack.c.l.b16 %v1436
      %v2001 = vunpack.c.l.b16 %v1437
      %v2002 = vunpack.c.l.b16 %v1438
      %v2003 = vunpack.c.l.b16 %v1439
      %v2004 = vunpack.c.l.b16 %v1440
      %v2005 = vunpack.c.l.b16 %v1441
      %v2006 = vunpack.c.l.b16 %v1442
      %v2007 = vunpack.c.l.b16 %v1443
      %v2008 = vunpack.c.l.b16 %v1444
      %v2009 = vunpack.c.l.b16 %v1445
      %v2010 = vunpack.c.l.b16 %v1446
      %v2011 = vunpack.c.l.b16 %v1447
      %v2012 = vunpack.c.l.b16 %v1448
      %v2013 = vunpack.c.l.b16 %v1449
      %v2014 = vpack.c.b16 %v1967, %v1966
      %v2015 = vpack.c.b16 %v1969, %v1968
      %v2016 = vpack.c.b16 %v1971, %v1970
      %v2017 = vpack.c.b16 %v1973, %v1972
      %v2018 = vpack.c.b16 %v1975, %v1974
      %v2019 = vpack.c.b16 %v1977, %v1976
      %v2020 = vpack.c.b16 %v1979, %v1978
      %v2021 = vpack.c.b16 %v1981, %v1980
      %v2022 = vpack.c.b16 %v1983, %v1982
      %v2023 = vpack.c.b16 %v1985, %v1984
      %v2024 = vpack.c.b16 %v1987, %v1986
      %v2025 = vpack.c.b16 %v1989, %v1988
      %v2026 = vpack.c.b16 %v1991, %v1990
      %v2027 = vpack.c.b16 %v1993, %v1992
      %v2028 = vpack.c.b16 %v1995, %v1994
      %v2029 = vpack.c.b16 %v1997, %v1996
      %v2030 = vpack.c.b16 %v1999, %v1998
      %v2031 = vpack.c.b16 %v2001, %v2000
      %v2032 = vpack.c.b16 %v2003, %v2002
      %v2033 = vpack.c.b16 %v2005, %v2004
      %v2034 = vpack.c.b16 %v2007, %v2006
      %v2035 = vpack.c.b16 %v2009, %v2008
      %v2036 = vpack.c.b16 %v2011, %v2010
      %v2037 = vpack.c.b16 %v2013, %v2012
      %2062 = vmatprep.subr.bf16.mxu0 0
      %2063 = vmatpush1.bf16.msra.mxu0 %v2014
      %2064 = vmatprep.subr.bf16.mxu0 0
      %2065 = vmatpush1.bf16.msra.mxu0 %v2015
      %2066 = vmatprep.subr.bf16.mxu0 0
      %2067 = vmatpush1.bf16.msra.mxu0 %v2016
      %2068 = vmatprep.subr.bf16.mxu0 0
      %2069 = vmatpush1.bf16.msra.mxu0 %v2017
      %2070 = vmatprep.subr.bf16.mxu0 0
      %2071 = vmatpush1.bf16.msra.mxu0 %v2018
      %2072 = vmatprep.subr.bf16.mxu0 0
      %2073 = vmatpush1.bf16.msra.mxu0 %v2019
      %2074 = vmatprep.subr.bf16.mxu0 0
      %2075 = vmatpush1.bf16.msra.mxu0 %v2020
      %2076 = vmatprep.subr.bf16.mxu0 0
      %2077 = vmatpush1.bf16.msra.mxu0 %v2021
      %2078 = vmatprep.subr.bf16.mxu0 0
      %2079 = vmatpush1.bf16.msra.mxu0 %v2022
      %2080 = vmatprep.subr.bf16.mxu0 0
      %2081 = vmatpush1.bf16.msra.mxu0 %v2023
      %2082 = vmatprep.subr.bf16.mxu0 0
      %2083 = vmatpush1.bf16.msra.mxu0 %v2024
      %2084 = vmatprep.subr.bf16.mxu0 0
      %2085 = vmatpush1.bf16.msra.mxu0 %v2025
      %2086 = vmatprep.subr.bf16.mxu0 0
      %2087 = vmatpush1.bf16.msra.mxu0 %v2026
      %2088 = vmatprep.subr.bf16.mxu0 0
      %2089 = vmatpush1.bf16.msra.mxu0 %v2027
      %2090 = vmatprep.subr.bf16.mxu0 0
      %2091 = vmatpush1.bf16.msra.mxu0 %v2028
      %2092 = vmatprep.subr.bf16.mxu0 0
      %2093 = vmatpush1.bf16.msra.mxu0 %v2029
      %2094 = vmatprep.mubr.bf16.mxu0 %v1895
      %2095 = vmatmul.mubr.bf16.gmra.mrb[0].mxu0 %v1894
      %v2096 = vpop.f32.mrb[0].mxu0
      %v2097 = vadd.f32 %v1824, %v2096
      %v2098 = vpop.f32.mrb[0].mxu0
      %v2099 = vpop.f32.mrb[0].mxu0
      %v2100 = vadd.f32 %v1827, %v2099
      %v2101 = vpop.f32.mrb[0].mxu0
      %2102 = vmatprep.mubr.bf16.mxu0 %v1898
      %2103 = vmatmul.mubr.bf16.gmra.mrb[0].mxu0 %v1897
      %v2104 = vpop.f32.mrb[0].mxu0
      %v2105 = vadd.f32 %v1832, %v2104
      %v2106 = vpop.f32.mrb[0].mxu0
      %v2107 = vpop.f32.mrb[0].mxu0
      %v2108 = vadd.f32 %v1835, %v2107
      %v2109 = vpop.f32.mrb[0].mxu0
      %2110 = vmatprep.mubr.bf16.mxu0 %v1901
      %2111 = vmatmul.mubr.bf16.gmra.mrb[0].mxu0 %v1900
      %v2112 = vpop.f32.mrb[0].mxu0
      %v2113 = vadd.f32 %v1840, %v2112
      %v2114 = vpop.f32.mrb[0].mxu0
      %v2115 = vpop.f32.mrb[0].mxu0
      %v2116 = vadd.f32 %v1843, %v2115
      %v2117 = vpop.f32.mrb[0].mxu0
      %2118 = vmatprep.mubr.bf16.mxu0 %v1904
      %2119 = vmatmul.mubr.bf16.gmra.mrb[0].mxu0 %v1903
      %v2120 = vpop.f32.mrb[0].mxu0
      %v2121 = vadd.f32 %v1848, %v2120
      %v2122 = vpop.f32.mrb[0].mxu0
      %v2123 = vpop.f32.mrb[0].mxu0
      %v2124 = vadd.f32 %v1851, %v2123
      %v2125 = vpop.f32.mrb[0].mxu0
      %2126 = vdwg.mxu0
      %2127 = vmatprep.subr.bf16.mxu0 0
      %2128 = vmatpush1.bf16.msra.mxu0 %v2030
      %2129 = vmatprep.subr.bf16.mxu0 0
      %2130 = vmatpush1.bf16.msra.mxu0 %v2031
      %2131 = vmatprep.subr.bf16.mxu0 0
      %2132 = vmatpush1.bf16.msra.mxu0 %v2032
      %2133 = vmatprep.subr.bf16.mxu0 0
      %2134 = vmatpush1.bf16.msra.mxu0 %v2033
      %2135 = vmatprep.subr.bf16.mxu0 0
      %2136 = vmatpush1.bf16.msra.mxu0 %v2034
      %2137 = vmatprep.subr.bf16.mxu0 0
      %2138 = vmatpush1.bf16.msra.mxu0 %v2035
      %2139 = vmatprep.subr.bf16.mxu0 0
      %2140 = vmatpush1.bf16.msra.mxu0 %v2036
      %2141 = vmatprep.subr.bf16.mxu0 0
      %2142 = vmatpush1.bf16.msra.mxu0 %v2037
      %2143 = vmatprep.subr.bf16.mxu0 0
      %2144 = vmatpush1.bf16.msra.mxu0 0
      %2145 = vmatprep.subr.bf16.mxu0 0
      %2146 = vmatpush1.bf16.msra.mxu0 0
      %2147 = vmatprep.subr.bf16.mxu0 0
      %2148 = vmatpush1.bf16.msra.mxu0 0
      %2149 = vmatprep.subr.bf16.mxu0 0
      %2150 = vmatpush1.bf16.msra.mxu0 0
      %2151 = vmatprep.subr.bf16.mxu0 0
      %2152 = vmatpush1.bf16.msra.mxu0 0
      %2153 = vmatprep.subr.bf16.mxu0 0
      %2154 = vmatpush1.bf16.msra.mxu0 0
      %2155 = vmatprep.subr.bf16.mxu0 0
      %2156 = vmatpush1.bf16.msra.mxu0 0
      %2157 = vmatprep.subr.bf16.mxu0 0
      %2158 = vmatpush1.bf16.msra.mxu0 0
      %2159 = vmatprep.mubr.bf16.mxu0 0
      %2160 = vmatmul.mubr.bf16.gmra.mrb[0].mxu0 %v1896
      %v2161 = vpop.f32.mrb[0].mxu0
      %v2162 = vadd.f32 %v2097, %v2161
      %v2163 = vpop.f32.mrb[0].mxu0
      %v2164 = vpop.f32.mrb[0].mxu0
      %v2165 = vadd.f32 %v2100, %v2164
      %v2166 = vpop.f32.mrb[0].mxu0
      %2167 = vmatprep.mubr.bf16.mxu0 0
      %2168 = vmatmul.mubr.bf16.gmra.mrb[0].mxu0 %v1899
      %v2169 = vpop.f32.mrb[0].mxu0
      %v2170 = vadd.f32 %v2105, %v2169
      %v2171 = vpop.f32.mrb[0].mxu0
      %v2172 = vpop.f32.mrb[0].mxu0
      %v2173 = vadd.f32 %v2108, %v2172
      %v2174 = vpop.f32.mrb[0].mxu0
      %2175 = vmatprep.mubr.bf16.mxu0 0
      %2176 = vmatmul.mubr.bf16.gmra.mrb[0].mxu0 %v1902
      %v2177 = vpop.f32.mrb[0].mxu0
      %v2178 = vadd.f32 %v2113, %v2177
      %v2179 = vpop.f32.mrb[0].mxu0
      %v2180 = vpop.f32.mrb[0].mxu0
      %v2181 = vadd.f32 %v2116, %v2180
      %v2182 = vpop.f32.mrb[0].mxu0
      %2183 = vmatprep.mubr.bf16.mxu0 0
      %2184 = vmatmul.mubr.bf16.gmra.mrb[0].mxu0 %v1905
      %v2185 = vpop.f32.mrb[0].mxu0
      %v2186 = vadd.f32 %v2121, %v2185
      %v2187 = vpop.f32.mrb[0].mxu0
      %v2188 = vpop.f32.mrb[0].mxu0
      %v2189 = vadd.f32 %v2124, %v2188
      %v2190 = vpop.f32.mrb[0].mxu0
      %2191 = vdwg.mxu0
      %s2192 = scalar_lea.vmem [#allocation3], 108
      %v2193 = vld [vmem:[%s2192] sm:$0xff]
      %v2194 = vld [vmem:[%s2192 + $0x8] sm:$0xf]
      %v2195 = vld [vmem:[%s2192 + $0xc] sm:$0xff]
      %v2196 = vld [vmem:[%s2192 + $0x14] sm:$0xf]
      %v2197 = vld [vmem:[%s2192 + $0x18] sm:$0xff]
      %v2198 = vld [vmem:[%s2192 + $0x20] sm:$0xf]
      %v2199 = vld [vmem:[%s2192 + $0x24] sm:$0xff]
      %v2200 = vld [vmem:[%s2192 + $0x2c] sm:$0xf]
      %v2201 = vld [vmem:[%s2192 + $0x30] sm:$0xff]
      %v2202 = vld [vmem:[%s2192 + $0x38] sm:$0xf]
      %v2203 = vld [vmem:[%s2192 + $0x3c] sm:$0xff]
      %v2204 = vld [vmem:[%s2192 + $0x44] sm:$0xf]
      %v2205 = vld [vmem:[%s2192 + $0x48] sm:$0xff]
      %v2206 = vld [vmem:[%s2192 + $0x50] sm:$0xf]
      %v2207 = vld [vmem:[%s2192 + $0x54] sm:$0xff]
      %v2208 = vld [vmem:[%s2192 + $0x5c] sm:$0xf]
      %s2209 = scalar_lea.vmem %s3, 384
      %v2210 = vld [vmem:[%s2209] sm:$0xf]
      %v2211 = vld [vmem:[%s2209 + $0x4] sm:$0xf]
      %v2212 = vld [vmem:[%s2209 + $0x8] sm:$0xf]
      %v2213 = vld [vmem:[%s2209 + $0xc] sm:$0xf]
      %v2214 = vld [vmem:[%s2209 + $0x10] sm:$0xf]
      %v2215 = vld [vmem:[%s2209 + $0x14] sm:$0xf]
      %v2216 = vld [vmem:[%s2209 + $0x18] sm:$0xf]
      %v2217 = vld [vmem:[%s2209 + $0x1c] sm:$0xf]
      %v2218 = vld [vmem:[%s2209 + $0x20] sm:$0xf]
      %v2219 = vld [vmem:[%s2209 + $0x24] sm:$0xf]
      %v2220 = vld [vmem:[%s2209 + $0x28] sm:$0xf]
      %v2221 = vld [vmem:[%s2209 + $0x2c] sm:$0xf]
      %v2222 = vld [vmem:[%s2209 + $0x30] sm:$0xf]
      %v2223 = vld [vmem:[%s2209 + $0x34] sm:$0xf]
      %v2224 = vld [vmem:[%s2209 + $0x38] sm:$0xf]
      %v2225 = vld [vmem:[%s2209 + $0x3c] sm:$0xf]
      %v2226 = vld [vmem:[%s2209 + $0x40] sm:$0xf]
      %v2227 = vld [vmem:[%s2209 + $0x44] sm:$0xf]
      %v2228 = vld [vmem:[%s2209 + $0x48] sm:$0xf]
      %v2229 = vld [vmem:[%s2209 + $0x4c] sm:$0xf]
      %v2230 = vld [vmem:[%s2209 + $0x50] sm:$0xf]
      %v2231 = vld [vmem:[%s2209 + $0x54] sm:$0xf]
      %v2232 = vld [vmem:[%s2209 + $0x58] sm:$0xf]
      %v2233 = vld [vmem:[%s2209 + $0x5c] sm:$0xf]
      %v2234 = vld [vmem:[%s2209 + $0x60] sm:$0xf]
      %v2235 = vld [vmem:[%s2209 + $0x64] sm:$0xf]
      %v2236 = vld [vmem:[%s2209 + $0x68] sm:$0xf]
      %v2237 = vld [vmem:[%s2209 + $0x6c] sm:$0xf]
      %v2238 = vld [vmem:[%s2209 + $0x70] sm:$0xf]
      %v2239 = vld [vmem:[%s2209 + $0x74] sm:$0xf]
      %v2240 = vld [vmem:[%s2209 + $0x78] sm:$0xf]
      %v2241 = vld [vmem:[%s2209 + $0x7c] sm:$0xf]
      %v2242 = vld [vmem:[%s2209 + $0x80] sm:$0xf]
      %v2243 = vld [vmem:[%s2209 + $0x84] sm:$0xf]
      %v2244 = vld [vmem:[%s2209 + $0x88] sm:$0xf]
      %v2245 = vld [vmem:[%s2209 + $0x8c] sm:$0xf]
      %v2246 = vld [vmem:[%s2209 + $0x90] sm:$0xf]
      %v2247 = vld [vmem:[%s2209 + $0x94] sm:$0xf]
      %v2248 = vld [vmem:[%s2209 + $0x98] sm:$0xf]
      %v2249 = vld [vmem:[%s2209 + $0x9c] sm:$0xf]
      %v2250 = vld [vmem:[%s2209 + $0xa0] sm:$0xf]
      %v2251 = vld [vmem:[%s2209 + $0xa4] sm:$0xf]
      %v2252 = vld [vmem:[%s2209 + $0xa8] sm:$0xf]
      %v2253 = vld [vmem:[%s2209 + $0xac] sm:$0xf]
      %v2254 = vld [vmem:[%s2209 + $0xb0] sm:$0xf]
      %v2255 = vld [vmem:[%s2209 + $0xb4] sm:$0xf]
      %v2256 = vld [vmem:[%s2209 + $0xb8] sm:$0xf]
      %v2257 = vld [vmem:[%s2209 + $0xbc] sm:$0xf]
      %v2274 = vunpack.c.l.b16 %v2193
      %v2275 = vunpack.c.h.b16 %v2193
      %v2276 = vunpack.c.l.b16 %v2194
      %v2277 = vunpack.c.l.b16 %v2195
      %v2278 = vunpack.c.h.b16 %v2195
      %v2279 = vunpack.c.l.b16 %v2196
      %v2280 = vunpack.c.l.b16 %v2197
      %v2281 = vunpack.c.h.b16 %v2197
      %v2282 = vunpack.c.l.b16 %v2198
      %v2283 = vunpack.c.l.b16 %v2199
      %v2284 = vunpack.c.h.b16 %v2199
      %v2285 = vunpack.c.l.b16 %v2200
      %v2286 = vunpack.c.l.b16 %v2201
      %v2287 = vunpack.c.h.b16 %v2201
      %v2288 = vunpack.c.l.b16 %v2202
      %v2289 = vunpack.c.l.b16 %v2203
      %v2290 = vunpack.c.h.b16 %v2203
      %v2291 = vunpack.c.l.b16 %v2204
      %v2292 = vunpack.c.l.b16 %v2205
      %v2293 = vunpack.c.h.b16 %v2205
      %v2294 = vunpack.c.l.b16 %v2206
      %v2295 = vunpack.c.l.b16 %v2207
      %v2296 = vunpack.c.h.b16 %v2207
      %v2297 = vunpack.c.l.b16 %v2208
      %v2298 = vpack.c.b16 %v2277, %v2274
      %v2299 = vpack.c.b16 %v2278, %v2275
      %v2300 = vpack.c.b16 %v2279, %v2276
      %v2301 = vpack.c.b16 %v2283, %v2280
      %v2302 = vpack.c.b16 %v2284, %v2281
      %v2303 = vpack.c.b16 %v2285, %v2282
      %v2304 = vpack.c.b16 %v2289, %v2286
      %v2305 = vpack.c.b16 %v2290, %v2287
      %v2306 = vpack.c.b16 %v2291, %v2288
      %v2307 = vpack.c.b16 %v2295, %v2292
      %v2308 = vpack.c.b16 %v2296, %v2293
      %v2309 = vpack.c.b16 %v2297, %v2294
      %v2370 = vunpack.c.l.b16 %v2210
      %v2371 = vunpack.c.l.b16 %v2211
      %v2372 = vunpack.c.l.b16 %v2212
      %v2373 = vunpack.c.l.b16 %v2213
      %v2374 = vunpack.c.l.b16 %v2214
      %v2375 = vunpack.c.l.b16 %v2215
      %v2376 = vunpack.c.l.b16 %v2216
      %v2377 = vunpack.c.l.b16 %v2217
      %v2378 = vunpack.c.l.b16 %v2218
      %v2379 = vunpack.c.l.b16 %v2219
      %v2380 = vunpack.c.l.b16 %v2220
      %v2381 = vunpack.c.l.b16 %v2221
      %v2382 = vunpack.c.l.b16 %v2222
      %v2383 = vunpack.c.l.b16 %v2223
      %v2384 = vunpack.c.l.b16 %v2224
      %v2385 = vunpack.c.l.b16 %v2225
      %v2386 = vunpack.c.l.b16 %v2226
      %v2387 = vunpack.c.l.b16 %v2227
      %v2388 = vunpack.c.l.b16 %v2228
      %v2389 = vunpack.c.l.b16 %v2229
      %v2390 = vunpack.c.l.b16 %v2230
      %v2391 = vunpack.c.l.b16 %v2231
      %v2392 = vunpack.c.l.b16 %v2232
      %v2393 = vunpack.c.l.b16 %v2233
      %v2394 = vunpack.c.l.b16 %v2234
      %v2395 = vunpack.c.l.b16 %v2235
      %v2396 = vunpack.c.l.b16 %v2236
      %v2397 = vunpack.c.l.b16 %v2237
      %v2398 = vunpack.c.l.b16 %v2238
      %v2399 = vunpack.c.l.b16 %v2239
      %v2400 = vunpack.c.l.b16 %v2240
      %v2401 = vunpack.c.l.b16 %v2241
      %v2402 = vunpack.c.l.b16 %v2242
      %v2403 = vunpack.c.l.b16 %v2243
      %v2404 = vunpack.c.l.b16 %v2244
      %v2405 = vunpack.c.l.b16 %v2245
      %v2406 = vunpack.c.l.b16 %v2246
      %v2407 = vunpack.c.l.b16 %v2247
      %v2408 = vunpack.c.l.b16 %v2248
      %v2409 = vunpack.c.l.b16 %v2249
      %v2410 = vunpack.c.l.b16 %v2250
      %v2411 = vunpack.c.l.b16 %v2251
      %v2412 = vunpack.c.l.b16 %v2252
      %v2413 = vunpack.c.l.b16 %v2253
      %v2414 = vunpack.c.l.b16 %v2254
      %v2415 = vunpack.c.l.b16 %v2255
      %v2416 = vunpack.c.l.b16 %v2256
      %v2417 = vunpack.c.l.b16 %v2257
      %v2418 = vpack.c.b16 %v2371, %v2370
      %v2419 = vpack.c.b16 %v2373, %v2372
      %v2420 = vpack.c.b16 %v2375, %v2374
      %v2421 = vpack.c.b16 %v2377, %v2376
      %v2422 = vpack.c.b16 %v2379, %v2378
      %v2423 = vpack.c.b16 %v2381, %v2380
      %v2424 = vpack.c.b16 %v2383, %v2382
      %v2425 = vpack.c.b16 %v2385, %v2384
      %v2426 = vpack.c.b16 %v2387, %v2386
      %v2427 = vpack.c.b16 %v2389, %v2388
      %v2428 = vpack.c.b16 %v2391, %v2390
      %v2429 = vpack.c.b16 %v2393, %v2392
      %v2430 = vpack.c.b16 %v2395, %v2394
      %v2431 = vpack.c.b16 %v2397, %v2396
      %v2432 = vpack.c.b16 %v2399, %v2398
      %v2433 = vpack.c.b16 %v2401, %v2400
      %v2434 = vpack.c.b16 %v2403, %v2402
      %v2435 = vpack.c.b16 %v2405, %v2404
      %v2436 = vpack.c.b16 %v2407, %v2406
      %v2437 = vpack.c.b16 %v2409, %v2408
      %v2438 = vpack.c.b16 %v2411, %v2410
      %v2439 = vpack.c.b16 %v2413, %v2412
      %v2440 = vpack.c.b16 %v2415, %v2414
      %v2441 = vpack.c.b16 %v2417, %v2416
      %2466 = vmatprep.subr.bf16.mxu0 0
      %2467 = vmatpush1.bf16.msra.mxu0 %v2418
      %2468 = vmatprep.subr.bf16.mxu0 0
      %2469 = vmatpush1.bf16.msra.mxu0 %v2419
      %2470 = vmatprep.subr.bf16.mxu0 0
      %2471 = vmatpush1.bf16.msra.mxu0 %v2420
      %2472 = vmatprep.subr.bf16.mxu0 0
      %2473 = vmatpush1.bf16.msra.mxu0 %v2421
      %2474 = vmatprep.subr.bf16.mxu0 0
      %2475 = vmatpush1.bf16.msra.mxu0 %v2422
      %2476 = vmatprep.subr.bf16.mxu0 0
      %2477 = vmatpush1.bf16.msra.mxu0 %v2423
      %2478 = vmatprep.subr.bf16.mxu0 0
      %2479 = vmatpush1.bf16.msra.mxu0 %v2424
      %2480 = vmatprep.subr.bf16.mxu0 0
      %2481 = vmatpush1.bf16.msra.mxu0 %v2425
      %2482 = vmatprep.subr.bf16.mxu0 0
      %2483 = vmatpush1.bf16.msra.mxu0 %v2426
      %2484 = vmatprep.subr.bf16.mxu0 0
      %2485 = vmatpush1.bf16.msra.mxu0 %v2427
      %2486 = vmatprep.subr.bf16.mxu0 0
      %2487 = vmatpush1.bf16.msra.mxu0 %v2428
      %2488 = vmatprep.subr.bf16.mxu0 0
      %2489 = vmatpush1.bf16.msra.mxu0 %v2429
      %2490 = vmatprep.subr.bf16.mxu0 0
      %2491 = vmatpush1.bf16.msra.mxu0 %v2430
      %2492 = vmatprep.subr.bf16.mxu0 0
      %2493 = vmatpush1.bf16.msra.mxu0 %v2431
      %2494 = vmatprep.subr.bf16.mxu0 0
      %2495 = vmatpush1.bf16.msra.mxu0 %v2432
      %2496 = vmatprep.subr.bf16.mxu0 0
      %2497 = vmatpush1.bf16.msra.mxu0 %v2433
      %2498 = vmatprep.mubr.bf16.mxu0 %v2299
      %2499 = vmatmul.mubr.bf16.gmra.mrb[0].mxu0 %v2298
      %v2500 = vpop.f32.mrb[0].mxu0
      %v2501 = vadd.f32 0.0, %v2500
      %v2502 = vpop.f32.mrb[0].mxu0
      %v2503 = vpop.f32.mrb[0].mxu0
      %v2504 = vadd.f32 0.0, %v2503
      %v2505 = vpop.f32.mrb[0].mxu0
      %2506 = vmatprep.mubr.bf16.mxu0 %v2302
      %2507 = vmatmul.mubr.bf16.gmra.mrb[0].mxu0 %v2301
      %v2508 = vpop.f32.mrb[0].mxu0
      %v2509 = vadd.f32 0.0, %v2508
      %v2510 = vpop.f32.mrb[0].mxu0
      %v2511 = vpop.f32.mrb[0].mxu0
      %v2512 = vadd.f32 0.0, %v2511
      %v2513 = vpop.f32.mrb[0].mxu0
      %2514 = vmatprep.mubr.bf16.mxu0 %v2305
      %2515 = vmatmul.mubr.bf16.gmra.mrb[0].mxu0 %v2304
      %v2516 = vpop.f32.mrb[0].mxu0
      %v2517 = vadd.f32 0.0, %v2516
      %v2518 = vpop.f32.mrb[0].mxu0
      %v2519 = vpop.f32.mrb[0].mxu0
      %v2520 = vadd.f32 0.0, %v2519
      %v2521 = vpop.f32.mrb[0].mxu0
      %2522 = vmatprep.mubr.bf16.mxu0 %v2308
      %2523 = vmatmul.mubr.bf16.gmra.mrb[0].mxu0 %v2307
      %v2524 = vpop.f32.mrb[0].mxu0
      %v2525 = vadd.f32 0.0, %v2524
      %v2526 = vpop.f32.mrb[0].mxu0
      %v2527 = vpop.f32.mrb[0].mxu0
      %v2528 = vadd.f32 0.0, %v2527
      %v2529 = vpop.f32.mrb[0].mxu0
      %2530 = vdwg.mxu0
      %2531 = vmatprep.subr.bf16.mxu0 0
      %2532 = vmatpush1.bf16.msra.mxu0 %v2434
      %2533 = vmatprep.subr.bf16.mxu0 0
      %2534 = vmatpush1.bf16.msra.mxu0 %v2435
      %2535 = vmatprep.subr.bf16.mxu0 0
      %2536 = vmatpush1.bf16.msra.mxu0 %v2436
      %2537 = vmatprep.subr.bf16.mxu0 0
      %2538 = vmatpush1.bf16.msra.mxu0 %v2437
      %2539 = vmatprep.subr.bf16.mxu0 0
      %2540 = vmatpush1.bf16.msra.mxu0 %v2438
      %2541 = vmatprep.subr.bf16.mxu0 0
      %2542 = vmatpush1.bf16.msra.mxu0 %v2439
      %2543 = vmatprep.subr.bf16.mxu0 0
      %2544 = vmatpush1.bf16.msra.mxu0 %v2440
      %2545 = vmatprep.subr.bf16.mxu0 0
      %2546 = vmatpush1.bf16.msra.mxu0 %v2441
      %2547 = vmatprep.subr.bf16.mxu0 0
      %2548 = vmatpush1.bf16.msra.mxu0 0
      %2549 = vmatprep.subr.bf16.mxu0 0
      %2550 = vmatpush1.bf16.msra.mxu0 0
      %2551 = vmatprep.subr.bf16.mxu0 0
      %2552 = vmatpush1.bf16.msra.mxu0 0
      %2553 = vmatprep.subr.bf16.mxu0 0
      %2554 = vmatpush1.bf16.msra.mxu0 0
      %2555 = vmatprep.subr.bf16.mxu0 0
      %2556 = vmatpush1.bf16.msra.mxu0 0
      %2557 = vmatprep.subr.bf16.mxu0 0
      %2558 = vmatpush1.bf16.msra.mxu0 0
      %2559 = vmatprep.subr.bf16.mxu0 0
      %2560 = vmatpush1.bf16.msra.mxu0 0
      %2561 = vmatprep.subr.bf16.mxu0 0
      %2562 = vmatpush1.bf16.msra.mxu0 0
      %2563 = vmatprep.mubr.bf16.mxu0 0
      %2564 = vmatmul.mubr.bf16.gmra.mrb[0].mxu0 %v2300
      %v2565 = vpop.f32.mrb[0].mxu0
      %v2566 = vadd.f32 %v2501, %v2565
      %v2567 = vpop.f32.mrb[0].mxu0
      %v2568 = vpop.f32.mrb[0].mxu0
      %v2569 = vadd.f32 %v2504, %v2568
      %v2570 = vpop.f32.mrb[0].mxu0
      %2571 = vmatprep.mubr.bf16.mxu0 0
      %2572 = vmatmul.mubr.bf16.gmra.mrb[0].mxu0 %v2303
      %v2573 = vpop.f32.mrb[0].mxu0
      %v2574 = vadd.f32 %v2509, %v2573
      %v2575 = vpop.f32.mrb[0].mxu0
      %v2576 = vpop.f32.mrb[0].mxu0
      %v2577 = vadd.f32 %v2512, %v2576
      %v2578 = vpop.f32.mrb[0].mxu0
      %2579 = vmatprep.mubr.bf16.mxu0 0
      %2580 = vmatmul.mubr.bf16.gmra.mrb[0].mxu0 %v2306
      %v2581 = vpop.f32.mrb[0].mxu0
      %v2582 = vadd.f32 %v2517, %v2581
      %v2583 = vpop.f32.mrb[0].mxu0
      %v2584 = vpop.f32.mrb[0].mxu0
      %v2585 = vadd.f32 %v2520, %v2584
      %v2586 = vpop.f32.mrb[0].mxu0
      %2587 = vmatprep.mubr.bf16.mxu0 0
      %2588 = vmatmul.mubr.bf16.gmra.mrb[0].mxu0 %v2309
      %v2589 = vpop.f32.mrb[0].mxu0
      %v2590 = vadd.f32 %v2525, %v2589
      %v2591 = vpop.f32.mrb[0].mxu0
      %v2592 = vpop.f32.mrb[0].mxu0
      %v2593 = vadd.f32 %v2528, %v2592
      %v2594 = vpop.f32.mrb[0].mxu0
      %2595 = vdwg.mxu0
      %v2596 = vadd.f32 %v2162, %v2566
      %v2597 = vadd.f32 %v2165, %v2569
      %v2598 = vadd.f32 %v2170, %v2574
      %v2599 = vadd.f32 %v2173, %v2577
      %v2600 = vadd.f32 %v2178, %v2582
      %v2601 = vadd.f32 %v2181, %v2585
      %v2602 = vadd.f32 %v2186, %v2590
      %v2603 = vadd.f32 %v2189, %v2593
      %v2604 = vld [vmem:[%s4] sm:$0x1]
      %v2606 = vlaneseq
      %v2607 = vshrl.u32 %v2606, 7
      %v2608 = vsub.s32 0, %v2607
      %v2609 = vrot.slane %v2604, %v2608
      %v2611 = vmul.f32 %v2596, %v2609
      %v2612 = vmul.f32 %v2597, %v2609
      %v2613 = vmul.f32 %v2598, %v2609
      %v2614 = vmul.f32 %v2599, %v2609
      %v2615 = vmul.f32 %v2600, %v2609
      %v2616 = vmul.f32 %v2601, %v2609
      %v2617 = vmul.f32 %v2602, %v2609
      %v2618 = vmul.f32 %v2603, %v2609
      %v2619 = vld [vmem:[%s5] sm:$0x1]
      %v2621 = vlaneseq
      %v2622 = vshrl.u32 %v2621, 7
      %v2623 = vsub.s32 0, %v2622
      %v2624 = vrot.slane %v2619, %v2623
      %v2626 = vadd.f32 %v2611, %v2624
      %v2627 = vadd.f32 %v2612, %v2624
      %v2628 = vadd.f32 %v2613, %v2624
      %v2629 = vadd.f32 %v2614, %v2624
      %v2630 = vadd.f32 %v2615, %v2624
      %v2631 = vadd.f32 %v2616, %v2624
      %v2632 = vadd.f32 %v2617, %v2624
      %v2633 = vadd.f32 %v2618, %v2624
      %v2634 = vmax.f32 %v2626, 0.0
      %v2635 = vmax.f32 %v2627, 0.0
      %v2636 = vmax.f32 %v2628, 0.0
      %v2637 = vmax.f32 %v2629, 0.0
      %v2638 = vmax.f32 %v2630, 0.0
      %v2639 = vmax.f32 %v2631, 0.0
      %v2640 = vmax.f32 %v2632, 0.0
      %v2641 = vmax.f32 %v2633, 0.0
      %v2642 = vpack.c.bf16 %v2634, %v2634
      %v2643 = vpack.c.bf16 %v2635, %v2635
      %v2644 = vpack.c.bf16 %v2636, %v2636
      %v2645 = vpack.c.bf16 %v2637, %v2637
      %v2646 = vpack.c.bf16 %v2638, %v2638
      %v2647 = vpack.c.bf16 %v2639, %v2639
      %v2648 = vpack.c.bf16 %v2640, %v2640
      %v2649 = vpack.c.bf16 %v2641, %v2641
      %2650 = vst [vmem:[%s356 + $0x4] sm:$0xf] %v2642
      %2651 = vst [vmem:[%s356 + $0x10] sm:$0xf] %v2643
      %2652 = vst [vmem:[%s356 + $0x1c] sm:$0xf] %v2644
      %2653 = vst [vmem:[%s356 + $0x28] sm:$0xf] %v2645
      %2654 = vst [vmem:[%s356 + $0x34] sm:$0xf] %v2646
      %2655 = vst [vmem:[%s356 + $0x40] sm:$0xf] %v2647
      %2656 = vst [vmem:[%s356 + $0x4c] sm:$0xf] %v2648
      %2657 = vst [vmem:[%s356 + $0x58] sm:$0xf] %v2649
      %v2658 = vld [vmem:[#allocation2] sm:$0x8]
      %v2659 = vld [vmem:[#allocation2 + $0x4] sm:$0x7]
      %v2660 = vld [vmem:[#allocation2 + $0xc] sm:$0x8]
      %v2661 = vld [vmem:[#allocation2 + $0x10] sm:$0x7]
      %v2662 = vld [vmem:[#allocation2 + $0x18] sm:$0x8]
      %v2663 = vld [vmem:[#allocation2 + $0x1c] sm:$0x7]
      %v2664 = vld [vmem:[#allocation2 + $0x24] sm:$0x8]
      %v2665 = vld [vmem:[#allocation2 + $0x28] sm:$0x7]
      %v2666 = vld [vmem:[#allocation2 + $0x30] sm:$0x8]
      %v2667 = vld [vmem:[#allocation2 + $0x34] sm:$0x7]
      %v2668 = vld [vmem:[#allocation2 + $0x3c] sm:$0x8]
      %v2669 = vld [vmem:[#allocation2 + $0x40] sm:$0x7]
      %v2670 = vld [vmem:[#allocation2 + $0x48] sm:$0x8]
      %v2671 = vld [vmem:[#allocation2 + $0x4c] sm:$0x7]
      %v2672 = vld [vmem:[#allocation2 + $0x54] sm:$0x8]
      %v2673 = vld [vmem:[#allocation2 + $0x58] sm:$0x7]
      %v2674 = vld [vmem:[#allocation2 + $0x60] sm:$0x8]
      %v2675 = vld [vmem:[#allocation2 + $0x64] sm:$0x7]
      %v2676 = vld [vmem:[#allocation2 + $0x6c] sm:$0x8]
      %v2677 = vld [vmem:[#allocation2 + $0x70] sm:$0x7]
      %v2678 = vld [vmem:[#allocation2 + $0x78] sm:$0x8]
      %v2679 = vld [vmem:[#allocation2 + $0x7c] sm:$0x7]
      %v2680 = vld [vmem:[#allocation2 + $0x84] sm:$0x8]
      %v2681 = vld [vmem:[#allocation2 + $0x88] sm:$0x7]
      %v2682 = vld [vmem:[#allocation2 + $0x90] sm:$0x8]
      %v2683 = vld [vmem:[#allocation2 + $0x94] sm:$0x7]
      %v2684 = vld [vmem:[#allocation2 + $0x9c] sm:$0x8]
      %v2685 = vld [vmem:[#allocation2 + $0xa0] sm:$0x7]
      %v2686 = vld [vmem:[#allocation2 + $0xa8] sm:$0x8]
      %v2687 = vld [vmem:[#allocation2 + $0xac] sm:$0x7]
      %v2688 = vld [vmem:[#allocation2 + $0xb4] sm:$0x8]
      %v2689 = vld [vmem:[#allocation2 + $0xb8] sm:$0x7]
      %v2690 = vld [vmem:[#allocation2 + $0xc0] sm:$0x8]
      %v2691 = vld [vmem:[#allocation2 + $0xc4] sm:$0x7]
      %v2692 = vld [vmem:[#allocation2 + $0xcc] sm:$0x8]
      %v2693 = vld [vmem:[#allocation2 + $0xd0] sm:$0x7]
      %v2694 = vld [vmem:[#allocation2 + $0xd8] sm:$0x8]
      %v2695 = vld [vmem:[#allocation2 + $0xdc] sm:$0x7]
      %v2696 = vld [vmem:[#allocation2 + $0xe4] sm:$0x8]
      %v2697 = vld [vmem:[#allocation2 + $0xe8] sm:$0x7]
      %v2698 = vld [vmem:[#allocation2 + $0xf0] sm:$0x8]
      %v2699 = vld [vmem:[#allocation2 + $0xf4] sm:$0x7]
      %v2700 = vld [vmem:[#allocation2 + $0xfc] sm:$0x8]
      %v2701 = vld [vmem:[#allocation2 + $0x100] sm:$0x7]
      %v2702 = vld [vmem:[#allocation2 + $0x108] sm:$0x8]
      %v2703 = vld [vmem:[#allocation2 + $0x10c] sm:$0x7]
      %v2704 = vld [vmem:[#allocation2 + $0x114] sm:$0x8]
      %v2705 = vld [vmem:[#allocation2 + $0x118] sm:$0x7]
      %vm2754 = vcmask 1040384
      %vm2755 = vcmask 1044484
      %vm2756 = vmor %vm2754, %vm2755
      %v2757 = vrot.slane %v2658, 7
      %v2758 = vrot.slane %v2757, 4
      %v2759 = vrot.slane %v2659, 7
      %v2760 = vsel %vm2756, %v2758, %v2759
      %v2761 = vrot.slane %v2660, 7
      %v2762 = vrot.slane %v2761, 4
      %v2763 = vrot.slane %v2661, 7
      %v2764 = vsel %vm2756, %v2762, %v2763
      %v2765 = vrot.slane %v2662, 7
      %v2766 = vrot.slane %v2765, 4
      %v2767 = vrot.slane %v2663, 7
      %v2768 = vsel %vm2756, %v2766, %v2767
      %v2769 = vrot.slane %v2664, 7
      %v2770 = vrot.slane %v2769, 4
      %v2771 = vrot.slane %v2665, 7
      %v2772 = vsel %vm2756, %v2770, %v2771
      %v2773 = vrot.slane %v2666, 7
      %v2774 = vrot.slane %v2773, 4
      %v2775 = vrot.slane %v2667, 7
      %v2776 = vsel %vm2756, %v2774, %v2775
      %v2777 = vrot.slane %v2668, 7
      %v2778 = vrot.slane %v2777, 4
      %v2779 = vrot.slane %v2669, 7
      %v2780 = vsel %vm2756, %v2778, %v2779
      %v2781 = vrot.slane %v2670, 7
      %v2782 = vrot.slane %v2781, 4
      %v2783 = vrot.slane %v2671, 7
      %v2784 = vsel %vm2756, %v2782, %v2783
      %v2785 = vrot.slane %v2672, 7
      %v2786 = vrot.slane %v2785, 4
      %v2787 = vrot.slane %v2673, 7
      %v2788 = vsel %vm2756, %v2786, %v2787
      %v2789 = vrot.slane %v2674, 7
      %v2790 = vrot.slane %v2789, 4
      %v2791 = vrot.slane %v2675, 7
      %v2792 = vsel %vm2756, %v2790, %v2791
      %v2793 = vrot.slane %v2676, 7
      %v2794 = vrot.slane %v2793, 4
      %v2795 = vrot.slane %v2677, 7
      %v2796 = vsel %vm2756, %v2794, %v2795
      %v2797 = vrot.slane %v2678, 7
      %v2798 = vrot.slane %v2797, 4
      %v2799 = vrot.slane %v2679, 7
      %v2800 = vsel %vm2756, %v2798, %v2799
      %v2801 = vrot.slane %v2680, 7
      %v2802 = vrot.slane %v2801, 4
      %v2803 = vrot.slane %v2681, 7
      %v2804 = vsel %vm2756, %v2802, %v2803
      %v2805 = vrot.slane %v2682, 7
      %v2806 = vrot.slane %v2805, 4
      %v2807 = vrot.slane %v2683, 7
      %v2808 = vsel %vm2756, %v2806, %v2807
      %v2809 = vrot.slane %v2684, 7
      %v2810 = vrot.slane %v2809, 4
      %v2811 = vrot.slane %v2685, 7
      %v2812 = vsel %vm2756, %v2810, %v2811
      %v2813 = vrot.slane %v2686, 7
      %v2814 = vrot.slane %v2813, 4
      %v2815 = vrot.slane %v2687, 7
      %v2816 = vsel %vm2756, %v2814, %v2815
      %v2817 = vrot.slane %v2688, 7
      %v2818 = vrot.slane %v2817, 4
      %v2819 = vrot.slane %v2689, 7
      %v2820 = vsel %vm2756, %v2818, %v2819
      %v2821 = vrot.slane %v2690, 7
      %v2822 = vrot.slane %v2821, 4
      %v2823 = vrot.slane %v2691, 7
      %v2824 = vsel %vm2756, %v2822, %v2823
      %v2825 = vrot.slane %v2692, 7
      %v2826 = vrot.slane %v2825, 4
      %v2827 = vrot.slane %v2693, 7
      %v2828 = vsel %vm2756, %v2826, %v2827
      %v2829 = vrot.slane %v2694, 7
      %v2830 = vrot.slane %v2829, 4
      %v2831 = vrot.slane %v2695, 7
      %v2832 = vsel %vm2756, %v2830, %v2831
      %v2833 = vrot.slane %v2696, 7
      %v2834 = vrot.slane %v2833, 4
      %v2835 = vrot.slane %v2697, 7
      %v2836 = vsel %vm2756, %v2834, %v2835
      %v2837 = vrot.slane %v2698, 7
      %v2838 = vrot.slane %v2837, 4
      %v2839 = vrot.slane %v2699, 7
      %v2840 = vsel %vm2756, %v2838, %v2839
      %v2841 = vrot.slane %v2700, 7
      %v2842 = vrot.slane %v2841, 4
      %v2843 = vrot.slane %v2701, 7
      %v2844 = vsel %vm2756, %v2842, %v2843
      %v2845 = vrot.slane %v2702, 7
      %v2846 = vrot.slane %v2845, 4
      %v2847 = vrot.slane %v2703, 7
      %v2848 = vsel %vm2756, %v2846, %v2847
      %v2849 = vrot.slane %v2704, 7
      %v2850 = vrot.slane %v2849, 4
      %v2851 = vrot.slane %v2705, 7
      %v2852 = vsel %vm2756, %v2850, %v2851
      %2877 = vst [vmem:[#allocation3] sm:$0xf] %v2760
      %2878 = vst [vmem:[#allocation3 + $0xc] sm:$0xf] %v2764
      %2879 = vst [vmem:[#allocation3 + $0x18] sm:$0xf] %v2768
      %2880 = vst [vmem:[#allocation3 + $0x24] sm:$0xf] %v2772
      %2881 = vst [vmem:[#allocation3 + $0x30] sm:$0xf] %v2776
      %2882 = vst [vmem:[#allocation3 + $0x3c] sm:$0xf] %v2780
      %2883 = vst [vmem:[#allocation3 + $0x48] sm:$0xf] %v2784
      %2884 = vst [vmem:[#allocation3 + $0x54] sm:$0xf] %v2788
      %2885 = vst [vmem:[#allocation3 + $0x60] sm:$0xf] %v2792
      %2886 = vst [vmem:[#allocation3 + $0x6c] sm:$0xf] %v2796
      %2887 = vst [vmem:[#allocation3 + $0x78] sm:$0xf] %v2800
      %2888 = vst [vmem:[#allocation3 + $0x84] sm:$0xf] %v2804
      %2889 = vst [vmem:[#allocation3 + $0x90] sm:$0xf] %v2808
      %2890 = vst [vmem:[#allocation3 + $0x9c] sm:$0xf] %v2812
      %2891 = vst [vmem:[#allocation3 + $0xa8] sm:$0xf] %v2816
      %2892 = vst [vmem:[#allocation3 + $0xb4] sm:$0xf] %v2820
      %2893 = vst [vmem:[#allocation3 + $0xc0] sm:$0xf] %v2824
      %2894 = vst [vmem:[#allocation3 + $0xcc] sm:$0xf] %v2828
      %2895 = vst [vmem:[#allocation3 + $0xd8] sm:$0xf] %v2832
      %2896 = vst [vmem:[#allocation3 + $0xe4] sm:$0xf] %v2836
      %2897 = vst [vmem:[#allocation3 + $0xf0] sm:$0xf] %v2840
      %2898 = vst [vmem:[#allocation3 + $0xfc] sm:$0xf] %v2844
      %2899 = vst [vmem:[#allocation3 + $0x108] sm:$0xf] %v2848
      %2900 = vst [vmem:[#allocation3 + $0x114] sm:$0xf] %v2852
      %v2901 = vld [vmem:[#allocation2 + $0x4] sm:$0xf]
      %v2902 = vld [vmem:[#allocation2 + $0x10] sm:$0xf]
      %v2903 = vld [vmem:[#allocation2 + $0x1c] sm:$0xf]
      %v2904 = vld [vmem:[#allocation2 + $0x28] sm:$0xf]
      %v2905 = vld [vmem:[#allocation2 + $0x34] sm:$0xf]
      %v2906 = vld [vmem:[#allocation2 + $0x40] sm:$0xf]
      %v2907 = vld [vmem:[#allocation2 + $0x4c] sm:$0xf]
      %v2908 = vld [vmem:[#allocation2 + $0x58] sm:$0xf]
      %v2909 = vld [vmem:[#allocation2 + $0x64] sm:$0xf]
      %v2910 = vld [vmem:[#allocation2 + $0x70] sm:$0xf]
      %v2911 = vld [vmem:[#allocation2 + $0x7c] sm:$0xf]
      %v2912 = vld [vmem:[#allocation2 + $0x88] sm:$0xf]
      %v2913 = vld [vmem:[#allocation2 + $0x94] sm:$0xf]
      %v2914 = vld [vmem:[#allocation2 + $0xa0] sm:$0xf]
      %v2915 = vld [vmem:[#allocation2 + $0xac] sm:$0xf]
      %v2916 = vld [vmem:[#allocation2 + $0xb8] sm:$0xf]
      %v2917 = vld [vmem:[#allocation2 + $0xc4] sm:$0xf]
      %v2918 = vld [vmem:[#allocation2 + $0xd0] sm:$0xf]
      %v2919 = vld [vmem:[#allocation2 + $0xdc] sm:$0xf]
      %v2920 = vld [vmem:[#allocation2 + $0xe8] sm:$0xf]
      %v2921 = vld [vmem:[#allocation2 + $0xf4] sm:$0xf]
      %v2922 = vld [vmem:[#allocation2 + $0x100] sm:$0xf]
      %v2923 = vld [vmem:[#allocation2 + $0x10c] sm:$0xf]
      %v2924 = vld [vmem:[#allocation2 + $0x118] sm:$0xf]
      %2925 = vst [vmem:[#allocation3 + $0x4] sm:$0xf] %v2901
      %2926 = vst [vmem:[#allocation3 + $0x10] sm:$0xf] %v2902
      %2927 = vst [vmem:[#allocation3 + $0x1c] sm:$0xf] %v2903
      %2928 = vst [vmem:[#allocation3 + $0x28] sm:$0xf] %v2904
      %2929 = vst [vmem:[#allocation3 + $0x34] sm:$0xf] %v2905
      %2930 = vst [vmem:[#allocation3 + $0x40] sm:$0xf] %v2906
      %2931 = vst [vmem:[#allocation3 + $0x4c] sm:$0xf] %v2907
      %2932 = vst [vmem:[#allocation3 + $0x58] sm:$0xf] %v2908
      %2933 = vst [vmem:[#allocation3 + $0x64] sm:$0xf] %v2909
      %2934 = vst [vmem:[#allocation3 + $0x70] sm:$0xf] %v2910
      %2935 = vst [vmem:[#allocation3 + $0x7c] sm:$0xf] %v2911
      %2936 = vst [vmem:[#allocation3 + $0x88] sm:$0xf] %v2912
      %2937 = vst [vmem:[#allocation3 + $0x94] sm:$0xf] %v2913
      %2938 = vst [vmem:[#allocation3 + $0xa0] sm:$0xf] %v2914
      %2939 = vst [vmem:[#allocation3 + $0xac] sm:$0xf] %v2915
      %2940 = vst [vmem:[#allocation3 + $0xb8] sm:$0xf] %v2916
      %2941 = vst [vmem:[#allocation3 + $0xc4] sm:$0xf] %v2917
      %2942 = vst [vmem:[#allocation3 + $0xd0] sm:$0xf] %v2918
      %2943 = vst [vmem:[#allocation3 + $0xdc] sm:$0xf] %v2919
      %2944 = vst [vmem:[#allocation3 + $0xe8] sm:$0xf] %v2920
      %2945 = vst [vmem:[#allocation3 + $0xf4] sm:$0xf] %v2921
      %2946 = vst [vmem:[#allocation3 + $0x100] sm:$0xf] %v2922
      %2947 = vst [vmem:[#allocation3 + $0x10c] sm:$0xf] %v2923
      %2948 = vst [vmem:[#allocation3 + $0x118] sm:$0xf] %v2924
      %v2949 = vld [vmem:[#allocation2 + $0x4] sm:$0xe]
      %v2950 = vld [vmem:[#allocation2 + $0x8] sm:$0x1]
      %v2951 = vld [vmem:[#allocation2 + $0x10] sm:$0xe]
      %v2952 = vld [vmem:[#allocation2 + $0x14] sm:$0x1]
      %v2953 = vld [vmem:[#allocation2 + $0x1c] sm:$0xe]
      %v2954 = vld [vmem:[#allocation2 + $0x20] sm:$0x1]
      %v2955 = vld [vmem:[#allocation2 + $0x28] sm:$0xe]
      %v2956 = vld [vmem:[#allocation2 + $0x2c] sm:$0x1]
      %v2957 = vld [vmem:[#allocation2 + $0x34] sm:$0xe]
      %v2958 = vld [vmem:[#allocation2 + $0x38] sm:$0x1]
      %v2959 = vld [vmem:[#allocation2 + $0x40] sm:$0xe]
      %v2960 = vld [vmem:[#allocation2 + $0x44] sm:$0x1]
      %v2961 = vld [vmem:[#allocation2 + $0x4c] sm:$0xe]
      %v2962 = vld [vmem:[#allocation2 + $0x50] sm:$0x1]
      %v2963 = vld [vmem:[#allocation2 + $0x58] sm:$0xe]
      %v2964 = vld [vmem:[#allocation2 + $0x5c] sm:$0x1]
      %v2965 = vld [vmem:[#allocation2 + $0x64] sm:$0xe]
      %v2966 = vld [vmem:[#allocation2 + $0x68] sm:$0x1]
      %v2967 = vld [vmem:[#allocation2 + $0x70] sm:$0xe]
      %v2968 = vld [vmem:[#allocation2 + $0x74] sm:$0x1]
      %v2969 = vld [vmem:[#allocation2 + $0x7c] sm:$0xe]
      %v2970 = vld [vmem:[#allocation2 + $0x80] sm:$0x1]
      %v2971 = vld [vmem:[#allocation2 + $0x88] sm:$0xe]
      %v2972 = vld [vmem:[#allocation2 + $0x8c] sm:$0x1]
      %v2973 = vld [vmem:[#allocation2 + $0x94] sm:$0xe]
      %v2974 = vld [vmem:[#allocation2 + $0x98] sm:$0x1]
      %v2975 = vld [vmem:[#allocation2 + $0xa0] sm:$0xe]
      %v2976 = vld [vmem:[#allocation2 + $0xa4] sm:$0x1]
      %v2977 = vld [vmem:[#allocation2 + $0xac] sm:$0xe]
      %v2978 = vld [vmem:[#allocation2 + $0xb0] sm:$0x1]
      %v2979 = vld [vmem:[#allocation2 + $0xb8] sm:$0xe]
      %v2980 = vld [vmem:[#allocation2 + $0xbc] sm:$0x1]
      %v2981 = vld [vmem:[#allocation2 + $0xc4] sm:$0xe]
      %v2982 = vld [vmem:[#allocation2 + $0xc8] sm:$0x1]
      %v2983 = vld [vmem:[#allocation2 + $0xd0] sm:$0xe]
      %v2984 = vld [vmem:[#allocation2 + $0xd4] sm:$0x1]
      %v2985 = vld [vmem:[#allocation2 + $0xdc] sm:$0xe]
      %v2986 = vld [vmem:[#allocation2 + $0xe0] sm:$0x1]
      %v2987 = vld [vmem:[#allocation2 + $0xe8] sm:$0xe]
      %v2988 = vld [vmem:[#allocation2 + $0xec] sm:$0x1]
      %v2989 = vld [vmem:[#allocation2 + $0xf4] sm:$0xe]
      %v2990 = vld [vmem:[#allocation2 + $0xf8] sm:$0x1]
      %v2991 = vld [vmem:[#allocation2 + $0x100] sm:$0xe]
      %v2992 = vld [vmem:[#allocation2 + $0x104] sm:$0x1]
      %v2993 = vld [vmem:[#allocation2 + $0x10c] sm:$0xe]
      %v2994 = vld [vmem:[#allocation2 + $0x110] sm:$0x1]
      %v2995 = vld [vmem:[#allocation2 + $0x118] sm:$0xe]
      %v2996 = vld [vmem:[#allocation2 + $0x11c] sm:$0x1]
      %vm3045 = vcmask 1042432
      %vm3046 = vcmask 1046532
      %vm3047 = vmor %vm3045, %vm3046
      %v3048 = vrot.slane %v2949, 5
      %v3049 = vrot.slane %v3048, 4
      %v3050 = vrot.slane %v2950, 5
      %v3051 = vsel %vm3047, %v3049, %v3050
      %v3052 = vrot.slane %v2951, 5
      %v3053 = vrot.slane %v3052, 4
      %v3054 = vrot.slane %v2952, 5
      %v3055 = vsel %vm3047, %v3053, %v3054
      %v3056 = vrot.slane %v2953, 5
      %v3057 = vrot.slane %v3056, 4
      %v3058 = vrot.slane %v2954, 5
      %v3059 = vsel %vm3047, %v3057, %v3058
      %v3060 = vrot.slane %v2955, 5
      %v3061 = vrot.slane %v3060, 4
      %v3062 = vrot.slane %v2956, 5
      %v3063 = vsel %vm3047, %v3061, %v3062
      %v3064 = vrot.slane %v2957, 5
      %v3065 = vrot.slane %v3064, 4
      %v3066 = vrot.slane %v2958, 5
      %v3067 = vsel %vm3047, %v3065, %v3066
      %v3068 = vrot.slane %v2959, 5
      %v3069 = vrot.slane %v3068, 4
      %v3070 = vrot.slane %v2960, 5
      %v3071 = vsel %vm3047, %v3069, %v3070
      %v3072 = vrot.slane %v2961, 5
      %v3073 = vrot.slane %v3072, 4
      %v3074 = vrot.slane %v2962, 5
      %v3075 = vsel %vm3047, %v3073, %v3074
      %v3076 = vrot.slane %v2963, 5
      %v3077 = vrot.slane %v3076, 4
      %v3078 = vrot.slane %v2964, 5
      %v3079 = vsel %vm3047, %v3077, %v3078
      %v3080 = vrot.slane %v2965, 5
      %v3081 = vrot.slane %v3080, 4
      %v3082 = vrot.slane %v2966, 5
      %v3083 = vsel %vm3047, %v3081, %v3082
      %v3084 = vrot.slane %v2967, 5
      %v3085 = vrot.slane %v3084, 4
      %v3086 = vrot.slane %v2968, 5
      %v3087 = vsel %vm3047, %v3085, %v3086
      %v3088 = vrot.slane %v2969, 5
      %v3089 = vrot.slane %v3088, 4
      %v3090 = vrot.slane %v2970, 5
      %v3091 = vsel %vm3047, %v3089, %v3090
      %v3092 = vrot.slane %v2971, 5
      %v3093 = vrot.slane %v3092, 4
      %v3094 = vrot.slane %v2972, 5
      %v3095 = vsel %vm3047, %v3093, %v3094
      %v3096 = vrot.slane %v2973, 5
      %v3097 = vrot.slane %v3096, 4
      %v3098 = vrot.slane %v2974, 5
      %v3099 = vsel %vm3047, %v3097, %v3098
      %v3100 = vrot.slane %v2975, 5
      %v3101 = vrot.slane %v3100, 4
      %v3102 = vrot.slane %v2976, 5
      %v3103 = vsel %vm3047, %v3101, %v3102
      %v3104 = vrot.slane %v2977, 5
      %v3105 = vrot.slane %v3104, 4
      %v3106 = vrot.slane %v2978, 5
      %v3107 = vsel %vm3047, %v3105, %v3106
      %v3108 = vrot.slane %v2979, 5
      %v3109 = vrot.slane %v3108, 4
      %v3110 = vrot.slane %v2980, 5
      %v3111 = vsel %vm3047, %v3109, %v3110
      %v3112 = vrot.slane %v2981, 5
      %v3113 = vrot.slane %v3112, 4
      %v3114 = vrot.slane %v2982, 5
      %v3115 = vsel %vm3047, %v3113, %v3114
      %v3116 = vrot.slane %v2983, 5
      %v3117 = vrot.slane %v3116, 4
      %v3118 = vrot.slane %v2984, 5
      %v3119 = vsel %vm3047, %v3117, %v3118
      %v3120 = vrot.slane %v2985, 5
      %v3121 = vrot.slane %v3120, 4
      %v3122 = vrot.slane %v2986, 5
      %v3123 = vsel %vm3047, %v3121, %v3122
      %v3124 = vrot.slane %v2987, 5
      %v3125 = vrot.slane %v3124, 4
      %v3126 = vrot.slane %v2988, 5
      %v3127 = vsel %vm3047, %v3125, %v3126
      %v3128 = vrot.slane %v2989, 5
      %v3129 = vrot.slane %v3128, 4
      %v3130 = vrot.slane %v2990, 5
      %v3131 = vsel %vm3047, %v3129, %v3130
      %v3132 = vrot.slane %v2991, 5
      %v3133 = vrot.slane %v3132, 4
      %v3134 = vrot.slane %v2992, 5
      %v3135 = vsel %vm3047, %v3133, %v3134
      %v3136 = vrot.slane %v2993, 5
      %v3137 = vrot.slane %v3136, 4
      %v3138 = vrot.slane %v2994, 5
      %v3139 = vsel %vm3047, %v3137, %v3138
      %v3140 = vrot.slane %v2995, 5
      %v3141 = vrot.slane %v3140, 4
      %v3142 = vrot.slane %v2996, 5
      %v3143 = vsel %vm3047, %v3141, %v3142
      %3168 = vst [vmem:[#allocation3 + $0x8] sm:$0xf] %v3051
      %3169 = vst [vmem:[#allocation3 + $0x14] sm:$0xf] %v3055
      %3170 = vst [vmem:[#allocation3 + $0x20] sm:$0xf] %v3059
      %3171 = vst [vmem:[#allocation3 + $0x2c] sm:$0xf] %v3063
      %3172 = vst [vmem:[#allocation3 + $0x38] sm:$0xf] %v3067
      %3173 = vst [vmem:[#allocation3 + $0x44] sm:$0xf] %v3071
      %3174 = vst [vmem:[#allocation3 + $0x50] sm:$0xf] %v3075
      %3175 = vst [vmem:[#allocation3 + $0x5c] sm:$0xf] %v3079
      %3176 = vst [vmem:[#allocation3 + $0x68] sm:$0xf] %v3083
      %3177 = vst [vmem:[#allocation3 + $0x74] sm:$0xf] %v3087
      %3178 = vst [vmem:[#allocation3 + $0x80] sm:$0xf] %v3091
      %3179 = vst [vmem:[#allocation3 + $0x8c] sm:$0xf] %v3095
      %3180 = vst [vmem:[#allocation3 + $0x98] sm:$0xf] %v3099
      %3181 = vst [vmem:[#allocation3 + $0xa4] sm:$0xf] %v3103
      %3182 = vst [vmem:[#allocation3 + $0xb0] sm:$0xf] %v3107
      %3183 = vst [vmem:[#allocation3 + $0xbc] sm:$0xf] %v3111
      %3184 = vst [vmem:[#allocation3 + $0xc8] sm:$0xf] %v3115
      %3185 = vst [vmem:[#allocation3 + $0xd4] sm:$0xf] %v3119
      %3186 = vst [vmem:[#allocation3 + $0xe0] sm:$0xf] %v3123
      %3187 = vst [vmem:[#allocation3 + $0xec] sm:$0xf] %v3127
      %3188 = vst [vmem:[#allocation3 + $0xf8] sm:$0xf] %v3131
      %3189 = vst [vmem:[#allocation3 + $0x104] sm:$0xf] %v3135
      %3190 = vst [vmem:[#allocation3 + $0x110] sm:$0xf] %v3139
      %3191 = vst [vmem:[#allocation3 + $0x11c] sm:$0xf] %v3143
      %s3192 = scalar_lea.vmem [#allocation3], 72
      %v3193 = vld [vmem:[%s3192] sm:$0xff]
      %v3194 = vld [vmem:[%s3192 + $0x8] sm:$0xf]
      %v3195 = vld [vmem:[%s3192 + $0xc] sm:$0xff]
      %v3196 = vld [vmem:[%s3192 + $0x14] sm:$0xf]
      %v3197 = vld [vmem:[%s3192 + $0x18] sm:$0xff]
      %v3198 = vld [vmem:[%s3192 + $0x20] sm:$0xf]
      %v3199 = vld [vmem:[%s3192 + $0x24] sm:$0xff]
      %v3200 = vld [vmem:[%s3192 + $0x2c] sm:$0xf]
      %v3201 = vld [vmem:[%s3192 + $0x30] sm:$0xff]
      %v3202 = vld [vmem:[%s3192 + $0x38] sm:$0xf]
      %v3203 = vld [vmem:[%s3192 + $0x3c] sm:$0xff]
      %v3204 = vld [vmem:[%s3192 + $0x44] sm:$0xf]
      %v3205 = vld [vmem:[%s3192 + $0x48] sm:$0xff]
      %v3206 = vld [vmem:[%s3192 + $0x50] sm:$0xf]
      %v3207 = vld [vmem:[%s3192 + $0x54] sm:$0xff]
      %v3208 = vld [vmem:[%s3192 + $0x5c] sm:$0xf]
      %s3209 = scalar_lea.vmem %s3, 576
      %v3210 = vld [vmem:[%s3209] sm:$0xf]
      %v3211 = vld [vmem:[%s3209 + $0x4] sm:$0xf]
      %v3212 = vld [vmem:[%s3209 + $0x8] sm:$0xf]
      %v3213 = vld [vmem:[%s3209 + $0xc] sm:$0xf]
      %v3214 = vld [vmem:[%s3209 + $0x10] sm:$0xf]
      %v3215 = vld [vmem:[%s3209 + $0x14] sm:$0xf]
      %v3216 = vld [vmem:[%s3209 + $0x18] sm:$0xf]
      %v3217 = vld [vmem:[%s3209 + $0x1c] sm:$0xf]
      %v3218 = vld [vmem:[%s3209 + $0x20] sm:$0xf]
      %v3219 = vld [vmem:[%s3209 + $0x24] sm:$0xf]
      %v3220 = vld [vmem:[%s3209 + $0x28] sm:$0xf]
      %v3221 = vld [vmem:[%s3209 + $0x2c] sm:$0xf]
      %v3222 = vld [vmem:[%s3209 + $0x30] sm:$0xf]
      %v3223 = vld [vmem:[%s3209 + $0x34] sm:$0xf]
      %v3224 = vld [vmem:[%s3209 + $0x38] sm:$0xf]
      %v3225 = vld [vmem:[%s3209 + $0x3c] sm:$0xf]
      %v3226 = vld [vmem:[%s3209 + $0x40] sm:$0xf]
      %v3227 = vld [vmem:[%s3209 + $0x44] sm:$0xf]
      %v3228 = vld [vmem:[%s3209 + $0x48] sm:$0xf]
      %v3229 = vld [vmem:[%s3209 + $0x4c] sm:$0xf]
      %v3230 = vld [vmem:[%s3209 + $0x50] sm:$0xf]
      %v3231 = vld [vmem:[%s3209 + $0x54] sm:$0xf]
      %v3232 = vld [vmem:[%s3209 + $0x58] sm:$0xf]
      %v3233 = vld [vmem:[%s3209 + $0x5c] sm:$0xf]
      %v3234 = vld [vmem:[%s3209 + $0x60] sm:$0xf]
      %v3235 = vld [vmem:[%s3209 + $0x64] sm:$0xf]
      %v3236 = vld [vmem:[%s3209 + $0x68] sm:$0xf]
      %v3237 = vld [vmem:[%s3209 + $0x6c] sm:$0xf]
      %v3238 = vld [vmem:[%s3209 + $0x70] sm:$0xf]
      %v3239 = vld [vmem:[%s3209 + $0x74] sm:$0xf]
      %v3240 = vld [vmem:[%s3209 + $0x78] sm:$0xf]
      %v3241 = vld [vmem:[%s3209 + $0x7c] sm:$0xf]
      %v3242 = vld [vmem:[%s3209 + $0x80] sm:$0xf]
      %v3243 = vld [vmem:[%s3209 + $0x84] sm:$0xf]
      %v3244 = vld [vmem:[%s3209 + $0x88] sm:$0xf]
      %v3245 = vld [vmem:[%s3209 + $0x8c] sm:$0xf]
      %v3246 = vld [vmem:[%s3209 + $0x90] sm:$0xf]
      %v3247 = vld [vmem:[%s3209 + $0x94] sm:$0xf]
      %v3248 = vld [vmem:[%s3209 + $0x98] sm:$0xf]
      %v3249 = vld [vmem:[%s3209 + $0x9c] sm:$0xf]
      %v3250 = vld [vmem:[%s3209 + $0xa0] sm:$0xf]
      %v3251 = vld [vmem:[%s3209 + $0xa4] sm:$0xf]
      %v3252 = vld [vmem:[%s3209 + $0xa8] sm:$0xf]
      %v3253 = vld [vmem:[%s3209 + $0xac] sm:$0xf]
      %v3254 = vld [vmem:[%s3209 + $0xb0] sm:$0xf]
      %v3255 = vld [vmem:[%s3209 + $0xb4] sm:$0xf]
      %v3256 = vld [vmem:[%s3209 + $0xb8] sm:$0xf]
      %v3257 = vld [vmem:[%s3209 + $0xbc] sm:$0xf]
      %v3258 = vld [vmem:[%s1450] sm:$0xff]
      %v3259 = vld [vmem:[%s1450 + $0x8] sm:$0xf]
      %v3260 = vld [vmem:[%s1450 + $0xc] sm:$0xff]
      %v3261 = vld [vmem:[%s1450 + $0x14] sm:$0xf]
      %v3262 = vld [vmem:[%s1450 + $0x18] sm:$0xff]
      %v3263 = vld [vmem:[%s1450 + $0x20] sm:$0xf]
      %v3264 = vld [vmem:[%s1450 + $0x24] sm:$0xff]
      %v3265 = vld [vmem:[%s1450 + $0x2c] sm:$0xf]
      %v3266 = vld [vmem:[%s1450 + $0x30] sm:$0xff]
      %v3267 = vld [vmem:[%s1450 + $0x38] sm:$0xf]
      %v3268 = vld [vmem:[%s1450 + $0x3c] sm:$0xff]
      %v3269 = vld [vmem:[%s1450 + $0x44] sm:$0xf]
      %v3270 = vld [vmem:[%s1450 + $0x48] sm:$0xff]
      %v3271 = vld [vmem:[%s1450 + $0x50] sm:$0xf]
      %v3272 = vld [vmem:[%s1450 + $0x54] sm:$0xff]
      %v3273 = vld [vmem:[%s1450 + $0x5c] sm:$0xf]
      %s3274 = scalar_lea.vmem %s3, 768
      %v3275 = vld [vmem:[%s3274] sm:$0xf]
      %v3276 = vld [vmem:[%s3274 + $0x4] sm:$0xf]
      %v3277 = vld [vmem:[%s3274 + $0x8] sm:$0xf]
      %v3278 = vld [vmem:[%s3274 + $0xc] sm:$0xf]
      %v3279 = vld [vmem:[%s3274 + $0x10] sm:$0xf]
      %v3280 = vld [vmem:[%s3274 + $0x14] sm:$0xf]
      %v3281 = vld [vmem:[%s3274 + $0x18] sm:$0xf]
      %v3282 = vld [vmem:[%s3274 + $0x1c] sm:$0xf]
      %v3283 = vld [vmem:[%s3274 + $0x20] sm:$0xf]
      %v3284 = vld [vmem:[%s3274 + $0x24] sm:$0xf]
      %v3285 = vld [vmem:[%s3274 + $0x28] sm:$0xf]
      %v3286 = vld [vmem:[%s3274 + $0x2c] sm:$0xf]
      %v3287 = vld [vmem:[%s3274 + $0x30] sm:$0xf]
      %v3288 = vld [vmem:[%s3274 + $0x34] sm:$0xf]
      %v3289 = vld [vmem:[%s3274 + $0x38] sm:$0xf]
      %v3290 = vld [vmem:[%s3274 + $0x3c] sm:$0xf]
      %v3291 = vld [vmem:[%s3274 + $0x40] sm:$0xf]
      %v3292 = vld [vmem:[%s3274 + $0x44] sm:$0xf]
      %v3293 = vld [vmem:[%s3274 + $0x48] sm:$0xf]
      %v3294 = vld [vmem:[%s3274 + $0x4c] sm:$0xf]
      %v3295 = vld [vmem:[%s3274 + $0x50] sm:$0xf]
      %v3296 = vld [vmem:[%s3274 + $0x54] sm:$0xf]
      %v3297 = vld [vmem:[%s3274 + $0x58] sm:$0xf]
      %v3298 = vld [vmem:[%s3274 + $0x5c] sm:$0xf]
      %v3299 = vld [vmem:[%s3274 + $0x60] sm:$0xf]
      %v3300 = vld [vmem:[%s3274 + $0x64] sm:$0xf]
      %v3301 = vld [vmem:[%s3274 + $0x68] sm:$0xf]
      %v3302 = vld [vmem:[%s3274 + $0x6c] sm:$0xf]
      %v3303 = vld [vmem:[%s3274 + $0x70] sm:$0xf]
      %v3304 = vld [vmem:[%s3274 + $0x74] sm:$0xf]
      %v3305 = vld [vmem:[%s3274 + $0x78] sm:$0xf]
      %v3306 = vld [vmem:[%s3274 + $0x7c] sm:$0xf]
      %v3307 = vld [vmem:[%s3274 + $0x80] sm:$0xf]
      %v3308 = vld [vmem:[%s3274 + $0x84] sm:$0xf]
      %v3309 = vld [vmem:[%s3274 + $0x88] sm:$0xf]
      %v3310 = vld [vmem:[%s3274 + $0x8c] sm:$0xf]
      %v3311 = vld [vmem:[%s3274 + $0x90] sm:$0xf]
      %v3312 = vld [vmem:[%s3274 + $0x94] sm:$0xf]
      %v3313 = vld [vmem:[%s3274 + $0x98] sm:$0xf]
      %v3314 = vld [vmem:[%s3274 + $0x9c] sm:$0xf]
      %v3315 = vld [vmem:[%s3274 + $0xa0] sm:$0xf]
      %v3316 = vld [vmem:[%s3274 + $0xa4] sm:$0xf]
      %v3317 = vld [vmem:[%s3274 + $0xa8] sm:$0xf]
      %v3318 = vld [vmem:[%s3274 + $0xac] sm:$0xf]
      %v3319 = vld [vmem:[%s3274 + $0xb0] sm:$0xf]
      %v3320 = vld [vmem:[%s3274 + $0xb4] sm:$0xf]
      %v3321 = vld [vmem:[%s3274 + $0xb8] sm:$0xf]
      %v3322 = vld [vmem:[%s3274 + $0xbc] sm:$0xf]
      %v3339 = vunpack.c.l.b16 %v3258
      %v3340 = vunpack.c.h.b16 %v3258
      %v3341 = vunpack.c.l.b16 %v3259
      %v3342 = vunpack.c.l.b16 %v3260
      %v3343 = vunpack.c.h.b16 %v3260
      %v3344 = vunpack.c.l.b16 %v3261
      %v3345 = vunpack.c.l.b16 %v3262
      %v3346 = vunpack.c.h.b16 %v3262
      %v3347 = vunpack.c.l.b16 %v3263
      %v3348 = vunpack.c.l.b16 %v3264
      %v3349 = vunpack.c.h.b16 %v3264
      %v3350 = vunpack.c.l.b16 %v3265
      %v3351 = vunpack.c.l.b16 %v3266
      %v3352 = vunpack.c.h.b16 %v3266
      %v3353 = vunpack.c.l.b16 %v3267
      %v3354 = vunpack.c.l.b16 %v3268
      %v3355 = vunpack.c.h.b16 %v3268
      %v3356 = vunpack.c.l.b16 %v3269
      %v3357 = vunpack.c.l.b16 %v3270
      %v3358 = vunpack.c.h.b16 %v3270
      %v3359 = vunpack.c.l.b16 %v3271
      %v3360 = vunpack.c.l.b16 %v3272
      %v3361 = vunpack.c.h.b16 %v3272
      %v3362 = vunpack.c.l.b16 %v3273
      %v3363 = vpack.c.b16 %v3342, %v3339
      %v3364 = vpack.c.b16 %v3343, %v3340
      %v3365 = vpack.c.b16 %v3344, %v3341
      %v3366 = vpack.c.b16 %v3348, %v3345
      %v3367 = vpack.c.b16 %v3349, %v3346
      %v3368 = vpack.c.b16 %v3350, %v3347
      %v3369 = vpack.c.b16 %v3354, %v3351
      %v3370 = vpack.c.b16 %v3355, %v3352
      %v3371 = vpack.c.b16 %v3356, %v3353
      %v3372 = vpack.c.b16 %v3360, %v3357
      %v3373 = vpack.c.b16 %v3361, %v3358
      %v3374 = vpack.c.b16 %v3362, %v3359
      %v3435 = vunpack.c.l.b16 %v3275
      %v3436 = vunpack.c.l.b16 %v3276
      %v3437 = vunpack.c.l.b16 %v3277
      %v3438 = vunpack.c.l.b16 %v3278
      %v3439 = vunpack.c.l.b16 %v3279
      %v3440 = vunpack.c.l.b16 %v3280
      %v3441 = vunpack.c.l.b16 %v3281
      %v3442 = vunpack.c.l.b16 %v3282
      %v3443 = vunpack.c.l.b16 %v3283
      %v3444 = vunpack.c.l.b16 %v3284
      %v3445 = vunpack.c.l.b16 %v3285
      %v3446 = vunpack.c.l.b16 %v3286
      %v3447 = vunpack.c.l.b16 %v3287
      %v3448 = vunpack.c.l.b16 %v3288
      %v3449 = vunpack.c.l.b16 %v3289
      %v3450 = vunpack.c.l.b16 %v3290
      %v3451 = vunpack.c.l.b16 %v3291
      %v3452 = vunpack.c.l.b16 %v3292
      %v3453 = vunpack.c.l.b16 %v3293
      %v3454 = vunpack.c.l.b16 %v3294
      %v3455 = vunpack.c.l.b16 %v3295
      %v3456 = vunpack.c.l.b16 %v3296
      %v3457 = vunpack.c.l.b16 %v3297
      %v3458 = vunpack.c.l.b16 %v3298
      %v3459 = vunpack.c.l.b16 %v3299
      %v3460 = vunpack.c.l.b16 %v3300
      %v3461 = vunpack.c.l.b16 %v3301
      %v3462 = vunpack.c.l.b16 %v3302
      %v3463 = vunpack.c.l.b16 %v3303
      %v3464 = vunpack.c.l.b16 %v3304
      %v3465 = vunpack.c.l.b16 %v3305
      %v3466 = vunpack.c.l.b16 %v3306
      %v3467 = vunpack.c.l.b16 %v3307
      %v3468 = vunpack.c.l.b16 %v3308
      %v3469 = vunpack.c.l.b16 %v3309
      %v3470 = vunpack.c.l.b16 %v3310
      %v3471 = vunpack.c.l.b16 %v3311
      %v3472 = vunpack.c.l.b16 %v3312
      %v3473 = vunpack.c.l.b16 %v3313
      %v3474 = vunpack.c.l.b16 %v3314
      %v3475 = vunpack.c.l.b16 %v3315
      %v3476 = vunpack.c.l.b16 %v3316
      %v3477 = vunpack.c.l.b16 %v3317
      %v3478 = vunpack.c.l.b16 %v3318
      %v3479 = vunpack.c.l.b16 %v3319
      %v3480 = vunpack.c.l.b16 %v3320
      %v3481 = vunpack.c.l.b16 %v3321
      %v3482 = vunpack.c.l.b16 %v3322
      %v3483 = vpack.c.b16 %v3436, %v3435
      %v3484 = vpack.c.b16 %v3438, %v3437
      %v3485 = vpack.c.b16 %v3440, %v3439
      %v3486 = vpack.c.b16 %v3442, %v3441
      %v3487 = vpack.c.b16 %v3444, %v3443
      %v3488 = vpack.c.b16 %v3446, %v3445
      %v3489 = vpack.c.b16 %v3448, %v3447
      %v3490 = vpack.c.b16 %v3450, %v3449
      %v3491 = vpack.c.b16 %v3452, %v3451
      %v3492 = vpack.c.b16 %v3454, %v3453
      %v3493 = vpack.c.b16 %v3456, %v3455
      %v3494 = vpack.c.b16 %v3458, %v3457
      %v3495 = vpack.c.b16 %v3460, %v3459
      %v3496 = vpack.c.b16 %v3462, %v3461
      %v3497 = vpack.c.b16 %v3464, %v3463
      %v3498 = vpack.c.b16 %v3466, %v3465
      %v3499 = vpack.c.b16 %v3468, %v3467
      %v3500 = vpack.c.b16 %v3470, %v3469
      %v3501 = vpack.c.b16 %v3472, %v3471
      %v3502 = vpack.c.b16 %v3474, %v3473
      %v3503 = vpack.c.b16 %v3476, %v3475
      %v3504 = vpack.c.b16 %v3478, %v3477
      %v3505 = vpack.c.b16 %v3480, %v3479
      %v3506 = vpack.c.b16 %v3482, %v3481
      %3531 = vmatprep.subr.bf16.mxu0 0
      %3532 = vmatpush1.bf16.msra.mxu0 %v3483
      %3533 = vmatprep.subr.bf16.mxu0 0
      %3534 = vmatpush1.bf16.msra.mxu0 %v3484
      %3535 = vmatprep.subr.bf16.mxu0 0
      %3536 = vmatpush1.bf16.msra.mxu0 %v3485
      %3537 = vmatprep.subr.bf16.mxu0 0
      %3538 = vmatpush1.bf16.msra.mxu0 %v3486
      %3539 = vmatprep.subr.bf16.mxu0 0
      %3540 = vmatpush1.bf16.msra.mxu0 %v3487
      %3541 = vmatprep.subr.bf16.mxu0 0
      %3542 = vmatpush1.bf16.msra.mxu0 %v3488
      %3543 = vmatprep.subr.bf16.mxu0 0
      %3544 = vmatpush1.bf16.msra.mxu0 %v3489
      %3545 = vmatprep.subr.bf16.mxu0 0
      %3546 = vmatpush1.bf16.msra.mxu0 %v3490
      %3547 = vmatprep.subr.bf16.mxu0 0
      %3548 = vmatpush1.bf16.msra.mxu0 %v3491
      %3549 = vmatprep.subr.bf16.mxu0 0
      %3550 = vmatpush1.bf16.msra.mxu0 %v3492
      %3551 = vmatprep.subr.bf16.mxu0 0
      %3552 = vmatpush1.bf16.msra.mxu0 %v3493
      %3553 = vmatprep.subr.bf16.mxu0 0
      %3554 = vmatpush1.bf16.msra.mxu0 %v3494
      %3555 = vmatprep.subr.bf16.mxu0 0
      %3556 = vmatpush1.bf16.msra.mxu0 %v3495
      %3557 = vmatprep.subr.bf16.mxu0 0
      %3558 = vmatpush1.bf16.msra.mxu0 %v3496
      %3559 = vmatprep.subr.bf16.mxu0 0
      %3560 = vmatpush1.bf16.msra.mxu0 %v3497
      %3561 = vmatprep.subr.bf16.mxu0 0
      %3562 = vmatpush1.bf16.msra.mxu0 %v3498
      %3563 = vmatprep.mubr.bf16.mxu0 %v3364
      %3564 = vmatmul.mubr.bf16.gmra.mrb[0].mxu0 %v3363
      %v3565 = vpop.f32.mrb[0].mxu0
      %v3566 = vadd.f32 0.0, %v3565
      %v3567 = vpop.f32.mrb[0].mxu0
      %v3568 = vpop.f32.mrb[0].mxu0
      %v3569 = vadd.f32 0.0, %v3568
      %v3570 = vpop.f32.mrb[0].mxu0
      %3571 = vmatprep.mubr.bf16.mxu0 %v3367
      %3572 = vmatmul.mubr.bf16.gmra.mrb[0].mxu0 %v3366
      %v3573 = vpop.f32.mrb[0].mxu0
      %v3574 = vadd.f32 0.0, %v3573
      %v3575 = vpop.f32.mrb[0].mxu0
      %v3576 = vpop.f32.mrb[0].mxu0
      %v3577 = vadd.f32 0.0, %v3576
      %v3578 = vpop.f32.mrb[0].mxu0
      %3579 = vmatprep.mubr.bf16.mxu0 %v3370
      %3580 = vmatmul.mubr.bf16.gmra.mrb[0].mxu0 %v3369
      %v3581 = vpop.f32.mrb[0].mxu0
      %v3582 = vadd.f32 0.0, %v3581
      %v3583 = vpop.f32.mrb[0].mxu0
      %v3584 = vpop.f32.mrb[0].mxu0
      %v3585 = vadd.f32 0.0, %v3584
      %v3586 = vpop.f32.mrb[0].mxu0
      %3587 = vmatprep.mubr.bf16.mxu0 %v3373
      %3588 = vmatmul.mubr.bf16.gmra.mrb[0].mxu0 %v3372
      %v3589 = vpop.f32.mrb[0].mxu0
      %v3590 = vadd.f32 0.0, %v3589
      %v3591 = vpop.f32.mrb[0].mxu0
      %v3592 = vpop.f32.mrb[0].mxu0
      %v3593 = vadd.f32 0.0, %v3592
      %v3594 = vpop.f32.mrb[0].mxu0
      %3595 = vdwg.mxu0
      %3596 = vmatprep.subr.bf16.mxu0 0
      %3597 = vmatpush1.bf16.msra.mxu0 %v3499
      %3598 = vmatprep.subr.bf16.mxu0 0
      %3599 = vmatpush1.bf16.msra.mxu0 %v3500
      %3600 = vmatprep.subr.bf16.mxu0 0
      %3601 = vmatpush1.bf16.msra.mxu0 %v3501
      %3602 = vmatprep.subr.bf16.mxu0 0
      %3603 = vmatpush1.bf16.msra.mxu0 %v3502
      %3604 = vmatprep.subr.bf16.mxu0 0
      %3605 = vmatpush1.bf16.msra.mxu0 %v3503
      %3606 = vmatprep.subr.bf16.mxu0 0
      %3607 = vmatpush1.bf16.msra.mxu0 %v3504
      %3608 = vmatprep.subr.bf16.mxu0 0
      %3609 = vmatpush1.bf16.msra.mxu0 %v3505
      %3610 = vmatprep.subr.bf16.mxu0 0
      %3611 = vmatpush1.bf16.msra.mxu0 %v3506
      %3612 = vmatprep.subr.bf16.mxu0 0
      %3613 = vmatpush1.bf16.msra.mxu0 0
      %3614 = vmatprep.subr.bf16.mxu0 0
      %3615 = vmatpush1.bf16.msra.mxu0 0
      %3616 = vmatprep.subr.bf16.mxu0 0
      %3617 = vmatpush1.bf16.msra.mxu0 0
      %3618 = vmatprep.subr.bf16.mxu0 0
      %3619 = vmatpush1.bf16.msra.mxu0 0
      %3620 = vmatprep.subr.bf16.mxu0 0
      %3621 = vmatpush1.bf16.msra.mxu0 0
      %3622 = vmatprep.subr.bf16.mxu0 0
      %3623 = vmatpush1.bf16.msra.mxu0 0
      %3624 = vmatprep.subr.bf16.mxu0 0
      %3625 = vmatpush1.bf16.msra.mxu0 0
      %3626 = vmatprep.subr.bf16.mxu0 0
      %3627 = vmatpush1.bf16.msra.mxu0 0
      %3628 = vmatprep.mubr.bf16.mxu0 0
      %3629 = vmatmul.mubr.bf16.gmra.mrb[0].mxu0 %v3365
      %v3630 = vpop.f32.mrb[0].mxu0
      %v3631 = vadd.f32 %v3566, %v3630
      %v3632 = vpop.f32.mrb[0].mxu0
      %v3633 = vpop.f32.mrb[0].mxu0
      %v3634 = vadd.f32 %v3569, %v3633
      %v3635 = vpop.f32.mrb[0].mxu0
      %3636 = vmatprep.mubr.bf16.mxu0 0
      %3637 = vmatmul.mubr.bf16.gmra.mrb[0].mxu0 %v3368
      %v3638 = vpop.f32.mrb[0].mxu0
      %v3639 = vadd.f32 %v3574, %v3638
      %v3640 = vpop.f32.mrb[0].mxu0
      %v3641 = vpop.f32.mrb[0].mxu0
      %v3642 = vadd.f32 %v3577, %v3641
      %v3643 = vpop.f32.mrb[0].mxu0
      %3644 = vmatprep.mubr.bf16.mxu0 0
      %3645 = vmatmul.mubr.bf16.gmra.mrb[0].mxu0 %v3371
      %v3646 = vpop.f32.mrb[0].mxu0
      %v3647 = vadd.f32 %v3582, %v3646
      %v3648 = vpop.f32.mrb[0].mxu0
      %v3649 = vpop.f32.mrb[0].mxu0
      %v3650 = vadd.f32 %v3585, %v3649
      %v3651 = vpop.f32.mrb[0].mxu0
      %3652 = vmatprep.mubr.bf16.mxu0 0
      %3653 = vmatmul.mubr.bf16.gmra.mrb[0].mxu0 %v3374
      %v3654 = vpop.f32.mrb[0].mxu0
      %v3655 = vadd.f32 %v3590, %v3654
      %v3656 = vpop.f32.mrb[0].mxu0
      %v3657 = vpop.f32.mrb[0].mxu0
      %v3658 = vadd.f32 %v3593, %v3657
      %v3659 = vpop.f32.mrb[0].mxu0
      %3660 = vdwg.mxu0
      %v3677 = vunpack.c.l.b16 %v3193
      %v3678 = vunpack.c.h.b16 %v3193
      %v3679 = vunpack.c.l.b16 %v3194
      %v3680 = vunpack.c.l.b16 %v3195
      %v3681 = vunpack.c.h.b16 %v3195
      %v3682 = vunpack.c.l.b16 %v3196
      %v3683 = vunpack.c.l.b16 %v3197
      %v3684 = vunpack.c.h.b16 %v3197
      %v3685 = vunpack.c.l.b16 %v3198
      %v3686 = vunpack.c.l.b16 %v3199
      %v3687 = vunpack.c.h.b16 %v3199
      %v3688 = vunpack.c.l.b16 %v3200
      %v3689 = vunpack.c.l.b16 %v3201
      %v3690 = vunpack.c.h.b16 %v3201
      %v3691 = vunpack.c.l.b16 %v3202
      %v3692 = vunpack.c.l.b16 %v3203
      %v3693 = vunpack.c.h.b16 %v3203
      %v3694 = vunpack.c.l.b16 %v3204
      %v3695 = vunpack.c.l.b16 %v3205
      %v3696 = vunpack.c.h.b16 %v3205
      %v3697 = vunpack.c.l.b16 %v3206
      %v3698 = vunpack.c.l.b16 %v3207
      %v3699 = vunpack.c.h.b16 %v3207
      %v3700 = vunpack.c.l.b16 %v3208
      %v3701 = vpack.c.b16 %v3680, %v3677
      %v3702 = vpack.c.b16 %v3681, %v3678
      %v3703 = vpack.c.b16 %v3682, %v3679
      %v3704 = vpack.c.b16 %v3686, %v3683
      %v3705 = vpack.c.b16 %v3687, %v3684
      %v3706 = vpack.c.b16 %v3688, %v3685
      %v3707 = vpack.c.b16 %v3692, %v3689
      %v3708 = vpack.c.b16 %v3693, %v3690
      %v3709 = vpack.c.b16 %v3694, %v3691
      %v3710 = vpack.c.b16 %v3698, %v3695
      %v3711 = vpack.c.b16 %v3699, %v3696
      %v3712 = vpack.c.b16 %v3700, %v3697
      %v3773 = vunpack.c.l.b16 %v3210
      %v3774 = vunpack.c.l.b16 %v3211
      %v3775 = vunpack.c.l.b16 %v3212
      %v3776 = vunpack.c.l.b16 %v3213
      %v3777 = vunpack.c.l.b16 %v3214
      %v3778 = vunpack.c.l.b16 %v3215
      %v3779 = vunpack.c.l.b16 %v3216
      %v3780 = vunpack.c.l.b16 %v3217
      %v3781 = vunpack.c.l.b16 %v3218
      %v3782 = vunpack.c.l.b16 %v3219
      %v3783 = vunpack.c.l.b16 %v3220
      %v3784 = vunpack.c.l.b16 %v3221
      %v3785 = vunpack.c.l.b16 %v3222
      %v3786 = vunpack.c.l.b16 %v3223
      %v3787 = vunpack.c.l.b16 %v3224
      %v3788 = vunpack.c.l.b16 %v3225
      %v3789 = vunpack.c.l.b16 %v3226
      %v3790 = vunpack.c.l.b16 %v3227
      %v3791 = vunpack.c.l.b16 %v3228
      %v3792 = vunpack.c.l.b16 %v3229
      %v3793 = vunpack.c.l.b16 %v3230
      %v3794 = vunpack.c.l.b16 %v3231
      %v3795 = vunpack.c.l.b16 %v3232
      %v3796 = vunpack.c.l.b16 %v3233
      %v3797 = vunpack.c.l.b16 %v3234
      %v3798 = vunpack.c.l.b16 %v3235
      %v3799 = vunpack.c.l.b16 %v3236
      %v3800 = vunpack.c.l.b16 %v3237
      %v3801 = vunpack.c.l.b16 %v3238
      %v3802 = vunpack.c.l.b16 %v3239
      %v3803 = vunpack.c.l.b16 %v3240
      %v3804 = vunpack.c.l.b16 %v3241
      %v3805 = vunpack.c.l.b16 %v3242
      %v3806 = vunpack.c.l.b16 %v3243
      %v3807 = vunpack.c.l.b16 %v3244
      %v3808 = vunpack.c.l.b16 %v3245
      %v3809 = vunpack.c.l.b16 %v3246
      %v3810 = vunpack.c.l.b16 %v3247
      %v3811 = vunpack.c.l.b16 %v3248
      %v3812 = vunpack.c.l.b16 %v3249
      %v3813 = vunpack.c.l.b16 %v3250
      %v3814 = vunpack.c.l.b16 %v3251
      %v3815 = vunpack.c.l.b16 %v3252
      %v3816 = vunpack.c.l.b16 %v3253
      %v3817 = vunpack.c.l.b16 %v3254
      %v3818 = vunpack.c.l.b16 %v3255
      %v3819 = vunpack.c.l.b16 %v3256
      %v3820 = vunpack.c.l.b16 %v3257
      %v3821 = vpack.c.b16 %v3774, %v3773
      %v3822 = vpack.c.b16 %v3776, %v3775
      %v3823 = vpack.c.b16 %v3778, %v3777
      %v3824 = vpack.c.b16 %v3780, %v3779
      %v3825 = vpack.c.b16 %v3782, %v3781
      %v3826 = vpack.c.b16 %v3784, %v3783
      %v3827 = vpack.c.b16 %v3786, %v3785
      %v3828 = vpack.c.b16 %v3788, %v3787
      %v3829 = vpack.c.b16 %v3790, %v3789
      %v3830 = vpack.c.b16 %v3792, %v3791
      %v3831 = vpack.c.b16 %v3794, %v3793
      %v3832 = vpack.c.b16 %v3796, %v3795
      %v3833 = vpack.c.b16 %v3798, %v3797
      %v3834 = vpack.c.b16 %v3800, %v3799
      %v3835 = vpack.c.b16 %v3802, %v3801
      %v3836 = vpack.c.b16 %v3804, %v3803
      %v3837 = vpack.c.b16 %v3806, %v3805
      %v3838 = vpack.c.b16 %v3808, %v3807
      %v3839 = vpack.c.b16 %v3810, %v3809
      %v3840 = vpack.c.b16 %v3812, %v3811
      %v3841 = vpack.c.b16 %v3814, %v3813
      %v3842 = vpack.c.b16 %v3816, %v3815
      %v3843 = vpack.c.b16 %v3818, %v3817
      %v3844 = vpack.c.b16 %v3820, %v3819
      %3869 = vmatprep.subr.bf16.mxu0 0
      %3870 = vmatpush1.bf16.msra.mxu0 %v3821
      %3871 = vmatprep.subr.bf16.mxu0 0
      %3872 = vmatpush1.bf16.msra.mxu0 %v3822
      %3873 = vmatprep.subr.bf16.mxu0 0
      %3874 = vmatpush1.bf16.msra.mxu0 %v3823
      %3875 = vmatprep.subr.bf16.mxu0 0
      %3876 = vmatpush1.bf16.msra.mxu0 %v3824
      %3877 = vmatprep.subr.bf16.mxu0 0
      %3878 = vmatpush1.bf16.msra.mxu0 %v3825
      %3879 = vmatprep.subr.bf16.mxu0 0
      %3880 = vmatpush1.bf16.msra.mxu0 %v3826
      %3881 = vmatprep.subr.bf16.mxu0 0
      %3882 = vmatpush1.bf16.msra.mxu0 %v3827
      %3883 = vmatprep.subr.bf16.mxu0 0
      %3884 = vmatpush1.bf16.msra.mxu0 %v3828
      %3885 = vmatprep.subr.bf16.mxu0 0
      %3886 = vmatpush1.bf16.msra.mxu0 %v3829
      %3887 = vmatprep.subr.bf16.mxu0 0
      %3888 = vmatpush1.bf16.msra.mxu0 %v3830
      %3889 = vmatprep.subr.bf16.mxu0 0
      %3890 = vmatpush1.bf16.msra.mxu0 %v3831
      %3891 = vmatprep.subr.bf16.mxu0 0
      %3892 = vmatpush1.bf16.msra.mxu0 %v3832
      %3893 = vmatprep.subr.bf16.mxu0 0
      %3894 = vmatpush1.bf16.msra.mxu0 %v3833
      %3895 = vmatprep.subr.bf16.mxu0 0
      %3896 = vmatpush1.bf16.msra.mxu0 %v3834
      %3897 = vmatprep.subr.bf16.mxu0 0
      %3898 = vmatpush1.bf16.msra.mxu0 %v3835
      %3899 = vmatprep.subr.bf16.mxu0 0
      %3900 = vmatpush1.bf16.msra.mxu0 %v3836
      %3901 = vmatprep.mubr.bf16.mxu0 %v3702
      %3902 = vmatmul.mubr.bf16.gmra.mrb[0].mxu0 %v3701
      %v3903 = vpop.f32.mrb[0].mxu0
      %v3904 = vadd.f32 %v3631, %v3903
      %v3905 = vpop.f32.mrb[0].mxu0
      %v3906 = vpop.f32.mrb[0].mxu0
      %v3907 = vadd.f32 %v3634, %v3906
      %v3908 = vpop.f32.mrb[0].mxu0
      %3909 = vmatprep.mubr.bf16.mxu0 %v3705
      %3910 = vmatmul.mubr.bf16.gmra.mrb[0].mxu0 %v3704
      %v3911 = vpop.f32.mrb[0].mxu0
      %v3912 = vadd.f32 %v3639, %v3911
      %v3913 = vpop.f32.mrb[0].mxu0
      %v3914 = vpop.f32.mrb[0].mxu0
      %v3915 = vadd.f32 %v3642, %v3914
      %v3916 = vpop.f32.mrb[0].mxu0
      %3917 = vmatprep.mubr.bf16.mxu0 %v3708
      %3918 = vmatmul.mubr.bf16.gmra.mrb[0].mxu0 %v3707
      %v3919 = vpop.f32.mrb[0].mxu0
      %v3920 = vadd.f32 %v3647, %v3919
      %v3921 = vpop.f32.mrb[0].mxu0
      %v3922 = vpop.f32.mrb[0].mxu0
      %v3923 = vadd.f32 %v3650, %v3922
      %v3924 = vpop.f32.mrb[0].mxu0
      %3925 = vmatprep.mubr.bf16.mxu0 %v3711
      %3926 = vmatmul.mubr.bf16.gmra.mrb[0].mxu0 %v3710
      %v3927 = vpop.f32.mrb[0].mxu0
      %v3928 = vadd.f32 %v3655, %v3927
      %v3929 = vpop.f32.mrb[0].mxu0
      %v3930 = vpop.f32.mrb[0].mxu0
      %v3931 = vadd.f32 %v3658, %v3930
      %v3932 = vpop.f32.mrb[0].mxu0
      %3933 = vdwg.mxu0
      %3934 = vmatprep.subr.bf16.mxu0 0
      %3935 = vmatpush1.bf16.msra.mxu0 %v3837
      %3936 = vmatprep.subr.bf16.mxu0 0
      %3937 = vmatpush1.bf16.msra.mxu0 %v3838
      %3938 = vmatprep.subr.bf16.mxu0 0
      %3939 = vmatpush1.bf16.msra.mxu0 %v3839
      %3940 = vmatprep.subr.bf16.mxu0 0
      %3941 = vmatpush1.bf16.msra.mxu0 %v3840
      %3942 = vmatprep.subr.bf16.mxu0 0
      %3943 = vmatpush1.bf16.msra.mxu0 %v3841
      %3944 = vmatprep.subr.bf16.mxu0 0
      %3945 = vmatpush1.bf16.msra.mxu0 %v3842
      %3946 = vmatprep.subr.bf16.mxu0 0
      %3947 = vmatpush1.bf16.msra.mxu0 %v3843
      %3948 = vmatprep.subr.bf16.mxu0 0
      %3949 = vmatpush1.bf16.msra.mxu0 %v3844
      %3950 = vmatprep.subr.bf16.mxu0 0
      %3951 = vmatpush1.bf16.msra.mxu0 0
      %3952 = vmatprep.subr.bf16.mxu0 0
      %3953 = vmatpush1.bf16.msra.mxu0 0
      %3954 = vmatprep.subr.bf16.mxu0 0
      %3955 = vmatpush1.bf16.msra.mxu0 0
      %3956 = vmatprep.subr.bf16.mxu0 0
      %3957 = vmatpush1.bf16.msra.mxu0 0
      %3958 = vmatprep.subr.bf16.mxu0 0
      %3959 = vmatpush1.bf16.msra.mxu0 0
      %3960 = vmatprep.subr.bf16.mxu0 0
      %3961 = vmatpush1.bf16.msra.mxu0 0
      %3962 = vmatprep.subr.bf16.mxu0 0
      %3963 = vmatpush1.bf16.msra.mxu0 0
      %3964 = vmatprep.subr.bf16.mxu0 0
      %3965 = vmatpush1.bf16.msra.mxu0 0
      %3966 = vmatprep.mubr.bf16.mxu0 0
      %3967 = vmatmul.mubr.bf16.gmra.mrb[0].mxu0 %v3703
      %v3968 = vpop.f32.mrb[0].mxu0
      %v3969 = vadd.f32 %v3904, %v3968
      %v3970 = vpop.f32.mrb[0].mxu0
      %v3971 = vpop.f32.mrb[0].mxu0
      %v3972 = vadd.f32 %v3907, %v3971
      %v3973 = vpop.f32.mrb[0].mxu0
      %3974 = vmatprep.mubr.bf16.mxu0 0
      %3975 = vmatmul.mubr.bf16.gmra.mrb[0].mxu0 %v3706
      %v3976 = vpop.f32.mrb[0].mxu0
      %v3977 = vadd.f32 %v3912, %v3976
      %v3978 = vpop.f32.mrb[0].mxu0
      %v3979 = vpop.f32.mrb[0].mxu0
      %v3980 = vadd.f32 %v3915, %v3979
      %v3981 = vpop.f32.mrb[0].mxu0
      %3982 = vmatprep.mubr.bf16.mxu0 0
      %3983 = vmatmul.mubr.bf16.gmra.mrb[0].mxu0 %v3709
      %v3984 = vpop.f32.mrb[0].mxu0
      %v3985 = vadd.f32 %v3920, %v3984
      %v3986 = vpop.f32.mrb[0].mxu0
      %v3987 = vpop.f32.mrb[0].mxu0
      %v3988 = vadd.f32 %v3923, %v3987
      %v3989 = vpop.f32.mrb[0].mxu0
      %3990 = vmatprep.mubr.bf16.mxu0 0
      %3991 = vmatmul.mubr.bf16.gmra.mrb[0].mxu0 %v3712
      %v3992 = vpop.f32.mrb[0].mxu0
      %v3993 = vadd.f32 %v3928, %v3992
      %v3994 = vpop.f32.mrb[0].mxu0
      %v3995 = vpop.f32.mrb[0].mxu0
      %v3996 = vadd.f32 %v3931, %v3995
      %v3997 = vpop.f32.mrb[0].mxu0
      %3998 = vdwg.mxu0
      %s3999 = scalar_lea.vmem [#allocation3], 120
      %v4000 = vld [vmem:[%s3999] sm:$0xff]
      %v4001 = vld [vmem:[%s3999 + $0x8] sm:$0xf]
      %v4002 = vld [vmem:[%s3999 + $0xc] sm:$0xff]
      %v4003 = vld [vmem:[%s3999 + $0x14] sm:$0xf]
      %v4004 = vld [vmem:[%s3999 + $0x18] sm:$0xff]
      %v4005 = vld [vmem:[%s3999 + $0x20] sm:$0xf]
      %v4006 = vld [vmem:[%s3999 + $0x24] sm:$0xff]
      %v4007 = vld [vmem:[%s3999 + $0x2c] sm:$0xf]
      %v4008 = vld [vmem:[%s3999 + $0x30] sm:$0xff]
      %v4009 = vld [vmem:[%s3999 + $0x38] sm:$0xf]
      %v4010 = vld [vmem:[%s3999 + $0x3c] sm:$0xff]
      %v4011 = vld [vmem:[%s3999 + $0x44] sm:$0xf]
      %v4012 = vld [vmem:[%s3999 + $0x48] sm:$0xff]
      %v4013 = vld [vmem:[%s3999 + $0x50] sm:$0xf]
      %v4014 = vld [vmem:[%s3999 + $0x54] sm:$0xff]
      %v4015 = vld [vmem:[%s3999 + $0x5c] sm:$0xf]
      %s4016 = scalar_lea.vmem %s3, 960
      %v4017 = vld [vmem:[%s4016] sm:$0xf]
      %v4018 = vld [vmem:[%s4016 + $0x4] sm:$0xf]
      %v4019 = vld [vmem:[%s4016 + $0x8] sm:$0xf]
      %v4020 = vld [vmem:[%s4016 + $0xc] sm:$0xf]
      %v4021 = vld [vmem:[%s4016 + $0x10] sm:$0xf]
      %v4022 = vld [vmem:[%s4016 + $0x14] sm:$0xf]
      %v4023 = vld [vmem:[%s4016 + $0x18] sm:$0xf]
      %v4024 = vld [vmem:[%s4016 + $0x1c] sm:$0xf]
      %v4025 = vld [vmem:[%s4016 + $0x20] sm:$0xf]
      %v4026 = vld [vmem:[%s4016 + $0x24] sm:$0xf]
      %v4027 = vld [vmem:[%s4016 + $0x28] sm:$0xf]
      %v4028 = vld [vmem:[%s4016 + $0x2c] sm:$0xf]
      %v4029 = vld [vmem:[%s4016 + $0x30] sm:$0xf]
      %v4030 = vld [vmem:[%s4016 + $0x34] sm:$0xf]
      %v4031 = vld [vmem:[%s4016 + $0x38] sm:$0xf]
      %v4032 = vld [vmem:[%s4016 + $0x3c] sm:$0xf]
      %v4033 = vld [vmem:[%s4016 + $0x40] sm:$0xf]
      %v4034 = vld [vmem:[%s4016 + $0x44] sm:$0xf]
      %v4035 = vld [vmem:[%s4016 + $0x48] sm:$0xf]
      %v4036 = vld [vmem:[%s4016 + $0x4c] sm:$0xf]
      %v4037 = vld [vmem:[%s4016 + $0x50] sm:$0xf]
      %v4038 = vld [vmem:[%s4016 + $0x54] sm:$0xf]
      %v4039 = vld [vmem:[%s4016 + $0x58] sm:$0xf]
      %v4040 = vld [vmem:[%s4016 + $0x5c] sm:$0xf]
      %v4041 = vld [vmem:[%s4016 + $0x60] sm:$0xf]
      %v4042 = vld [vmem:[%s4016 + $0x64] sm:$0xf]
      %v4043 = vld [vmem:[%s4016 + $0x68] sm:$0xf]
      %v4044 = vld [vmem:[%s4016 + $0x6c] sm:$0xf]
      %v4045 = vld [vmem:[%s4016 + $0x70] sm:$0xf]
      %v4046 = vld [vmem:[%s4016 + $0x74] sm:$0xf]
      %v4047 = vld [vmem:[%s4016 + $0x78] sm:$0xf]
      %v4048 = vld [vmem:[%s4016 + $0x7c] sm:$0xf]
      %v4049 = vld [vmem:[%s4016 + $0x80] sm:$0xf]
      %v4050 = vld [vmem:[%s4016 + $0x84] sm:$0xf]
      %v4051 = vld [vmem:[%s4016 + $0x88] sm:$0xf]
      %v4052 = vld [vmem:[%s4016 + $0x8c] sm:$0xf]
      %v4053 = vld [vmem:[%s4016 + $0x90] sm:$0xf]
      %v4054 = vld [vmem:[%s4016 + $0x94] sm:$0xf]
      %v4055 = vld [vmem:[%s4016 + $0x98] sm:$0xf]
      %v4056 = vld [vmem:[%s4016 + $0x9c] sm:$0xf]
      %v4057 = vld [vmem:[%s4016 + $0xa0] sm:$0xf]
      %v4058 = vld [vmem:[%s4016 + $0xa4] sm:$0xf]
      %v4059 = vld [vmem:[%s4016 + $0xa8] sm:$0xf]
      %v4060 = vld [vmem:[%s4016 + $0xac] sm:$0xf]
      %v4061 = vld [vmem:[%s4016 + $0xb0] sm:$0xf]
      %v4062 = vld [vmem:[%s4016 + $0xb4] sm:$0xf]
      %v4063 = vld [vmem:[%s4016 + $0xb8] sm:$0xf]
      %v4064 = vld [vmem:[%s4016 + $0xbc] sm:$0xf]
      %v4081 = vunpack.c.l.b16 %v4000
      %v4082 = vunpack.c.h.b16 %v4000
      %v4083 = vunpack.c.l.b16 %v4001
      %v4084 = vunpack.c.l.b16 %v4002
      %v4085 = vunpack.c.h.b16 %v4002
      %v4086 = vunpack.c.l.b16 %v4003
      %v4087 = vunpack.c.l.b16 %v4004
      %v4088 = vunpack.c.h.b16 %v4004
      %v4089 = vunpack.c.l.b16 %v4005
      %v4090 = vunpack.c.l.b16 %v4006
      %v4091 = vunpack.c.h.b16 %v4006
      %v4092 = vunpack.c.l.b16 %v4007
      %v4093 = vunpack.c.l.b16 %v4008
      %v4094 = vunpack.c.h.b16 %v4008
      %v4095 = vunpack.c.l.b16 %v4009
      %v4096 = vunpack.c.l.b16 %v4010
      %v4097 = vunpack.c.h.b16 %v4010
      %v4098 = vunpack.c.l.b16 %v4011
      %v4099 = vunpack.c.l.b16 %v4012
      %v4100 = vunpack.c.h.b16 %v4012
      %v4101 = vunpack.c.l.b16 %v4013
      %v4102 = vunpack.c.l.b16 %v4014
      %v4103 = vunpack.c.h.b16 %v4014
      %v4104 = vunpack.c.l.b16 %v4015
      %v4105 = vpack.c.b16 %v4084, %v4081
      %v4106 = vpack.c.b16 %v4085, %v4082
      %v4107 = vpack.c.b16 %v4086, %v4083
      %v4108 = vpack.c.b16 %v4090, %v4087
      %v4109 = vpack.c.b16 %v4091, %v4088
      %v4110 = vpack.c.b16 %v4092, %v4089
      %v4111 = vpack.c.b16 %v4096, %v4093
      %v4112 = vpack.c.b16 %v4097, %v4094
      %v4113 = vpack.c.b16 %v4098, %v4095
      %v4114 = vpack.c.b16 %v4102, %v4099
      %v4115 = vpack.c.b16 %v4103, %v4100
      %v4116 = vpack.c.b16 %v4104, %v4101
      %v4177 = vunpack.c.l.b16 %v4017
      %v4178 = vunpack.c.l.b16 %v4018
      %v4179 = vunpack.c.l.b16 %v4019
      %v4180 = vunpack.c.l.b16 %v4020
      %v4181 = vunpack.c.l.b16 %v4021
      %v4182 = vunpack.c.l.b16 %v4022
      %v4183 = vunpack.c.l.b16 %v4023
      %v4184 = vunpack.c.l.b16 %v4024
      %v4185 = vunpack.c.l.b16 %v4025
      %v4186 = vunpack.c.l.b16 %v4026
      %v4187 = vunpack.c.l.b16 %v4027
      %v4188 = vunpack.c.l.b16 %v4028
      %v4189 = vunpack.c.l.b16 %v4029
      %v4190 = vunpack.c.l.b16 %v4030
      %v4191 = vunpack.c.l.b16 %v4031
      %v4192 = vunpack.c.l.b16 %v4032
      %v4193 = vunpack.c.l.b16 %v4033
      %v4194 = vunpack.c.l.b16 %v4034
      %v4195 = vunpack.c.l.b16 %v4035
      %v4196 = vunpack.c.l.b16 %v4036
      %v4197 = vunpack.c.l.b16 %v4037
      %v4198 = vunpack.c.l.b16 %v4038
      %v4199 = vunpack.c.l.b16 %v4039
      %v4200 = vunpack.c.l.b16 %v4040
      %v4201 = vunpack.c.l.b16 %v4041
      %v4202 = vunpack.c.l.b16 %v4042
      %v4203 = vunpack.c.l.b16 %v4043
      %v4204 = vunpack.c.l.b16 %v4044
      %v4205 = vunpack.c.l.b16 %v4045
      %v4206 = vunpack.c.l.b16 %v4046
      %v4207 = vunpack.c.l.b16 %v4047
      %v4208 = vunpack.c.l.b16 %v4048
      %v4209 = vunpack.c.l.b16 %v4049
      %v4210 = vunpack.c.l.b16 %v4050
      %v4211 = vunpack.c.l.b16 %v4051
      %v4212 = vunpack.c.l.b16 %v4052
      %v4213 = vunpack.c.l.b16 %v4053
      %v4214 = vunpack.c.l.b16 %v4054
      %v4215 = vunpack.c.l.b16 %v4055
      %v4216 = vunpack.c.l.b16 %v4056
      %v4217 = vunpack.c.l.b16 %v4057
      %v4218 = vunpack.c.l.b16 %v4058
      %v4219 = vunpack.c.l.b16 %v4059
      %v4220 = vunpack.c.l.b16 %v4060
      %v4221 = vunpack.c.l.b16 %v4061
      %v4222 = vunpack.c.l.b16 %v4062
      %v4223 = vunpack.c.l.b16 %v4063
      %v4224 = vunpack.c.l.b16 %v4064
      %v4225 = vpack.c.b16 %v4178, %v4177
      %v4226 = vpack.c.b16 %v4180, %v4179
      %v4227 = vpack.c.b16 %v4182, %v4181
      %v4228 = vpack.c.b16 %v4184, %v4183
      %v4229 = vpack.c.b16 %v4186, %v4185
      %v4230 = vpack.c.b16 %v4188, %v4187
      %v4231 = vpack.c.b16 %v4190, %v4189
      %v4232 = vpack.c.b16 %v4192, %v4191
      %v4233 = vpack.c.b16 %v4194, %v4193
      %v4234 = vpack.c.b16 %v4196, %v4195
      %v4235 = vpack.c.b16 %v4198, %v4197
      %v4236 = vpack.c.b16 %v4200, %v4199
      %v4237 = vpack.c.b16 %v4202, %v4201
      %v4238 = vpack.c.b16 %v4204, %v4203
      %v4239 = vpack.c.b16 %v4206, %v4205
      %v4240 = vpack.c.b16 %v4208, %v4207
      %v4241 = vpack.c.b16 %v4210, %v4209
      %v4242 = vpack.c.b16 %v4212, %v4211
      %v4243 = vpack.c.b16 %v4214, %v4213
      %v4244 = vpack.c.b16 %v4216, %v4215
      %v4245 = vpack.c.b16 %v4218, %v4217
      %v4246 = vpack.c.b16 %v4220, %v4219
      %v4247 = vpack.c.b16 %v4222, %v4221
      %v4248 = vpack.c.b16 %v4224, %v4223
      %4273 = vmatprep.subr.bf16.mxu0 0
      %4274 = vmatpush1.bf16.msra.mxu0 %v4225
      %4275 = vmatprep.subr.bf16.mxu0 0
      %4276 = vmatpush1.bf16.msra.mxu0 %v4226
      %4277 = vmatprep.subr.bf16.mxu0 0
      %4278 = vmatpush1.bf16.msra.mxu0 %v4227
      %4279 = vmatprep.subr.bf16.mxu0 0
      %4280 = vmatpush1.bf16.msra.mxu0 %v4228
      %4281 = vmatprep.subr.bf16.mxu0 0
      %4282 = vmatpush1.bf16.msra.mxu0 %v4229
      %4283 = vmatprep.subr.bf16.mxu0 0
      %4284 = vmatpush1.bf16.msra.mxu0 %v4230
      %4285 = vmatprep.subr.bf16.mxu0 0
      %4286 = vmatpush1.bf16.msra.mxu0 %v4231
      %4287 = vmatprep.subr.bf16.mxu0 0
      %4288 = vmatpush1.bf16.msra.mxu0 %v4232
      %4289 = vmatprep.subr.bf16.mxu0 0
      %4290 = vmatpush1.bf16.msra.mxu0 %v4233
      %4291 = vmatprep.subr.bf16.mxu0 0
      %4292 = vmatpush1.bf16.msra.mxu0 %v4234
      %4293 = vmatprep.subr.bf16.mxu0 0
      %4294 = vmatpush1.bf16.msra.mxu0 %v4235
      %4295 = vmatprep.subr.bf16.mxu0 0
      %4296 = vmatpush1.bf16.msra.mxu0 %v4236
      %4297 = vmatprep.subr.bf16.mxu0 0
      %4298 = vmatpush1.bf16.msra.mxu0 %v4237
      %4299 = vmatprep.subr.bf16.mxu0 0
      %4300 = vmatpush1.bf16.msra.mxu0 %v4238
      %4301 = vmatprep.subr.bf16.mxu0 0
      %4302 = vmatpush1.bf16.msra.mxu0 %v4239
      %4303 = vmatprep.subr.bf16.mxu0 0
      %4304 = vmatpush1.bf16.msra.mxu0 %v4240
      %4305 = vmatprep.mubr.bf16.mxu0 %v4106
      %4306 = vmatmul.mubr.bf16.gmra.mrb[0].mxu0 %v4105
      %v4307 = vpop.f32.mrb[0].mxu0
      %v4308 = vadd.f32 0.0, %v4307
      %v4309 = vpop.f32.mrb[0].mxu0
      %v4310 = vpop.f32.mrb[0].mxu0
      %v4311 = vadd.f32 0.0, %v4310
      %v4312 = vpop.f32.mrb[0].mxu0
      %4313 = vmatprep.mubr.bf16.mxu0 %v4109
      %4314 = vmatmul.mubr.bf16.gmra.mrb[0].mxu0 %v4108
      %v4315 = vpop.f32.mrb[0].mxu0
      %v4316 = vadd.f32 0.0, %v4315
      %v4317 = vpop.f32.mrb[0].mxu0
      %v4318 = vpop.f32.mrb[0].mxu0
      %v4319 = vadd.f32 0.0, %v4318
      %v4320 = vpop.f32.mrb[0].mxu0
      %4321 = vmatprep.mubr.bf16.mxu0 %v4112
      %4322 = vmatmul.mubr.bf16.gmra.mrb[0].mxu0 %v4111
      %v4323 = vpop.f32.mrb[0].mxu0
      %v4324 = vadd.f32 0.0, %v4323
      %v4325 = vpop.f32.mrb[0].mxu0
      %v4326 = vpop.f32.mrb[0].mxu0
      %v4327 = vadd.f32 0.0, %v4326
      %v4328 = vpop.f32.mrb[0].mxu0
      %4329 = vmatprep.mubr.bf16.mxu0 %v4115
      %4330 = vmatmul.mubr.bf16.gmra.mrb[0].mxu0 %v4114
      %v4331 = vpop.f32.mrb[0].mxu0
      %v4332 = vadd.f32 0.0, %v4331
      %v4333 = vpop.f32.mrb[0].mxu0
      %v4334 = vpop.f32.mrb[0].mxu0
      %v4335 = vadd.f32 0.0, %v4334
      %v4336 = vpop.f32.mrb[0].mxu0
      %4337 = vdwg.mxu0
      %4338 = vmatprep.subr.bf16.mxu0 0
      %4339 = vmatpush1.bf16.msra.mxu0 %v4241
      %4340 = vmatprep.subr.bf16.mxu0 0
      %4341 = vmatpush1.bf16.msra.mxu0 %v4242
      %4342 = vmatprep.subr.bf16.mxu0 0
      %4343 = vmatpush1.bf16.msra.mxu0 %v4243
      %4344 = vmatprep.subr.bf16.mxu0 0
      %4345 = vmatpush1.bf16.msra.mxu0 %v4244
      %4346 = vmatprep.subr.bf16.mxu0 0
      %4347 = vmatpush1.bf16.msra.mxu0 %v4245
      %4348 = vmatprep.subr.bf16.mxu0 0
      %4349 = vmatpush1.bf16.msra.mxu0 %v4246
      %4350 = vmatprep.subr.bf16.mxu0 0
      %4351 = vmatpush1.bf16.msra.mxu0 %v4247
      %4352 = vmatprep.subr.bf16.mxu0 0
      %4353 = vmatpush1.bf16.msra.mxu0 %v4248
      %4354 = vmatprep.subr.bf16.mxu0 0
      %4355 = vmatpush1.bf16.msra.mxu0 0
      %4356 = vmatprep.subr.bf16.mxu0 0
      %4357 = vmatpush1.bf16.msra.mxu0 0
      %4358 = vmatprep.subr.bf16.mxu0 0
      %4359 = vmatpush1.bf16.msra.mxu0 0
      %4360 = vmatprep.subr.bf16.mxu0 0
      %4361 = vmatpush1.bf16.msra.mxu0 0
      %4362 = vmatprep.subr.bf16.mxu0 0
      %4363 = vmatpush1.bf16.msra.mxu0 0
      %4364 = vmatprep.subr.bf16.mxu0 0
      %4365 = vmatpush1.bf16.msra.mxu0 0
      %4366 = vmatprep.subr.bf16.mxu0 0
      %4367 = vmatpush1.bf16.msra.mxu0 0
      %4368 = vmatprep.subr.bf16.mxu0 0
      %4369 = vmatpush1.bf16.msra.mxu0 0
      %4370 = vmatprep.mubr.bf16.mxu0 0
      %4371 = vmatmul.mubr.bf16.gmra.mrb[0].mxu0 %v4107
      %v4372 = vpop.f32.mrb[0].mxu0
      %v4373 = vadd.f32 %v4308, %v4372
      %v4374 = vpop.f32.mrb[0].mxu0
      %v4375 = vpop.f32.mrb[0].mxu0
      %v4376 = vadd.f32 %v4311, %v4375
      %v4377 = vpop.f32.mrb[0].mxu0
      %4378 = vmatprep.mubr.bf16.mxu0 0
      %4379 = vmatmul.mubr.bf16.gmra.mrb[0].mxu0 %v4110
      %v4380 = vpop.f32.mrb[0].mxu0
      %v4381 = vadd.f32 %v4316, %v4380
      %v4382 = vpop.f32.mrb[0].mxu0
      %v4383 = vpop.f32.mrb[0].mxu0
      %v4384 = vadd.f32 %v4319, %v4383
      %v4385 = vpop.f32.mrb[0].mxu0
      %4386 = vmatprep.mubr.bf16.mxu0 0
      %4387 = vmatmul.mubr.bf16.gmra.mrb[0].mxu0 %v4113
      %v4388 = vpop.f32.mrb[0].mxu0
      %v4389 = vadd.f32 %v4324, %v4388
      %v4390 = vpop.f32.mrb[0].mxu0
      %v4391 = vpop.f32.mrb[0].mxu0
      %v4392 = vadd.f32 %v4327, %v4391
      %v4393 = vpop.f32.mrb[0].mxu0
      %4394 = vmatprep.mubr.bf16.mxu0 0
      %4395 = vmatmul.mubr.bf16.gmra.mrb[0].mxu0 %v4116
      %v4396 = vpop.f32.mrb[0].mxu0
      %v4397 = vadd.f32 %v4332, %v4396
      %v4398 = vpop.f32.mrb[0].mxu0
      %v4399 = vpop.f32.mrb[0].mxu0
      %v4400 = vadd.f32 %v4335, %v4399
      %v4401 = vpop.f32.mrb[0].mxu0
      %4402 = vdwg.mxu0
      %v4403 = vadd.f32 %v3969, %v4373
      %v4404 = vadd.f32 %v3972, %v4376
      %v4405 = vadd.f32 %v3977, %v4381
      %v4406 = vadd.f32 %v3980, %v4384
      %v4407 = vadd.f32 %v3985, %v4389
      %v4408 = vadd.f32 %v3988, %v4392
      %v4409 = vadd.f32 %v3993, %v4397
      %v4410 = vadd.f32 %v3996, %v4400
      %s4411 = scalar_lea.vmem %s4, 1
      %v4412 = vld [vmem:[%s4411] sm:$0x1]
      %v4414 = vlaneseq
      %v4415 = vshrl.u32 %v4414, 7
      %v4416 = vsub.s32 0, %v4415
      %v4417 = vrot.slane %v4412, %v4416
      %v4419 = vmul.f32 %v4403, %v4417
      %v4420 = vmul.f32 %v4404, %v4417
      %v4421 = vmul.f32 %v4405, %v4417
      %v4422 = vmul.f32 %v4406, %v4417
      %v4423 = vmul.f32 %v4407, %v4417
      %v4424 = vmul.f32 %v4408, %v4417
      %v4425 = vmul.f32 %v4409, %v4417
      %v4426 = vmul.f32 %v4410, %v4417
      %s4427 = scalar_lea.vmem %s5, 1
      %v4428 = vld [vmem:[%s4427] sm:$0x1]
      %v4430 = vlaneseq
      %v4431 = vshrl.u32 %v4430, 7
      %v4432 = vsub.s32 0, %v4431
      %v4433 = vrot.slane %v4428, %v4432
      %v4435 = vadd.f32 %v4419, %v4433
      %v4436 = vadd.f32 %v4420, %v4433
      %v4437 = vadd.f32 %v4421, %v4433
      %v4438 = vadd.f32 %v4422, %v4433
      %v4439 = vadd.f32 %v4423, %v4433
      %v4440 = vadd.f32 %v4424, %v4433
      %v4441 = vadd.f32 %v4425, %v4433
      %v4442 = vadd.f32 %v4426, %v4433
      %v4443 = vmax.f32 %v4435, 0.0
      %v4444 = vmax.f32 %v4436, 0.0
      %v4445 = vmax.f32 %v4437, 0.0
      %v4446 = vmax.f32 %v4438, 0.0
      %v4447 = vmax.f32 %v4439, 0.0
      %v4448 = vmax.f32 %v4440, 0.0
      %v4449 = vmax.f32 %v4441, 0.0
      %v4450 = vmax.f32 %v4442, 0.0
      %v4451 = vpack.c.bf16 %v4443, %v4443
      %v4452 = vpack.c.bf16 %v4444, %v4444
      %v4453 = vpack.c.bf16 %v4445, %v4445
      %v4454 = vpack.c.bf16 %v4446, %v4446
      %v4455 = vpack.c.bf16 %v4447, %v4447
      %v4456 = vpack.c.bf16 %v4448, %v4448
      %v4457 = vpack.c.bf16 %v4449, %v4449
      %v4458 = vpack.c.bf16 %v4450, %v4450
      %4459 = vst [vmem:[%s356 + $0x4] sm:$0xf] %v4451
      %4460 = vst [vmem:[%s356 + $0x10] sm:$0xf] %v4452
      %4461 = vst [vmem:[%s356 + $0x1c] sm:$0xf] %v4453
      %4462 = vst [vmem:[%s356 + $0x28] sm:$0xf] %v4454
      %4463 = vst [vmem:[%s356 + $0x34] sm:$0xf] %v4455
      %4464 = vst [vmem:[%s356 + $0x40] sm:$0xf] %v4456
      %4465 = vst [vmem:[%s356 + $0x4c] sm:$0xf] %v4457
      %4466 = vst [vmem:[%s356 + $0x58] sm:$0xf] %v4458
      %v4467 = vld [vmem:[#allocation2] sm:$0xe]
      %v4468 = vld [vmem:[#allocation2 + $0x4] sm:$0x3]
      %v4469 = vld [vmem:[#allocation2 + $0xc] sm:$0xe]
      %v4470 = vld [vmem:[#allocation2 + $0x10] sm:$0x3]
      %v4471 = vld [vmem:[#allocation2 + $0x18] sm:$0xe]
      %v4472 = vld [vmem:[#allocation2 + $0x1c] sm:$0x3]
      %v4473 = vld [vmem:[#allocation2 + $0x24] sm:$0xe]
      %v4474 = vld [vmem:[#allocation2 + $0x28] sm:$0x3]
      %v4475 = vld [vmem:[#allocation2 + $0x30] sm:$0xe]
      %v4476 = vld [vmem:[#allocation2 + $0x34] sm:$0x3]
      %v4477 = vld [vmem:[#allocation2 + $0x3c] sm:$0xe]
      %v4478 = vld [vmem:[#allocation2 + $0x40] sm:$0x3]
      %v4479 = vld [vmem:[#allocation2 + $0x48] sm:$0xe]
      %v4480 = vld [vmem:[#allocation2 + $0x4c] sm:$0x3]
      %v4481 = vld [vmem:[#allocation2 + $0x54] sm:$0xe]
      %v4482 = vld [vmem:[#allocation2 + $0x58] sm:$0x3]
      %v4483 = vld [vmem:[#allocation2 + $0x60] sm:$0xe]
      %v4484 = vld [vmem:[#allocation2 + $0x64] sm:$0x3]
      %v4485 = vld [vmem:[#allocation2 + $0x6c] sm:$0xe]
      %v4486 = vld [vmem:[#allocation2 + $0x70] sm:$0x3]
      %v4487 = vld [vmem:[#allocation2 + $0x78] sm:$0xe]
      %v4488 = vld [vmem:[#allocation2 + $0x7c] sm:$0x3]
      %v4489 = vld [vmem:[#allocation2 + $0x84] sm:$0xe]
      %v4490 = vld [vmem:[#allocation2 + $0x88] sm:$0x3]
      %v4491 = vld [vmem:[#allocation2 + $0x90] sm:$0xe]
      %v4492 = vld [vmem:[#allocation2 + $0x94] sm:$0x3]
      %v4493 = vld [vmem:[#allocation2 + $0x9c] sm:$0xe]
      %v4494 = vld [vmem:[#allocation2 + $0xa0] sm:$0x3]
      %v4495 = vld [vmem:[#allocation2 + $0xa8] sm:$0xe]
      %v4496 = vld [vmem:[#allocation2 + $0xac] sm:$0x3]
      %v4497 = vld [vmem:[#allocation2 + $0xb4] sm:$0xe]
      %v4498 = vld [vmem:[#allocation2 + $0xb8] sm:$0x3]
      %v4499 = vld [vmem:[#allocation2 + $0xc0] sm:$0xe]
      %v4500 = vld [vmem:[#allocation2 + $0xc4] sm:$0x3]
      %v4501 = vld [vmem:[#allocation2 + $0xcc] sm:$0xe]
      %v4502 = vld [vmem:[#allocation2 + $0xd0] sm:$0x3]
      %v4503 = vld [vmem:[#allocation2 + $0xd8] sm:$0xe]
      %v4504 = vld [vmem:[#allocation2 + $0xdc] sm:$0x3]
      %v4505 = vld [vmem:[#allocation2 + $0xe4] sm:$0xe]
      %v4506 = vld [vmem:[#allocation2 + $0xe8] sm:$0x3]
      %v4507 = vld [vmem:[#allocation2 + $0xf0] sm:$0xe]
      %v4508 = vld [vmem:[#allocation2 + $0xf4] sm:$0x3]
      %v4509 = vld [vmem:[#allocation2 + $0xfc] sm:$0xe]
      %v4510 = vld [vmem:[#allocation2 + $0x100] sm:$0x3]
      %v4511 = vld [vmem:[#allocation2 + $0x108] sm:$0xe]
      %v4512 = vld [vmem:[#allocation2 + $0x10c] sm:$0x3]
      %v4513 = vld [vmem:[#allocation2 + $0x114] sm:$0xe]
      %v4514 = vld [vmem:[#allocation2 + $0x118] sm:$0x3]
      %vm4515 = vsmask.f32 2304
      %vm4516 = vsmask.f32 6416
      %vm4517 = vmor %vm4515, %vm4516
      %v4519 = vshrl.u32 %v4467, 16
      %v4521 = vrot.slane %v4519, 5
      %v4522 = vshll.u32 %v4467, 16
      %v4524 = vrot.slane %v4522, 6
      %v4525 = vor.u32 %v4521, %v4524
      %v4526 = vrot.slane %v4525, 4
      %v4528 = vshrl.u32 %v4468, 16
      %v4530 = vrot.slane %v4528, 5
      %v4531 = vshll.u32 %v4468, 16
      %v4533 = vrot.slane %v4531, 6
      %v4534 = vor.u32 %v4530, %v4533
      %v4535 = vsel %vm4517, %v4526, %v4534
      %v4537 = vshrl.u32 %v4469, 16
      %v4539 = vrot.slane %v4537, 5
      %v4540 = vshll.u32 %v4469, 16
      %v4542 = vrot.slane %v4540, 6
      %v4543 = vor.u32 %v4539, %v4542
      %v4544 = vrot.slane %v4543, 4
      %v4546 = vshrl.u32 %v4470, 16
      %v4548 = vrot.slane %v4546, 5
      %v4549 = vshll.u32 %v4470, 16
      %v4551 = vrot.slane %v4549, 6
      %v4552 = vor.u32 %v4548, %v4551
      %v4553 = vsel %vm4517, %v4544, %v4552
      %v4555 = vshrl.u32 %v4471, 16
      %v4557 = vrot.slane %v4555, 5
      %v4558 = vshll.u32 %v4471, 16
      %v4560 = vrot.slane %v4558, 6
      %v4561 = vor.u32 %v4557, %v4560
      %v4562 = vrot.slane %v4561, 4
      %v4564 = vshrl.u32 %v4472, 16
      %v4566 = vrot.slane %v4564, 5
      %v4567 = vshll.u32 %v4472, 16
      %v4569 = vrot.slane %v4567, 6
      %v4570 = vor.u32 %v4566, %v4569
      %v4571 = vsel %vm4517, %v4562, %v4570
      %v4573 = vshrl.u32 %v4473, 16
      %v4575 = vrot.slane %v4573, 5
      %v4576 = vshll.u32 %v4473, 16
      %v4578 = vrot.slane %v4576, 6
      %v4579 = vor.u32 %v4575, %v4578
      %v4580 = vrot.slane %v4579, 4
      %v4582 = vshrl.u32 %v4474, 16
      %v4584 = vrot.slane %v4582, 5
      %v4585 = vshll.u32 %v4474, 16
      %v4587 = vrot.slane %v4585, 6
      %v4588 = vor.u32 %v4584, %v4587
      %v4589 = vsel %vm4517, %v4580, %v4588
      %v4591 = vshrl.u32 %v4475, 16
      %v4593 = vrot.slane %v4591, 5
      %v4594 = vshll.u32 %v4475, 16
      %v4596 = vrot.slane %v4594, 6
      %v4597 = vor.u32 %v4593, %v4596
      %v4598 = vrot.slane %v4597, 4
      %v4600 = vshrl.u32 %v4476, 16
      %v4602 = vrot.slane %v4600, 5
      %v4603 = vshll.u32 %v4476, 16
      %v4605 = vrot.slane %v4603, 6
      %v4606 = vor.u32 %v4602, %v4605
      %v4607 = vsel %vm4517, %v4598, %v4606
      %v4609 = vshrl.u32 %v4477, 16
      %v4611 = vrot.slane %v4609, 5
      %v4612 = vshll.u32 %v4477, 16
      %v4614 = vrot.slane %v4612, 6
      %v4615 = vor.u32 %v4611, %v4614
      %v4616 = vrot.slane %v4615, 4
      %v4618 = vshrl.u32 %v4478, 16
      %v4620 = vrot.slane %v4618, 5
      %v4621 = vshll.u32 %v4478, 16
      %v4623 = vrot.slane %v4621, 6
      %v4624 = vor.u32 %v4620, %v4623
      %v4625 = vsel %vm4517, %v4616, %v4624
      %v4627 = vshrl.u32 %v4479, 16
      %v4629 = vrot.slane %v4627, 5
      %v4630 = vshll.u32 %v4479, 16
      %v4632 = vrot.slane %v4630, 6
      %v4633 = vor.u32 %v4629, %v4632
      %v4634 = vrot.slane %v4633, 4
      %v4636 = vshrl.u32 %v4480, 16
      %v4638 = vrot.slane %v4636, 5
      %v4639 = vshll.u32 %v4480, 16
      %v4641 = vrot.slane %v4639, 6
      %v4642 = vor.u32 %v4638, %v4641
      %v4643 = vsel %vm4517, %v4634, %v4642
      %v4645 = vshrl.u32 %v4481, 16
      %v4647 = vrot.slane %v4645, 5
      %v4648 = vshll.u32 %v4481, 16
      %v4650 = vrot.slane %v4648, 6
      %v4651 = vor.u32 %v4647, %v4650
      %v4652 = vrot.slane %v4651, 4
      %v4654 = vshrl.u32 %v4482, 16
      %v4656 = vrot.slane %v4654, 5
      %v4657 = vshll.u32 %v4482, 16
      %v4659 = vrot.slane %v4657, 6
      %v4660 = vor.u32 %v4656, %v4659
      %v4661 = vsel %vm4517, %v4652, %v4660
      %v4663 = vshrl.u32 %v4483, 16
      %v4665 = vrot.slane %v4663, 5
      %v4666 = vshll.u32 %v4483, 16
      %v4668 = vrot.slane %v4666, 6
      %v4669 = vor.u32 %v4665, %v4668
      %v4670 = vrot.slane %v4669, 4
      %v4672 = vshrl.u32 %v4484, 16
      %v4674 = vrot.slane %v4672, 5
      %v4675 = vshll.u32 %v4484, 16
      %v4677 = vrot.slane %v4675, 6
      %v4678 = vor.u32 %v4674, %v4677
      %v4679 = vsel %vm4517, %v4670, %v4678
      %v4681 = vshrl.u32 %v4485, 16
      %v4683 = vrot.slane %v4681, 5
      %v4684 = vshll.u32 %v4485, 16
      %v4686 = vrot.slane %v4684, 6
      %v4687 = vor.u32 %v4683, %v4686
      %v4688 = vrot.slane %v4687, 4
      %v4690 = vshrl.u32 %v4486, 16
      %v4692 = vrot.slane %v4690, 5
      %v4693 = vshll.u32 %v4486, 16
      %v4695 = vrot.slane %v4693, 6
      %v4696 = vor.u32 %v4692, %v4695
      %v4697 = vsel %vm4517, %v4688, %v4696
      %v4699 = vshrl.u32 %v4487, 16
      %v4701 = vrot.slane %v4699, 5
      %v4702 = vshll.u32 %v4487, 16
      %v4704 = vrot.slane %v4702, 6
      %v4705 = vor.u32 %v4701, %v4704
      %v4706 = vrot.slane %v4705, 4
      %v4708 = vshrl.u32 %v4488, 16
      %v4710 = vrot.slane %v4708, 5
      %v4711 = vshll.u32 %v4488, 16
      %v4713 = vrot.slane %v4711, 6
      %v4714 = vor.u32 %v4710, %v4713
      %v4715 = vsel %vm4517, %v4706, %v4714
      %v4717 = vshrl.u32 %v4489, 16
      %v4719 = vrot.slane %v4717, 5
      %v4720 = vshll.u32 %v4489, 16
      %v4722 = vrot.slane %v4720, 6
      %v4723 = vor.u32 %v4719, %v4722
      %v4724 = vrot.slane %v4723, 4
      %v4726 = vshrl.u32 %v4490, 16
      %v4728 = vrot.slane %v4726, 5
      %v4729 = vshll.u32 %v4490, 16
      %v4731 = vrot.slane %v4729, 6
      %v4732 = vor.u32 %v4728, %v4731
      %v4733 = vsel %vm4517, %v4724, %v4732
      %v4735 = vshrl.u32 %v4491, 16
      %v4737 = vrot.slane %v4735, 5
      %v4738 = vshll.u32 %v4491, 16
      %v4740 = vrot.slane %v4738, 6
      %v4741 = vor.u32 %v4737, %v4740
      %v4742 = vrot.slane %v4741, 4
      %v4744 = vshrl.u32 %v4492, 16
      %v4746 = vrot.slane %v4744, 5
      %v4747 = vshll.u32 %v4492, 16
      %v4749 = vrot.slane %v4747, 6
      %v4750 = vor.u32 %v4746, %v4749
      %v4751 = vsel %vm4517, %v4742, %v4750
      %v4753 = vshrl.u32 %v4493, 16
      %v4755 = vrot.slane %v4753, 5
      %v4756 = vshll.u32 %v4493, 16
      %v4758 = vrot.slane %v4756, 6
      %v4759 = vor.u32 %v4755, %v4758
      %v4760 = vrot.slane %v4759, 4
      %v4762 = vshrl.u32 %v4494, 16
      %v4764 = vrot.slane %v4762, 5
      %v4765 = vshll.u32 %v4494, 16
      %v4767 = vrot.slane %v4765, 6
      %v4768 = vor.u32 %v4764, %v4767
      %v4769 = vsel %vm4517, %v4760, %v4768
      %v4771 = vshrl.u32 %v4495, 16
      %v4773 = vrot.slane %v4771, 5
      %v4774 = vshll.u32 %v4495, 16
      %v4776 = vrot.slane %v4774, 6
      %v4777 = vor.u32 %v4773, %v4776
      %v4778 = vrot.slane %v4777, 4
      %v4780 = vshrl.u32 %v4496, 16
      %v4782 = vrot.slane %v4780, 5
      %v4783 = vshll.u32 %v4496, 16
      %v4785 = vrot.slane %v4783, 6
      %v4786 = vor.u32 %v4782, %v4785
      %v4787 = vsel %vm4517, %v4778, %v4786
      %v4789 = vshrl.u32 %v4497, 16
      %v4791 = vrot.slane %v4789, 5
      %v4792 = vshll.u32 %v4497, 16
      %v4794 = vrot.slane %v4792, 6
      %v4795 = vor.u32 %v4791, %v4794
      %v4796 = vrot.slane %v4795, 4
      %v4798 = vshrl.u32 %v4498, 16
      %v4800 = vrot.slane %v4798, 5
      %v4801 = vshll.u32 %v4498, 16
      %v4803 = vrot.slane %v4801, 6
      %v4804 = vor.u32 %v4800, %v4803
      %v4805 = vsel %vm4517, %v4796, %v4804
      %v4807 = vshrl.u32 %v4499, 16
      %v4809 = vrot.slane %v4807, 5
      %v4810 = vshll.u32 %v4499, 16
      %v4812 = vrot.slane %v4810, 6
      %v4813 = vor.u32 %v4809, %v4812
      %v4814 = vrot.slane %v4813, 4
      %v4816 = vshrl.u32 %v4500, 16
      %v4818 = vrot.slane %v4816, 5
      %v4819 = vshll.u32 %v4500, 16
      %v4821 = vrot.slane %v4819, 6
      %v4822 = vor.u32 %v4818, %v4821
      %v4823 = vsel %vm4517, %v4814, %v4822
      %v4825 = vshrl.u32 %v4501, 16
      %v4827 = vrot.slane %v4825, 5
      %v4828 = vshll.u32 %v4501, 16
      %v4830 = vrot.slane %v4828, 6
      %v4831 = vor.u32 %v4827, %v4830
      %v4832 = vrot.slane %v4831, 4
      %v4834 = vshrl.u32 %v4502, 16
      %v4836 = vrot.slane %v4834, 5
      %v4837 = vshll.u32 %v4502, 16
      %v4839 = vrot.slane %v4837, 6
      %v4840 = vor.u32 %v4836, %v4839
      %v4841 = vsel %vm4517, %v4832, %v4840
      %v4843 = vshrl.u32 %v4503, 16
      %v4845 = vrot.slane %v4843, 5
      %v4846 = vshll.u32 %v4503, 16
      %v4848 = vrot.slane %v4846, 6
      %v4849 = vor.u32 %v4845, %v4848
      %v4850 = vrot.slane %v4849, 4
      %v4852 = vshrl.u32 %v4504, 16
      %v4854 = vrot.slane %v4852, 5
      %v4855 = vshll.u32 %v4504, 16
      %v4857 = vrot.slane %v4855, 6
      %v4858 = vor.u32 %v4854, %v4857
      %v4859 = vsel %vm4517, %v4850, %v4858
      %v4861 = vshrl.u32 %v4505, 16
      %v4863 = vrot.slane %v4861, 5
      %v4864 = vshll.u32 %v4505, 16
      %v4866 = vrot.slane %v4864, 6
      %v4867 = vor.u32 %v4863, %v4866
      %v4868 = vrot.slane %v4867, 4
      %v4870 = vshrl.u32 %v4506, 16
      %v4872 = vrot.slane %v4870, 5
      %v4873 = vshll.u32 %v4506, 16
      %v4875 = vrot.slane %v4873, 6
      %v4876 = vor.u32 %v4872, %v4875
      %v4877 = vsel %vm4517, %v4868, %v4876
      %v4879 = vshrl.u32 %v4507, 16
      %v4881 = vrot.slane %v4879, 5
      %v4882 = vshll.u32 %v4507, 16
      %v4884 = vrot.slane %v4882, 6
      %v4885 = vor.u32 %v4881, %v4884
      %v4886 = vrot.slane %v4885, 4
      %v4888 = vshrl.u32 %v4508, 16
      %v4890 = vrot.slane %v4888, 5
      %v4891 = vshll.u32 %v4508, 16
      %v4893 = vrot.slane %v4891, 6
      %v4894 = vor.u32 %v4890, %v4893
      %v4895 = vsel %vm4517, %v4886, %v4894
      %v4897 = vshrl.u32 %v4509, 16
      %v4899 = vrot.slane %v4897, 5
      %v4900 = vshll.u32 %v4509, 16
      %v4902 = vrot.slane %v4900, 6
      %v4903 = vor.u32 %v4899, %v4902
      %v4904 = vrot.slane %v4903, 4
      %v4906 = vshrl.u32 %v4510, 16
      %v4908 = vrot.slane %v4906, 5
      %v4909 = vshll.u32 %v4510, 16
      %v4911 = vrot.slane %v4909, 6
      %v4912 = vor.u32 %v4908, %v4911
      %v4913 = vsel %vm4517, %v4904, %v4912
      %v4915 = vshrl.u32 %v4511, 16
      %v4917 = vrot.slane %v4915, 5
      %v4918 = vshll.u32 %v4511, 16
      %v4920 = vrot.slane %v4918, 6
      %v4921 = vor.u32 %v4917, %v4920
      %v4922 = vrot.slane %v4921, 4
      %v4924 = vshrl.u32 %v4512, 16
      %v4926 = vrot.slane %v4924, 5
      %v4927 = vshll.u32 %v4512, 16
      %v4929 = vrot.slane %v4927, 6
      %v4930 = vor.u32 %v4926, %v4929
      %v4931 = vsel %vm4517, %v4922, %v4930
      %v4933 = vshrl.u32 %v4513, 16
      %v4935 = vrot.slane %v4933, 5
      %v4936 = vshll.u32 %v4513, 16
      %v4938 = vrot.slane %v4936, 6
      %v4939 = vor.u32 %v4935, %v4938
      %v4940 = vrot.slane %v4939, 4
      %v4942 = vshrl.u32 %v4514, 16
      %v4944 = vrot.slane %v4942, 5
      %v4945 = vshll.u32 %v4514, 16
      %v4947 = vrot.slane %v4945, 6
      %v4948 = vor.u32 %v4944, %v4947
      %v4949 = vsel %vm4517, %v4940, %v4948
      %4974 = vst [vmem:[#allocation3] sm:$0xf] %v4535
      %4975 = vst [vmem:[#allocation3 + $0xc] sm:$0xf] %v4553
      %4976 = vst [vmem:[#allocation3 + $0x18] sm:$0xf] %v4571
      %4977 = vst [vmem:[#allocation3 + $0x24] sm:$0xf] %v4589
      %4978 = vst [vmem:[#allocation3 + $0x30] sm:$0xf] %v4607
      %4979 = vst [vmem:[#allocation3 + $0x3c] sm:$0xf] %v4625
      %4980 = vst [vmem:[#allocation3 + $0x48] sm:$0xf] %v4643
      %4981 = vst [vmem:[#allocation3 + $0x54] sm:$0xf] %v4661
      %4982 = vst [vmem:[#allocation3 + $0x60] sm:$0xf] %v4679
      %4983 = vst [vmem:[#allocation3 + $0x6c] sm:$0xf] %v4697
      %4984 = vst [vmem:[#allocation3 + $0x78] sm:$0xf] %v4715
      %4985 = vst [vmem:[#allocation3 + $0x84] sm:$0xf] %v4733
      %4986 = vst [vmem:[#allocation3 + $0x90] sm:$0xf] %v4751
      %4987 = vst [vmem:[#allocation3 + $0x9c] sm:$0xf] %v4769
      %4988 = vst [vmem:[#allocation3 + $0xa8] sm:$0xf] %v4787
      %4989 = vst [vmem:[#allocation3 + $0xb4] sm:$0xf] %v4805
      %4990 = vst [vmem:[#allocation3 + $0xc0] sm:$0xf] %v4823
      %4991 = vst [vmem:[#allocation3 + $0xcc] sm:$0xf] %v4841
      %4992 = vst [vmem:[#allocation3 + $0xd8] sm:$0xf] %v4859
      %4993 = vst [vmem:[#allocation3 + $0xe4] sm:$0xf] %v4877
      %4994 = vst [vmem:[#allocation3 + $0xf0] sm:$0xf] %v4895
      %4995 = vst [vmem:[#allocation3 + $0xfc] sm:$0xf] %v4913
      %4996 = vst [vmem:[#allocation3 + $0x108] sm:$0xf] %v4931
      %4997 = vst [vmem:[#allocation3 + $0x114] sm:$0xf] %v4949
      %v4998 = vld [vmem:[#allocation2 + $0x4] sm:$0xf]
      %v4999 = vld [vmem:[#allocation2 + $0x10] sm:$0xf]
      %v5000 = vld [vmem:[#allocation2 + $0x1c] sm:$0xf]
      %v5001 = vld [vmem:[#allocation2 + $0x28] sm:$0xf]
      %v5002 = vld [vmem:[#allocation2 + $0x34] sm:$0xf]
      %v5003 = vld [vmem:[#allocation2 + $0x40] sm:$0xf]
      %v5004 = vld [vmem:[#allocation2 + $0x4c] sm:$0xf]
      %v5005 = vld [vmem:[#allocation2 + $0x58] sm:$0xf]
      %v5006 = vld [vmem:[#allocation2 + $0x64] sm:$0xf]
      %v5007 = vld [vmem:[#allocation2 + $0x70] sm:$0xf]
      %v5008 = vld [vmem:[#allocation2 + $0x7c] sm:$0xf]
      %v5009 = vld [vmem:[#allocation2 + $0x88] sm:$0xf]
      %v5010 = vld [vmem:[#allocation2 + $0x94] sm:$0xf]
      %v5011 = vld [vmem:[#allocation2 + $0xa0] sm:$0xf]
      %v5012 = vld [vmem:[#allocation2 + $0xac] sm:$0xf]
      %v5013 = vld [vmem:[#allocation2 + $0xb8] sm:$0xf]
      %v5014 = vld [vmem:[#allocation2 + $0xc4] sm:$0xf]
      %v5015 = vld [vmem:[#allocation2 + $0xd0] sm:$0xf]
      %v5016 = vld [vmem:[#allocation2 + $0xdc] sm:$0xf]
      %v5017 = vld [vmem:[#allocation2 + $0xe8] sm:$0xf]
      %v5018 = vld [vmem:[#allocation2 + $0xf4] sm:$0xf]
      %v5019 = vld [vmem:[#allocation2 + $0x100] sm:$0xf]
      %v5020 = vld [vmem:[#allocation2 + $0x10c] sm:$0xf]
      %v5021 = vld [vmem:[#allocation2 + $0x118] sm:$0xf]
      %5022 = vst [vmem:[#allocation3 + $0x4] sm:$0xf] %v4998
      %5023 = vst [vmem:[#allocation3 + $0x10] sm:$0xf] %v4999
      %5024 = vst [vmem:[#allocation3 + $0x1c] sm:$0xf] %v5000
      %5025 = vst [vmem:[#allocation3 + $0x28] sm:$0xf] %v5001
      %5026 = vst [vmem:[#allocation3 + $0x34] sm:$0xf] %v5002
      %5027 = vst [vmem:[#allocation3 + $0x40] sm:$0xf] %v5003
      %5028 = vst [vmem:[#allocation3 + $0x4c] sm:$0xf] %v5004
      %5029 = vst [vmem:[#allocation3 + $0x58] sm:$0xf] %v5005
      %5030 = vst [vmem:[#allocation3 + $0x64] sm:$0xf] %v5006
      %5031 = vst [vmem:[#allocation3 + $0x70] sm:$0xf] %v5007
      %5032 = vst [vmem:[#allocation3 + $0x7c] sm:$0xf] %v5008
      %5033 = vst [vmem:[#allocation3 + $0x88] sm:$0xf] %v5009
      %5034 = vst [vmem:[#allocation3 + $0x94] sm:$0xf] %v5010
      %5035 = vst [vmem:[#allocation3 + $0xa0] sm:$0xf] %v5011
      %5036 = vst [vmem:[#allocation3 + $0xac] sm:$0xf] %v5012
      %5037 = vst [vmem:[#allocation3 + $0xb8] sm:$0xf] %v5013
      %5038 = vst [vmem:[#allocation3 + $0xc4] sm:$0xf] %v5014
      %5039 = vst [vmem:[#allocation3 + $0xd0] sm:$0xf] %v5015
      %5040 = vst [vmem:[#allocation3 + $0xdc] sm:$0xf] %v5016
      %5041 = vst [vmem:[#allocation3 + $0xe8] sm:$0xf] %v5017
      %5042 = vst [vmem:[#allocation3 + $0xf4] sm:$0xf] %v5018
      %5043 = vst [vmem:[#allocation3 + $0x100] sm:$0xf] %v5019
      %5044 = vst [vmem:[#allocation3 + $0x10c] sm:$0xf] %v5020
      %5045 = vst [vmem:[#allocation3 + $0x118] sm:$0xf] %v5021
      %v5046 = vld [vmem:[#allocation2 + $0x4] sm:$0xc]
      %v5047 = vld [vmem:[#allocation2 + $0x8] sm:$0x7]
      %v5048 = vld [vmem:[#allocation2 + $0x10] sm:$0xc]
      %v5049 = vld [vmem:[#allocation2 + $0x14] sm:$0x7]
      %v5050 = vld [vmem:[#allocation2 + $0x1c] sm:$0xc]
      %v5051 = vld [vmem:[#allocation2 + $0x20] sm:$0x7]
      %v5052 = vld [vmem:[#allocation2 + $0x28] sm:$0xc]
      %v5053 = vld [vmem:[#allocation2 + $0x2c] sm:$0x7]
      %v5054 = vld [vmem:[#allocation2 + $0x34] sm:$0xc]
      %v5055 = vld [vmem:[#allocation2 + $0x38] sm:$0x7]
      %v5056 = vld [vmem:[#allocation2 + $0x40] sm:$0xc]
      %v5057 = vld [vmem:[#allocation2 + $0x44] sm:$0x7]
      %v5058 = vld [vmem:[#allocation2 + $0x4c] sm:$0xc]
      %v5059 = vld [vmem:[#allocation2 + $0x50] sm:$0x7]
      %v5060 = vld [vmem:[#allocation2 + $0x58] sm:$0xc]
      %v5061 = vld [vmem:[#allocation2 + $0x5c] sm:$0x7]
      %v5062 = vld [vmem:[#allocation2 + $0x64] sm:$0xc]
      %v5063 = vld [vmem:[#allocation2 + $0x68] sm:$0x7]
      %v5064 = vld [vmem:[#allocation2 + $0x70] sm:$0xc]
      %v5065 = vld [vmem:[#allocation2 + $0x74] sm:$0x7]
      %v5066 = vld [vmem:[#allocation2 + $0x7c] sm:$0xc]
      %v5067 = vld [vmem:[#allocation2 + $0x80] sm:$0x7]
      %v5068 = vld [vmem:[#allocation2 + $0x88] sm:$0xc]
      %v5069 = vld [vmem:[#allocation2 + $0x8c] sm:$0x7]
      %v5070 = vld [vmem:[#allocation2 + $0x94] sm:$0xc]
      %v5071 = vld [vmem:[#allocation2 + $0x98] sm:$0x7]
      %v5072 = vld [vmem:[#allocation2 + $0xa0] sm:$0xc]
      %v5073 = vld [vmem:[#allocation2 + $0xa4] sm:$0x7]
      %v5074 = vld [vmem:[#allocation2 + $0xac] sm:$0xc]
      %v5075 = vld [vmem:[#allocation2 + $0xb0] sm:$0x7]
      %v5076 = vld [vmem:[#allocation2 + $0xb8] sm:$0xc]
      %v5077 = vld [vmem:[#allocation2 + $0xbc] sm:$0x7]
      %v5078 = vld [vmem:[#allocation2 + $0xc4] sm:$0xc]
      %v5079 = vld [vmem:[#allocation2 + $0xc8] sm:$0x7]
      %v5080 = vld [vmem:[#allocation2 + $0xd0] sm:$0xc]
      %v5081 = vld [vmem:[#allocation2 + $0xd4] sm:$0x7]
      %v5082 = vld [vmem:[#allocation2 + $0xdc] sm:$0xc]
      %v5083 = vld [vmem:[#allocation2 + $0xe0] sm:$0x7]
      %v5084 = vld [vmem:[#allocation2 + $0xe8] sm:$0xc]
      %v5085 = vld [vmem:[#allocation2 + $0xec] sm:$0x7]
      %v5086 = vld [vmem:[#allocation2 + $0xf4] sm:$0xc]
      %v5087 = vld [vmem:[#allocation2 + $0xf8] sm:$0x7]
      %v5088 = vld [vmem:[#allocation2 + $0x100] sm:$0xc]
      %v5089 = vld [vmem:[#allocation2 + $0x104] sm:$0x7]
      %v5090 = vld [vmem:[#allocation2 + $0x10c] sm:$0xc]
      %v5091 = vld [vmem:[#allocation2 + $0x110] sm:$0x7]
      %v5092 = vld [vmem:[#allocation2 + $0x118] sm:$0xc]
      %v5093 = vld [vmem:[#allocation2 + $0x11c] sm:$0x7]
      %vm5094 = vsmask.f32 1280
      %vm5095 = vsmask.f32 5392
      %vm5096 = vmor %vm5094, %vm5095
      %v5098 = vshrl.u32 %v5046, 16
      %v5100 = vrot.slane %v5098, 6
      %v5101 = vshll.u32 %v5046, 16
      %v5103 = vrot.slane %v5101, 7
      %v5104 = vor.u32 %v5100, %v5103
      %v5105 = vrot.slane %v5104, 4
      %v5107 = vshrl.u32 %v5047, 16
      %v5109 = vrot.slane %v5107, 6
      %v5110 = vshll.u32 %v5047, 16
      %v5112 = vrot.slane %v5110, 7
      %v5113 = vor.u32 %v5109, %v5112
      %v5114 = vsel %vm5096, %v5105, %v5113
      %v5116 = vshrl.u32 %v5048, 16
      %v5118 = vrot.slane %v5116, 6
      %v5119 = vshll.u32 %v5048, 16
      %v5121 = vrot.slane %v5119, 7
      %v5122 = vor.u32 %v5118, %v5121
      %v5123 = vrot.slane %v5122, 4
      %v5125 = vshrl.u32 %v5049, 16
      %v5127 = vrot.slane %v5125, 6
      %v5128 = vshll.u32 %v5049, 16
      %v5130 = vrot.slane %v5128, 7
      %v5131 = vor.u32 %v5127, %v5130
      %v5132 = vsel %vm5096, %v5123, %v5131
      %v5134 = vshrl.u32 %v5050, 16
      %v5136 = vrot.slane %v5134, 6
      %v5137 = vshll.u32 %v5050, 16
      %v5139 = vrot.slane %v5137, 7
      %v5140 = vor.u32 %v5136, %v5139
      %v5141 = vrot.slane %v5140, 4
      %v5143 = vshrl.u32 %v5051, 16
      %v5145 = vrot.slane %v5143, 6
      %v5146 = vshll.u32 %v5051, 16
      %v5148 = vrot.slane %v5146, 7
      %v5149 = vor.u32 %v5145, %v5148
      %v5150 = vsel %vm5096, %v5141, %v5149
      %v5152 = vshrl.u32 %v5052, 16
      %v5154 = vrot.slane %v5152, 6
      %v5155 = vshll.u32 %v5052, 16
      %v5157 = vrot.slane %v5155, 7
      %v5158 = vor.u32 %v5154, %v5157
      %v5159 = vrot.slane %v5158, 4
      %v5161 = vshrl.u32 %v5053, 16
      %v5163 = vrot.slane %v5161, 6
      %v5164 = vshll.u32 %v5053, 16
      %v5166 = vrot.slane %v5164, 7
      %v5167 = vor.u32 %v5163, %v5166
      %v5168 = vsel %vm5096, %v5159, %v5167
      %v5170 = vshrl.u32 %v5054, 16
      %v5172 = vrot.slane %v5170, 6
      %v5173 = vshll.u32 %v5054, 16
      %v5175 = vrot.slane %v5173, 7
      %v5176 = vor.u32 %v5172, %v5175
      %v5177 = vrot.slane %v5176, 4
      %v5179 = vshrl.u32 %v5055, 16
      %v5181 = vrot.slane %v5179, 6
      %v5182 = vshll.u32 %v5055, 16
      %v5184 = vrot.slane %v5182, 7
      %v5185 = vor.u32 %v5181, %v5184
      %v5186 = vsel %vm5096, %v5177, %v5185
      %v5188 = vshrl.u32 %v5056, 16
      %v5190 = vrot.slane %v5188, 6
      %v5191 = vshll.u32 %v5056, 16
      %v5193 = vrot.slane %v5191, 7
      %v5194 = vor.u32 %v5190, %v5193
      %v5195 = vrot.slane %v5194, 4
      %v5197 = vshrl.u32 %v5057, 16
      %v5199 = vrot.slane %v5197, 6
      %v5200 = vshll.u32 %v5057, 16
      %v5202 = vrot.slane %v5200, 7
      %v5203 = vor.u32 %v5199, %v5202
      %v5204 = vsel %vm5096, %v5195, %v5203
      %v5206 = vshrl.u32 %v5058, 16
      %v5208 = vrot.slane %v5206, 6
      %v5209 = vshll.u32 %v5058, 16
      %v5211 = vrot.slane %v5209, 7
      %v5212 = vor.u32 %v5208, %v5211
      %v5213 = vrot.slane %v5212, 4
      %v5215 = vshrl.u32 %v5059, 16
      %v5217 = vrot.slane %v5215, 6
      %v5218 = vshll.u32 %v5059, 16
      %v5220 = vrot.slane %v5218, 7
      %v5221 = vor.u32 %v5217, %v5220
      %v5222 = vsel %vm5096, %v5213, %v5221
      %v5224 = vshrl.u32 %v5060, 16
      %v5226 = vrot.slane %v5224, 6
      %v5227 = vshll.u32 %v5060, 16
      %v5229 = vrot.slane %v5227, 7
      %v5230 = vor.u32 %v5226, %v5229
      %v5231 = vrot.slane %v5230, 4
      %v5233 = vshrl.u32 %v5061, 16
      %v5235 = vrot.slane %v5233, 6
      %v5236 = vshll.u32 %v5061, 16
      %v5238 = vrot.slane %v5236, 7
      %v5239 = vor.u32 %v5235, %v5238
      %v5240 = vsel %vm5096, %v5231, %v5239
      %v5242 = vshrl.u32 %v5062, 16
      %v5244 = vrot.slane %v5242, 6
      %v5245 = vshll.u32 %v5062, 16
      %v5247 = vrot.slane %v5245, 7
      %v5248 = vor.u32 %v5244, %v5247
      %v5249 = vrot.slane %v5248, 4
      %v5251 = vshrl.u32 %v5063, 16
      %v5253 = vrot.slane %v5251, 6
      %v5254 = vshll.u32 %v5063, 16
      %v5256 = vrot.slane %v5254, 7
      %v5257 = vor.u32 %v5253, %v5256
      %v5258 = vsel %vm5096, %v5249, %v5257
      %v5260 = vshrl.u32 %v5064, 16
      %v5262 = vrot.slane %v5260, 6
      %v5263 = vshll.u32 %v5064, 16
      %v5265 = vrot.slane %v5263, 7
      %v5266 = vor.u32 %v5262, %v5265
      %v5267 = vrot.slane %v5266, 4
      %v5269 = vshrl.u32 %v5065, 16
      %v5271 = vrot.slane %v5269, 6
      %v5272 = vshll.u32 %v5065, 16
      %v5274 = vrot.slane %v5272, 7
      %v5275 = vor.u32 %v5271, %v5274
      %v5276 = vsel %vm5096, %v5267, %v5275
      %v5278 = vshrl.u32 %v5066, 16
      %v5280 = vrot.slane %v5278, 6
      %v5281 = vshll.u32 %v5066, 16
      %v5283 = vrot.slane %v5281, 7
      %v5284 = vor.u32 %v5280, %v5283
      %v5285 = vrot.slane %v5284, 4
      %v5287 = vshrl.u32 %v5067, 16
      %v5289 = vrot.slane %v5287, 6
      %v5290 = vshll.u32 %v5067, 16
      %v5292 = vrot.slane %v5290, 7
      %v5293 = vor.u32 %v5289, %v5292
      %v5294 = vsel %vm5096, %v5285, %v5293
      %v5296 = vshrl.u32 %v5068, 16
      %v5298 = vrot.slane %v5296, 6
      %v5299 = vshll.u32 %v5068, 16
      %v5301 = vrot.slane %v5299, 7
      %v5302 = vor.u32 %v5298, %v5301
      %v5303 = vrot.slane %v5302, 4
      %v5305 = vshrl.u32 %v5069, 16
      %v5307 = vrot.slane %v5305, 6
      %v5308 = vshll.u32 %v5069, 16
      %v5310 = vrot.slane %v5308, 7
      %v5311 = vor.u32 %v5307, %v5310
      %v5312 = vsel %vm5096, %v5303, %v5311
      %v5314 = vshrl.u32 %v5070, 16
      %v5316 = vrot.slane %v5314, 6
      %v5317 = vshll.u32 %v5070, 16
      %v5319 = vrot.slane %v5317, 7
      %v5320 = vor.u32 %v5316, %v5319
      %v5321 = vrot.slane %v5320, 4
      %v5323 = vshrl.u32 %v5071, 16
      %v5325 = vrot.slane %v5323, 6
      %v5326 = vshll.u32 %v5071, 16
      %v5328 = vrot.slane %v5326, 7
      %v5329 = vor.u32 %v5325, %v5328
      %v5330 = vsel %vm5096, %v5321, %v5329
      %v5332 = vshrl.u32 %v5072, 16
      %v5334 = vrot.slane %v5332, 6
      %v5335 = vshll.u32 %v5072, 16
      %v5337 = vrot.slane %v5335, 7
      %v5338 = vor.u32 %v5334, %v5337
      %v5339 = vrot.slane %v5338, 4
      %v5341 = vshrl.u32 %v5073, 16
      %v5343 = vrot.slane %v5341, 6
      %v5344 = vshll.u32 %v5073, 16
      %v5346 = vrot.slane %v5344, 7
      %v5347 = vor.u32 %v5343, %v5346
      %v5348 = vsel %vm5096, %v5339, %v5347
      %v5350 = vshrl.u32 %v5074, 16
      %v5352 = vrot.slane %v5350, 6
      %v5353 = vshll.u32 %v5074, 16
      %v5355 = vrot.slane %v5353, 7
      %v5356 = vor.u32 %v5352, %v5355
      %v5357 = vrot.slane %v5356, 4
      %v5359 = vshrl.u32 %v5075, 16
      %v5361 = vrot.slane %v5359, 6
      %v5362 = vshll.u32 %v5075, 16
      %v5364 = vrot.slane %v5362, 7
      %v5365 = vor.u32 %v5361, %v5364
      %v5366 = vsel %vm5096, %v5357, %v5365
      %v5368 = vshrl.u32 %v5076, 16
      %v5370 = vrot.slane %v5368, 6
      %v5371 = vshll.u32 %v5076, 16
      %v5373 = vrot.slane %v5371, 7
      %v5374 = vor.u32 %v5370, %v5373
      %v5375 = vrot.slane %v5374, 4
      %v5377 = vshrl.u32 %v5077, 16
      %v5379 = vrot.slane %v5377, 6
      %v5380 = vshll.u32 %v5077, 16
      %v5382 = vrot.slane %v5380, 7
      %v5383 = vor.u32 %v5379, %v5382
      %v5384 = vsel %vm5096, %v5375, %v5383
      %v5386 = vshrl.u32 %v5078, 16
      %v5388 = vrot.slane %v5386, 6
      %v5389 = vshll.u32 %v5078, 16
      %v5391 = vrot.slane %v5389, 7
      %v5392 = vor.u32 %v5388, %v5391
      %v5393 = vrot.slane %v5392, 4
      %v5395 = vshrl.u32 %v5079, 16
      %v5397 = vrot.slane %v5395, 6
      %v5398 = vshll.u32 %v5079, 16
      %v5400 = vrot.slane %v5398, 7
      %v5401 = vor.u32 %v5397, %v5400
      %v5402 = vsel %vm5096, %v5393, %v5401
      %v5404 = vshrl.u32 %v5080, 16
      %v5406 = vrot.slane %v5404, 6
      %v5407 = vshll.u32 %v5080, 16
      %v5409 = vrot.slane %v5407, 7
      %v5410 = vor.u32 %v5406, %v5409
      %v5411 = vrot.slane %v5410, 4
      %v5413 = vshrl.u32 %v5081, 16
      %v5415 = vrot.slane %v5413, 6
      %v5416 = vshll.u32 %v5081, 16
      %v5418 = vrot.slane %v5416, 7
      %v5419 = vor.u32 %v5415, %v5418
      %v5420 = vsel %vm5096, %v5411, %v5419
      %v5422 = vshrl.u32 %v5082, 16
      %v5424 = vrot.slane %v5422, 6
      %v5425 = vshll.u32 %v5082, 16
      %v5427 = vrot.slane %v5425, 7
      %v5428 = vor.u32 %v5424, %v5427
      %v5429 = vrot.slane %v5428, 4
      %v5431 = vshrl.u32 %v5083, 16
      %v5433 = vrot.slane %v5431, 6
      %v5434 = vshll.u32 %v5083, 16
      %v5436 = vrot.slane %v5434, 7
      %v5437 = vor.u32 %v5433, %v5436
      %v5438 = vsel %vm5096, %v5429, %v5437
      %v5440 = vshrl.u32 %v5084, 16
      %v5442 = vrot.slane %v5440, 6
      %v5443 = vshll.u32 %v5084, 16
      %v5445 = vrot.slane %v5443, 7
      %v5446 = vor.u32 %v5442, %v5445
      %v5447 = vrot.slane %v5446, 4
      %v5449 = vshrl.u32 %v5085, 16
      %v5451 = vrot.slane %v5449, 6
      %v5452 = vshll.u32 %v5085, 16
      %v5454 = vrot.slane %v5452, 7
      %v5455 = vor.u32 %v5451, %v5454
      %v5456 = vsel %vm5096, %v5447, %v5455
      %v5458 = vshrl.u32 %v5086, 16
      %v5460 = vrot.slane %v5458, 6
      %v5461 = vshll.u32 %v5086, 16
      %v5463 = vrot.slane %v5461, 7
      %v5464 = vor.u32 %v5460, %v5463
      %v5465 = vrot.slane %v5464, 4
      %v5467 = vshrl.u32 %v5087, 16
      %v5469 = vrot.slane %v5467, 6
      %v5470 = vshll.u32 %v5087, 16
      %v5472 = vrot.slane %v5470, 7
      %v5473 = vor.u32 %v5469, %v5472
      %v5474 = vsel %vm5096, %v5465, %v5473
      %v5476 = vshrl.u32 %v5088, 16
      %v5478 = vrot.slane %v5476, 6
      %v5479 = vshll.u32 %v5088, 16
      %v5481 = vrot.slane %v5479, 7
      %v5482 = vor.u32 %v5478, %v5481
      %v5483 = vrot.slane %v5482, 4
      %v5485 = vshrl.u32 %v5089, 16
      %v5487 = vrot.slane %v5485, 6
      %v5488 = vshll.u32 %v5089, 16
      %v5490 = vrot.slane %v5488, 7
      %v5491 = vor.u32 %v5487, %v5490
      %v5492 = vsel %vm5096, %v5483, %v5491
      %v5494 = vshrl.u32 %v5090, 16
      %v5496 = vrot.slane %v5494, 6
      %v5497 = vshll.u32 %v5090, 16
      %v5499 = vrot.slane %v5497, 7
      %v5500 = vor.u32 %v5496, %v5499
      %v5501 = vrot.slane %v5500, 4
      %v5503 = vshrl.u32 %v5091, 16
      %v5505 = vrot.slane %v5503, 6
      %v5506 = vshll.u32 %v5091, 16
      %v5508 = vrot.slane %v5506, 7
      %v5509 = vor.u32 %v5505, %v5508
      %v5510 = vsel %vm5096, %v5501, %v5509
      %v5512 = vshrl.u32 %v5092, 16
      %v5514 = vrot.slane %v5512, 6
      %v5515 = vshll.u32 %v5092, 16
      %v5517 = vrot.slane %v5515, 7
      %v5518 = vor.u32 %v5514, %v5517
      %v5519 = vrot.slane %v5518, 4
      %v5521 = vshrl.u32 %v5093, 16
      %v5523 = vrot.slane %v5521, 6
      %v5524 = vshll.u32 %v5093, 16
      %v5526 = vrot.slane %v5524, 7
      %v5527 = vor.u32 %v5523, %v5526
      %v5528 = vsel %vm5096, %v5519, %v5527
      %5553 = vst [vmem:[#allocation3 + $0x8] sm:$0xf] %v5114
      %5554 = vst [vmem:[#allocation3 + $0x14] sm:$0xf] %v5132
      %5555 = vst [vmem:[#allocation3 + $0x20] sm:$0xf] %v5150
      %5556 = vst [vmem:[#allocation3 + $0x2c] sm:$0xf] %v5168
      %5557 = vst [vmem:[#allocation3 + $0x38] sm:$0xf] %v5186
      %5558 = vst [vmem:[#allocation3 + $0x44] sm:$0xf] %v5204
      %5559 = vst [vmem:[#allocation3 + $0x50] sm:$0xf] %v5222
      %5560 = vst [vmem:[#allocation3 + $0x5c] sm:$0xf] %v5240
      %5561 = vst [vmem:[#allocation3 + $0x68] sm:$0xf] %v5258
      %5562 = vst [vmem:[#allocation3 + $0x74] sm:$0xf] %v5276
      %5563 = vst [vmem:[#allocation3 + $0x80] sm:$0xf] %v5294
      %5564 = vst [vmem:[#allocation3 + $0x8c] sm:$0xf] %v5312
      %5565 = vst [vmem:[#allocation3 + $0x98] sm:$0xf] %v5330
      %5566 = vst [vmem:[#allocation3 + $0xa4] sm:$0xf] %v5348
      %5567 = vst [vmem:[#allocation3 + $0xb0] sm:$0xf] %v5366
      %5568 = vst [vmem:[#allocation3 + $0xbc] sm:$0xf] %v5384
      %5569 = vst [vmem:[#allocation3 + $0xc8] sm:$0xf] %v5402
      %5570 = vst [vmem:[#allocation3 + $0xd4] sm:$0xf] %v5420
      %5571 = vst [vmem:[#allocation3 + $0xe0] sm:$0xf] %v5438
      %5572 = vst [vmem:[#allocation3 + $0xec] sm:$0xf] %v5456
      %5573 = vst [vmem:[#allocation3 + $0xf8] sm:$0xf] %v5474
      %5574 = vst [vmem:[#allocation3 + $0x104] sm:$0xf] %v5492
      %5575 = vst [vmem:[#allocation3 + $0x110] sm:$0xf] %v5510
      %5576 = vst [vmem:[#allocation3 + $0x11c] sm:$0xf] %v5528
      %s5577 = scalar_lea.vmem [#allocation3], 36
      %v5578 = vld [vmem:[%s5577] sm:$0xff]
      %v5579 = vld [vmem:[%s5577 + $0x8] sm:$0xf]
      %v5580 = vld [vmem:[%s5577 + $0xc] sm:$0xff]
      %v5581 = vld [vmem:[%s5577 + $0x14] sm:$0xf]
      %v5582 = vld [vmem:[%s5577 + $0x18] sm:$0xff]
      %v5583 = vld [vmem:[%s5577 + $0x20] sm:$0xf]
      %v5584 = vld [vmem:[%s5577 + $0x24] sm:$0xff]
      %v5585 = vld [vmem:[%s5577 + $0x2c] sm:$0xf]
      %v5586 = vld [vmem:[%s5577 + $0x30] sm:$0xff]
      %v5587 = vld [vmem:[%s5577 + $0x38] sm:$0xf]
      %v5588 = vld [vmem:[%s5577 + $0x3c] sm:$0xff]
      %v5589 = vld [vmem:[%s5577 + $0x44] sm:$0xf]
      %v5590 = vld [vmem:[%s5577 + $0x48] sm:$0xff]
      %v5591 = vld [vmem:[%s5577 + $0x50] sm:$0xf]
      %v5592 = vld [vmem:[%s5577 + $0x54] sm:$0xff]
      %v5593 = vld [vmem:[%s5577 + $0x5c] sm:$0xf]
      %s5594 = scalar_lea.vmem %s3, 1152
      %v5595 = vld [vmem:[%s5594] sm:$0xf]
      %v5596 = vld [vmem:[%s5594 + $0x4] sm:$0xf]
      %v5597 = vld [vmem:[%s5594 + $0x8] sm:$0xf]
      %v5598 = vld [vmem:[%s5594 + $0xc] sm:$0xf]
      %v5599 = vld [vmem:[%s5594 + $0x10] sm:$0xf]
      %v5600 = vld [vmem:[%s5594 + $0x14] sm:$0xf]
      %v5601 = vld [vmem:[%s5594 + $0x18] sm:$0xf]
      %v5602 = vld [vmem:[%s5594 + $0x1c] sm:$0xf]
      %v5603 = vld [vmem:[%s5594 + $0x20] sm:$0xf]
      %v5604 = vld [vmem:[%s5594 + $0x24] sm:$0xf]
      %v5605 = vld [vmem:[%s5594 + $0x28] sm:$0xf]
      %v5606 = vld [vmem:[%s5594 + $0x2c] sm:$0xf]
      %v5607 = vld [vmem:[%s5594 + $0x30] sm:$0xf]
      %v5608 = vld [vmem:[%s5594 + $0x34] sm:$0xf]
      %v5609 = vld [vmem:[%s5594 + $0x38] sm:$0xf]
      %v5610 = vld [vmem:[%s5594 + $0x3c] sm:$0xf]
      %v5611 = vld [vmem:[%s5594 + $0x40] sm:$0xf]
      %v5612 = vld [vmem:[%s5594 + $0x44] sm:$0xf]
      %v5613 = vld [vmem:[%s5594 + $0x48] sm:$0xf]
      %v5614 = vld [vmem:[%s5594 + $0x4c] sm:$0xf]
      %v5615 = vld [vmem:[%s5594 + $0x50] sm:$0xf]
      %v5616 = vld [vmem:[%s5594 + $0x54] sm:$0xf]
      %v5617 = vld [vmem:[%s5594 + $0x58] sm:$0xf]
      %v5618 = vld [vmem:[%s5594 + $0x5c] sm:$0xf]
      %v5619 = vld [vmem:[%s5594 + $0x60] sm:$0xf]
      %v5620 = vld [vmem:[%s5594 + $0x64] sm:$0xf]
      %v5621 = vld [vmem:[%s5594 + $0x68] sm:$0xf]
      %v5622 = vld [vmem:[%s5594 + $0x6c] sm:$0xf]
      %v5623 = vld [vmem:[%s5594 + $0x70] sm:$0xf]
      %v5624 = vld [vmem:[%s5594 + $0x74] sm:$0xf]
      %v5625 = vld [vmem:[%s5594 + $0x78] sm:$0xf]
      %v5626 = vld [vmem:[%s5594 + $0x7c] sm:$0xf]
      %v5627 = vld [vmem:[%s5594 + $0x80] sm:$0xf]
      %v5628 = vld [vmem:[%s5594 + $0x84] sm:$0xf]
      %v5629 = vld [vmem:[%s5594 + $0x88] sm:$0xf]
      %v5630 = vld [vmem:[%s5594 + $0x8c] sm:$0xf]
      %v5631 = vld [vmem:[%s5594 + $0x90] sm:$0xf]
      %v5632 = vld [vmem:[%s5594 + $0x94] sm:$0xf]
      %v5633 = vld [vmem:[%s5594 + $0x98] sm:$0xf]
      %v5634 = vld [vmem:[%s5594 + $0x9c] sm:$0xf]
      %v5635 = vld [vmem:[%s5594 + $0xa0] sm:$0xf]
      %v5636 = vld [vmem:[%s5594 + $0xa4] sm:$0xf]
      %v5637 = vld [vmem:[%s5594 + $0xa8] sm:$0xf]
      %v5638 = vld [vmem:[%s5594 + $0xac] sm:$0xf]
      %v5639 = vld [vmem:[%s5594 + $0xb0] sm:$0xf]
      %v5640 = vld [vmem:[%s5594 + $0xb4] sm:$0xf]
      %v5641 = vld [vmem:[%s5594 + $0xb8] sm:$0xf]
      %v5642 = vld [vmem:[%s5594 + $0xbc] sm:$0xf]
      %v5643 = vld [vmem:[%s1450] sm:$0xff]
      %v5644 = vld [vmem:[%s1450 + $0x8] sm:$0xf]
      %v5645 = vld [vmem:[%s1450 + $0xc] sm:$0xff]
      %v5646 = vld [vmem:[%s1450 + $0x14] sm:$0xf]
      %v5647 = vld [vmem:[%s1450 + $0x18] sm:$0xff]
      %v5648 = vld [vmem:[%s1450 + $0x20] sm:$0xf]
      %v5649 = vld [vmem:[%s1450 + $0x24] sm:$0xff]
      %v5650 = vld [vmem:[%s1450 + $0x2c] sm:$0xf]
      %v5651 = vld [vmem:[%s1450 + $0x30] sm:$0xff]
      %v5652 = vld [vmem:[%s1450 + $0x38] sm:$0xf]
      %v5653 = vld [vmem:[%s1450 + $0x3c] sm:$0xff]
      %v5654 = vld [vmem:[%s1450 + $0x44] sm:$0xf]
      %v5655 = vld [vmem:[%s1450 + $0x48] sm:$0xff]
      %v5656 = vld [vmem:[%s1450 + $0x50] sm:$0xf]
      %v5657 = vld [vmem:[%s1450 + $0x54] sm:$0xff]
      %v5658 = vld [vmem:[%s1450 + $0x5c] sm:$0xf]
      %s5659 = scalar_lea.vmem %s3, 1344
      %v5660 = vld [vmem:[%s5659] sm:$0xf]
      %v5661 = vld [vmem:[%s5659 + $0x4] sm:$0xf]
      %v5662 = vld [vmem:[%s5659 + $0x8] sm:$0xf]
      %v5663 = vld [vmem:[%s5659 + $0xc] sm:$0xf]
      %v5664 = vld [vmem:[%s5659 + $0x10] sm:$0xf]
      %v5665 = vld [vmem:[%s5659 + $0x14] sm:$0xf]
      %v5666 = vld [vmem:[%s5659 + $0x18] sm:$0xf]
      %v5667 = vld [vmem:[%s5659 + $0x1c] sm:$0xf]
      %v5668 = vld [vmem:[%s5659 + $0x20] sm:$0xf]
      %v5669 = vld [vmem:[%s5659 + $0x24] sm:$0xf]
      %v5670 = vld [vmem:[%s5659 + $0x28] sm:$0xf]
      %v5671 = vld [vmem:[%s5659 + $0x2c] sm:$0xf]
      %v5672 = vld [vmem:[%s5659 + $0x30] sm:$0xf]
      %v5673 = vld [vmem:[%s5659 + $0x34] sm:$0xf]
      %v5674 = vld [vmem:[%s5659 + $0x38] sm:$0xf]
      %v5675 = vld [vmem:[%s5659 + $0x3c] sm:$0xf]
      %v5676 = vld [vmem:[%s5659 + $0x40] sm:$0xf]
      %v5677 = vld [vmem:[%s5659 + $0x44] sm:$0xf]
      %v5678 = vld [vmem:[%s5659 + $0x48] sm:$0xf]
      %v5679 = vld [vmem:[%s5659 + $0x4c] sm:$0xf]
      %v5680 = vld [vmem:[%s5659 + $0x50] sm:$0xf]
      %v5681 = vld [vmem:[%s5659 + $0x54] sm:$0xf]
      %v5682 = vld [vmem:[%s5659 + $0x58] sm:$0xf]
      %v5683 = vld [vmem:[%s5659 + $0x5c] sm:$0xf]
      %v5684 = vld [vmem:[%s5659 + $0x60] sm:$0xf]
      %v5685 = vld [vmem:[%s5659 + $0x64] sm:$0xf]
      %v5686 = vld [vmem:[%s5659 + $0x68] sm:$0xf]
      %v5687 = vld [vmem:[%s5659 + $0x6c] sm:$0xf]
      %v5688 = vld [vmem:[%s5659 + $0x70] sm:$0xf]
      %v5689 = vld [vmem:[%s5659 + $0x74] sm:$0xf]
      %v5690 = vld [vmem:[%s5659 + $0x78] sm:$0xf]
      %v5691 = vld [vmem:[%s5659 + $0x7c] sm:$0xf]
      %v5692 = vld [vmem:[%s5659 + $0x80] sm:$0xf]
      %v5693 = vld [vmem:[%s5659 + $0x84] sm:$0xf]
      %v5694 = vld [vmem:[%s5659 + $0x88] sm:$0xf]
      %v5695 = vld [vmem:[%s5659 + $0x8c] sm:$0xf]
      %v5696 = vld [vmem:[%s5659 + $0x90] sm:$0xf]
      %v5697 = vld [vmem:[%s5659 + $0x94] sm:$0xf]
      %v5698 = vld [vmem:[%s5659 + $0x98] sm:$0xf]
      %v5699 = vld [vmem:[%s5659 + $0x9c] sm:$0xf]
      %v5700 = vld [vmem:[%s5659 + $0xa0] sm:$0xf]
      %v5701 = vld [vmem:[%s5659 + $0xa4] sm:$0xf]
      %v5702 = vld [vmem:[%s5659 + $0xa8] sm:$0xf]
      %v5703 = vld [vmem:[%s5659 + $0xac] sm:$0xf]
      %v5704 = vld [vmem:[%s5659 + $0xb0] sm:$0xf]
      %v5705 = vld [vmem:[%s5659 + $0xb4] sm:$0xf]
      %v5706 = vld [vmem:[%s5659 + $0xb8] sm:$0xf]
      %v5707 = vld [vmem:[%s5659 + $0xbc] sm:$0xf]
      %v5724 = vunpack.c.l.b16 %v5643
      %v5725 = vunpack.c.h.b16 %v5643
      %v5726 = vunpack.c.l.b16 %v5644
      %v5727 = vunpack.c.l.b16 %v5645
      %v5728 = vunpack.c.h.b16 %v5645
      %v5729 = vunpack.c.l.b16 %v5646
      %v5730 = vunpack.c.l.b16 %v5647
      %v5731 = vunpack.c.h.b16 %v5647
      %v5732 = vunpack.c.l.b16 %v5648
      %v5733 = vunpack.c.l.b16 %v5649
      %v5734 = vunpack.c.h.b16 %v5649
      %v5735 = vunpack.c.l.b16 %v5650
      %v5736 = vunpack.c.l.b16 %v5651
      %v5737 = vunpack.c.h.b16 %v5651
      %v5738 = vunpack.c.l.b16 %v5652
      %v5739 = vunpack.c.l.b16 %v5653
      %v5740 = vunpack.c.h.b16 %v5653
      %v5741 = vunpack.c.l.b16 %v5654
      %v5742 = vunpack.c.l.b16 %v5655
      %v5743 = vunpack.c.h.b16 %v5655
      %v5744 = vunpack.c.l.b16 %v5656
      %v5745 = vunpack.c.l.b16 %v5657
      %v5746 = vunpack.c.h.b16 %v5657
      %v5747 = vunpack.c.l.b16 %v5658
      %v5748 = vpack.c.b16 %v5727, %v5724
      %v5749 = vpack.c.b16 %v5728, %v5725
      %v5750 = vpack.c.b16 %v5729, %v5726
      %v5751 = vpack.c.b16 %v5733, %v5730
      %v5752 = vpack.c.b16 %v5734, %v5731
      %v5753 = vpack.c.b16 %v5735, %v5732
      %v5754 = vpack.c.b16 %v5739, %v5736
      %v5755 = vpack.c.b16 %v5740, %v5737
      %v5756 = vpack.c.b16 %v5741, %v5738
      %v5757 = vpack.c.b16 %v5745, %v5742
      %v5758 = vpack.c.b16 %v5746, %v5743
      %v5759 = vpack.c.b16 %v5747, %v5744
      %v5820 = vunpack.c.l.b16 %v5660
      %v5821 = vunpack.c.l.b16 %v5661
      %v5822 = vunpack.c.l.b16 %v5662
      %v5823 = vunpack.c.l.b16 %v5663
      %v5824 = vunpack.c.l.b16 %v5664
      %v5825 = vunpack.c.l.b16 %v5665
      %v5826 = vunpack.c.l.b16 %v5666
      %v5827 = vunpack.c.l.b16 %v5667
      %v5828 = vunpack.c.l.b16 %v5668
      %v5829 = vunpack.c.l.b16 %v5669
      %v5830 = vunpack.c.l.b16 %v5670
      %v5831 = vunpack.c.l.b16 %v5671
      %v5832 = vunpack.c.l.b16 %v5672
      %v5833 = vunpack.c.l.b16 %v5673
      %v5834 = vunpack.c.l.b16 %v5674
      %v5835 = vunpack.c.l.b16 %v5675
      %v5836 = vunpack.c.l.b16 %v5676
      %v5837 = vunpack.c.l.b16 %v5677
      %v5838 = vunpack.c.l.b16 %v5678
      %v5839 = vunpack.c.l.b16 %v5679
      %v5840 = vunpack.c.l.b16 %v5680
      %v5841 = vunpack.c.l.b16 %v5681
      %v5842 = vunpack.c.l.b16 %v5682
      %v5843 = vunpack.c.l.b16 %v5683
      %v5844 = vunpack.c.l.b16 %v5684
      %v5845 = vunpack.c.l.b16 %v5685
      %v5846 = vunpack.c.l.b16 %v5686
      %v5847 = vunpack.c.l.b16 %v5687
      %v5848 = vunpack.c.l.b16 %v5688
      %v5849 = vunpack.c.l.b16 %v5689
      %v5850 = vunpack.c.l.b16 %v5690
      %v5851 = vunpack.c.l.b16 %v5691
      %v5852 = vunpack.c.l.b16 %v5692
      %v5853 = vunpack.c.l.b16 %v5693
      %v5854 = vunpack.c.l.b16 %v5694
      %v5855 = vunpack.c.l.b16 %v5695
      %v5856 = vunpack.c.l.b16 %v5696
      %v5857 = vunpack.c.l.b16 %v5697
      %v5858 = vunpack.c.l.b16 %v5698
      %v5859 = vunpack.c.l.b16 %v5699
      %v5860 = vunpack.c.l.b16 %v5700
      %v5861 = vunpack.c.l.b16 %v5701
      %v5862 = vunpack.c.l.b16 %v5702
      %v5863 = vunpack.c.l.b16 %v5703
      %v5864 = vunpack.c.l.b16 %v5704
      %v5865 = vunpack.c.l.b16 %v5705
      %v5866 = vunpack.c.l.b16 %v5706
      %v5867 = vunpack.c.l.b16 %v5707
      %v5868 = vpack.c.b16 %v5821, %v5820
      %v5869 = vpack.c.b16 %v5823, %v5822
      %v5870 = vpack.c.b16 %v5825, %v5824
      %v5871 = vpack.c.b16 %v5827, %v5826
      %v5872 = vpack.c.b16 %v5829, %v5828
      %v5873 = vpack.c.b16 %v5831, %v5830
      %v5874 = vpack.c.b16 %v5833, %v5832
      %v5875 = vpack.c.b16 %v5835, %v5834
      %v5876 = vpack.c.b16 %v5837, %v5836
      %v5877 = vpack.c.b16 %v5839, %v5838
      %v5878 = vpack.c.b16 %v5841, %v5840
      %v5879 = vpack.c.b16 %v5843, %v5842
      %v5880 = vpack.c.b16 %v5845, %v5844
      %v5881 = vpack.c.b16 %v5847, %v5846
      %v5882 = vpack.c.b16 %v5849, %v5848
      %v5883 = vpack.c.b16 %v5851, %v5850
      %v5884 = vpack.c.b16 %v5853, %v5852
      %v5885 = vpack.c.b16 %v5855, %v5854
      %v5886 = vpack.c.b16 %v5857, %v5856
      %v5887 = vpack.c.b16 %v5859, %v5858
      %v5888 = vpack.c.b16 %v5861, %v5860
      %v5889 = vpack.c.b16 %v5863, %v5862
      %v5890 = vpack.c.b16 %v5865, %v5864
      %v5891 = vpack.c.b16 %v5867, %v5866
      %5916 = vmatprep.subr.bf16.mxu0 0
      %5917 = vmatpush1.bf16.msra.mxu0 %v5868
      %5918 = vmatprep.subr.bf16.mxu0 0
      %5919 = vmatpush1.bf16.msra.mxu0 %v5869
      %5920 = vmatprep.subr.bf16.mxu0 0
      %5921 = vmatpush1.bf16.msra.mxu0 %v5870
      %5922 = vmatprep.subr.bf16.mxu0 0
      %5923 = vmatpush1.bf16.msra.mxu0 %v5871
      %5924 = vmatprep.subr.bf16.mxu0 0
      %5925 = vmatpush1.bf16.msra.mxu0 %v5872
      %5926 = vmatprep.subr.bf16.mxu0 0
      %5927 = vmatpush1.bf16.msra.mxu0 %v5873
      %5928 = vmatprep.subr.bf16.mxu0 0
      %5929 = vmatpush1.bf16.msra.mxu0 %v5874
      %5930 = vmatprep.subr.bf16.mxu0 0
      %5931 = vmatpush1.bf16.msra.mxu0 %v5875
      %5932 = vmatprep.subr.bf16.mxu0 0
      %5933 = vmatpush1.bf16.msra.mxu0 %v5876
      %5934 = vmatprep.subr.bf16.mxu0 0
      %5935 = vmatpush1.bf16.msra.mxu0 %v5877
      %5936 = vmatprep.subr.bf16.mxu0 0
      %5937 = vmatpush1.bf16.msra.mxu0 %v5878
      %5938 = vmatprep.subr.bf16.mxu0 0
      %5939 = vmatpush1.bf16.msra.mxu0 %v5879
      %5940 = vmatprep.subr.bf16.mxu0 0
      %5941 = vmatpush1.bf16.msra.mxu0 %v5880
      %5942 = vmatprep.subr.bf16.mxu0 0
      %5943 = vmatpush1.bf16.msra.mxu0 %v5881
      %5944 = vmatprep.subr.bf16.mxu0 0
      %5945 = vmatpush1.bf16.msra.mxu0 %v5882
      %5946 = vmatprep.subr.bf16.mxu0 0
      %5947 = vmatpush1.bf16.msra.mxu0 %v5883
      %5948 = vmatprep.mubr.bf16.mxu0 %v5749
      %5949 = vmatmul.mubr.bf16.gmra.mrb[0].mxu0 %v5748
      %v5950 = vpop.f32.mrb[0].mxu0
      %v5951 = vadd.f32 0.0, %v5950
      %v5952 = vpop.f32.mrb[0].mxu0
      %v5953 = vpop.f32.mrb[0].mxu0
      %v5954 = vadd.f32 0.0, %v5953
      %v5955 = vpop.f32.mrb[0].mxu0
      %5956 = vmatprep.mubr.bf16.mxu0 %v5752
      %5957 = vmatmul.mubr.bf16.gmra.mrb[0].mxu0 %v5751
      %v5958 = vpop.f32.mrb[0].mxu0
      %v5959 = vadd.f32 0.0, %v5958
      %v5960 = vpop.f32.mrb[0].mxu0
      %v5961 = vpop.f32.mrb[0].mxu0
      %v5962 = vadd.f32 0.0, %v5961
      %v5963 = vpop.f32.mrb[0].mxu0
      %5964 = vmatprep.mubr.bf16.mxu0 %v5755
      %5965 = vmatmul.mubr.bf16.gmra.mrb[0].mxu0 %v5754
      %v5966 = vpop.f32.mrb[0].mxu0
      %v5967 = vadd.f32 0.0, %v5966
      %v5968 = vpop.f32.mrb[0].mxu0
      %v5969 = vpop.f32.mrb[0].mxu0
      %v5970 = vadd.f32 0.0, %v5969
      %v5971 = vpop.f32.mrb[0].mxu0
      %5972 = vmatprep.mubr.bf16.mxu0 %v5758
      %5973 = vmatmul.mubr.bf16.gmra.mrb[0].mxu0 %v5757
      %v5974 = vpop.f32.mrb[0].mxu0
      %v5975 = vadd.f32 0.0, %v5974
      %v5976 = vpop.f32.mrb[0].mxu0
      %v5977 = vpop.f32.mrb[0].mxu0
      %v5978 = vadd.f32 0.0, %v5977
      %v5979 = vpop.f32.mrb[0].mxu0
      %5980 = vdwg.mxu0
      %5981 = vmatprep.subr.bf16.mxu0 0
      %5982 = vmatpush1.bf16.msra.mxu0 %v5884
      %5983 = vmatprep.subr.bf16.mxu0 0
      %5984 = vmatpush1.bf16.msra.mxu0 %v5885
      %5985 = vmatprep.subr.bf16.mxu0 0
      %5986 = vmatpush1.bf16.msra.mxu0 %v5886
      %5987 = vmatprep.subr.bf16.mxu0 0
      %5988 = vmatpush1.bf16.msra.mxu0 %v5887
      %5989 = vmatprep.subr.bf16.mxu0 0
      %5990 = vmatpush1.bf16.msra.mxu0 %v5888
      %5991 = vmatprep.subr.bf16.mxu0 0
      %5992 = vmatpush1.bf16.msra.mxu0 %v5889
      %5993 = vmatprep.subr.bf16.mxu0 0
      %5994 = vmatpush1.bf16.msra.mxu0 %v5890
      %5995 = vmatprep.subr.bf16.mxu0 0
      %5996 = vmatpush1.bf16.msra.mxu0 %v5891
      %5997 = vmatprep.subr.bf16.mxu0 0
      %5998 = vmatpush1.bf16.msra.mxu0 0
      %5999 = vmatprep.subr.bf16.mxu0 0
      %6000 = vmatpush1.bf16.msra.mxu0 0
      %6001 = vmatprep.subr.bf16.mxu0 0
      %6002 = vmatpush1.bf16.msra.mxu0 0
      %6003 = vmatprep.subr.bf16.mxu0 0
      %6004 = vmatpush1.bf16.msra.mxu0 0
      %6005 = vmatprep.subr.bf16.mxu0 0
      %6006 = vmatpush1.bf16.msra.mxu0 0
      %6007 = vmatprep.subr.bf16.mxu0 0
      %6008 = vmatpush1.bf16.msra.mxu0 0
      %6009 = vmatprep.subr.bf16.mxu0 0
      %6010 = vmatpush1.bf16.msra.mxu0 0
      %6011 = vmatprep.subr.bf16.mxu0 0
      %6012 = vmatpush1.bf16.msra.mxu0 0
      %6013 = vmatprep.mubr.bf16.mxu0 0
      %6014 = vmatmul.mubr.bf16.gmra.mrb[0].mxu0 %v5750
      %v6015 = vpop.f32.mrb[0].mxu0
      %v6016 = vadd.f32 %v5951, %v6015
      %v6017 = vpop.f32.mrb[0].mxu0
      %v6018 = vpop.f32.mrb[0].mxu0
      %v6019 = vadd.f32 %v5954, %v6018
      %v6020 = vpop.f32.mrb[0].mxu0
      %6021 = vmatprep.mubr.bf16.mxu0 0
      %6022 = vmatmul.mubr.bf16.gmra.mrb[0].mxu0 %v5753
      %v6023 = vpop.f32.mrb[0].mxu0
      %v6024 = vadd.f32 %v5959, %v6023
      %v6025 = vpop.f32.mrb[0].mxu0
      %v6026 = vpop.f32.mrb[0].mxu0
      %v6027 = vadd.f32 %v5962, %v6026
      %v6028 = vpop.f32.mrb[0].mxu0
      %6029 = vmatprep.mubr.bf16.mxu0 0
      %6030 = vmatmul.mubr.bf16.gmra.mrb[0].mxu0 %v5756
      %v6031 = vpop.f32.mrb[0].mxu0
      %v6032 = vadd.f32 %v5967, %v6031
      %v6033 = vpop.f32.mrb[0].mxu0
      %v6034 = vpop.f32.mrb[0].mxu0
      %v6035 = vadd.f32 %v5970, %v6034
      %v6036 = vpop.f32.mrb[0].mxu0
      %6037 = vmatprep.mubr.bf16.mxu0 0
      %6038 = vmatmul.mubr.bf16.gmra.mrb[0].mxu0 %v5759
      %v6039 = vpop.f32.mrb[0].mxu0
      %v6040 = vadd.f32 %v5975, %v6039
      %v6041 = vpop.f32.mrb[0].mxu0
      %v6042 = vpop.f32.mrb[0].mxu0
      %v6043 = vadd.f32 %v5978, %v6042
      %v6044 = vpop.f32.mrb[0].mxu0
      %6045 = vdwg.mxu0
      %v6062 = vunpack.c.l.b16 %v5578
      %v6063 = vunpack.c.h.b16 %v5578
      %v6064 = vunpack.c.l.b16 %v5579
      %v6065 = vunpack.c.l.b16 %v5580
      %v6066 = vunpack.c.h.b16 %v5580
      %v6067 = vunpack.c.l.b16 %v5581
      %v6068 = vunpack.c.l.b16 %v5582
      %v6069 = vunpack.c.h.b16 %v5582
      %v6070 = vunpack.c.l.b16 %v5583
      %v6071 = vunpack.c.l.b16 %v5584
      %v6072 = vunpack.c.h.b16 %v5584
      %v6073 = vunpack.c.l.b16 %v5585
      %v6074 = vunpack.c.l.b16 %v5586
      %v6075 = vunpack.c.h.b16 %v5586
      %v6076 = vunpack.c.l.b16 %v5587
      %v6077 = vunpack.c.l.b16 %v5588
      %v6078 = vunpack.c.h.b16 %v5588
      %v6079 = vunpack.c.l.b16 %v5589
      %v6080 = vunpack.c.l.b16 %v5590
      %v6081 = vunpack.c.h.b16 %v5590
      %v6082 = vunpack.c.l.b16 %v5591
      %v6083 = vunpack.c.l.b16 %v5592
      %v6084 = vunpack.c.h.b16 %v5592
      %v6085 = vunpack.c.l.b16 %v5593
      %v6086 = vpack.c.b16 %v6065, %v6062
      %v6087 = vpack.c.b16 %v6066, %v6063
      %v6088 = vpack.c.b16 %v6067, %v6064
      %v6089 = vpack.c.b16 %v6071, %v6068
      %v6090 = vpack.c.b16 %v6072, %v6069
      %v6091 = vpack.c.b16 %v6073, %v6070
      %v6092 = vpack.c.b16 %v6077, %v6074
      %v6093 = vpack.c.b16 %v6078, %v6075
      %v6094 = vpack.c.b16 %v6079, %v6076
      %v6095 = vpack.c.b16 %v6083, %v6080
      %v6096 = vpack.c.b16 %v6084, %v6081
      %v6097 = vpack.c.b16 %v6085, %v6082
      %v6158 = vunpack.c.l.b16 %v5595
      %v6159 = vunpack.c.l.b16 %v5596
      %v6160 = vunpack.c.l.b16 %v5597
      %v6161 = vunpack.c.l.b16 %v5598
      %v6162 = vunpack.c.l.b16 %v5599
      %v6163 = vunpack.c.l.b16 %v5600
      %v6164 = vunpack.c.l.b16 %v5601
      %v6165 = vunpack.c.l.b16 %v5602
      %v6166 = vunpack.c.l.b16 %v5603
      %v6167 = vunpack.c.l.b16 %v5604
      %v6168 = vunpack.c.l.b16 %v5605
      %v6169 = vunpack.c.l.b16 %v5606
      %v6170 = vunpack.c.l.b16 %v5607
      %v6171 = vunpack.c.l.b16 %v5608
      %v6172 = vunpack.c.l.b16 %v5609
      %v6173 = vunpack.c.l.b16 %v5610
      %v6174 = vunpack.c.l.b16 %v5611
      %v6175 = vunpack.c.l.b16 %v5612
      %v6176 = vunpack.c.l.b16 %v5613
      %v6177 = vunpack.c.l.b16 %v5614
      %v6178 = vunpack.c.l.b16 %v5615
      %v6179 = vunpack.c.l.b16 %v5616
      %v6180 = vunpack.c.l.b16 %v5617
      %v6181 = vunpack.c.l.b16 %v5618
      %v6182 = vunpack.c.l.b16 %v5619
      %v6183 = vunpack.c.l.b16 %v5620
      %v6184 = vunpack.c.l.b16 %v5621
      %v6185 = vunpack.c.l.b16 %v5622
      %v6186 = vunpack.c.l.b16 %v5623
      %v6187 = vunpack.c.l.b16 %v5624
      %v6188 = vunpack.c.l.b16 %v5625
      %v6189 = vunpack.c.l.b16 %v5626
      %v6190 = vunpack.c.l.b16 %v5627
      %v6191 = vunpack.c.l.b16 %v5628
      %v6192 = vunpack.c.l.b16 %v5629
      %v6193 = vunpack.c.l.b16 %v5630
      %v6194 = vunpack.c.l.b16 %v5631
      %v6195 = vunpack.c.l.b16 %v5632
      %v6196 = vunpack.c.l.b16 %v5633
      %v6197 = vunpack.c.l.b16 %v5634
      %v6198 = vunpack.c.l.b16 %v5635
      %v6199 = vunpack.c.l.b16 %v5636
      %v6200 = vunpack.c.l.b16 %v5637
      %v6201 = vunpack.c.l.b16 %v5638
      %v6202 = vunpack.c.l.b16 %v5639
      %v6203 = vunpack.c.l.b16 %v5640
      %v6204 = vunpack.c.l.b16 %v5641
      %v6205 = vunpack.c.l.b16 %v5642
      %v6206 = vpack.c.b16 %v6159, %v6158
      %v6207 = vpack.c.b16 %v6161, %v6160
      %v6208 = vpack.c.b16 %v6163, %v6162
      %v6209 = vpack.c.b16 %v6165, %v6164
      %v6210 = vpack.c.b16 %v6167, %v6166
      %v6211 = vpack.c.b16 %v6169, %v6168
      %v6212 = vpack.c.b16 %v6171, %v6170
      %v6213 = vpack.c.b16 %v6173, %v6172
      %v6214 = vpack.c.b16 %v6175, %v6174
      %v6215 = vpack.c.b16 %v6177, %v6176
      %v6216 = vpack.c.b16 %v6179, %v6178
      %v6217 = vpack.c.b16 %v6181, %v6180
      %v6218 = vpack.c.b16 %v6183, %v6182
      %v6219 = vpack.c.b16 %v6185, %v6184
      %v6220 = vpack.c.b16 %v6187, %v6186
      %v6221 = vpack.c.b16 %v6189, %v6188
      %v6222 = vpack.c.b16 %v6191, %v6190
      %v6223 = vpack.c.b16 %v6193, %v6192
      %v6224 = vpack.c.b16 %v6195, %v6194
      %v6225 = vpack.c.b16 %v6197, %v6196
      %v6226 = vpack.c.b16 %v6199, %v6198
      %v6227 = vpack.c.b16 %v6201, %v6200
      %v6228 = vpack.c.b16 %v6203, %v6202
      %v6229 = vpack.c.b16 %v6205, %v6204
      %6254 = vmatprep.subr.bf16.mxu0 0
      %6255 = vmatpush1.bf16.msra.mxu0 %v6206
      %6256 = vmatprep.subr.bf16.mxu0 0
      %6257 = vmatpush1.bf16.msra.mxu0 %v6207
      %6258 = vmatprep.subr.bf16.mxu0 0
      %6259 = vmatpush1.bf16.msra.mxu0 %v6208
      %6260 = vmatprep.subr.bf16.mxu0 0
      %6261 = vmatpush1.bf16.msra.mxu0 %v6209
      %6262 = vmatprep.subr.bf16.mxu0 0
      %6263 = vmatpush1.bf16.msra.mxu0 %v6210
      %6264 = vmatprep.subr.bf16.mxu0 0
      %6265 = vmatpush1.bf16.msra.mxu0 %v6211
      %6266 = vmatprep.subr.bf16.mxu0 0
      %6267 = vmatpush1.bf16.msra.mxu0 %v6212
      %6268 = vmatprep.subr.bf16.mxu0 0
      %6269 = vmatpush1.bf16.msra.mxu0 %v6213
      %6270 = vmatprep.subr.bf16.mxu0 0
      %6271 = vmatpush1.bf16.msra.mxu0 %v6214
      %6272 = vmatprep.subr.bf16.mxu0 0
      %6273 = vmatpush1.bf16.msra.mxu0 %v6215
      %6274 = vmatprep.subr.bf16.mxu0 0
      %6275 = vmatpush1.bf16.msra.mxu0 %v6216
      %6276 = vmatprep.subr.bf16.mxu0 0
      %6277 = vmatpush1.bf16.msra.mxu0 %v6217
      %6278 = vmatprep.subr.bf16.mxu0 0
      %6279 = vmatpush1.bf16.msra.mxu0 %v6218
      %6280 = vmatprep.subr.bf16.mxu0 0
      %6281 = vmatpush1.bf16.msra.mxu0 %v6219
      %6282 = vmatprep.subr.bf16.mxu0 0
      %6283 = vmatpush1.bf16.msra.mxu0 %v6220
      %6284 = vmatprep.subr.bf16.mxu0 0
      %6285 = vmatpush1.bf16.msra.mxu0 %v6221
      %6286 = vmatprep.mubr.bf16.mxu0 %v6087
      %6287 = vmatmul.mubr.bf16.gmra.mrb[0].mxu0 %v6086
      %v6288 = vpop.f32.mrb[0].mxu0
      %v6289 = vadd.f32 %v6016, %v6288
      %v6290 = vpop.f32.mrb[0].mxu0
      %v6291 = vpop.f32.mrb[0].mxu0
      %v6292 = vadd.f32 %v6019, %v6291
      %v6293 = vpop.f32.mrb[0].mxu0
      %6294 = vmatprep.mubr.bf16.mxu0 %v6090
      %6295 = vmatmul.mubr.bf16.gmra.mrb[0].mxu0 %v6089
      %v6296 = vpop.f32.mrb[0].mxu0
      %v6297 = vadd.f32 %v6024, %v6296
      %v6298 = vpop.f32.mrb[0].mxu0
      %v6299 = vpop.f32.mrb[0].mxu0
      %v6300 = vadd.f32 %v6027, %v6299
      %v6301 = vpop.f32.mrb[0].mxu0
      %6302 = vmatprep.mubr.bf16.mxu0 %v6093
      %6303 = vmatmul.mubr.bf16.gmra.mrb[0].mxu0 %v6092
      %v6304 = vpop.f32.mrb[0].mxu0
      %v6305 = vadd.f32 %v6032, %v6304
      %v6306 = vpop.f32.mrb[0].mxu0
      %v6307 = vpop.f32.mrb[0].mxu0
      %v6308 = vadd.f32 %v6035, %v6307
      %v6309 = vpop.f32.mrb[0].mxu0
      %6310 = vmatprep.mubr.bf16.mxu0 %v6096
      %6311 = vmatmul.mubr.bf16.gmra.mrb[0].mxu0 %v6095
      %v6312 = vpop.f32.mrb[0].mxu0
      %v6313 = vadd.f32 %v6040, %v6312
      %v6314 = vpop.f32.mrb[0].mxu0
      %v6315 = vpop.f32.mrb[0].mxu0
      %v6316 = vadd.f32 %v6043, %v6315
      %v6317 = vpop.f32.mrb[0].mxu0
      %6318 = vdwg.mxu0
      %6319 = vmatprep.subr.bf16.mxu0 0
      %6320 = vmatpush1.bf16.msra.mxu0 %v6222
      %6321 = vmatprep.subr.bf16.mxu0 0
      %6322 = vmatpush1.bf16.msra.mxu0 %v6223
      %6323 = vmatprep.subr.bf16.mxu0 0
      %6324 = vmatpush1.bf16.msra.mxu0 %v6224
      %6325 = vmatprep.subr.bf16.mxu0 0
      %6326 = vmatpush1.bf16.msra.mxu0 %v6225
      %6327 = vmatprep.subr.bf16.mxu0 0
      %6328 = vmatpush1.bf16.msra.mxu0 %v6226
      %6329 = vmatprep.subr.bf16.mxu0 0
      %6330 = vmatpush1.bf16.msra.mxu0 %v6227
      %6331 = vmatprep.subr.bf16.mxu0 0
      %6332 = vmatpush1.bf16.msra.mxu0 %v6228
      %6333 = vmatprep.subr.bf16.mxu0 0
      %6334 = vmatpush1.bf16.msra.mxu0 %v6229
      %6335 = vmatprep.subr.bf16.mxu0 0
      %6336 = vmatpush1.bf16.msra.mxu0 0
      %6337 = vmatprep.subr.bf16.mxu0 0
      %6338 = vmatpush1.bf16.msra.mxu0 0
      %6339 = vmatprep.subr.bf16.mxu0 0
      %6340 = vmatpush1.bf16.msra.mxu0 0
      %6341 = vmatprep.subr.bf16.mxu0 0
      %6342 = vmatpush1.bf16.msra.mxu0 0
      %6343 = vmatprep.subr.bf16.mxu0 0
      %6344 = vmatpush1.bf16.msra.mxu0 0
      %6345 = vmatprep.subr.bf16.mxu0 0
      %6346 = vmatpush1.bf16.msra.mxu0 0
      %6347 = vmatprep.subr.bf16.mxu0 0
      %6348 = vmatpush1.bf16.msra.mxu0 0
      %6349 = vmatprep.subr.bf16.mxu0 0
      %6350 = vmatpush1.bf16.msra.mxu0 0
      %6351 = vmatprep.mubr.bf16.mxu0 0
      %6352 = vmatmul.mubr.bf16.gmra.mrb[0].mxu0 %v6088
      %v6353 = vpop.f32.mrb[0].mxu0
      %v6354 = vadd.f32 %v6289, %v6353
      %v6355 = vpop.f32.mrb[0].mxu0
      %v6356 = vpop.f32.mrb[0].mxu0
      %v6357 = vadd.f32 %v6292, %v6356
      %v6358 = vpop.f32.mrb[0].mxu0
      %6359 = vmatprep.mubr.bf16.mxu0 0
      %6360 = vmatmul.mubr.bf16.gmra.mrb[0].mxu0 %v6091
      %v6361 = vpop.f32.mrb[0].mxu0
      %v6362 = vadd.f32 %v6297, %v6361
      %v6363 = vpop.f32.mrb[0].mxu0
      %v6364 = vpop.f32.mrb[0].mxu0
      %v6365 = vadd.f32 %v6300, %v6364
      %v6366 = vpop.f32.mrb[0].mxu0
      %6367 = vmatprep.mubr.bf16.mxu0 0
      %6368 = vmatmul.mubr.bf16.gmra.mrb[0].mxu0 %v6094
      %v6369 = vpop.f32.mrb[0].mxu0
      %v6370 = vadd.f32 %v6305, %v6369
      %v6371 = vpop.f32.mrb[0].mxu0
      %v6372 = vpop.f32.mrb[0].mxu0
      %v6373 = vadd.f32 %v6308, %v6372
      %v6374 = vpop.f32.mrb[0].mxu0
      %6375 = vmatprep.mubr.bf16.mxu0 0
      %6376 = vmatmul.mubr.bf16.gmra.mrb[0].mxu0 %v6097
      %v6377 = vpop.f32.mrb[0].mxu0
      %v6378 = vadd.f32 %v6313, %v6377
      %v6379 = vpop.f32.mrb[0].mxu0
      %v6380 = vpop.f32.mrb[0].mxu0
      %v6381 = vadd.f32 %v6316, %v6380
      %v6382 = vpop.f32.mrb[0].mxu0
      %6383 = vdwg.mxu0
      %s6384 = scalar_lea.vmem [#allocation3], 156
      %v6385 = vld [vmem:[%s6384] sm:$0xff]
      %v6386 = vld [vmem:[%s6384 + $0x8] sm:$0xf]
      %v6387 = vld [vmem:[%s6384 + $0xc] sm:$0xff]
      %v6388 = vld [vmem:[%s6384 + $0x14] sm:$0xf]
      %v6389 = vld [vmem:[%s6384 + $0x18] sm:$0xff]
      %v6390 = vld [vmem:[%s6384 + $0x20] sm:$0xf]
      %v6391 = vld [vmem:[%s6384 + $0x24] sm:$0xff]
      %v6392 = vld [vmem:[%s6384 + $0x2c] sm:$0xf]
      %v6393 = vld [vmem:[%s6384 + $0x30] sm:$0xff]
      %v6394 = vld [vmem:[%s6384 + $0x38] sm:$0xf]
      %v6395 = vld [vmem:[%s6384 + $0x3c] sm:$0xff]
      %v6396 = vld [vmem:[%s6384 + $0x44] sm:$0xf]
      %v6397 = vld [vmem:[%s6384 + $0x48] sm:$0xff]
      %v6398 = vld [vmem:[%s6384 + $0x50] sm:$0xf]
      %v6399 = vld [vmem:[%s6384 + $0x54] sm:$0xff]
      %v6400 = vld [vmem:[%s6384 + $0x5c] sm:$0xf]
      %s6401 = scalar_lea.vmem %s3, 1536
      %v6402 = vld [vmem:[%s6401] sm:$0xf]
      %v6403 = vld [vmem:[%s6401 + $0x4] sm:$0xf]
      %v6404 = vld [vmem:[%s6401 + $0x8] sm:$0xf]
      %v6405 = vld [vmem:[%s6401 + $0xc] sm:$0xf]
      %v6406 = vld [vmem:[%s6401 + $0x10] sm:$0xf]
      %v6407 = vld [vmem:[%s6401 + $0x14] sm:$0xf]
      %v6408 = vld [vmem:[%s6401 + $0x18] sm:$0xf]
      %v6409 = vld [vmem:[%s6401 + $0x1c] sm:$0xf]
      %v6410 = vld [vmem:[%s6401 + $0x20] sm:$0xf]
      %v6411 = vld [vmem:[%s6401 + $0x24] sm:$0xf]
      %v6412 = vld [vmem:[%s6401 + $0x28] sm:$0xf]
      %v6413 = vld [vmem:[%s6401 + $0x2c] sm:$0xf]
      %v6414 = vld [vmem:[%s6401 + $0x30] sm:$0xf]
      %v6415 = vld [vmem:[%s6401 + $0x34] sm:$0xf]
      %v6416 = vld [vmem:[%s6401 + $0x38] sm:$0xf]
      %v6417 = vld [vmem:[%s6401 + $0x3c] sm:$0xf]
      %v6418 = vld [vmem:[%s6401 + $0x40] sm:$0xf]
      %v6419 = vld [vmem:[%s6401 + $0x44] sm:$0xf]
      %v6420 = vld [vmem:[%s6401 + $0x48] sm:$0xf]
      %v6421 = vld [vmem:[%s6401 + $0x4c] sm:$0xf]
      %v6422 = vld [vmem:[%s6401 + $0x50] sm:$0xf]
      %v6423 = vld [vmem:[%s6401 + $0x54] sm:$0xf]
      %v6424 = vld [vmem:[%s6401 + $0x58] sm:$0xf]
      %v6425 = vld [vmem:[%s6401 + $0x5c] sm:$0xf]
      %v6426 = vld [vmem:[%s6401 + $0x60] sm:$0xf]
      %v6427 = vld [vmem:[%s6401 + $0x64] sm:$0xf]
      %v6428 = vld [vmem:[%s6401 + $0x68] sm:$0xf]
      %v6429 = vld [vmem:[%s6401 + $0x6c] sm:$0xf]
      %v6430 = vld [vmem:[%s6401 + $0x70] sm:$0xf]
      %v6431 = vld [vmem:[%s6401 + $0x74] sm:$0xf]
      %v6432 = vld [vmem:[%s6401 + $0x78] sm:$0xf]
      %v6433 = vld [vmem:[%s6401 + $0x7c] sm:$0xf]
      %v6434 = vld [vmem:[%s6401 + $0x80] sm:$0xf]
      %v6435 = vld [vmem:[%s6401 + $0x84] sm:$0xf]
      %v6436 = vld [vmem:[%s6401 + $0x88] sm:$0xf]
      %v6437 = vld [vmem:[%s6401 + $0x8c] sm:$0xf]
      %v6438 = vld [vmem:[%s6401 + $0x90] sm:$0xf]
      %v6439 = vld [vmem:[%s6401 + $0x94] sm:$0xf]
      %v6440 = vld [vmem:[%s6401 + $0x98] sm:$0xf]
      %v6441 = vld [vmem:[%s6401 + $0x9c] sm:$0xf]
      %v6442 = vld [vmem:[%s6401 + $0xa0] sm:$0xf]
      %v6443 = vld [vmem:[%s6401 + $0xa4] sm:$0xf]
      %v6444 = vld [vmem:[%s6401 + $0xa8] sm:$0xf]
      %v6445 = vld [vmem:[%s6401 + $0xac] sm:$0xf]
      %v6446 = vld [vmem:[%s6401 + $0xb0] sm:$0xf]
      %v6447 = vld [vmem:[%s6401 + $0xb4] sm:$0xf]
      %v6448 = vld [vmem:[%s6401 + $0xb8] sm:$0xf]
      %v6449 = vld [vmem:[%s6401 + $0xbc] sm:$0xf]
      %v6466 = vunpack.c.l.b16 %v6385
      %v6467 = vunpack.c.h.b16 %v6385
      %v6468 = vunpack.c.l.b16 %v6386
      %v6469 = vunpack.c.l.b16 %v6387
      %v6470 = vunpack.c.h.b16 %v6387
      %v6471 = vunpack.c.l.b16 %v6388
      %v6472 = vunpack.c.l.b16 %v6389
      %v6473 = vunpack.c.h.b16 %v6389
      %v6474 = vunpack.c.l.b16 %v6390
      %v6475 = vunpack.c.l.b16 %v6391
      %v6476 = vunpack.c.h.b16 %v6391
      %v6477 = vunpack.c.l.b16 %v6392
      %v6478 = vunpack.c.l.b16 %v6393
      %v6479 = vunpack.c.h.b16 %v6393
      %v6480 = vunpack.c.l.b16 %v6394
      %v6481 = vunpack.c.l.b16 %v6395
      %v6482 = vunpack.c.h.b16 %v6395
      %v6483 = vunpack.c.l.b16 %v6396
      %v6484 = vunpack.c.l.b16 %v6397
      %v6485 = vunpack.c.h.b16 %v6397
      %v6486 = vunpack.c.l.b16 %v6398
      %v6487 = vunpack.c.l.b16 %v6399
      %v6488 = vunpack.c.h.b16 %v6399
      %v6489 = vunpack.c.l.b16 %v6400
      %v6490 = vpack.c.b16 %v6469, %v6466
      %v6491 = vpack.c.b16 %v6470, %v6467
      %v6492 = vpack.c.b16 %v6471, %v6468
      %v6493 = vpack.c.b16 %v6475, %v6472
      %v6494 = vpack.c.b16 %v6476, %v6473
      %v6495 = vpack.c.b16 %v6477, %v6474
      %v6496 = vpack.c.b16 %v6481, %v6478
      %v6497 = vpack.c.b16 %v6482, %v6479
      %v6498 = vpack.c.b16 %v6483, %v6480
      %v6499 = vpack.c.b16 %v6487, %v6484
      %v6500 = vpack.c.b16 %v6488, %v6485
      %v6501 = vpack.c.b16 %v6489, %v6486
      %v6562 = vunpack.c.l.b16 %v6402
      %v6563 = vunpack.c.l.b16 %v6403
      %v6564 = vunpack.c.l.b16 %v6404
      %v6565 = vunpack.c.l.b16 %v6405
      %v6566 = vunpack.c.l.b16 %v6406
      %v6567 = vunpack.c.l.b16 %v6407
      %v6568 = vunpack.c.l.b16 %v6408
      %v6569 = vunpack.c.l.b16 %v6409
      %v6570 = vunpack.c.l.b16 %v6410
      %v6571 = vunpack.c.l.b16 %v6411
      %v6572 = vunpack.c.l.b16 %v6412
      %v6573 = vunpack.c.l.b16 %v6413
      %v6574 = vunpack.c.l.b16 %v6414
      %v6575 = vunpack.c.l.b16 %v6415
      %v6576 = vunpack.c.l.b16 %v6416
      %v6577 = vunpack.c.l.b16 %v6417
      %v6578 = vunpack.c.l.b16 %v6418
      %v6579 = vunpack.c.l.b16 %v6419
      %v6580 = vunpack.c.l.b16 %v6420
      %v6581 = vunpack.c.l.b16 %v6421
      %v6582 = vunpack.c.l.b16 %v6422
      %v6583 = vunpack.c.l.b16 %v6423
      %v6584 = vunpack.c.l.b16 %v6424
      %v6585 = vunpack.c.l.b16 %v6425
      %v6586 = vunpack.c.l.b16 %v6426
      %v6587 = vunpack.c.l.b16 %v6427
      %v6588 = vunpack.c.l.b16 %v6428
      %v6589 = vunpack.c.l.b16 %v6429
      %v6590 = vunpack.c.l.b16 %v6430
      %v6591 = vunpack.c.l.b16 %v6431
      %v6592 = vunpack.c.l.b16 %v6432
      %v6593 = vunpack.c.l.b16 %v6433
      %v6594 = vunpack.c.l.b16 %v6434
      %v6595 = vunpack.c.l.b16 %v6435
      %v6596 = vunpack.c.l.b16 %v6436
      %v6597 = vunpack.c.l.b16 %v6437
      %v6598 = vunpack.c.l.b16 %v6438
      %v6599 = vunpack.c.l.b16 %v6439
      %v6600 = vunpack.c.l.b16 %v6440
      %v6601 = vunpack.c.l.b16 %v6441
      %v6602 = vunpack.c.l.b16 %v6442
      %v6603 = vunpack.c.l.b16 %v6443
      %v6604 = vunpack.c.l.b16 %v6444
      %v6605 = vunpack.c.l.b16 %v6445
      %v6606 = vunpack.c.l.b16 %v6446
      %v6607 = vunpack.c.l.b16 %v6447
      %v6608 = vunpack.c.l.b16 %v6448
      %v6609 = vunpack.c.l.b16 %v6449
      %v6610 = vpack.c.b16 %v6563, %v6562
      %v6611 = vpack.c.b16 %v6565, %v6564
      %v6612 = vpack.c.b16 %v6567, %v6566
      %v6613 = vpack.c.b16 %v6569, %v6568
      %v6614 = vpack.c.b16 %v6571, %v6570
      %v6615 = vpack.c.b16 %v6573, %v6572
      %v6616 = vpack.c.b16 %v6575, %v6574
      %v6617 = vpack.c.b16 %v6577, %v6576
      %v6618 = vpack.c.b16 %v6579, %v6578
      %v6619 = vpack.c.b16 %v6581, %v6580
      %v6620 = vpack.c.b16 %v6583, %v6582
      %v6621 = vpack.c.b16 %v6585, %v6584
      %v6622 = vpack.c.b16 %v6587, %v6586
      %v6623 = vpack.c.b16 %v6589, %v6588
      %v6624 = vpack.c.b16 %v6591, %v6590
      %v6625 = vpack.c.b16 %v6593, %v6592
      %v6626 = vpack.c.b16 %v6595, %v6594
      %v6627 = vpack.c.b16 %v6597, %v6596
      %v6628 = vpack.c.b16 %v6599, %v6598
      %v6629 = vpack.c.b16 %v6601, %v6600
      %v6630 = vpack.c.b16 %v6603, %v6602
      %v6631 = vpack.c.b16 %v6605, %v6604
      %v6632 = vpack.c.b16 %v6607, %v6606
      %v6633 = vpack.c.b16 %v6609, %v6608
      %6658 = vmatprep.subr.bf16.mxu0 0
      %6659 = vmatpush1.bf16.msra.mxu0 %v6610
      %6660 = vmatprep.subr.bf16.mxu0 0
      %6661 = vmatpush1.bf16.msra.mxu0 %v6611
      %6662 = vmatprep.subr.bf16.mxu0 0
      %6663 = vmatpush1.bf16.msra.mxu0 %v6612
      %6664 = vmatprep.subr.bf16.mxu0 0
      %6665 = vmatpush1.bf16.msra.mxu0 %v6613
      %6666 = vmatprep.subr.bf16.mxu0 0
      %6667 = vmatpush1.bf16.msra.mxu0 %v6614
      %6668 = vmatprep.subr.bf16.mxu0 0
      %6669 = vmatpush1.bf16.msra.mxu0 %v6615
      %6670 = vmatprep.subr.bf16.mxu0 0
      %6671 = vmatpush1.bf16.msra.mxu0 %v6616
      %6672 = vmatprep.subr.bf16.mxu0 0
      %6673 = vmatpush1.bf16.msra.mxu0 %v6617
      %6674 = vmatprep.subr.bf16.mxu0 0
      %6675 = vmatpush1.bf16.msra.mxu0 %v6618
      %6676 = vmatprep.subr.bf16.mxu0 0
      %6677 = vmatpush1.bf16.msra.mxu0 %v6619
      %6678 = vmatprep.subr.bf16.mxu0 0
      %6679 = vmatpush1.bf16.msra.mxu0 %v6620
      %6680 = vmatprep.subr.bf16.mxu0 0
      %6681 = vmatpush1.bf16.msra.mxu0 %v6621
      %6682 = vmatprep.subr.bf16.mxu0 0
      %6683 = vmatpush1.bf16.msra.mxu0 %v6622
      %6684 = vmatprep.subr.bf16.mxu0 0
      %6685 = vmatpush1.bf16.msra.mxu0 %v6623
      %6686 = vmatprep.subr.bf16.mxu0 0
      %6687 = vmatpush1.bf16.msra.mxu0 %v6624
      %6688 = vmatprep.subr.bf16.mxu0 0
      %6689 = vmatpush1.bf16.msra.mxu0 %v6625
      %6690 = vmatprep.mubr.bf16.mxu0 %v6491
      %6691 = vmatmul.mubr.bf16.gmra.mrb[0].mxu0 %v6490
      %v6692 = vpop.f32.mrb[0].mxu0
      %v6693 = vadd.f32 0.0, %v6692
      %v6694 = vpop.f32.mrb[0].mxu0
      %v6695 = vpop.f32.mrb[0].mxu0
      %v6696 = vadd.f32 0.0, %v6695
      %v6697 = vpop.f32.mrb[0].mxu0
      %6698 = vmatprep.mubr.bf16.mxu0 %v6494
      %6699 = vmatmul.mubr.bf16.gmra.mrb[0].mxu0 %v6493
      %v6700 = vpop.f32.mrb[0].mxu0
      %v6701 = vadd.f32 0.0, %v6700
      %v6702 = vpop.f32.mrb[0].mxu0
      %v6703 = vpop.f32.mrb[0].mxu0
      %v6704 = vadd.f32 0.0, %v6703
      %v6705 = vpop.f32.mrb[0].mxu0
      %6706 = vmatprep.mubr.bf16.mxu0 %v6497
      %6707 = vmatmul.mubr.bf16.gmra.mrb[0].mxu0 %v6496
      %v6708 = vpop.f32.mrb[0].mxu0
      %v6709 = vadd.f32 0.0, %v6708
      %v6710 = vpop.f32.mrb[0].mxu0
      %v6711 = vpop.f32.mrb[0].mxu0
      %v6712 = vadd.f32 0.0, %v6711
      %v6713 = vpop.f32.mrb[0].mxu0
      %6714 = vmatprep.mubr.bf16.mxu0 %v6500
      %6715 = vmatmul.mubr.bf16.gmra.mrb[0].mxu0 %v6499
      %v6716 = vpop.f32.mrb[0].mxu0
      %v6717 = vadd.f32 0.0, %v6716
      %v6718 = vpop.f32.mrb[0].mxu0
      %v6719 = vpop.f32.mrb[0].mxu0
      %v6720 = vadd.f32 0.0, %v6719
      %v6721 = vpop.f32.mrb[0].mxu0
      %6722 = vdwg.mxu0
      %6723 = vmatprep.subr.bf16.mxu0 0
      %6724 = vmatpush1.bf16.msra.mxu0 %v6626
      %6725 = vmatprep.subr.bf16.mxu0 0
      %6726 = vmatpush1.bf16.msra.mxu0 %v6627
      %6727 = vmatprep.subr.bf16.mxu0 0
      %6728 = vmatpush1.bf16.msra.mxu0 %v6628
      %6729 = vmatprep.subr.bf16.mxu0 0
      %6730 = vmatpush1.bf16.msra.mxu0 %v6629
      %6731 = vmatprep.subr.bf16.mxu0 0
      %6732 = vmatpush1.bf16.msra.mxu0 %v6630
      %6733 = vmatprep.subr.bf16.mxu0 0
      %6734 = vmatpush1.bf16.msra.mxu0 %v6631
      %6735 = vmatprep.subr.bf16.mxu0 0
      %6736 = vmatpush1.bf16.msra.mxu0 %v6632
      %6737 = vmatprep.subr.bf16.mxu0 0
      %6738 = vmatpush1.bf16.msra.mxu0 %v6633
      %6739 = vmatprep.subr.bf16.mxu0 0
      %6740 = vmatpush1.bf16.msra.mxu0 0
      %6741 = vmatprep.subr.bf16.mxu0 0
      %6742 = vmatpush1.bf16.msra.mxu0 0
      %6743 = vmatprep.subr.bf16.mxu0 0
      %6744 = vmatpush1.bf16.msra.mxu0 0
      %6745 = vmatprep.subr.bf16.mxu0 0
      %6746 = vmatpush1.bf16.msra.mxu0 0
      %6747 = vmatprep.subr.bf16.mxu0 0
      %6748 = vmatpush1.bf16.msra.mxu0 0
      %6749 = vmatprep.subr.bf16.mxu0 0
      %6750 = vmatpush1.bf16.msra.mxu0 0
      %6751 = vmatprep.subr.bf16.mxu0 0
      %6752 = vmatpush1.bf16.msra.mxu0 0
      %6753 = vmatprep.subr.bf16.mxu0 0
      %6754 = vmatpush1.bf16.msra.mxu0 0
      %6755 = vmatprep.mubr.bf16.mxu0 0
      %6756 = vmatmul.mubr.bf16.gmra.mrb[0].mxu0 %v6492
      %v6757 = vpop.f32.mrb[0].mxu0
      %v6758 = vadd.f32 %v6693, %v6757
      %v6759 = vpop.f32.mrb[0].mxu0
      %v6760 = vpop.f32.mrb[0].mxu0
      %v6761 = vadd.f32 %v6696, %v6760
      %v6762 = vpop.f32.mrb[0].mxu0
      %6763 = vmatprep.mubr.bf16.mxu0 0
      %6764 = vmatmul.mubr.bf16.gmra.mrb[0].mxu0 %v6495
      %v6765 = vpop.f32.mrb[0].mxu0
      %v6766 = vadd.f32 %v6701, %v6765
      %v6767 = vpop.f32.mrb[0].mxu0
      %v6768 = vpop.f32.mrb[0].mxu0
      %v6769 = vadd.f32 %v6704, %v6768
      %v6770 = vpop.f32.mrb[0].mxu0
      %6771 = vmatprep.mubr.bf16.mxu0 0
      %6772 = vmatmul.mubr.bf16.gmra.mrb[0].mxu0 %v6498
      %v6773 = vpop.f32.mrb[0].mxu0
      %v6774 = vadd.f32 %v6709, %v6773
      %v6775 = vpop.f32.mrb[0].mxu0
      %v6776 = vpop.f32.mrb[0].mxu0
      %v6777 = vadd.f32 %v6712, %v6776
      %v6778 = vpop.f32.mrb[0].mxu0
      %6779 = vmatprep.mubr.bf16.mxu0 0
      %6780 = vmatmul.mubr.bf16.gmra.mrb[0].mxu0 %v6501
      %v6781 = vpop.f32.mrb[0].mxu0
      %v6782 = vadd.f32 %v6717, %v6781
      %v6783 = vpop.f32.mrb[0].mxu0
      %v6784 = vpop.f32.mrb[0].mxu0
      %v6785 = vadd.f32 %v6720, %v6784
      %v6786 = vpop.f32.mrb[0].mxu0
      %6787 = vdwg.mxu0
      %v6788 = vadd.f32 %v6354, %v6758
      %v6789 = vadd.f32 %v6357, %v6761
      %v6790 = vadd.f32 %v6362, %v6766
      %v6791 = vadd.f32 %v6365, %v6769
      %v6792 = vadd.f32 %v6370, %v6774
      %v6793 = vadd.f32 %v6373, %v6777
      %v6794 = vadd.f32 %v6378, %v6782
      %v6795 = vadd.f32 %v6381, %v6785
      %s6796 = scalar_lea.vmem %s4, 2
      %v6797 = vld [vmem:[%s6796] sm:$0x1]
      %v6799 = vlaneseq
      %v6800 = vshrl.u32 %v6799, 7
      %v6801 = vsub.s32 0, %v6800
      %v6802 = vrot.slane %v6797, %v6801
      %v6804 = vmul.f32 %v6788, %v6802
      %v6805 = vmul.f32 %v6789, %v6802
      %v6806 = vmul.f32 %v6790, %v6802
      %v6807 = vmul.f32 %v6791, %v6802
      %v6808 = vmul.f32 %v6792, %v6802
      %v6809 = vmul.f32 %v6793, %v6802
      %v6810 = vmul.f32 %v6794, %v6802
      %v6811 = vmul.f32 %v6795, %v6802
      %s6812 = scalar_lea.vmem %s5, 2
      %v6813 = vld [vmem:[%s6812] sm:$0x1]
      %v6815 = vlaneseq
      %v6816 = vshrl.u32 %v6815, 7
      %v6817 = vsub.s32 0, %v6816
      %v6818 = vrot.slane %v6813, %v6817
      %v6820 = vadd.f32 %v6804, %v6818
      %v6821 = vadd.f32 %v6805, %v6818
      %v6822 = vadd.f32 %v6806, %v6818
      %v6823 = vadd.f32 %v6807, %v6818
      %v6824 = vadd.f32 %v6808, %v6818
      %v6825 = vadd.f32 %v6809, %v6818
      %v6826 = vadd.f32 %v6810, %v6818
      %v6827 = vadd.f32 %v6811, %v6818
      %v6828 = vmax.f32 %v6820, 0.0
      %v6829 = vmax.f32 %v6821, 0.0
      %v6830 = vmax.f32 %v6822, 0.0
      %v6831 = vmax.f32 %v6823, 0.0
      %v6832 = vmax.f32 %v6824, 0.0
      %v6833 = vmax.f32 %v6825, 0.0
      %v6834 = vmax.f32 %v6826, 0.0
      %v6835 = vmax.f32 %v6827, 0.0
      %v6836 = vpack.c.bf16 %v6828, %v6828
      %v6837 = vpack.c.bf16 %v6829, %v6829
      %v6838 = vpack.c.bf16 %v6830, %v6830
      %v6839 = vpack.c.bf16 %v6831, %v6831
      %v6840 = vpack.c.bf16 %v6832, %v6832
      %v6841 = vpack.c.bf16 %v6833, %v6833
      %v6842 = vpack.c.bf16 %v6834, %v6834
      %v6843 = vpack.c.bf16 %v6835, %v6835
      %6844 = vst [vmem:[%s356 + $0x4] sm:$0xf] %v6836
      %6845 = vst [vmem:[%s356 + $0x10] sm:$0xf] %v6837
      %6846 = vst [vmem:[%s356 + $0x1c] sm:$0xf] %v6838
      %6847 = vst [vmem:[%s356 + $0x28] sm:$0xf] %v6839
      %6848 = vst [vmem:[%s356 + $0x34] sm:$0xf] %v6840
      %6849 = vst [vmem:[%s356 + $0x40] sm:$0xf] %v6841
      %6850 = vst [vmem:[%s356 + $0x4c] sm:$0xf] %v6842
      %6851 = vst [vmem:[%s356 + $0x58] sm:$0xf] %v6843
      %v6852 = vld [vmem:[%s356 + $0x4] sm:$0xf]
      %v6853 = vld [vmem:[%s356 + $0x10] sm:$0xf]
      %v6854 = vld [vmem:[%s356 + $0x1c] sm:$0xf]
      %v6855 = vld [vmem:[%s356 + $0x28] sm:$0xf]
      %v6856 = vld [vmem:[%s356 + $0x34] sm:$0xf]
      %v6857 = vld [vmem:[%s356 + $0x40] sm:$0xf]
      %v6858 = vld [vmem:[%s356 + $0x4c] sm:$0xf]
      %v6859 = vld [vmem:[%s356 + $0x58] sm:$0xf]
      %v6860 = vld [vmem:[%s6] sm:$0xf]
      %v6861 = vld [vmem:[%s6 + $0x4] sm:$0xf]
      %v6862 = vld [vmem:[%s6 + $0x8] sm:$0xf]
      %v6863 = vld [vmem:[%s6 + $0xc] sm:$0xf]
      %v6864 = vld [vmem:[%s6 + $0x10] sm:$0xf]
      %v6865 = vld [vmem:[%s6 + $0x14] sm:$0xf]
      %v6866 = vld [vmem:[%s6 + $0x18] sm:$0xf]
      %v6867 = vld [vmem:[%s6 + $0x1c] sm:$0xf]
      %v6868 = vld [vmem:[%s6 + $0x20] sm:$0xf]
      %v6869 = vld [vmem:[%s6 + $0x24] sm:$0xf]
      %v6870 = vld [vmem:[%s6 + $0x28] sm:$0xf]
      %v6871 = vld [vmem:[%s6 + $0x2c] sm:$0xf]
      %v6872 = vld [vmem:[%s6 + $0x30] sm:$0xf]
      %v6873 = vld [vmem:[%s6 + $0x34] sm:$0xf]
      %v6874 = vld [vmem:[%s6 + $0x38] sm:$0xf]
      %v6875 = vld [vmem:[%s6 + $0x3c] sm:$0xf]
      %v6876 = vld [vmem:[%s7] sm:$0x1]
      %v6878 = vlaneseq
      %v6879 = vshrl.u32 %v6878, 7
      %v6880 = vsub.s32 0, %v6879
      %v6881 = vrot.slane %v6876, %v6880
      %v6891 = vunpack.c.l.b16 %v6852
      %v6892 = vunpack.c.l.b16 %v6853
      %v6893 = vunpack.c.l.b16 %v6854
      %v6894 = vunpack.c.l.b16 %v6855
      %v6895 = vunpack.c.l.b16 %v6856
      %v6896 = vunpack.c.l.b16 %v6857
      %v6897 = vunpack.c.l.b16 %v6858
      %v6898 = vunpack.c.l.b16 %v6859
      %v6899 = vpack.c.b16 %v6892, %v6891
      %v6900 = vpack.c.b16 %v6894, %v6893
      %v6901 = vpack.c.b16 %v6896, %v6895
      %v6902 = vpack.c.b16 %v6898, %v6897
      %v6923 = vunpack.c.l.b16 %v6860
      %v6924 = vunpack.c.l.b16 %v6861
      %v6925 = vunpack.c.l.b16 %v6862
      %v6926 = vunpack.c.l.b16 %v6863
      %v6927 = vunpack.c.l.b16 %v6864
      %v6928 = vunpack.c.l.b16 %v6865
      %v6929 = vunpack.c.l.b16 %v6866
      %v6930 = vunpack.c.l.b16 %v6867
      %v6931 = vunpack.c.l.b16 %v6868
      %v6932 = vunpack.c.l.b16 %v6869
      %v6933 = vunpack.c.l.b16 %v6870
      %v6934 = vunpack.c.l.b16 %v6871
      %v6935 = vunpack.c.l.b16 %v6872
      %v6936 = vunpack.c.l.b16 %v6873
      %v6937 = vunpack.c.l.b16 %v6874
      %v6938 = vunpack.c.l.b16 %v6875
      %v6939 = vpack.c.b16 %v6924, %v6923
      %v6940 = vpack.c.b16 %v6926, %v6925
      %v6941 = vpack.c.b16 %v6928, %v6927
      %v6942 = vpack.c.b16 %v6930, %v6929
      %v6943 = vpack.c.b16 %v6932, %v6931
      %v6944 = vpack.c.b16 %v6934, %v6933
      %v6945 = vpack.c.b16 %v6936, %v6935
      %v6946 = vpack.c.b16 %v6938, %v6937
      %6955 = vmatprep.subr.bf16.mxu0 0
      %6956 = vmatpush1.bf16.msra.mxu0 %v6939
      %6957 = vmatprep.subr.bf16.mxu0 0
      %6958 = vmatpush1.bf16.msra.mxu0 %v6940
      %6959 = vmatprep.subr.bf16.mxu0 0
      %6960 = vmatpush1.bf16.msra.mxu0 %v6941
      %6961 = vmatprep.subr.bf16.mxu0 0
      %6962 = vmatpush1.bf16.msra.mxu0 %v6942
      %6963 = vmatprep.subr.bf16.mxu0 0
      %6964 = vmatpush1.bf16.msra.mxu0 %v6943
      %6965 = vmatprep.subr.bf16.mxu0 0
      %6966 = vmatpush1.bf16.msra.mxu0 %v6944
      %6967 = vmatprep.subr.bf16.mxu0 0
      %6968 = vmatpush1.bf16.msra.mxu0 %v6945
      %6969 = vmatprep.subr.bf16.mxu0 0
      %6970 = vmatpush1.bf16.msra.mxu0 %v6946
      %6971 = vmatprep.subr.bf16.mxu0 0
      %6972 = vmatpush1.bf16.msra.mxu0 0
      %6973 = vmatprep.subr.bf16.mxu0 0
      %6974 = vmatpush1.bf16.msra.mxu0 0
      %6975 = vmatprep.subr.bf16.mxu0 0
      %6976 = vmatpush1.bf16.msra.mxu0 0
      %6977 = vmatprep.subr.bf16.mxu0 0
      %6978 = vmatpush1.bf16.msra.mxu0 0
      %6979 = vmatprep.subr.bf16.mxu0 0
      %6980 = vmatpush1.bf16.msra.mxu0 0
      %6981 = vmatprep.subr.bf16.mxu0 0
      %6982 = vmatpush1.bf16.msra.mxu0 0
      %6983 = vmatprep.subr.bf16.mxu0 0
      %6984 = vmatpush1.bf16.msra.mxu0 0
      %6985 = vmatprep.subr.bf16.mxu0 0
      %6986 = vmatpush1.bf16.msra.mxu0 0
      %6987 = vmatprep.mubr.bf16.mxu0 0
      %6988 = vmatmul.mubr.bf16.gmra.mrb[0].mxu0 %v6899
      %v6989 = vpop.f32.mrb[0].mxu0
      %v6990 = vadd.f32 %v6881, %v6989
      %v6991 = vpop.f32.mrb[0].mxu0
      %v6992 = vpop.f32.mrb[0].mxu0
      %v6993 = vadd.f32 %v6881, %v6992
      %v6994 = vpop.f32.mrb[0].mxu0
      %6995 = vmatprep.mubr.bf16.mxu0 0
      %6996 = vmatmul.mubr.bf16.gmra.mrb[0].mxu0 %v6900
      %v6997 = vpop.f32.mrb[0].mxu0
      %v6998 = vadd.f32 %v6881, %v6997
      %v6999 = vpop.f32.mrb[0].mxu0
      %v7000 = vpop.f32.mrb[0].mxu0
      %v7001 = vadd.f32 %v6881, %v7000
      %v7002 = vpop.f32.mrb[0].mxu0
      %7003 = vmatprep.mubr.bf16.mxu0 0
      %7004 = vmatmul.mubr.bf16.gmra.mrb[0].mxu0 %v6901
      %v7005 = vpop.f32.mrb[0].mxu0
      %v7006 = vadd.f32 %v6881, %v7005
      %v7007 = vpop.f32.mrb[0].mxu0
      %v7008 = vpop.f32.mrb[0].mxu0
      %v7009 = vadd.f32 %v6881, %v7008
      %v7010 = vpop.f32.mrb[0].mxu0
      %7011 = vmatprep.mubr.bf16.mxu0 0
      %7012 = vmatmul.mubr.bf16.gmra.mrb[0].mxu0 %v6902
      %v7013 = vpop.f32.mrb[0].mxu0
      %v7014 = vadd.f32 %v6881, %v7013
      %v7015 = vpop.f32.mrb[0].mxu0
      %v7016 = vpop.f32.mrb[0].mxu0
      %v7017 = vadd.f32 %v6881, %v7016
      %v7018 = vpop.f32.mrb[0].mxu0
      %7019 = vdwg.mxu0
      %v7020 = vmul.f32 %v6990, 0.5
      %v7021 = vmul.f32 %v6993, 0.5
      %v7022 = vmul.f32 %v6998, 0.5
      %v7023 = vmul.f32 %v7001, 0.5
      %v7024 = vmul.f32 %v7006, 0.5
      %v7025 = vmul.f32 %v7009, 0.5
      %v7026 = vmul.f32 %v7014, 0.5
      %v7027 = vmul.f32 %v7017, 0.5
      %v7028 = vtanh.pop %v7020
      %v7029 = vtanh.pop %v7021
      %v7030 = vtanh.pop %v7022
      %v7031 = vtanh.pop %v7023
      %v7032 = vtanh.pop %v7024
      %v7033 = vtanh.pop %v7025
      %v7034 = vtanh.pop %v7026
      %v7035 = vtanh.pop %v7027
      %v7036 = vmul.f32 %v7028, 0.5
      %v7037 = vmul.f32 %v7029, 0.5
      %v7038 = vmul.f32 %v7030, 0.5
      %v7039 = vmul.f32 %v7031, 0.5
      %v7040 = vmul.f32 %v7032, 0.5
      %v7041 = vmul.f32 %v7033, 0.5
      %v7042 = vmul.f32 %v7034, 0.5
      %v7043 = vmul.f32 %v7035, 0.5
      %v7044 = vadd.f32 %v7036, 0.5
      %v7045 = vadd.f32 %v7037, 0.5
      %v7046 = vadd.f32 %v7038, 0.5
      %v7047 = vadd.f32 %v7039, 0.5
      %v7048 = vadd.f32 %v7040, 0.5
      %v7049 = vadd.f32 %v7041, 0.5
      %v7050 = vadd.f32 %v7042, 0.5
      %v7051 = vadd.f32 %v7043, 0.5
      %v7052 = vpack.c.bf16 %v7045, %v7044
      %v7053 = vpack.c.bf16 %v7047, %v7046
      %v7054 = vpack.c.bf16 %v7049, %v7048
      %v7055 = vpack.c.bf16 %v7051, %v7050
      %v7060 = vunpack.c.l.b16 %v7052
      %v7061 = vunpack.c.h.b16 %v7052
      %v7062 = vunpack.c.l.b16 %v7053
      %v7063 = vunpack.c.h.b16 %v7053
      %v7064 = vunpack.c.l.b16 %v7054
      %v7065 = vunpack.c.h.b16 %v7054
      %v7066 = vunpack.c.l.b16 %v7055
      %v7067 = vunpack.c.h.b16 %v7055
      %v7068 = vpack.c.b16 %v7060, %v7060
      %v7069 = vpack.c.b16 %v7061, %v7061
      %v7070 = vpack.c.b16 %v7062, %v7062
      %v7071 = vpack.c.b16 %v7063, %v7063
      %v7072 = vpack.c.b16 %v7064, %v7064
      %v7073 = vpack.c.b16 %v7065, %v7065
      %v7074 = vpack.c.b16 %v7066, %v7066
      %v7075 = vpack.c.b16 %v7067, %v7067
      %7084 = vst [vmem:[%s305] sm:$0xf] %v7068
      %7085 = vst [vmem:[%s305 + $0x4] sm:$0xf] %v7069
      %7086 = vst [vmem:[%s305 + $0x8] sm:$0xf] %v7070
      %7087 = vst [vmem:[%s305 + $0xc] sm:$0xf] %v7071
      %7088 = vst [vmem:[%s305 + $0x10] sm:$0xf] %v7072
      %7089 = vst [vmem:[%s305 + $0x14] sm:$0xf] %v7073
      %7090 = vst [vmem:[%s305 + $0x18] sm:$0xf] %v7074
      %7091 = vst [vmem:[%s305 + $0x1c] sm:$0xf] %v7075
      %p7092 = scmp.lt.s32.totalorder %s19, 1
      %s7093 = scalar_select %p7092, %s19, 1
      %s7094 = smul.addr %s7093, 8
      %s7095 = smul.addr %s7094, 4
      %s7096 = scalar_lea.vmem %s8, %s7095
      // Predicated region
      $region53: #{_lambda_.1} parent=51 // pred_check
        %p7097 = pneg %p210
      $region54: #{_lambda_.1} parent=51 // pred_check_branch
        %7099 = sbr.rel (%p7097) target = $region56
      $region55: #{_lambda_.1} parent=51 // pred_region
        _
      $region56: #{_lambda_.1} parent=51 // pred_fallthru
        _
    $region52: #{_lambda_.1} parent=5 // pred_fallthru
      _
    %p7100 = scmp.le.s32.totalorder 2, %s14
    // Predicated region
    $region57: #{_lambda_.1} parent=5 // pred_check
      %p7101 = pneg %p7100
    $region58: #{_lambda_.1} parent=5 // pred_check_branch
      %7103 = sbr.rel (%p7101) target = $region60
    $region59: #{_lambda_.1} parent=5 // pred_region
      %s7104 = ssub.s32 %s14, 2
      // Predicated region
      $region61: #{_lambda_.1} parent=59 // pred_check
        %p7105 = pneg %p216
      $region62: #{_lambda_.1} parent=59 // pred_check_branch
        %7107 = sbr.rel (%p7105) target = $region64
      $region63: #{_lambda_.1} parent=59 // pred_region
        %p7108 = scmp.lt.s32.totalorder %s20, 1
        %s7109 = scalar_select %p7108, %s20, 1
        %s7110 = smul.addr %s7109, 8
        %s7111 = smul.addr %s7110, 4
        %s7112 = scalar_lea.vmem %s8, %s7111
      $region64: #{_lambda_.1} parent=59 // pred_fallthru
        _
    $region60: #{_lambda_.1} parent=5 // pred_fallthru
      _
  $region6: #{_lambda_.1} parent=0 // loop_footer
    %s18 = sadd.s32 1, %s14
  $region7: #{_lambda_.1} parent=0 // loop_footer_branch
    %13 = sbr.rel target = $region3
  $region8: #{_lambda_.1} parent=0 // loop_exit
    _

</llo_original>
